<compile_context>
chip_gen: v7x
topology: tpu7x:2x2x1
jax: 0.10.0
libtpu: 0.0.40
codegen_flags: <defaults>
</compile_context>

<pallas_src>
import functools

import numpy as np
import jax
import jax.numpy as jnp
from jax import lax
from jax.experimental import pallas as pl
from jax.experimental.pallas import tpu as pltpu

# ----------------------------- configuration ---------------------------------
NODE_DIM = 52
EDGE_DIM = 10
CONV_DIM = 32          # must equal GRAPH_DIM for the reference math to work
GRAPH_DIM = 32
PROTEIN_DIM = 64
NUM_LAYER = 4
DMA_DEPTH = 2
PRED_N_LAYER = 2
BN_EPS = 1e-5
XCAT_DIM = NUM_LAYER * CONV_DIM          # 128: lane-dense concatenated features
_VMEM_LIMIT = 32 * 1024 * 1024           # explicit scoped-VMEM cap (v5e default is 16 MiB)

# dot_general dimension numbers
_NT = (((1,), (1,)), ((), ()))           # A @ B^T  (contract trailing dims)
_TN = (((0,), (0,)), ((), ()))           # A^T @ B  (contract leading dims)


# ----------------------------- small helpers ---------------------------------
def _elu(x):
    # Clamp the exp argument so the discarded negative branch never overflows.
    return jnp.where(x > 0, x, jnp.exp(jnp.minimum(x, 0.0)) - 1.0)


def _relu(x):
    return jnp.maximum(x, 0.0)


def _round_up(x, m):
    return ((x + m - 1) // m) * m


def _full_spec(a):
    """Whole-array VMEM block; same block at every grid step (resident reuse)."""
    nd = a.ndim
    return pl.BlockSpec(a.shape, lambda *_: (0,) * nd)


# ----------------------------- fused 4-layer GINE stack -----------------------
def _gine_stack_kernel(x_ref, ea_ref, goh_ref, soh_ref, *rest):
    o_ref = rest[-1]                      # [N, XCAT_DIM]
    prm = rest[:-1]                       # 9 refs per layer
    x = x_ref[...]                        # [N, NODE_DIM] f32
    ea = ea_ref[...]                      # [E, EDGE_DIM]
    goh = goh_ref[...]                    # [E, N]  one-hot gather (f32: exact)
    soh = soh_ref[...]                    # [N, E]  one-hot scatter-add
    for i in range(NUM_LAYER):
        we, be, w1, b1, w2, b2, eps, gam, bet = prm[9 * i:9 * i + 9]
        # edge Linear; message = ReLU(x_src + lin(edge_attr))
        e = jnp.dot(ea, we[...], preferred_element_type=jnp.float32) + be[...]
        x_src = jnp.dot(goh, x, preferred_element_type=jnp.float32)   # x[src]
        msg = _relu(x_src + e)
        # scatter-add to destination nodes
        agg = jnp.dot(soh, msg, preferred_element_type=jnp.float32)   # [N, Cin]
        h = x * (1.0 + eps[...]) + agg
        # GIN MLP: Linear -> ReLU -> Linear, then the outer F.relu of forward
        h = _relu(jnp.dot(h, w1[...],
                          preferred_element_type=jnp.float32) + b1[...])
        h = jnp.dot(h, w2[...], preferred_element_type=jnp.float32) + b2[...]
        h = _relu(h)
        # BatchNorm1d with training-mode batch statistics (biased variance)
        mu = jnp.mean(h, axis=0, keepdims=True)
        var = jnp.mean(jnp.square(h - mu), axis=0, keepdims=True)
        x = (h - mu) * lax.rsqrt(var + BN_EPS) * gam[...] + bet[...]
        # column-slice write into the concatenated [N, 128] feature buffer
        o_ref[:, i * CONV_DIM:(i + 1) * CONV_DIM] = x


def gine_stack(node_x, edge_attr, gather_oh, scatter_oh, convs):
    n_nodes = node_x.shape[0]
    inputs = [node_x, edge_attr, gather_oh, scatter_oh]
    for prm in convs:
        inputs += [prm["we"], prm["be"], prm["w1"], prm["b1"], prm["w2"],
                   prm["b2"], prm["eps"], prm["gamma"], prm["beta"]]
    return pl.pallas_call(
        _gine_stack_kernel,
        out_shape=jax.ShapeDtypeStruct((n_nodes, XCAT_DIM), jnp.float32),
        grid=(1,),
        in_specs=[_full_spec(a) for a in inputs],
        out_specs=pl.BlockSpec((n_nodes, XCAT_DIM), lambda i: (0, 0)),
        compiler_params=pltpu.CompilerParams(vmem_limit_bytes=_VMEM_LIMIT),
    )(*inputs)


# --------- fused global_add_pool + out_lin + super_final + prot transform -----
def _pool_head_prot_kernel(xcat_ref, poh_ref, w1_ref, b1_ref, w2_ref, b2_ref,
                           ws_ref, bs_ref, pfeat_ref, pw_ref, pb_ref,
                           sup_ref, prot_ref):
    # one [B,N]@[N,128] pool matmul over the concatenated layer features
    # == cat_i(global_add_pool(x_i)); then one lane-dense [B,128]@[128,32].
    g = jnp.dot(poh_ref[...], xcat_ref[...],
                preferred_element_type=jnp.float32)                  # [B, 128]
    h = _relu(jnp.dot(g, w1_ref[...],
                      preferred_element_type=jnp.float32) + b1_ref[...])
    h = jnp.dot(h, w2_ref[...], preferred_element_type=jnp.float32) + b2_ref[...]
    # super_final Linear followed by the F.elu applied in Affinity_pred_module
    sup_ref[...] = _elu(jnp.dot(h, ws_ref[...],
                                preferred_element_type=jnp.float32) + bs_ref[...])
    # trans_prot_ft[0] Linear + [1] ReLU (padded rows handled by masks later)
    prot_ref[...] = _relu(jnp.dot(pfeat_ref[...], pw_ref[...],
                                  preferred_element_type=jnp.float32) + pb_ref[...])


def pool_out_super_prot(xcat, pool_oh, prot_pad, params):
    n_graphs = pool_oh.shape[0]
    lp = prot_pad.shape[0]
    inputs = [xcat, pool_oh, params["out1_w"], params["out1_b"],
              params["out2_w"], params["out2_b"],
              params["sup_w"], params["sup_b"],
              prot_pad, params["prot_w"], params["prot_b"]]
    out_shape = (jax.ShapeDtypeStruct((n_graphs, GRAPH_DIM), jnp.float32),
                 jax.ShapeDtypeStruct((lp, GRAPH_DIM), jnp.float32))
    out_specs = (pl.BlockSpec((n_graphs, GRAPH_DIM), lambda i: (0, 0)),
                 pl.BlockSpec((lp, GRAPH_DIM), lambda i: (0, 0)))
    return pl.pallas_call(
        _pool_head_prot_kernel,
        out_shape=out_shape,
        grid=(1,),
        in_specs=[_full_spec(a) for a in inputs],
        out_specs=out_specs,
        compiler_params=pltpu.CompilerParams(vmem_limit_bytes=_VMEM_LIMIT),
    )(*inputs)


# ------------------ fused pairwise-pred + full DMA-GRU kernel -----------------
def _pairwise_dma_kernel(comp_ref, vmc_ref, prot_ref, smr_ref, smc_ref,
                         cw_ref, cb_ref, pw_w_ref, pw_b_ref, mw_ref, mb_ref,
                         hc1_w_ref, hc1_b_ref, hp1_w_ref, hp1_b_ref,
                         gih_w_ref, gih_b_ref, ghh_w_ref, ghh_b_ref,
                         pw_out, cf_out, pf_out):
    D = GRAPH_DIM
    comp_e = _elu(comp_ref[0])                     # [NP, D]
    vmask_c = vmc_ref[0]                           # [NP, 1]
    prot_e = prot_ref[...]                         # [LP, D]; elu(relu(x)) == relu(x)
    smr = smr_ref[...]                             # [1, LP]
    smc = smc_ref[...]                             # [LP, 1]

    # ---- pairwise interaction map: ONE sigmoid matmul; transpose reused ----
    s = lax.dot_general(comp_e, prot_e, _NT,
                        preferred_element_type=jnp.float32)          # [NP, LP]
    pw = jax.nn.sigmoid(s) * (vmask_c * smr)
    pw_out[0] = pw                                                   # lane-dense store
    pw_b16 = pw.astype(jnp.bfloat16)

    # ---- dma_gru ----
    c0 = (jnp.sum(comp_e * vmask_c, axis=0, keepdims=True) /
          jnp.sum(vmask_c, axis=0, keepdims=True))                   # [1, D]
    p0 = (jnp.sum(prot_e * smc, axis=0, keepdims=True) /
          jnp.sum(smc, axis=0, keepdims=True))                       # [1, D]
    m = c0 * p0

    def msoftmax(score, mask):
        s_max = jnp.max(score, axis=0, keepdims=True)
        e = jnp.exp(score - s_max) * mask
        return e / (jnp.sum(e, axis=0, keepdims=True) + 1e-6)

    cf = pf = None
    for it in range(DMA_DEPTH):
        # concatenated weight pairs: one 64-wide matmul + tanh per shared input
        th_c = jnp.tanh(jnp.dot(comp_e, cw_ref[it],
                                preferred_element_type=jnp.float32) + cb_ref[it])
        th_p = jnp.tanh(jnp.dot(prot_e, pw_w_ref[it],
                                preferred_element_type=jnp.float32) + pw_b_ref[it])
        th_m = jnp.tanh(jnp.dot(m, mw_ref[it],
                                preferred_element_type=jnp.float32) + mb_ref[it])
        tc, h_c = th_c[:, :D], th_c[:, D:]          # tanh(ctp(x)), tanh(hc0(x))
        tp, h_p = th_p[:, :D], th_p[:, D:]          # tanh(ptc(p)), tanh(hp0(p))
        m_c, m_p = th_m[:, :D], th_m[:, D:]         # tanh(mc1(m)), tanh(mp1(m))
        # attention propagation: bf16 MXU matmuls, f32 accumulation
        c_to_p = lax.dot_general(pw_b16, tc.astype(jnp.bfloat16), _TN,
                                 preferred_element_type=jnp.float32)  # pw^T @ tc -> [LP, D]
        p_to_c = jnp.dot(pw_b16, tp.astype(jnp.bfloat16),
                         preferred_element_type=jnp.float32)          # [NP, D]
        c_tmp = h_c * m_c * p_to_c                  # [NP, D]
        p_tmp = h_p * m_p * c_to_p                  # [LP, D]
        # hc1/hp1 Linear(D, 1) as lane reductions (stay in vregs)
        c_score = jnp.sum(c_tmp * hc1_w_ref[it], axis=-1, keepdims=True) + hc1_b_ref[it]
        p_score = jnp.sum(p_tmp * hp1_w_ref[it], axis=-1, keepdims=True) + hp1_b_ref[it]
        c_att = msoftmax(c_score, vmask_c)          # [NP, 1]
        p_att = msoftmax(p_score, smc)              # [LP, 1]
        # attention pooling as masked VPU reductions
        cf = jnp.sum(comp_e * c_att, axis=0, keepdims=True)           # [1, D]
        pf = jnp.sum(prot_e * p_att, axis=0, keepdims=True)           # [1, D]
        # GRUCell(input=m, hidden=cf*pf)
        hgru = cf * pf
        gi = jnp.dot(m, gih_w_ref[...],
                     preferred_element_type=jnp.float32) + gih_b_ref[...]
        gh = jnp.dot(hgru, ghh_w_ref[...],
                     preferred_element_type=jnp.float32) + ghh_b_ref[...]
        r = jax.nn.sigmoid(gi[:, :D] + gh[:, :D])
        z = jax.nn.sigmoid(gi[:, D:2 * D] + gh[:, D:2 * D])
        n = jnp.tanh(gi[:, 2 * D:] + r * gh[:, 2 * D:])
        m = (1.0 - z) * n + z * hgru

    cf_out[0] = cf
    pf_out[0] = pf


def pairwise_dma(comp, vmask, prot, smr, smc,
                 cw, cb, pww, pwb, mw, mb, hc1_w, hc1_b, hp1_w, hp1_b, gru):
    B, n_pad, D = comp.shape
    lp = prot.shape[0]
    in_arrays = [comp, vmask, prot, smr, smc,
                 cw, cb, pww, pwb, mw, mb,
                 hc1_w, hc1_b, hp1_w, hp1_b,
                 gru["ih_w"], gru["ih_b"], gru["hh_w"], gru["hh_b"]]
    in_specs = ([pl.BlockSpec((1, n_pad, D), lambda b: (b, 0, 0)),
                 pl.BlockSpec((1, n_pad, 1), lambda b: (b, 0, 0))] +
                [_full_spec(a) for a in in_arrays[2:]])
    out_shape = (jax.ShapeDtypeStruct((B, n_pad, lp), jnp.float32),
                 jax.ShapeDtypeStruct((B, 1, D), jnp.float32),
                 jax.ShapeDtypeStruct((B, 1, D), jnp.float32))
    out_specs = (pl.BlockSpec((1, n_pad, lp), lambda b: (b, 0, 0)),
                 pl.BlockSpec((1, 1, D), lambda b: (b, 0, 0)),
                 pl.BlockSpec((1, 1, D), lambda b: (b, 0, 0)))
    return pl.pallas_call(
        _pairwise_dma_kernel,
        out_shape=out_shape,
        grid=(B,),
        in_specs=in_specs,
        out_specs=out_specs,
        compiler_params=pltpu.CompilerParams(
            dimension_semantics=("parallel",),
            vmem_limit_bytes=_VMEM_LIMIT),
    )(*in_arrays)


# ----------------------------- fused prediction head --------------------------
def _pred_head_kernel(*refs):
    k_ref = refs[0]
    o_ref = refs[-1]
    wb = refs[1:-1]
    n_lin = len(wb) // 2
    h = k_ref[...]
    for i in range(n_lin):
        w = wb[2 * i][...]
        b = wb[2 * i + 1][...]
        if i == 0:
            # the only wide-K matmul in the head: run it in bf16 on the MXU
            h = jnp.dot(h.astype(jnp.bfloat16), w.astype(jnp.bfloat16),
                        preferred_element_type=jnp.float32) + b
        else:
            h = jnp.dot(h, w, preferred_element_type=jnp.float32) + b
        if i < n_lin - 1:
            h = _elu(h)
    o_ref[...] = h


def pred_head(kron, head_params):
    B = kron.shape[0]
    inputs = [kron] + list(head_params)
    return pl.pallas_call(
        _pred_head_kernel,
        out_shape=jax.ShapeDtypeStruct((B, 1), jnp.float32),
        grid=(1,),
        in_specs=[_full_spec(a) for a in inputs],
        out_specs=pl.BlockSpec((B, 1), lambda i: (0, 0)),
        compiler_params=pltpu.CompilerParams(vmem_limit_bytes=_VMEM_LIMIT),
    )(*inputs)


# ----------------------------- parameters ------------------------------------
def _init_linear(key, fan_in, fan_out):
    k1, k2 = jax.random.split(key)
    w = jax.random.normal(k1, (fan_in, fan_out), jnp.float32) / np.sqrt(fan_in)
    b = 0.01 * jax.random.normal(k2, (1, fan_out), jnp.float32)
    return w, b


def init_params(key):
    keys = iter(jax.random.split(key, 64))
    p = {}
    convs = []
    for i in range(NUM_LAYER):
        in_dim = NODE_DIM if i == 0 else CONV_DIM
        we, be = _init_linear(next(keys), EDGE_DIM, in_dim)
        w1, b1 = _init_linear(next(keys), in_dim, CONV_DIM)
        w2, b2 = _init_linear(next(keys), CONV_DIM, CONV_DIM)
        convs.append({"we": we, "be": be, "w1": w1, "b1": b1, "w2": w2, "b2": b2,
                      "eps": jnp.zeros((1, 1), jnp.float32),     # train_eps init 0
                      "gamma": jnp.ones((1, CONV_DIM), jnp.float32),
                      "beta": jnp.zeros((1, CONV_DIM), jnp.float32)})
    p["convs"] = convs
    p["out1_w"], p["out1_b"] = _init_linear(next(keys), CONV_DIM * NUM_LAYER,
                                            GRAPH_DIM)
    p["out2_w"], p["out2_b"] = _init_linear(next(keys), GRAPH_DIM, GRAPH_DIM)
    p["sup_w"], p["sup_b"] = _init_linear(next(keys), GRAPH_DIM, GRAPH_DIM)
    p["prot_w"], p["prot_b"] = _init_linear(next(keys), PROTEIN_DIM, GRAPH_DIM)

    D = GRAPH_DIM
    dma = {}
    for name in ("ctp", "ptc", "mc1", "mp1", "hc0", "hp0"):
        ws, bs = [], []
        for _ in range(DMA_DEPTH):
            w, b = _init_linear(next(keys), D, D)
            ws.append(w)
            bs.append(b)
        dma[name + "_w"] = jnp.stack(ws)              # [T, D, D]
        dma[name + "_b"] = jnp.stack(bs)              # [T, 1, D]
    for name in ("hc1", "hp1"):
        ws, bs = [], []
        for _ in range(DMA_DEPTH):
            w, b = _init_linear(next(keys), D, 1)     # Linear(D, 1)
            ws.append(w.T.reshape(1, D))
            bs.append(b.reshape(1, 1))
        dma[name + "_w"] = jnp.stack(ws)              # [T, 1, D]
        dma[name + "_b"] = jnp.stack(bs)              # [T, 1, 1]
    p["dma"] = dma

    gih_w, gih_b = _init_linear(next(keys), D, 3 * D)
    ghh_w, ghh_b = _init_linear(next(keys), D, 3 * D)
    p["gru"] = {"ih_w": gih_w, "ih_b": gih_b, "hh_w": ghh_w, "hh_b": ghh_b}

    head = []
    w, b = _init_linear(next(keys), 2 * D * D, D)
    head += [w, b]
    for _ in range(PRED_N_LAYER):
        w, b = _init_linear(next(keys), D, D)
        head += [w, b]
    w, b = _init_linear(next(keys), D, 1)
    head += [w, b]
    p["head"] = head
    return p


# ----------------------------- graph preprocessing (host side) ----------------
def build_graph_constants(edge_index, batch, n_nodes):
    src = np.asarray(edge_index[0])
    dst = np.asarray(edge_index[1])
    batch = np.asarray(batch)
    B = int(batch.max()) + 1
    # f32 one-hots: exact 0/1 selection for gather / scatter-add / pool.
    gather_oh = (src[:, None] == np.arange(n_nodes)[None, :]).astype(np.float32)
    scatter_oh = (np.arange(n_nodes)[:, None] == dst[None, :]).astype(np.float32)
    pool_oh = (np.arange(B)[:, None] == batch[None, :]).astype(np.float32)
    counts = np.bincount(batch, minlength=B)
    n_max = int(counts.max())
    pos = np.concatenate([np.arange(c) for c in counts])
    return (jnp.asarray(gather_oh), jnp.asarray(scatter_oh), jnp.asarray(pool_oh),
            jnp.asarray(batch, jnp.int32), jnp.asarray(pos, jnp.int32),
            B, n_max)


# ----------------------------- forward -----------------------------------------
@functools.partial(jax.jit, static_argnames=("n_graphs", "n_max"))
def gin_ac_forward(params, node_x, edge_attr, prot_feat,
                   gather_oh, scatter_oh, pool_oh, batch_ids, pos_ids,
                   n_graphs, n_max):
    B = n_graphs
    L = prot_feat.shape[0]
    LP = max(128, _round_up(L, 128))    # lane-dense pairwise columns
    NP = _round_up(n_max, 8)            # sublane-dense dense-batch rows

    # --- fused 4-layer GINE stack: one call, lane-dense [N, 128] output ---
    xcat = gine_stack(node_x, edge_attr, gather_oh, scatter_oh, params["convs"])
    x_last = xcat[:, (NUM_LAYER - 1) * CONV_DIM:]                    # [N, C]

    # --- pad protein to LP; masks cover the padding ---
    prot_pad = jnp.zeros((LP, PROTEIN_DIM), jnp.float32).at[:L].set(prot_feat)
    smask_col = (jnp.arange(LP) < L).astype(jnp.float32).reshape(LP, 1)
    smask_row = (jnp.arange(LP) < L).astype(jnp.float32).reshape(1, LP)

    # --- pool + out_lin + super_final + protein transform: one fused call ---
    sup, prot = pool_out_super_prot(xcat, pool_oh, prot_pad, params)

    # --- to_dense_batch (data-dependent scatter: JAX glue) ---
    atom_feat = jnp.zeros((B, NP, CONV_DIM),
                          jnp.float32).at[batch_ids, pos_ids].set(x_last)
    atom_mask = jnp.zeros((B, NP, 1),
                          jnp.float32).at[batch_ids, pos_ids, 0].set(1.0)

    # --- concatenate DMA weight pairs that share an input (64-wide matmuls) ---
    dma = params["dma"]
    cw = jnp.concatenate([dma["ctp_w"], dma["hc0_w"]], axis=-1)      # [T, D, 2D]
    cb = jnp.concatenate([dma["ctp_b"], dma["hc0_b"]], axis=-1)      # [T, 1, 2D]
    pww = jnp.concatenate([dma["ptc_w"], dma["hp0_w"]], axis=-1)
    pwb = jnp.concatenate([dma["ptc_b"], dma["hp0_b"]], axis=-1)
    mw = jnp.concatenate([dma["mc1_w"], dma["mp1_w"]], axis=-1)
    mb = jnp.concatenate([dma["mc1_b"], dma["mp1_b"]], axis=-1)

    # --- fused pairwise map + DMA-GRU attention loop (grid over batch) ---
    pairwise_p, cf, pf = pairwise_dma(
        atom_feat, atom_mask, prot, smask_row, smask_col,
        cw, cb, pww, pwb, mw, mb,
        dma["hc1_w"], dma["hc1_b"], dma["hp1_w"], dma["hp1_b"], params["gru"])
    cf = cf.reshape(B, GRAPH_DIM)
    pf = pf.reshape(B, GRAPH_DIM)
    pairwise = pairwise_p[:, :n_max, :L]            # strip lane/sublane padding

    # --- kroneck feature (outer product + flatten: pure layout glue in XLA) ---
    cf_cat = jnp.concatenate([cf, sup], axis=1)                      # [B, 2D]
    kron = _elu((cf_cat[:, :, None] * pf[:, None, :]).reshape(B, -1))  # [B, 2D*D]

    # --- fused W_out prediction head ---
    affinity = pred_head(kron, params["head"])                       # [B, 1]
    return affinity, pairwise


# ----------------------------- main -------------------------------------------
if __name__ == "__main__":
    key = jax.random.PRNGKey(0)
    kp, kx, ke, kprot = jax.random.split(key, 4)
    params = init_params(kp)

    # two small graphs: 5 and 7 nodes, bidirectional ring edges
    n_per_graph = [5, 7]
    N = sum(n_per_graph)
    batch = np.concatenate(
        [np.full(n, g, np.int32) for g, n in enumerate(n_per_graph)])
    src_list, dst_list = [], []
    offset = 0
    for n in n_per_graph:
        for a in range(n):
            b_ = (a + 1) % n
            src_list += [offset + a, offset + b_]
            dst_list += [offset + b_, offset + a]
        offset += n
    edge_index = np.array([src_list, dst_list], dtype=np.int32)
    E = edge_index.shape[1]

    node_x = jax.random.normal(kx, (N, NODE_DIM), jnp.float32)
    edge_attr = jax.random.normal(ke, (E, EDGE_DIM), jnp.float32)
    L = 8
    prot_feat = jax.random.normal(kprot, (L, PROTEIN_DIM), jnp.float32)

    (gather_oh, scatter_oh, pool_oh, batch_ids, pos_ids,
     B, Nmax) = build_graph_constants(edge_index, batch, N)

    affinity_pred, pairwise_pred = gin_ac_forward(
        params, node_x, edge_attr, prot_feat,
        gather_oh, scatter_oh, pool_oh, batch_ids, pos_ids,
        n_graphs=B, n_max=Nmax)
    jax.block_until_ready((affinity_pred, pairwise_pred))

    assert affinity_pred.shape == (B, 1)
    assert pairwise_pred.shape == (B, Nmax, L)
    assert np.all(np.isfinite(np.asarray(affinity_pred)))
    assert np.all(np.isfinite(np.asarray(pairwise_pred)))
    print("KERNEL_OK")
</pallas_src>

<mosaic_0001>
module attributes {stable_mosaic.version = 11 : i64} {
  func.func @_gine_stack_kernel(%arg0: i32, %arg1: memref<12x52xf32, #tpu.memory_space<vmem>>, %arg2: memref<24x10xf32, #tpu.memory_space<vmem>>, %arg3: memref<24x12xf32, #tpu.memory_space<vmem>>, %arg4: memref<12x24xf32, #tpu.memory_space<vmem>>, %arg5: memref<10x52xf32, #tpu.memory_space<vmem>>, %arg6: memref<1x52xf32, #tpu.memory_space<vmem>>, %arg7: memref<52x32xf32, #tpu.memory_space<vmem>>, %arg8: memref<1x32xf32, #tpu.memory_space<vmem>>, %arg9: memref<32x32xf32, #tpu.memory_space<vmem>>, %arg10: memref<1x32xf32, #tpu.memory_space<vmem>>, %arg11: memref<1x1xf32, #tpu.memory_space<vmem>>, %arg12: memref<1x32xf32, #tpu.memory_space<vmem>>, %arg13: memref<1x32xf32, #tpu.memory_space<vmem>>, %arg14: memref<10x32xf32, #tpu.memory_space<vmem>>, %arg15: memref<1x32xf32, #tpu.memory_space<vmem>>, %arg16: memref<32x32xf32, #tpu.memory_space<vmem>>, %arg17: memref<1x32xf32, #tpu.memory_space<vmem>>, %arg18: memref<32x32xf32, #tpu.memory_space<vmem>>, %arg19: memref<1x32xf32, #tpu.memory_space<vmem>>, %arg20: memref<1x1xf32, #tpu.memory_space<vmem>>, %arg21: memref<1x32xf32, #tpu.memory_space<vmem>>, %arg22: memref<1x32xf32, #tpu.memory_space<vmem>>, %arg23: memref<10x32xf32, #tpu.memory_space<vmem>>, %arg24: memref<1x32xf32, #tpu.memory_space<vmem>>, %arg25: memref<32x32xf32, #tpu.memory_space<vmem>>, %arg26: memref<1x32xf32, #tpu.memory_space<vmem>>, %arg27: memref<32x32xf32, #tpu.memory_space<vmem>>, %arg28: memref<1x32xf32, #tpu.memory_space<vmem>>, %arg29: memref<1x1xf32, #tpu.memory_space<vmem>>, %arg30: memref<1x32xf32, #tpu.memory_space<vmem>>, %arg31: memref<1x32xf32, #tpu.memory_space<vmem>>, %arg32: memref<10x32xf32, #tpu.memory_space<vmem>>, %arg33: memref<1x32xf32, #tpu.memory_space<vmem>>, %arg34: memref<32x32xf32, #tpu.memory_space<vmem>>, %arg35: memref<1x32xf32, #tpu.memory_space<vmem>>, %arg36: memref<32x32xf32, #tpu.memory_space<vmem>>, %arg37: memref<1x32xf32, #tpu.memory_space<vmem>>, %arg38: memref<1x1xf32, #tpu.memory_space<vmem>>, %arg39: memref<1x32xf32, #tpu.memory_space<vmem>>, %arg40: memref<1x32xf32, #tpu.memory_space<vmem>>, %arg41: memref<12x128xf32, #tpu.memory_space<vmem>>) attributes {dimension_semantics = [#tpu.dimension_semantics<arbitrary>], iteration_bounds = array<i64: 1>, scalar_prefetch = 0 : i64, scratch_operands = 0 : i64, tpu.core_type = #tpu.core_type<tc>, window_params = [{pipeline_mode = #tpu.pipeline_mode<synchronous>, transform_indices = @transform_0, window_bounds = array<i64: 12, 52>}, {pipeline_mode = #tpu.pipeline_mode<synchronous>, transform_indices = @transform_1, window_bounds = array<i64: 24, 10>}, {pipeline_mode = #tpu.pipeline_mode<synchronous>, transform_indices = @transform_2, window_bounds = array<i64: 24, 12>}, {pipeline_mode = #tpu.pipeline_mode<synchronous>, transform_indices = @transform_3, window_bounds = array<i64: 12, 24>}, {pipeline_mode = #tpu.pipeline_mode<synchronous>, transform_indices = @transform_4, window_bounds = array<i64: 10, 52>}, {pipeline_mode = #tpu.pipeline_mode<synchronous>, transform_indices = @transform_5, window_bounds = array<i64: 1, 52>}, {pipeline_mode = #tpu.pipeline_mode<synchronous>, transform_indices = @transform_6, window_bounds = array<i64: 52, 32>}, {pipeline_mode = #tpu.pipeline_mode<synchronous>, transform_indices = @transform_7, window_bounds = array<i64: 1, 32>}, {pipeline_mode = #tpu.pipeline_mode<synchronous>, transform_indices = @transform_8, window_bounds = array<i64: 32, 32>}, {pipeline_mode = #tpu.pipeline_mode<synchronous>, transform_indices = @transform_9, window_bounds = array<i64: 1, 32>}, {pipeline_mode = #tpu.pipeline_mode<synchronous>, transform_indices = @transform_10, window_bounds = array<i64: 1, 1>}, {pipeline_mode = #tpu.pipeline_mode<synchronous>, transform_indices = @transform_11, window_bounds = array<i64: 1, 32>}, {pipeline_mode = #tpu.pipeline_mode<synchronous>, transform_indices = @transform_12, window_bounds = array<i64: 1, 32>}, {pipeline_mode = #tpu.pipeline_mode<synchronous>, transform_indices = @transform_13, window_bounds = array<i64: 10, 32>}, {pipeline_mode = #tpu.pipeline_mode<synchronous>, transform_indices = @transform_14, window_bounds = array<i64: 1, 32>}, {pipeline_mode = #tpu.pipeline_mode<synchronous>, transform_indices = @transform_15, window_bounds = array<i64: 32, 32>}, {pipeline_mode = #tpu.pipeline_mode<synchronous>, transform_indices = @transform_16, window_bounds = array<i64: 1, 32>}, {pipeline_mode = #tpu.pipeline_mode<synchronous>, transform_indices = @transform_17, window_bounds = array<i64: 32, 32>}, {pipeline_mode = #tpu.pipeline_mode<synchronous>, transform_indices = @transform_18, window_bounds = array<i64: 1, 32>}, {pipeline_mode = #tpu.pipeline_mode<synchronous>, transform_indices = @transform_19, window_bounds = array<i64: 1, 1>}, {pipeline_mode = #tpu.pipeline_mode<synchronous>, transform_indices = @transform_20, window_bounds = array<i64: 1, 32>}, {pipeline_mode = #tpu.pipeline_mode<synchronous>, transform_indices = @transform_21, window_bounds = array<i64: 1, 32>}, {pipeline_mode = #tpu.pipeline_mode<synchronous>, transform_indices = @transform_22, window_bounds = array<i64: 10, 32>}, {pipeline_mode = #tpu.pipeline_mode<synchronous>, transform_indices = @transform_23, window_bounds = array<i64: 1, 32>}, {pipeline_mode = #tpu.pipeline_mode<synchronous>, transform_indices = @transform_24, window_bounds = array<i64: 32, 32>}, {pipeline_mode = #tpu.pipeline_mode<synchronous>, transform_indices = @transform_25, window_bounds = array<i64: 1, 32>}, {pipeline_mode = #tpu.pipeline_mode<synchronous>, transform_indices = @transform_26, window_bounds = array<i64: 32, 32>}, {pipeline_mode = #tpu.pipeline_mode<synchronous>, transform_indices = @transform_27, window_bounds = array<i64: 1, 32>}, {pipeline_mode = #tpu.pipeline_mode<synchronous>, transform_indices = @transform_28, window_bounds = array<i64: 1, 1>}, {pipeline_mode = #tpu.pipeline_mode<synchronous>, transform_indices = @transform_29, window_bounds = array<i64: 1, 32>}, {pipeline_mode = #tpu.pipeline_mode<synchronous>, transform_indices = @transform_30, window_bounds = array<i64: 1, 32>}, {pipeline_mode = #tpu.pipeline_mode<synchronous>, transform_indices = @transform_31, window_bounds = array<i64: 10, 32>}, {pipeline_mode = #tpu.pipeline_mode<synchronous>, transform_indices = @transform_32, window_bounds = array<i64: 1, 32>}, {pipeline_mode = #tpu.pipeline_mode<synchronous>, transform_indices = @transform_33, window_bounds = array<i64: 32, 32>}, {pipeline_mode = #tpu.pipeline_mode<synchronous>, transform_indices = @transform_34, window_bounds = array<i64: 1, 32>}, {pipeline_mode = #tpu.pipeline_mode<synchronous>, transform_indices = @transform_35, window_bounds = array<i64: 32, 32>}, {pipeline_mode = #tpu.pipeline_mode<synchronous>, transform_indices = @transform_36, window_bounds = array<i64: 1, 32>}, {pipeline_mode = #tpu.pipeline_mode<synchronous>, transform_indices = @transform_37, window_bounds = array<i64: 1, 1>}, {pipeline_mode = #tpu.pipeline_mode<synchronous>, transform_indices = @transform_38, window_bounds = array<i64: 1, 32>}, {pipeline_mode = #tpu.pipeline_mode<synchronous>, transform_indices = @transform_39, window_bounds = array<i64: 1, 32>}, {pipeline_mode = #tpu.pipeline_mode<synchronous>, transform_indices = @transform_40, window_bounds = array<i64: 12, 128>}]} {
    %c0 = arith.constant 0 : index
    %c0_0 = arith.constant 0 : index
    %0 = vector.load %arg1[%c0, %c0_0] : memref<12x52xf32, #tpu.memory_space<vmem>>, vector<12x52xf32>
    %c0_1 = arith.constant 0 : index
    %c0_2 = arith.constant 0 : index
    %1 = vector.load %arg2[%c0_1, %c0_2] : memref<24x10xf32, #tpu.memory_space<vmem>>, vector<24x10xf32>
    %c0_3 = arith.constant 0 : index
    %c0_4 = arith.constant 0 : index
    %2 = vector.load %arg3[%c0_3, %c0_4] : memref<24x12xf32, #tpu.memory_space<vmem>>, vector<24x12xf32>
    %c0_5 = arith.constant 0 : index
    %c0_6 = arith.constant 0 : index
    %3 = vector.load %arg4[%c0_5, %c0_6] : memref<12x24xf32, #tpu.memory_space<vmem>>, vector<12x24xf32>
    %c0_7 = arith.constant 0 : index
    %c0_8 = arith.constant 0 : index
    %4 = vector.load %arg5[%c0_7, %c0_8] : memref<10x52xf32, #tpu.memory_space<vmem>>, vector<10x52xf32>
    %cst = arith.constant dense<0.000000e+00> : vector<24x52xf32>
    %5 = tpu.matmul %1, %4, %cst {dimension_numbers = #tpu.dot_dimension_numbers<[1], [0], [0], [1], [0, 0, 1, 1], [], []>} : vector<24x10xf32>, vector<10x52xf32>, vector<24x52xf32> -> vector<24x52xf32>
    %c0_9 = arith.constant 0 : index
    %c0_10 = arith.constant 0 : index
    %6 = vector.load %arg6[%c0_9, %c0_10] : memref<1x52xf32, #tpu.memory_space<vmem>>, vector<1x52xf32>
    %7 = vector.broadcast %6 : vector<1x52xf32> to vector<24x52xf32>
    %8 = arith.addf %5, %7 : vector<24x52xf32>
    %cst_11 = arith.constant dense<0.000000e+00> : vector<24x52xf32>
    %9 = tpu.matmul %2, %0, %cst_11 {dimension_numbers = #tpu.dot_dimension_numbers<[1], [0], [0], [1], [0, 0, 1, 1], [], []>} : vector<24x12xf32>, vector<12x52xf32>, vector<24x52xf32> -> vector<24x52xf32>
    %10 = arith.addf %9, %8 : vector<24x52xf32>
    %cst_12 = arith.constant 0.000000e+00 : f32
    %11 = vector.broadcast %cst_12 : f32 to vector<24x52xf32>
    %12 = arith.maximumf %10, %11 : vector<24x52xf32>
    %cst_13 = arith.constant dense<0.000000e+00> : vector<12x52xf32>
    %13 = tpu.matmul %3, %12, %cst_13 {dimension_numbers = #tpu.dot_dimension_numbers<[1], [0], [0], [1], [0, 0, 1, 1], [], []>} : vector<12x24xf32>, vector<24x52xf32>, vector<12x52xf32> -> vector<12x52xf32>
    %c0_14 = arith.constant 0 : index
    %c0_15 = arith.constant 0 : index
    %14 = vector.load %arg11[%c0_14, %c0_15] : memref<1x1xf32, #tpu.memory_space<vmem>>, vector<1x1xf32>
    %cst_16 = arith.constant 1.000000e+00 : f32
    %15 = vector.broadcast %cst_16 : f32 to vector<1x1xf32>
    %16 = arith.addf %15, %14 : vector<1x1xf32>
    %17 = vector.broadcast %16 : vector<1x1xf32> to vector<12x52xf32>
    %18 = arith.mulf %0, %17 : vector<12x52xf32>
    %19 = arith.addf %18, %13 : vector<12x52xf32>
    %c0_17 = arith.constant 0 : index
    %c0_18 = arith.constant 0 : index
    %20 = vector.load %arg7[%c0_17, %c0_18] : memref<52x32xf32, #tpu.memory_space<vmem>>, vector<52x32xf32>
    %cst_19 = arith.constant dense<0.000000e+00> : vector<12x32xf32>
    %21 = tpu.matmul %19, %20, %cst_19 {dimension_numbers = #tpu.dot_dimension_numbers<[1], [0], [0], [1], [0, 0, 1, 1], [], []>} : vector<12x52xf32>, vector<52x32xf32>, vector<12x32xf32> -> vector<12x32xf32>
    %c0_20 = arith.constant 0 : index
    %c0_21 = arith.constant 0 : index
    %22 = vector.load %arg8[%c0_20, %c0_21] : memref<1x32xf32, #tpu.memory_space<vmem>>, vector<1x32xf32>
    %23 = vector.broadcast %22 : vector<1x32xf32> to vector<12x32xf32>
    %24 = arith.addf %21, %23 : vector<12x32xf32>
    %cst_22 = arith.constant 0.000000e+00 : f32
    %25 = vector.broadcast %cst_22 : f32 to vector<12x32xf32>
    %26 = arith.maximumf %24, %25 : vector<12x32xf32>
    %c0_23 = arith.constant 0 : index
    %c0_24 = arith.constant 0 : index
    %27 = vector.load %arg9[%c0_23, %c0_24] : memref<32x32xf32, #tpu.memory_space<vmem>>, vector<32x32xf32>
    %cst_25 = arith.constant dense<0.000000e+00> : vector<12x32xf32>
    %28 = tpu.matmul %26, %27, %cst_25 {dimension_numbers = #tpu.dot_dimension_numbers<[1], [0], [0], [1], [0, 0, 1, 1], [], []>} : vector<12x32xf32>, vector<32x32xf32>, vector<12x32xf32> -> vector<12x32xf32>
    %c0_26 = arith.constant 0 : index
    %c0_27 = arith.constant 0 : index
    %29 = vector.load %arg10[%c0_26, %c0_27] : memref<1x32xf32, #tpu.memory_space<vmem>>, vector<1x32xf32>
    %30 = vector.broadcast %29 : vector<1x32xf32> to vector<12x32xf32>
    %31 = arith.addf %28, %30 : vector<12x32xf32>
    %cst_28 = arith.constant 0.000000e+00 : f32
    %32 = vector.broadcast %cst_28 : f32 to vector<12x32xf32>
    %33 = arith.maximumf %31, %32 : vector<12x32xf32>
    %cst_29 = arith.constant dense<0.000000e+00> : vector<32xf32>
    %34 = vector.multi_reduction <add>, %33, %cst_29 [0] : vector<12x32xf32> to vector<32xf32>
    %35 = vector.shape_cast %34 : vector<32xf32> to vector<1x32xf32>
    %cst_30 = arith.constant 1.200000e+01 : f32
    %36 = vector.broadcast %cst_30 : f32 to vector<1x32xf32>
    %37 = arith.divf %35, %36 : vector<1x32xf32>
    %38 = vector.broadcast %37 : vector<1x32xf32> to vector<12x32xf32>
    %39 = arith.subf %33, %38 : vector<12x32xf32>
    %40 = arith.mulf %39, %39 : vector<12x32xf32>
    %cst_31 = arith.constant dense<0.000000e+00> : vector<32xf32>
    %41 = vector.multi_reduction <add>, %40, %cst_31 [0] : vector<12x32xf32> to vector<32xf32>
    %42 = vector.shape_cast %41 : vector<32xf32> to vector<1x32xf32>
    %cst_32 = arith.constant 1.200000e+01 : f32
    %43 = vector.broadcast %cst_32 : f32 to vector<1x32xf32>
    %44 = arith.divf %42, %43 : vector<1x32xf32>
    %45 = vector.broadcast %37 : vector<1x32xf32> to vector<12x32xf32>
    %46 = arith.subf %33, %45 : vector<12x32xf32>
    %cst_33 = arith.constant 9.99999974E-6 : f32
    %47 = vector.broadcast %cst_33 : f32 to vector<1x32xf32>
    %48 = arith.addf %44, %47 : vector<1x32xf32>
    %49 = math.rsqrt %48 : vector<1x32xf32>
    %50 = vector.broadcast %49 : vector<1x32xf32> to vector<12x32xf32>
    %51 = arith.mulf %46, %50 : vector<12x32xf32>
    %c0_34 = arith.constant 0 : index
    %c0_35 = arith.constant 0 : index
    %52 = vector.load %arg12[%c0_34, %c0_35] : memref<1x32xf32, #tpu.memory_space<vmem>>, vector<1x32xf32>
    %53 = vector.broadcast %52 : vector<1x32xf32> to vector<12x32xf32>
    %54 = arith.mulf %51, %53 : vector<12x32xf32>
    %c0_36 = arith.constant 0 : index
    %c0_37 = arith.constant 0 : index
    %55 = vector.load %arg13[%c0_36, %c0_37] : memref<1x32xf32, #tpu.memory_space<vmem>>, vector<1x32xf32>
    %56 = vector.broadcast %55 : vector<1x32xf32> to vector<12x32xf32>
    %57 = arith.addf %54, %56 : vector<12x32xf32>
    %c0_38 = arith.constant 0 : index
    %c0_39 = arith.constant 0 : index
    %58 = vector.load %arg41[%c0_38, %c0_39] : memref<12x128xf32, #tpu.memory_space<vmem>>, vector<12x32xf32>
    tpu.vector_store %arg41[%c0_38, %c0_39], %57 {strides = array<i32>} : memref<12x128xf32, #tpu.memory_space<vmem>>, vector<12x32xf32>,
    %c0_40 = arith.constant 0 : index
    %c0_41 = arith.constant 0 : index
    %59 = vector.load %arg14[%c0_40, %c0_41] : memref<10x32xf32, #tpu.memory_space<vmem>>, vector<10x32xf32>
    %cst_42 = arith.constant dense<0.000000e+00> : vector<24x32xf32>
    %60 = tpu.matmul %1, %59, %cst_42 {dimension_numbers = #tpu.dot_dimension_numbers<[1], [0], [0], [1], [0, 0, 1, 1], [], []>} : vector<24x10xf32>, vector<10x32xf32>, vector<24x32xf32> -> vector<24x32xf32>
    %c0_43 = arith.constant 0 : index
    %c0_44 = arith.constant 0 : index
    %61 = vector.load %arg15[%c0_43, %c0_44] : memref<1x32xf32, #tpu.memory_space<vmem>>, vector<1x32xf32>
    %62 = vector.broadcast %61 : vector<1x32xf32> to vector<24x32xf32>
    %63 = arith.addf %60, %62 : vector<24x32xf32>
    %cst_45 = arith.constant dense<0.000000e+00> : vector<24x32xf32>
    %64 = tpu.matmul %2, %57, %cst_45 {dimension_numbers = #tpu.dot_dimension_numbers<[1], [0], [0], [1], [0, 0, 1, 1], [], []>} : vector<24x12xf32>, vector<12x32xf32>, vector<24x32xf32> -> vector<24x32xf32>
    %65 = arith.addf %64, %63 : vector<24x32xf32>
    %cst_46 = arith.constant 0.000000e+00 : f32
    %66 = vector.broadcast %cst_46 : f32 to vector<24x32xf32>
    %67 = arith.maximumf %65, %66 : vector<24x32xf32>
    %cst_47 = arith.constant dense<0.000000e+00> : vector<12x32xf32>
    %68 = tpu.matmul %3, %67, %cst_47 {dimension_numbers = #tpu.dot_dimension_numbers<[1], [0], [0], [1], [0, 0, 1, 1], [], []>} : vector<12x24xf32>, vector<24x32xf32>, vector<12x32xf32> -> vector<12x32xf32>
    %c0_48 = arith.constant 0 : index
    %c0_49 = arith.constant 0 : index
    %69 = vector.load %arg20[%c0_48, %c0_49] : memref<1x1xf32, #tpu.memory_space<vmem>>, vector<1x1xf32>
    %cst_50 = arith.constant 1.000000e+00 : f32
    %70 = vector.broadcast %cst_50 : f32 to vector<1x1xf32>
    %71 = arith.addf %70, %69 : vector<1x1xf32>
    %72 = vector.broadcast %71 : vector<1x1xf32> to vector<12x32xf32>
    %73 = arith.mulf %57, %72 : vector<12x32xf32>
    %74 = arith.addf %73, %68 : vector<12x32xf32>
    %c0_51 = arith.constant 0 : index
    %c0_52 = arith.constant 0 : index
    %75 = vector.load %arg16[%c0_51, %c0_52] : memref<32x32xf32, #tpu.memory_space<vmem>>, vector<32x32xf32>
    %cst_53 = arith.constant dense<0.000000e+00> : vector<12x32xf32>
    %76 = tpu.matmul %74, %75, %cst_53 {dimension_numbers = #tpu.dot_dimension_numbers<[1], [0], [0], [1], [0, 0, 1, 1], [], []>} : vector<12x32xf32>, vector<32x32xf32>, vector<12x32xf32> -> vector<12x32xf32>
    %c0_54 = arith.constant 0 : index
    %c0_55 = arith.constant 0 : index
    %77 = vector.load %arg17[%c0_54, %c0_55] : memref<1x32xf32, #tpu.memory_space<vmem>>, vector<1x32xf32>
    %78 = vector.broadcast %77 : vector<1x32xf32> to vector<12x32xf32>
    %79 = arith.addf %76, %78 : vector<12x32xf32>
    %cst_56 = arith.constant 0.000000e+00 : f32
    %80 = vector.broadcast %cst_56 : f32 to vector<12x32xf32>
    %81 = arith.maximumf %79, %80 : vector<12x32xf32>
    %c0_57 = arith.constant 0 : index
    %c0_58 = arith.constant 0 : index
    %82 = vector.load %arg18[%c0_57, %c0_58] : memref<32x32xf32, #tpu.memory_space<vmem>>, vector<32x32xf32>
    %cst_59 = arith.constant dense<0.000000e+00> : vector<12x32xf32>
    %83 = tpu.matmul %81, %82, %cst_59 {dimension_numbers = #tpu.dot_dimension_numbers<[1], [0], [0], [1], [0, 0, 1, 1], [], []>} : vector<12x32xf32>, vector<32x32xf32>, vector<12x32xf32> -> vector<12x32xf32>
    %c0_60 = arith.constant 0 : index
    %c0_61 = arith.constant 0 : index
    %84 = vector.load %arg19[%c0_60, %c0_61] : memref<1x32xf32, #tpu.memory_space<vmem>>, vector<1x32xf32>
    %85 = vector.broadcast %84 : vector<1x32xf32> to vector<12x32xf32>
    %86 = arith.addf %83, %85 : vector<12x32xf32>
    %cst_62 = arith.constant 0.000000e+00 : f32
    %87 = vector.broadcast %cst_62 : f32 to vector<12x32xf32>
    %88 = arith.maximumf %86, %87 : vector<12x32xf32>
    %cst_63 = arith.constant dense<0.000000e+00> : vector<32xf32>
    %89 = vector.multi_reduction <add>, %88, %cst_63 [0] : vector<12x32xf32> to vector<32xf32>
    %90 = vector.shape_cast %89 : vector<32xf32> to vector<1x32xf32>
    %cst_64 = arith.constant 1.200000e+01 : f32
    %91 = vector.broadcast %cst_64 : f32 to vector<1x32xf32>
    %92 = arith.divf %90, %91 : vector<1x32xf32>
    %93 = vector.broadcast %92 : vector<1x32xf32> to vector<12x32xf32>
    %94 = arith.subf %88, %93 : vector<12x32xf32>
    %95 = arith.mulf %94, %94 : vector<12x32xf32>
    %cst_65 = arith.constant dense<0.000000e+00> : vector<32xf32>
    %96 = vector.multi_reduction <add>, %95, %cst_65 [0] : vector<12x32xf32> to vector<32xf32>
    %97 = vector.shape_cast %96 : vector<32xf32> to vector<1x32xf32>
    %cst_66 = arith.constant 1.200000e+01 : f32
    %98 = vector.broadcast %cst_66 : f32 to vector<1x32xf32>
    %99 = arith.divf %97, %98 : vector<1x32xf32>
    %100 = vector.broadcast %92 : vector<1x32xf32> to vector<12x32xf32>
    %101 = arith.subf %88, %100 : vector<12x32xf32>
    %cst_67 = arith.constant 9.99999974E-6 : f32
    %102 = vector.broadcast %cst_67 : f32 to vector<1x32xf32>
    %103 = arith.addf %99, %102 : vector<1x32xf32>
    %104 = math.rsqrt %103 : vector<1x32xf32>
    %105 = vector.broadcast %104 : vector<1x32xf32> to vector<12x32xf32>
    %106 = arith.mulf %101, %105 : vector<12x32xf32>
    %c0_68 = arith.constant 0 : index
    %c0_69 = arith.constant 0 : index
    %107 = vector.load %arg21[%c0_68, %c0_69] : memref<1x32xf32, #tpu.memory_space<vmem>>, vector<1x32xf32>
    %108 = vector.broadcast %107 : vector<1x32xf32> to vector<12x32xf32>
    %109 = arith.mulf %106, %108 : vector<12x32xf32>
    %c0_70 = arith.constant 0 : index
    %c0_71 = arith.constant 0 : index
    %110 = vector.load %arg22[%c0_70, %c0_71] : memref<1x32xf32, #tpu.memory_space<vmem>>, vector<1x32xf32>
    %111 = vector.broadcast %110 : vector<1x32xf32> to vector<12x32xf32>
    %112 = arith.addf %109, %111 : vector<12x32xf32>
    %c0_72 = arith.constant 0 : index
    %c32 = arith.constant 32 : index
    %113 = vector.load %arg41[%c0_72, %c32] : memref<12x128xf32, #tpu.memory_space<vmem>>, vector<12x32xf32>
    tpu.vector_store %arg41[%c0_72, %c32], %112 {strides = array<i32>} : memref<12x128xf32, #tpu.memory_space<vmem>>, vector<12x32xf32>,
    %c0_73 = arith.constant 0 : index
    %c0_74 = arith.constant 0 : index
    %114 = vector.load %arg23[%c0_73, %c0_74] : memref<10x32xf32, #tpu.memory_space<vmem>>, vector<10x32xf32>
    %cst_75 = arith.constant dense<0.000000e+00> : vector<24x32xf32>
    %115 = tpu.matmul %1, %114, %cst_75 {dimension_numbers = #tpu.dot_dimension_numbers<[1], [0], [0], [1], [0, 0, 1, 1], [], []>} : vector<24x10xf32>, vector<10x32xf32>, vector<24x32xf32> -> vector<24x32xf32>
    %c0_76 = arith.constant 0 : index
    %c0_77 = arith.constant 0 : index
    %116 = vector.load %arg24[%c0_76, %c0_77] : memref<1x32xf32, #tpu.memory_space<vmem>>, vector<1x32xf32>
    %117 = vector.broadcast %116 : vector<1x32xf32> to vector<24x32xf32>
    %118 = arith.addf %115, %117 : vector<24x32xf32>
    %cst_78 = arith.constant dense<0.000000e+00> : vector<24x32xf32>
    %119 = tpu.matmul %2, %112, %cst_78 {dimension_numbers = #tpu.dot_dimension_numbers<[1], [0], [0], [1], [0, 0, 1, 1], [], []>} : vector<24x12xf32>, vector<12x32xf32>, vector<24x32xf32> -> vector<24x32xf32>
    %120 = arith.addf %119, %118 : vector<24x32xf32>
    %cst_79 = arith.constant 0.000000e+00 : f32
    %121 = vector.broadcast %cst_79 : f32 to vector<24x32xf32>
    %122 = arith.maximumf %120, %121 : vector<24x32xf32>
    %cst_80 = arith.constant dense<0.000000e+00> : vector<12x32xf32>
    %123 = tpu.matmul %3, %122, %cst_80 {dimension_numbers = #tpu.dot_dimension_numbers<[1], [0], [0], [1], [0, 0, 1, 1], [], []>} : vector<12x24xf32>, vector<24x32xf32>, vector<12x32xf32> -> vector<12x32xf32>
    %c0_81 = arith.constant 0 : index
    %c0_82 = arith.constant 0 : index
    %124 = vector.load %arg29[%c0_81, %c0_82] : memref<1x1xf32, #tpu.memory_space<vmem>>, vector<1x1xf32>
    %cst_83 = arith.constant 1.000000e+00 : f32
    %125 = vector.broadcast %cst_83 : f32 to vector<1x1xf32>
    %126 = arith.addf %125, %124 : vector<1x1xf32>
    %127 = vector.broadcast %126 : vector<1x1xf32> to vector<12x32xf32>
    %128 = arith.mulf %112, %127 : vector<12x32xf32>
    %129 = arith.addf %128, %123 : vector<12x32xf32>
    %c0_84 = arith.constant 0 : index
    %c0_85 = arith.constant 0 : index
    %130 = vector.load %arg25[%c0_84, %c0_85] : memref<32x32xf32, #tpu.memory_space<vmem>>, vector<32x32xf32>
    %cst_86 = arith.constant dense<0.000000e+00> : vector<12x32xf32>
    %131 = tpu.matmul %129, %130, %cst_86 {dimension_numbers = #tpu.dot_dimension_numbers<[1], [0], [0], [1], [0, 0, 1, 1], [], []>} : vector<12x32xf32>, vector<32x32xf32>, vector<12x32xf32> -> vector<12x32xf32>
    %c0_87 = arith.constant 0 : index
    %c0_88 = arith.constant 0 : index
    %132 = vector.load %arg26[%c0_87, %c0_88] : memref<1x32xf32, #tpu.memory_space<vmem>>, vector<1x32xf32>
    %133 = vector.broadcast %132 : vector<1x32xf32> to vector<12x32xf32>
    %134 = arith.addf %131, %133 : vector<12x32xf32>
    %cst_89 = arith.constant 0.000000e+00 : f32
    %135 = vector.broadcast %cst_89 : f32 to vector<12x32xf32>
    %136 = arith.maximumf %134, %135 : vector<12x32xf32>
    %c0_90 = arith.constant 0 : index
    %c0_91 = arith.constant 0 : index
    %137 = vector.load %arg27[%c0_90, %c0_91] : memref<32x32xf32, #tpu.memory_space<vmem>>, vector<32x32xf32>
    %cst_92 = arith.constant dense<0.000000e+00> : vector<12x32xf32>
    %138 = tpu.matmul %136, %137, %cst_92 {dimension_numbers = #tpu.dot_dimension_numbers<[1], [0], [0], [1], [0, 0, 1, 1], [], []>} : vector<12x32xf32>, vector<32x32xf32>, vector<12x32xf32> -> vector<12x32xf32>
    %c0_93 = arith.constant 0 : index
    %c0_94 = arith.constant 0 : index
    %139 = vector.load %arg28[%c0_93, %c0_94] : memref<1x32xf32, #tpu.memory_space<vmem>>, vector<1x32xf32>
    %140 = vector.broadcast %139 : vector<1x32xf32> to vector<12x32xf32>
    %141 = arith.addf %138, %140 : vector<12x32xf32>
    %cst_95 = arith.constant 0.000000e+00 : f32
    %142 = vector.broadcast %cst_95 : f32 to vector<12x32xf32>
    %143 = arith.maximumf %141, %142 : vector<12x32xf32>
    %cst_96 = arith.constant dense<0.000000e+00> : vector<32xf32>
    %144 = vector.multi_reduction <add>, %143, %cst_96 [0] : vector<12x32xf32> to vector<32xf32>
    %145 = vector.shape_cast %144 : vector<32xf32> to vector<1x32xf32>
    %cst_97 = arith.constant 1.200000e+01 : f32
    %146 = vector.broadcast %cst_97 : f32 to vector<1x32xf32>
    %147 = arith.divf %145, %146 : vector<1x32xf32>
    %148 = vector.broadcast %147 : vector<1x32xf32> to vector<12x32xf32>
    %149 = arith.subf %143, %148 : vector<12x32xf32>
    %150 = arith.mulf %149, %149 : vector<12x32xf32>
    %cst_98 = arith.constant dense<0.000000e+00> : vector<32xf32>
    %151 = vector.multi_reduction <add>, %150, %cst_98 [0] : vector<12x32xf32> to vector<32xf32>
    %152 = vector.shape_cast %151 : vector<32xf32> to vector<1x32xf32>
    %cst_99 = arith.constant 1.200000e+01 : f32
    %153 = vector.broadcast %cst_99 : f32 to vector<1x32xf32>
    %154 = arith.divf %152, %153 : vector<1x32xf32>
    %155 = vector.broadcast %147 : vector<1x32xf32> to vector<12x32xf32>
    %156 = arith.subf %143, %155 : vector<12x32xf32>
    %cst_100 = arith.constant 9.99999974E-6 : f32
    %157 = vector.broadcast %cst_100 : f32 to vector<1x32xf32>
    %158 = arith.addf %154, %157 : vector<1x32xf32>
    %159 = math.rsqrt %158 : vector<1x32xf32>
    %160 = vector.broadcast %159 : vector<1x32xf32> to vector<12x32xf32>
    %161 = arith.mulf %156, %160 : vector<12x32xf32>
    %c0_101 = arith.constant 0 : index
    %c0_102 = arith.constant 0 : index
    %162 = vector.load %arg30[%c0_101, %c0_102] : memref<1x32xf32, #tpu.memory_space<vmem>>, vector<1x32xf32>
    %163 = vector.broadcast %162 : vector<1x32xf32> to vector<12x32xf32>
    %164 = arith.mulf %161, %163 : vector<12x32xf32>
    %c0_103 = arith.constant 0 : index
    %c0_104 = arith.constant 0 : index
    %165 = vector.load %arg31[%c0_103, %c0_104] : memref<1x32xf32, #tpu.memory_space<vmem>>, vector<1x32xf32>
    %166 = vector.broadcast %165 : vector<1x32xf32> to vector<12x32xf32>
    %167 = arith.addf %164, %166 : vector<12x32xf32>
    %c0_105 = arith.constant 0 : index
    %c64 = arith.constant 64 : index
    %168 = vector.load %arg41[%c0_105, %c64] : memref<12x128xf32, #tpu.memory_space<vmem>>, vector<12x32xf32>
    tpu.vector_store %arg41[%c0_105, %c64], %167 {strides = array<i32>} : memref<12x128xf32, #tpu.memory_space<vmem>>, vector<12x32xf32>,
    %c0_106 = arith.constant 0 : index
    %c0_107 = arith.constant 0 : index
    %169 = vector.load %arg32[%c0_106, %c0_107] : memref<10x32xf32, #tpu.memory_space<vmem>>, vector<10x32xf32>
    %cst_108 = arith.constant dense<0.000000e+00> : vector<24x32xf32>
    %170 = tpu.matmul %1, %169, %cst_108 {dimension_numbers = #tpu.dot_dimension_numbers<[1], [0], [0], [1], [0, 0, 1, 1], [], []>} : vector<24x10xf32>, vector<10x32xf32>, vector<24x32xf32> -> vector<24x32xf32>
    %c0_109 = arith.constant 0 : index
    %c0_110 = arith.constant 0 : index
    %171 = vector.load %arg33[%c0_109, %c0_110] : memref<1x32xf32, #tpu.memory_space<vmem>>, vector<1x32xf32>
    %172 = vector.broadcast %171 : vector<1x32xf32> to vector<24x32xf32>
    %173 = arith.addf %170, %172 : vector<24x32xf32>
    %cst_111 = arith.constant dense<0.000000e+00> : vector<24x32xf32>
    %174 = tpu.matmul %2, %167, %cst_111 {dimension_numbers = #tpu.dot_dimension_numbers<[1], [0], [0], [1], [0, 0, 1, 1], [], []>} : vector<24x12xf32>, vector<12x32xf32>, vector<24x32xf32> -> vector<24x32xf32>
    %175 = arith.addf %174, %173 : vector<24x32xf32>
    %cst_112 = arith.constant 0.000000e+00 : f32
    %176 = vector.broadcast %cst_112 : f32 to vector<24x32xf32>
    %177 = arith.maximumf %175, %176 : vector<24x32xf32>
    %cst_113 = arith.constant dense<0.000000e+00> : vector<12x32xf32>
    %178 = tpu.matmul %3, %177, %cst_113 {dimension_numbers = #tpu.dot_dimension_numbers<[1], [0], [0], [1], [0, 0, 1, 1], [], []>} : vector<12x24xf32>, vector<24x32xf32>, vector<12x32xf32> -> vector<12x32xf32>
    %c0_114 = arith.constant 0 : index
    %c0_115 = arith.constant 0 : index
    %179 = vector.load %arg38[%c0_114, %c0_115] : memref<1x1xf32, #tpu.memory_space<vmem>>, vector<1x1xf32>
    %cst_116 = arith.constant 1.000000e+00 : f32
    %180 = vector.broadcast %cst_116 : f32 to vector<1x1xf32>
    %181 = arith.addf %180, %179 : vector<1x1xf32>
    %182 = vector.broadcast %181 : vector<1x1xf32> to vector<12x32xf32>
    %183 = arith.mulf %167, %182 : vector<12x32xf32>
    %184 = arith.addf %183, %178 : vector<12x32xf32>
    %c0_117 = arith.constant 0 : index
    %c0_118 = arith.constant 0 : index
    %185 = vector.load %arg34[%c0_117, %c0_118] : memref<32x32xf32, #tpu.memory_space<vmem>>, vector<32x32xf32>
    %cst_119 = arith.constant dense<0.000000e+00> : vector<12x32xf32>
    %186 = tpu.matmul %184, %185, %cst_119 {dimension_numbers = #tpu.dot_dimension_numbers<[1], [0], [0], [1], [0, 0, 1, 1], [], []>} : vector<12x32xf32>, vector<32x32xf32>, vector<12x32xf32> -> vector<12x32xf32>
    %c0_120 = arith.constant 0 : index
    %c0_121 = arith.constant 0 : index
    %187 = vector.load %arg35[%c0_120, %c0_121] : memref<1x32xf32, #tpu.memory_space<vmem>>, vector<1x32xf32>
    %188 = vector.broadcast %187 : vector<1x32xf32> to vector<12x32xf32>
    %189 = arith.addf %186, %188 : vector<12x32xf32>
    %cst_122 = arith.constant 0.000000e+00 : f32
    %190 = vector.broadcast %cst_122 : f32 to vector<12x32xf32>
    %191 = arith.maximumf %189, %190 : vector<12x32xf32>
    %c0_123 = arith.constant 0 : index
    %c0_124 = arith.constant 0 : index
    %192 = vector.load %arg36[%c0_123, %c0_124] : memref<32x32xf32, #tpu.memory_space<vmem>>, vector<32x32xf32>
    %cst_125 = arith.constant dense<0.000000e+00> : vector<12x32xf32>
    %193 = tpu.matmul %191, %192, %cst_125 {dimension_numbers = #tpu.dot_dimension_numbers<[1], [0], [0], [1], [0, 0, 1, 1], [], []>} : vector<12x32xf32>, vector<32x32xf32>, vector<12x32xf32> -> vector<12x32xf32>
    %c0_126 = arith.constant 0 : index
    %c0_127 = arith.constant 0 : index
    %194 = vector.load %arg37[%c0_126, %c0_127] : memref<1x32xf32, #tpu.memory_space<vmem>>, vector<1x32xf32>
    %195 = vector.broadcast %194 : vector<1x32xf32> to vector<12x32xf32>
    %196 = arith.addf %193, %195 : vector<12x32xf32>
    %cst_128 = arith.constant 0.000000e+00 : f32
    %197 = vector.broadcast %cst_128 : f32 to vector<12x32xf32>
    %198 = arith.maximumf %196, %197 : vector<12x32xf32>
    %cst_129 = arith.constant dense<0.000000e+00> : vector<32xf32>
    %199 = vector.multi_reduction <add>, %198, %cst_129 [0] : vector<12x32xf32> to vector<32xf32>
    %200 = vector.shape_cast %199 : vector<32xf32> to vector<1x32xf32>
    %cst_130 = arith.constant 1.200000e+01 : f32
    %201 = vector.broadcast %cst_130 : f32 to vector<1x32xf32>
    %202 = arith.divf %200, %201 : vector<1x32xf32>
    %203 = vector.broadcast %202 : vector<1x32xf32> to vector<12x32xf32>
    %204 = arith.subf %198, %203 : vector<12x32xf32>
    %205 = arith.mulf %204, %204 : vector<12x32xf32>
    %cst_131 = arith.constant dense<0.000000e+00> : vector<32xf32>
    %206 = vector.multi_reduction <add>, %205, %cst_131 [0] : vector<12x32xf32> to vector<32xf32>
    %207 = vector.shape_cast %206 : vector<32xf32> to vector<1x32xf32>
    %cst_132 = arith.constant 1.200000e+01 : f32
    %208 = vector.broadcast %cst_132 : f32 to vector<1x32xf32>
    %209 = arith.divf %207, %208 : vector<1x32xf32>
    %210 = vector.broadcast %202 : vector<1x32xf32> to vector<12x32xf32>
    %211 = arith.subf %198, %210 : vector<12x32xf32>
    %cst_133 = arith.constant 9.99999974E-6 : f32
    %212 = vector.broadcast %cst_133 : f32 to vector<1x32xf32>
    %213 = arith.addf %209, %212 : vector<1x32xf32>
    %214 = math.rsqrt %213 : vector<1x32xf32>
    %215 = vector.broadcast %214 : vector<1x32xf32> to vector<12x32xf32>
    %216 = arith.mulf %211, %215 : vector<12x32xf32>
    %c0_134 = arith.constant 0 : index
    %c0_135 = arith.constant 0 : index
    %217 = vector.load %arg39[%c0_134, %c0_135] : memref<1x32xf32, #tpu.memory_space<vmem>>, vector<1x32xf32>
    %218 = vector.broadcast %217 : vector<1x32xf32> to vector<12x32xf32>
    %219 = arith.mulf %216, %218 : vector<12x32xf32>
    %c0_136 = arith.constant 0 : index
    %c0_137 = arith.constant 0 : index
    %220 = vector.load %arg40[%c0_136, %c0_137] : memref<1x32xf32, #tpu.memory_space<vmem>>, vector<1x32xf32>
    %221 = vector.broadcast %220 : vector<1x32xf32> to vector<12x32xf32>
    %222 = arith.addf %219, %221 : vector<12x32xf32>
    %c0_138 = arith.constant 0 : index
    %c96 = arith.constant 96 : index
    %223 = vector.load %arg41[%c0_138, %c96] : memref<12x128xf32, #tpu.memory_space<vmem>>, vector<12x32xf32>
    tpu.vector_store %arg41[%c0_138, %c96], %222 {strides = array<i32>} : memref<12x128xf32, #tpu.memory_space<vmem>>, vector<12x32xf32>,
    return
  }
  func.func @transform_0(%arg0: i32) -> (i32, i32) {
    %c0_i32 = arith.constant 0 : i32
    %c0_i32_0 = arith.constant 0 : i32
    %c0_i32_1 = arith.constant 0 : i32
    return %c0_i32, %c0_i32_0 : i32, i32
  }
  func.func @transform_1(%arg0: i32) -> (i32, i32) {
    %c0_i32 = arith.constant 0 : i32
    %c0_i32_0 = arith.constant 0 : i32
    %c0_i32_1 = arith.constant 0 : i32
    return %c0_i32, %c0_i32_0 : i32, i32
  }
  func.func @transform_2(%arg0: i32) -> (i32, i32) {
    %c0_i32 = arith.constant 0 : i32
    %c0_i32_0 = arith.constant 0 : i32
    %c0_i32_1 = arith.constant 0 : i32
    return %c0_i32, %c0_i32_0 : i32, i32
  }
  func.func @transform_3(%arg0: i32) -> (i32, i32) {
    %c0_i32 = arith.constant 0 : i32
    %c0_i32_0 = arith.constant 0 : i32
    %c0_i32_1 = arith.constant 0 : i32
    return %c0_i32, %c0_i32_0 : i32, i32
  }
  func.func @transform_4(%arg0: i32) -> (i32, i32) {
    %c0_i32 = arith.constant 0 : i32
    %c0_i32_0 = arith.constant 0 : i32
    %c0_i32_1 = arith.constant 0 : i32
    return %c0_i32, %c0_i32_0 : i32, i32
  }
  func.func @transform_5(%arg0: i32) -> (i32, i32) {
    %c0_i32 = arith.constant 0 : i32
    %c0_i32_0 = arith.constant 0 : i32
    %c0_i32_1 = arith.constant 0 : i32
    return %c0_i32, %c0_i32_0 : i32, i32
  }
  func.func @transform_6(%arg0: i32) -> (i32, i32) {
    %c0_i32 = arith.constant 0 : i32
    %c0_i32_0 = arith.constant 0 : i32
    %c0_i32_1 = arith.constant 0 : i32
    return %c0_i32, %c0_i32_0 : i32, i32
  }
  func.func @transform_7(%arg0: i32) -> (i32, i32) {
    %c0_i32 = arith.constant 0 : i32
    %c0_i32_0 = arith.constant 0 : i32
    %c0_i32_1 = arith.constant 0 : i32
    return %c0_i32, %c0_i32_0 : i32, i32
  }
  func.func @transform_8(%arg0: i32) -> (i32, i32) {
    %c0_i32 = arith.constant 0 : i32
    %c0_i32_0 = arith.constant 0 : i32
    %c0_i32_1 = arith.constant 0 : i32
    return %c0_i32, %c0_i32_0 : i32, i32
  }
  func.func @transform_9(%arg0: i32) -> (i32, i32) {
    %c0_i32 = arith.constant 0 : i32
    %c0_i32_0 = arith.constant 0 : i32
    %c0_i32_1 = arith.constant 0 : i32
    return %c0_i32, %c0_i32_0 : i32, i32
  }
  func.func @transform_10(%arg0: i32) -> (i32, i32) {
    %c0_i32 = arith.constant 0 : i32
    %c0_i32_0 = arith.constant 0 : i32
    %c0_i32_1 = arith.constant 0 : i32
    return %c0_i32, %c0_i32_0 : i32, i32
  }
  func.func @transform_11(%arg0: i32) -> (i32, i32) {
    %c0_i32 = arith.constant 0 : i32
    %c0_i32_0 = arith.constant 0 : i32
    %c0_i32_1 = arith.constant 0 : i32
    return %c0_i32, %c0_i32_0 : i32, i32
  }
  func.func @transform_12(%arg0: i32) -> (i32, i32) {
    %c0_i32 = arith.constant 0 : i32
    %c0_i32_0 = arith.constant 0 : i32
    %c0_i32_1 = arith.constant 0 : i32
    return %c0_i32, %c0_i32_0 : i32, i32
  }
  func.func @transform_13(%arg0: i32) -> (i32, i32) {
    %c0_i32 = arith.constant 0 : i32
    %c0_i32_0 = arith.constant 0 : i32
    %c0_i32_1 = arith.constant 0 : i32
    return %c0_i32, %c0_i32_0 : i32, i32
  }
  func.func @transform_14(%arg0: i32) -> (i32, i32) {
    %c0_i32 = arith.constant 0 : i32
    %c0_i32_0 = arith.constant 0 : i32
    %c0_i32_1 = arith.constant 0 : i32
    return %c0_i32, %c0_i32_0 : i32, i32
  }
  func.func @transform_15(%arg0: i32) -> (i32, i32) {
    %c0_i32 = arith.constant 0 : i32
    %c0_i32_0 = arith.constant 0 : i32
    %c0_i32_1 = arith.constant 0 : i32
    return %c0_i32, %c0_i32_0 : i32, i32
  }
  func.func @transform_16(%arg0: i32) -> (i32, i32) {
    %c0_i32 = arith.constant 0 : i32
    %c0_i32_0 = arith.constant 0 : i32
    %c0_i32_1 = arith.constant 0 : i32
    return %c0_i32, %c0_i32_0 : i32, i32
  }
  func.func @transform_17(%arg0: i32) -> (i32, i32) {
    %c0_i32 = arith.constant 0 : i32
    %c0_i32_0 = arith.constant 0 : i32
    %c0_i32_1 = arith.constant 0 : i32
    return %c0_i32, %c0_i32_0 : i32, i32
  }
  func.func @transform_18(%arg0: i32) -> (i32, i32) {
    %c0_i32 = arith.constant 0 : i32
    %c0_i32_0 = arith.constant 0 : i32
    %c0_i32_1 = arith.constant 0 : i32
    return %c0_i32, %c0_i32_0 : i32, i32
  }
  func.func @transform_19(%arg0: i32) -> (i32, i32) {
    %c0_i32 = arith.constant 0 : i32
    %c0_i32_0 = arith.constant 0 : i32
    %c0_i32_1 = arith.constant 0 : i32
    return %c0_i32, %c0_i32_0 : i32, i32
  }
  func.func @transform_20(%arg0: i32) -> (i32, i32) {
    %c0_i32 = arith.constant 0 : i32
    %c0_i32_0 = arith.constant 0 : i32
    %c0_i32_1 = arith.constant 0 : i32
    return %c0_i32, %c0_i32_0 : i32, i32
  }
  func.func @transform_21(%arg0: i32) -> (i32, i32) {
    %c0_i32 = arith.constant 0 : i32
    %c0_i32_0 = arith.constant 0 : i32
    %c0_i32_1 = arith.constant 0 : i32
    return %c0_i32, %c0_i32_0 : i32, i32
  }
  func.func @transform_22(%arg0: i32) -> (i32, i32) {
    %c0_i32 = arith.constant 0 : i32
    %c0_i32_0 = arith.constant 0 : i32
    %c0_i32_1 = arith.constant 0 : i32
    return %c0_i32, %c0_i32_0 : i32, i32
  }
  func.func @transform_23(%arg0: i32) -> (i32, i32) {
    %c0_i32 = arith.constant 0 : i32
    %c0_i32_0 = arith.constant 0 : i32
    %c0_i32_1 = arith.constant 0 : i32
    return %c0_i32, %c0_i32_0 : i32, i32
  }
  func.func @transform_24(%arg0: i32) -> (i32, i32) {
    %c0_i32 = arith.constant 0 : i32
    %c0_i32_0 = arith.constant 0 : i32
    %c0_i32_1 = arith.constant 0 : i32
    return %c0_i32, %c0_i32_0 : i32, i32
  }
  func.func @transform_25(%arg0: i32) -> (i32, i32) {
    %c0_i32 = arith.constant 0 : i32
    %c0_i32_0 = arith.constant 0 : i32
    %c0_i32_1 = arith.constant 0 : i32
    return %c0_i32, %c0_i32_0 : i32, i32
  }
  func.func @transform_26(%arg0: i32) -> (i32, i32) {
    %c0_i32 = arith.constant 0 : i32
    %c0_i32_0 = arith.constant 0 : i32
    %c0_i32_1 = arith.constant 0 : i32
    return %c0_i32, %c0_i32_0 : i32, i32
  }
  func.func @transform_27(%arg0: i32) -> (i32, i32) {
    %c0_i32 = arith.constant 0 : i32
    %c0_i32_0 = arith.constant 0 : i32
    %c0_i32_1 = arith.constant 0 : i32
    return %c0_i32, %c0_i32_0 : i32, i32
  }
  func.func @transform_28(%arg0: i32) -> (i32, i32) {
    %c0_i32 = arith.constant 0 : i32
    %c0_i32_0 = arith.constant 0 : i32
    %c0_i32_1 = arith.constant 0 : i32
    return %c0_i32, %c0_i32_0 : i32, i32
  }
  func.func @transform_29(%arg0: i32) -> (i32, i32) {
    %c0_i32 = arith.constant 0 : i32
    %c0_i32_0 = arith.constant 0 : i32
    %c0_i32_1 = arith.constant 0 : i32
    return %c0_i32, %c0_i32_0 : i32, i32
  }
  func.func @transform_30(%arg0: i32) -> (i32, i32) {
    %c0_i32 = arith.constant 0 : i32
    %c0_i32_0 = arith.constant 0 : i32
    %c0_i32_1 = arith.constant 0 : i32
    return %c0_i32, %c0_i32_0 : i32, i32
  }
  func.func @transform_31(%arg0: i32) -> (i32, i32) {
    %c0_i32 = arith.constant 0 : i32
    %c0_i32_0 = arith.constant 0 : i32
    %c0_i32_1 = arith.constant 0 : i32
    return %c0_i32, %c0_i32_0 : i32, i32
  }
  func.func @transform_32(%arg0: i32) -> (i32, i32) {
    %c0_i32 = arith.constant 0 : i32
    %c0_i32_0 = arith.constant 0 : i32
    %c0_i32_1 = arith.constant 0 : i32
    return %c0_i32, %c0_i32_0 : i32, i32
  }
  func.func @transform_33(%arg0: i32) -> (i32, i32) {
    %c0_i32 = arith.constant 0 : i32
    %c0_i32_0 = arith.constant 0 : i32
    %c0_i32_1 = arith.constant 0 : i32
    return %c0_i32, %c0_i32_0 : i32, i32
  }
  func.func @transform_34(%arg0: i32) -> (i32, i32) {
    %c0_i32 = arith.constant 0 : i32
    %c0_i32_0 = arith.constant 0 : i32
    %c0_i32_1 = arith.constant 0 : i32
    return %c0_i32, %c0_i32_0 : i32, i32
  }
  func.func @transform_35(%arg0: i32) -> (i32, i32) {
    %c0_i32 = arith.constant 0 : i32
    %c0_i32_0 = arith.constant 0 : i32
    %c0_i32_1 = arith.constant 0 : i32
    return %c0_i32, %c0_i32_0 : i32, i32
  }
  func.func @transform_36(%arg0: i32) -> (i32, i32) {
    %c0_i32 = arith.constant 0 : i32
    %c0_i32_0 = arith.constant 0 : i32
    %c0_i32_1 = arith.constant 0 : i32
    return %c0_i32, %c0_i32_0 : i32, i32
  }
  func.func @transform_37(%arg0: i32) -> (i32, i32) {
    %c0_i32 = arith.constant 0 : i32
    %c0_i32_0 = arith.constant 0 : i32
    %c0_i32_1 = arith.constant 0 : i32
    return %c0_i32, %c0_i32_0 : i32, i32
  }
  func.func @transform_38(%arg0: i32) -> (i32, i32) {
    %c0_i32 = arith.constant 0 : i32
    %c0_i32_0 = arith.constant 0 : i32
    %c0_i32_1 = arith.constant 0 : i32
    return %c0_i32, %c0_i32_0 : i32, i32
  }
  func.func @transform_39(%arg0: i32) -> (i32, i32) {
    %c0_i32 = arith.constant 0 : i32
    %c0_i32_0 = arith.constant 0 : i32
    %c0_i32_1 = arith.constant 0 : i32
    return %c0_i32, %c0_i32_0 : i32, i32
  }
  func.func @transform_40(%arg0: i32) -> (i32, i32) {
    %c0_i32 = arith.constant 0 : i32
    %c0_i32_0 = arith.constant 0 : i32
    %c0_i32_1 = arith.constant 0 : i32
    return %c0_i32, %c0_i32_0 : i32, i32
  }
}

module attributes {stable_mosaic.version = 11 : i64} {
  func.func @_pool_head_prot_kernel(%arg0: i32, %arg1: memref<12x128xf32, #tpu.memory_space<vmem>>, %arg2: memref<2x12xf32, #tpu.memory_space<vmem>>, %arg3: memref<128x32xf32, #tpu.memory_space<vmem>>, %arg4: memref<1x32xf32, #tpu.memory_space<vmem>>, %arg5: memref<32x32xf32, #tpu.memory_space<vmem>>, %arg6: memref<1x32xf32, #tpu.memory_space<vmem>>, %arg7: memref<32x32xf32, #tpu.memory_space<vmem>>, %arg8: memref<1x32xf32, #tpu.memory_space<vmem>>, %arg9: memref<128x64xf32, #tpu.memory_space<vmem>>, %arg10: memref<64x32xf32, #tpu.memory_space<vmem>>, %arg11: memref<1x32xf32, #tpu.memory_space<vmem>>, %arg12: memref<2x32xf32, #tpu.memory_space<vmem>>, %arg13: memref<128x32xf32, #tpu.memory_space<vmem>>) attributes {dimension_semantics = [#tpu.dimension_semantics<arbitrary>], iteration_bounds = array<i64: 1>, scalar_prefetch = 0 : i64, scratch_operands = 0 : i64, tpu.core_type = #tpu.core_type<tc>, window_params = [{pipeline_mode = #tpu.pipeline_mode<synchronous>, transform_indices = @transform_0, window_bounds = array<i64: 12, 128>}, {pipeline_mode = #tpu.pipeline_mode<synchronous>, transform_indices = @transform_1, window_bounds = array<i64: 2, 12>}, {pipeline_mode = #tpu.pipeline_mode<synchronous>, transform_indices = @transform_2, window_bounds = array<i64: 128, 32>}, {pipeline_mode = #tpu.pipeline_mode<synchronous>, transform_indices = @transform_3, window_bounds = array<i64: 1, 32>}, {pipeline_mode = #tpu.pipeline_mode<synchronous>, transform_indices = @transform_4, window_bounds = array<i64: 32, 32>}, {pipeline_mode = #tpu.pipeline_mode<synchronous>, transform_indices = @transform_5, window_bounds = array<i64: 1, 32>}, {pipeline_mode = #tpu.pipeline_mode<synchronous>, transform_indices = @transform_6, window_bounds = array<i64: 32, 32>}, {pipeline_mode = #tpu.pipeline_mode<synchronous>, transform_indices = @transform_7, window_bounds = array<i64: 1, 32>}, {pipeline_mode = #tpu.pipeline_mode<synchronous>, transform_indices = @transform_8, window_bounds = array<i64: 128, 64>}, {pipeline_mode = #tpu.pipeline_mode<synchronous>, transform_indices = @transform_9, window_bounds = array<i64: 64, 32>}, {pipeline_mode = #tpu.pipeline_mode<synchronous>, transform_indices = @transform_10, window_bounds = array<i64: 1, 32>}, {pipeline_mode = #tpu.pipeline_mode<synchronous>, transform_indices = @transform_11, window_bounds = array<i64: 2, 32>}, {pipeline_mode = #tpu.pipeline_mode<synchronous>, transform_indices = @transform_12, window_bounds = array<i64: 128, 32>}]} {
    %c0 = arith.constant 0 : index
    %c0_0 = arith.constant 0 : index
    %0 = vector.load %arg2[%c0, %c0_0] : memref<2x12xf32, #tpu.memory_space<vmem>>, vector<2x12xf32>
    %c0_1 = arith.constant 0 : index
    %c0_2 = arith.constant 0 : index
    %1 = vector.load %arg1[%c0_1, %c0_2] : memref<12x128xf32, #tpu.memory_space<vmem>>, vector<12x128xf32>
    %cst = arith.constant dense<0.000000e+00> : vector<2x128xf32>
    %2 = tpu.matmul %0, %1, %cst {dimension_numbers = #tpu.dot_dimension_numbers<[1], [0], [0], [1], [0, 0, 1, 1], [], []>} : vector<2x12xf32>, vector<12x128xf32>, vector<2x128xf32> -> vector<2x128xf32>
    %c0_3 = arith.constant 0 : index
    %c0_4 = arith.constant 0 : index
    %3 = vector.load %arg3[%c0_3, %c0_4] : memref<128x32xf32, #tpu.memory_space<vmem>>, vector<128x32xf32>
    %cst_5 = arith.constant dense<0.000000e+00> : vector<2x32xf32>
    %4 = tpu.matmul %2, %3, %cst_5 {dimension_numbers = #tpu.dot_dimension_numbers<[1], [0], [0], [1], [0, 0, 1, 1], [], []>} : vector<2x128xf32>, vector<128x32xf32>, vector<2x32xf32> -> vector<2x32xf32>
    %c0_6 = arith.constant 0 : index
    %c0_7 = arith.constant 0 : index
    %5 = vector.load %arg4[%c0_6, %c0_7] : memref<1x32xf32, #tpu.memory_space<vmem>>, vector<1x32xf32>
    %6 = vector.broadcast %5 : vector<1x32xf32> to vector<2x32xf32>
    %7 = arith.addf %4, %6 : vector<2x32xf32>
    %cst_8 = arith.constant 0.000000e+00 : f32
    %8 = vector.broadcast %cst_8 : f32 to vector<2x32xf32>
    %9 = arith.maximumf %7, %8 : vector<2x32xf32>
    %c0_9 = arith.constant 0 : index
    %c0_10 = arith.constant 0 : index
    %10 = vector.load %arg5[%c0_9, %c0_10] : memref<32x32xf32, #tpu.memory_space<vmem>>, vector<32x32xf32>
    %cst_11 = arith.constant dense<0.000000e+00> : vector<2x32xf32>
    %11 = tpu.matmul %9, %10, %cst_11 {dimension_numbers = #tpu.dot_dimension_numbers<[1], [0], [0], [1], [0, 0, 1, 1], [], []>} : vector<2x32xf32>, vector<32x32xf32>, vector<2x32xf32> -> vector<2x32xf32>
    %c0_12 = arith.constant 0 : index
    %c0_13 = arith.constant 0 : index
    %12 = vector.load %arg6[%c0_12, %c0_13] : memref<1x32xf32, #tpu.memory_space<vmem>>, vector<1x32xf32>
    %13 = vector.broadcast %12 : vector<1x32xf32> to vector<2x32xf32>
    %14 = arith.addf %11, %13 : vector<2x32xf32>
    %c0_14 = arith.constant 0 : index
    %c0_15 = arith.constant 0 : index
    %15 = vector.load %arg7[%c0_14, %c0_15] : memref<32x32xf32, #tpu.memory_space<vmem>>, vector<32x32xf32>
    %cst_16 = arith.constant dense<0.000000e+00> : vector<2x32xf32>
    %16 = tpu.matmul %14, %15, %cst_16 {dimension_numbers = #tpu.dot_dimension_numbers<[1], [0], [0], [1], [0, 0, 1, 1], [], []>} : vector<2x32xf32>, vector<32x32xf32>, vector<2x32xf32> -> vector<2x32xf32>
    %c0_17 = arith.constant 0 : index
    %c0_18 = arith.constant 0 : index
    %17 = vector.load %arg8[%c0_17, %c0_18] : memref<1x32xf32, #tpu.memory_space<vmem>>, vector<1x32xf32>
    %18 = vector.broadcast %17 : vector<1x32xf32> to vector<2x32xf32>
    %19 = arith.addf %16, %18 : vector<2x32xf32>
    %cst_19 = arith.constant 0.000000e+00 : f32
    %20 = vector.broadcast %cst_19 : f32 to vector<2x32xf32>
    %21 = arith.cmpf ogt, %19, %20 : vector<2x32xf32>
    %cst_20 = arith.constant 0.000000e+00 : f32
    %22 = vector.broadcast %cst_20 : f32 to vector<2x32xf32>
    %23 = arith.minimumf %19, %22 : vector<2x32xf32>
    %24 = math.exp %23 : vector<2x32xf32>
    %cst_21 = arith.constant 1.000000e+00 : f32
    %25 = vector.broadcast %cst_21 : f32 to vector<2x32xf32>
    %26 = arith.subf %24, %25 : vector<2x32xf32>
    %27 = arith.select %21, %19, %26 : vector<2x32xi1>, vector<2x32xf32>
    %c0_22 = arith.constant 0 : index
    %c0_23 = arith.constant 0 : index
    %28 = vector.load %arg12[%c0_22, %c0_23] : memref<2x32xf32, #tpu.memory_space<vmem>>, vector<2x32xf32>
    tpu.vector_store %arg12[%c0_22, %c0_23], %27 {strides = array<i32>} : memref<2x32xf32, #tpu.memory_space<vmem>>, vector<2x32xf32>,
    %c0_24 = arith.constant 0 : index
    %c0_25 = arith.constant 0 : index
    %29 = vector.load %arg9[%c0_24, %c0_25] : memref<128x64xf32, #tpu.memory_space<vmem>>, vector<128x64xf32>
    %c0_26 = arith.constant 0 : index
    %c0_27 = arith.constant 0 : index
    %30 = vector.load %arg10[%c0_26, %c0_27] : memref<64x32xf32, #tpu.memory_space<vmem>>, vector<64x32xf32>
    %cst_28 = arith.constant dense<0.000000e+00> : vector<128x32xf32>
    %31 = tpu.matmul %29, %30, %cst_28 {dimension_numbers = #tpu.dot_dimension_numbers<[1], [0], [0], [1], [0, 0, 1, 1], [], []>} : vector<128x64xf32>, vector<64x32xf32>, vector<128x32xf32> -> vector<128x32xf32>
    %c0_29 = arith.constant 0 : index
    %c0_30 = arith.constant 0 : index
    %32 = vector.load %arg11[%c0_29, %c0_30] : memref<1x32xf32, #tpu.memory_space<vmem>>, vector<1x32xf32>
    %33 = vector.broadcast %32 : vector<1x32xf32> to vector<128x32xf32>
    %34 = arith.addf %31, %33 : vector<128x32xf32>
    %cst_31 = arith.constant 0.000000e+00 : f32
    %35 = vector.broadcast %cst_31 : f32 to vector<128x32xf32>
    %36 = arith.maximumf %34, %35 : vector<128x32xf32>
    %c0_32 = arith.constant 0 : index
    %c0_33 = arith.constant 0 : index
    %37 = vector.load %arg13[%c0_32, %c0_33] : memref<128x32xf32, #tpu.memory_space<vmem>>, vector<128x32xf32>
    tpu.vector_store %arg13[%c0_32, %c0_33], %36 {strides = array<i32>} : memref<128x32xf32, #tpu.memory_space<vmem>>, vector<128x32xf32>,
    return
  }
  func.func @transform_0(%arg0: i32) -> (i32, i32) {
    %c0_i32 = arith.constant 0 : i32
    %c0_i32_0 = arith.constant 0 : i32
    %c0_i32_1 = arith.constant 0 : i32
    return %c0_i32, %c0_i32_0 : i32, i32
  }
  func.func @transform_1(%arg0: i32) -> (i32, i32) {
    %c0_i32 = arith.constant 0 : i32
    %c0_i32_0 = arith.constant 0 : i32
    %c0_i32_1 = arith.constant 0 : i32
    return %c0_i32, %c0_i32_0 : i32, i32
  }
  func.func @transform_2(%arg0: i32) -> (i32, i32) {
    %c0_i32 = arith.constant 0 : i32
    %c0_i32_0 = arith.constant 0 : i32
    %c0_i32_1 = arith.constant 0 : i32
    return %c0_i32, %c0_i32_0 : i32, i32
  }
  func.func @transform_3(%arg0: i32) -> (i32, i32) {
    %c0_i32 = arith.constant 0 : i32
    %c0_i32_0 = arith.constant 0 : i32
    %c0_i32_1 = arith.constant 0 : i32
    return %c0_i32, %c0_i32_0 : i32, i32
  }
  func.func @transform_4(%arg0: i32) -> (i32, i32) {
    %c0_i32 = arith.constant 0 : i32
    %c0_i32_0 = arith.constant 0 : i32
    %c0_i32_1 = arith.constant 0 : i32
    return %c0_i32, %c0_i32_0 : i32, i32
  }
  func.func @transform_5(%arg0: i32) -> (i32, i32) {
    %c0_i32 = arith.constant 0 : i32
    %c0_i32_0 = arith.constant 0 : i32
    %c0_i32_1 = arith.constant 0 : i32
    return %c0_i32, %c0_i32_0 : i32, i32
  }
  func.func @transform_6(%arg0: i32) -> (i32, i32) {
    %c0_i32 = arith.constant 0 : i32
    %c0_i32_0 = arith.constant 0 : i32
    %c0_i32_1 = arith.constant 0 : i32
    return %c0_i32, %c0_i32_0 : i32, i32
  }
  func.func @transform_7(%arg0: i32) -> (i32, i32) {
    %c0_i32 = arith.constant 0 : i32
    %c0_i32_0 = arith.constant 0 : i32
    %c0_i32_1 = arith.constant 0 : i32
    return %c0_i32, %c0_i32_0 : i32, i32
  }
  func.func @transform_8(%arg0: i32) -> (i32, i32) {
    %c0_i32 = arith.constant 0 : i32
    %c0_i32_0 = arith.constant 0 : i32
    %c0_i32_1 = arith.constant 0 : i32
    return %c0_i32, %c0_i32_0 : i32, i32
  }
  func.func @transform_9(%arg0: i32) -> (i32, i32) {
    %c0_i32 = arith.constant 0 : i32
    %c0_i32_0 = arith.constant 0 : i32
    %c0_i32_1 = arith.constant 0 : i32
    return %c0_i32, %c0_i32_0 : i32, i32
  }
  func.func @transform_10(%arg0: i32) -> (i32, i32) {
    %c0_i32 = arith.constant 0 : i32
    %c0_i32_0 = arith.constant 0 : i32
    %c0_i32_1 = arith.constant 0 : i32
    return %c0_i32, %c0_i32_0 : i32, i32
  }
  func.func @transform_11(%arg0: i32) -> (i32, i32) {
    %c0_i32 = arith.constant 0 : i32
    %c0_i32_0 = arith.constant 0 : i32
    %c0_i32_1 = arith.constant 0 : i32
    return %c0_i32, %c0_i32_0 : i32, i32
  }
  func.func @transform_12(%arg0: i32) -> (i32, i32) {
    %c0_i32 = arith.constant 0 : i32
    %c0_i32_0 = arith.constant 0 : i32
    %c0_i32_1 = arith.constant 0 : i32
    return %c0_i32, %c0_i32_0 : i32, i32
  }
}

module attributes {stable_mosaic.version = 11 : i64} {
  func.func @_pairwise_dma_kernel(%arg0: i32, %arg1: memref<1x8x32xf32, #tpu.memory_space<vmem>>, %arg2: memref<1x8x1xf32, #tpu.memory_space<vmem>>, %arg3: memref<128x32xf32, #tpu.memory_space<vmem>>, %arg4: memref<1x128xf32, #tpu.memory_space<vmem>>, %arg5: memref<128x1xf32, #tpu.memory_space<vmem>>, %arg6: memref<2x32x64xf32, #tpu.memory_space<vmem>>, %arg7: memref<2x1x64xf32, #tpu.memory_space<vmem>>, %arg8: memref<2x32x64xf32, #tpu.memory_space<vmem>>, %arg9: memref<2x1x64xf32, #tpu.memory_space<vmem>>, %arg10: memref<2x32x64xf32, #tpu.memory_space<vmem>>, %arg11: memref<2x1x64xf32, #tpu.memory_space<vmem>>, %arg12: memref<2x1x32xf32, #tpu.memory_space<vmem>>, %arg13: memref<2x1x1xf32, #tpu.memory_space<vmem>>, %arg14: memref<2x1x32xf32, #tpu.memory_space<vmem>>, %arg15: memref<2x1x1xf32, #tpu.memory_space<vmem>>, %arg16: memref<32x96xf32, #tpu.memory_space<vmem>>, %arg17: memref<1x96xf32, #tpu.memory_space<vmem>>, %arg18: memref<32x96xf32, #tpu.memory_space<vmem>>, %arg19: memref<1x96xf32, #tpu.memory_space<vmem>>, %arg20: memref<1x8x128xf32, #tpu.memory_space<vmem>>, %arg21: memref<1x1x32xf32, #tpu.memory_space<vmem>>, %arg22: memref<1x1x32xf32, #tpu.memory_space<vmem>>) attributes {dimension_semantics = [#tpu.dimension_semantics<parallel>], iteration_bounds = array<i64: 2>, scalar_prefetch = 0 : i64, scratch_operands = 0 : i64, tpu.core_type = #tpu.core_type<tc>, window_params = [{transform_indices = @transform_0, window_bounds = array<i64: 1, 8, 32>}, {transform_indices = @transform_1, window_bounds = array<i64: 1, 8, 1>}, {pipeline_mode = #tpu.pipeline_mode<synchronous>, transform_indices = @transform_2, window_bounds = array<i64: 128, 32>}, {pipeline_mode = #tpu.pipeline_mode<synchronous>, transform_indices = @transform_3, window_bounds = array<i64: 1, 128>}, {pipeline_mode = #tpu.pipeline_mode<synchronous>, transform_indices = @transform_4, window_bounds = array<i64: 128, 1>}, {pipeline_mode = #tpu.pipeline_mode<synchronous>, transform_indices = @transform_5, window_bounds = array<i64: 2, 32, 64>}, {pipeline_mode = #tpu.pipeline_mode<synchronous>, transform_indices = @transform_6, window_bounds = array<i64: 2, 1, 64>}, {pipeline_mode = #tpu.pipeline_mode<synchronous>, transform_indices = @transform_7, window_bounds = array<i64: 2, 32, 64>}, {pipeline_mode = #tpu.pipeline_mode<synchronous>, transform_indices = @transform_8, window_bounds = array<i64: 2, 1, 64>}, {pipeline_mode = #tpu.pipeline_mode<synchronous>, transform_indices = @transform_9, window_bounds = array<i64: 2, 32, 64>}, {pipeline_mode = #tpu.pipeline_mode<synchronous>, transform_indices = @transform_10, window_bounds = array<i64: 2, 1, 64>}, {pipeline_mode = #tpu.pipeline_mode<synchronous>, transform_indices = @transform_11, window_bounds = array<i64: 2, 1, 32>}, {pipeline_mode = #tpu.pipeline_mode<synchronous>, transform_indices = @transform_12, window_bounds = array<i64: 2, 1, 1>}, {pipeline_mode = #tpu.pipeline_mode<synchronous>, transform_indices = @transform_13, window_bounds = array<i64: 2, 1, 32>}, {pipeline_mode = #tpu.pipeline_mode<synchronous>, transform_indices = @transform_14, window_bounds = array<i64: 2, 1, 1>}, {pipeline_mode = #tpu.pipeline_mode<synchronous>, transform_indices = @transform_15, window_bounds = array<i64: 32, 96>}, {pipeline_mode = #tpu.pipeline_mode<synchronous>, transform_indices = @transform_16, window_bounds = array<i64: 1, 96>}, {pipeline_mode = #tpu.pipeline_mode<synchronous>, transform_indices = @transform_17, window_bounds = array<i64: 32, 96>}, {pipeline_mode = #tpu.pipeline_mode<synchronous>, transform_indices = @transform_18, window_bounds = array<i64: 1, 96>}, {transform_indices = @transform_19, window_bounds = array<i64: 1, 8, 128>}, {transform_indices = @transform_20, window_bounds = array<i64: 1, 1, 32>}, {transform_indices = @transform_21, window_bounds = array<i64: 1, 1, 32>}]} {
    %c0 = arith.constant 0 : index
    %c0_0 = arith.constant 0 : index
    %c0_1 = arith.constant 0 : index
    %0 = vector.load %arg1[%c0, %c0_0, %c0_1] : memref<1x8x32xf32, #tpu.memory_space<vmem>>, vector<1x8x32xf32>
    %1 = vector.shape_cast %0 : vector<1x8x32xf32> to vector<8x32xf32>
    %cst = arith.constant 0.000000e+00 : f32
    %2 = vector.broadcast %cst : f32 to vector<8x32xf32>
    %3 = arith.cmpf ogt, %1, %2 : vector<8x32xf32>
    %cst_2 = arith.constant 0.000000e+00 : f32
    %4 = vector.broadcast %cst_2 : f32 to vector<8x32xf32>
    %5 = arith.minimumf %1, %4 : vector<8x32xf32>
    %6 = math.exp %5 : vector<8x32xf32>
    %cst_3 = arith.constant 1.000000e+00 : f32
    %7 = vector.broadcast %cst_3 : f32 to vector<8x32xf32>
    %8 = arith.subf %6, %7 : vector<8x32xf32>
    %9 = arith.select %3, %1, %8 : vector<8x32xi1>, vector<8x32xf32>
    %c0_4 = arith.constant 0 : index
    %c0_5 = arith.constant 0 : index
    %c0_6 = arith.constant 0 : index
    %10 = vector.load %arg2[%c0_4, %c0_5, %c0_6] : memref<1x8x1xf32, #tpu.memory_space<vmem>>, vector<1x8x1xf32>
    %11 = vector.shape_cast %10 : vector<1x8x1xf32> to vector<8x1xf32>
    %c0_7 = arith.constant 0 : index
    %c0_8 = arith.constant 0 : index
    %12 = vector.load %arg3[%c0_7, %c0_8] : memref<128x32xf32, #tpu.memory_space<vmem>>, vector<128x32xf32>
    %c0_9 = arith.constant 0 : index
    %c0_10 = arith.constant 0 : index
    %13 = vector.load %arg4[%c0_9, %c0_10] : memref<1x128xf32, #tpu.memory_space<vmem>>, vector<1x128xf32>
    %c0_11 = arith.constant 0 : index
    %c0_12 = arith.constant 0 : index
    %14 = vector.load %arg5[%c0_11, %c0_12] : memref<128x1xf32, #tpu.memory_space<vmem>>, vector<128x1xf32>
    %cst_13 = arith.constant dense<0.000000e+00> : vector<8x128xf32>
    %15 = tpu.matmul %9, %12, %cst_13 {dimension_numbers = #tpu.dot_dimension_numbers<[1], [1], [0], [0], [0, 0, 1, 0], [], []>} : vector<8x32xf32>, vector<128x32xf32>, vector<8x128xf32> -> vector<8x128xf32>
    %16 = arith.negf %15 : vector<8x128xf32>
    %17 = math.exp %16 : vector<8x128xf32>
    %cst_14 = arith.constant 1.000000e+00 : f32
    %18 = vector.broadcast %cst_14 : f32 to vector<8x128xf32>
    %19 = arith.addf %18, %17 : vector<8x128xf32>
    %20 = arith.divf %18, %19 : vector<8x128xf32>
    %21 = vector.broadcast %11 : vector<8x1xf32> to vector<8x128xf32>
    %22 = vector.broadcast %13 : vector<1x128xf32> to vector<8x128xf32>
    %23 = arith.mulf %21, %22 : vector<8x128xf32>
    %24 = arith.mulf %20, %23 : vector<8x128xf32>
    %c0_15 = arith.constant 0 : index
    %c0_16 = arith.constant 0 : index
    %c0_17 = arith.constant 0 : index
    %25 = vector.load %arg20[%c0_15, %c0_16, %c0_17] : memref<1x8x128xf32, #tpu.memory_space<vmem>>, vector<1x8x128xf32>
    %26 = vector.shape_cast %25 : vector<1x8x128xf32> to vector<8x128xf32>
    %27 = vector.shape_cast %24 : vector<8x128xf32> to vector<1x8x128xf32>
    tpu.vector_store %arg20[%c0_15, %c0_16, %c0_17], %27 {strides = array<i32>} : memref<1x8x128xf32, #tpu.memory_space<vmem>>, vector<1x8x128xf32>,
    %28 = arith.truncf %24 : vector<8x128xf32> to vector<8x128xbf16>
    %29 = vector.broadcast %11 : vector<8x1xf32> to vector<8x32xf32>
    %30 = arith.mulf %9, %29 : vector<8x32xf32>
    %cst_18 = arith.constant dense<0.000000e+00> : vector<32xf32>
    %31 = vector.multi_reduction <add>, %30, %cst_18 [0] : vector<8x32xf32> to vector<32xf32>
    %32 = vector.shape_cast %31 : vector<32xf32> to vector<1x32xf32>
    %cst_19 = arith.constant dense<0.000000e+00> : vector<1xf32>
    %33 = vector.multi_reduction <add>, %11, %cst_19 [0] : vector<8x1xf32> to vector<1xf32>
    %34 = vector.shape_cast %33 : vector<1xf32> to vector<1x1xf32>
    %35 = vector.broadcast %34 : vector<1x1xf32> to vector<1x32xf32>
    %36 = arith.divf %32, %35 : vector<1x32xf32>
    %37 = vector.broadcast %14 : vector<128x1xf32> to vector<128x32xf32>
    %38 = arith.mulf %12, %37 : vector<128x32xf32>
    %cst_20 = arith.constant dense<0.000000e+00> : vector<32xf32>
    %39 = vector.multi_reduction <add>, %38, %cst_20 [0] : vector<128x32xf32> to vector<32xf32>
    %40 = vector.shape_cast %39 : vector<32xf32> to vector<1x32xf32>
    %cst_21 = arith.constant dense<0.000000e+00> : vector<1xf32>
    %41 = vector.multi_reduction <add>, %14, %cst_21 [0] : vector<128x1xf32> to vector<1xf32>
    %42 = vector.shape_cast %41 : vector<1xf32> to vector<1x1xf32>
    %43 = vector.broadcast %42 : vector<1x1xf32> to vector<1x32xf32>
    %44 = arith.divf %40, %43 : vector<1x32xf32>
    %45 = arith.mulf %36, %44 : vector<1x32xf32>
    %c0_22 = arith.constant 0 : index
    %c0_23 = arith.constant 0 : index
    %c0_24 = arith.constant 0 : index
    %46 = vector.load %arg6[%c0_22, %c0_23, %c0_24] : memref<2x32x64xf32, #tpu.memory_space<vmem>>, vector<1x32x64xf32>
    %47 = vector.shape_cast %46 : vector<1x32x64xf32> to vector<32x64xf32>
    %cst_25 = arith.constant dense<0.000000e+00> : vector<8x64xf32>
    %48 = tpu.matmul %9, %47, %cst_25 {dimension_numbers = #tpu.dot_dimension_numbers<[1], [0], [0], [1], [0, 0, 1, 1], [], []>} : vector<8x32xf32>, vector<32x64xf32>, vector<8x64xf32> -> vector<8x64xf32>
    %c0_26 = arith.constant 0 : index
    %c0_27 = arith.constant 0 : index
    %c0_28 = arith.constant 0 : index
    %49 = vector.load %arg7[%c0_26, %c0_27, %c0_28] : memref<2x1x64xf32, #tpu.memory_space<vmem>>, vector<1x1x64xf32>
    %50 = vector.shape_cast %49 : vector<1x1x64xf32> to vector<1x64xf32>
    %51 = vector.broadcast %50 : vector<1x64xf32> to vector<8x64xf32>
    %52 = arith.addf %48, %51 : vector<8x64xf32>
    %53 = math.tanh %52 : vector<8x64xf32>
    %c0_29 = arith.constant 0 : index
    %c0_30 = arith.constant 0 : index
    %c0_31 = arith.constant 0 : index
    %54 = vector.load %arg8[%c0_29, %c0_30, %c0_31] : memref<2x32x64xf32, #tpu.memory_space<vmem>>, vector<1x32x64xf32>
    %55 = vector.shape_cast %54 : vector<1x32x64xf32> to vector<32x64xf32>
    %cst_32 = arith.constant dense<0.000000e+00> : vector<128x64xf32>
    %56 = tpu.matmul %12, %55, %cst_32 {dimension_numbers = #tpu.dot_dimension_numbers<[1], [0], [0], [1], [0, 0, 1, 1], [], []>} : vector<128x32xf32>, vector<32x64xf32>, vector<128x64xf32> -> vector<128x64xf32>
    %c0_33 = arith.constant 0 : index
    %c0_34 = arith.constant 0 : index
    %c0_35 = arith.constant 0 : index
    %57 = vector.load %arg9[%c0_33, %c0_34, %c0_35] : memref<2x1x64xf32, #tpu.memory_space<vmem>>, vector<1x1x64xf32>
    %58 = vector.shape_cast %57 : vector<1x1x64xf32> to vector<1x64xf32>
    %59 = vector.broadcast %58 : vector<1x64xf32> to vector<128x64xf32>
    %60 = arith.addf %56, %59 : vector<128x64xf32>
    %61 = math.tanh %60 : vector<128x64xf32>
    %c0_36 = arith.constant 0 : index
    %c0_37 = arith.constant 0 : index
    %c0_38 = arith.constant 0 : index
    %62 = vector.load %arg10[%c0_36, %c0_37, %c0_38] : memref<2x32x64xf32, #tpu.memory_space<vmem>>, vector<1x32x64xf32>
    %63 = vector.shape_cast %62 : vector<1x32x64xf32> to vector<32x64xf32>
    %cst_39 = arith.constant dense<0.000000e+00> : vector<1x64xf32>
    %64 = tpu.matmul %45, %63, %cst_39 {dimension_numbers = #tpu.dot_dimension_numbers<[1], [0], [0], [1], [0, 0, 1, 1], [], []>} : vector<1x32xf32>, vector<32x64xf32>, vector<1x64xf32> -> vector<1x64xf32>
    %c0_40 = arith.constant 0 : index
    %c0_41 = arith.constant 0 : index
    %c0_42 = arith.constant 0 : index
    %65 = vector.load %arg11[%c0_40, %c0_41, %c0_42] : memref<2x1x64xf32, #tpu.memory_space<vmem>>, vector<1x1x64xf32>
    %66 = vector.shape_cast %65 : vector<1x1x64xf32> to vector<1x64xf32>
    %67 = arith.addf %64, %66 : vector<1x64xf32>
    %68 = math.tanh %67 : vector<1x64xf32>
    %69 = vector.extract_strided_slice %53 {offsets = [0, 0], sizes = [8, 32], strides = [1, 1]} : vector<8x64xf32> to vector<8x32xf32>
    %70 = vector.extract_strided_slice %53 {offsets = [0, 32], sizes = [8, 32], strides = [1, 1]} : vector<8x64xf32> to vector<8x32xf32>
    %71 = vector.extract_strided_slice %61 {offsets = [0, 0], sizes = [128, 32], strides = [1, 1]} : vector<128x64xf32> to vector<128x32xf32>
    %72 = vector.extract_strided_slice %61 {offsets = [0, 32], sizes = [128, 32], strides = [1, 1]} : vector<128x64xf32> to vector<128x32xf32>
    %73 = vector.extract_strided_slice %68 {offsets = [0, 0], sizes = [1, 32], strides = [1, 1]} : vector<1x64xf32> to vector<1x32xf32>
    %74 = vector.extract_strided_slice %68 {offsets = [0, 32], sizes = [1, 32], strides = [1, 1]} : vector<1x64xf32> to vector<1x32xf32>
    %75 = arith.truncf %69 : vector<8x32xf32> to vector<8x32xbf16>
    %cst_43 = arith.constant dense<0.000000e+00> : vector<128x32xf32>
    %76 = tpu.matmul %28, %75, %cst_43 {dimension_numbers = #tpu.dot_dimension_numbers<[0], [0], [1], [1], [0, 1, 1, 1], [], []>} : vector<8x128xbf16>, vector<8x32xbf16>, vector<128x32xf32> -> vector<128x32xf32>
    %77 = arith.truncf %71 : vector<128x32xf32> to vector<128x32xbf16>
    %cst_44 = arith.constant dense<0.000000e+00> : vector<8x32xf32>
    %78 = tpu.matmul %28, %77, %cst_44 {dimension_numbers = #tpu.dot_dimension_numbers<[1], [0], [0], [1], [0, 0, 1, 1], [], []>} : vector<8x128xbf16>, vector<128x32xbf16>, vector<8x32xf32> -> vector<8x32xf32>
    %79 = vector.broadcast %73 : vector<1x32xf32> to vector<8x32xf32>
    %80 = arith.mulf %70, %79 : vector<8x32xf32>
    %81 = arith.mulf %80, %78 : vector<8x32xf32>
    %82 = vector.broadcast %74 : vector<1x32xf32> to vector<128x32xf32>
    %83 = arith.mulf %72, %82 : vector<128x32xf32>
    %84 = arith.mulf %83, %76 : vector<128x32xf32>
    %c0_45 = arith.constant 0 : index
    %c0_46 = arith.constant 0 : index
    %c0_47 = arith.constant 0 : index
    %85 = vector.load %arg12[%c0_45, %c0_46, %c0_47] : memref<2x1x32xf32, #tpu.memory_space<vmem>>, vector<1x1x32xf32>
    %86 = vector.shape_cast %85 : vector<1x1x32xf32> to vector<1x32xf32>
    %87 = vector.broadcast %86 : vector<1x32xf32> to vector<8x32xf32>
    %88 = arith.mulf %81, %87 : vector<8x32xf32>
    %cst_48 = arith.constant dense<0.000000e+00> : vector<8xf32>
    %89 = vector.multi_reduction <add>, %88, %cst_48 [1] : vector<8x32xf32> to vector<8xf32>
    %90 = vector.shape_cast %89 : vector<8xf32> to vector<8x1xf32>
    %c0_49 = arith.constant 0 : index
    %c0_50 = arith.constant 0 : index
    %c0_51 = arith.constant 0 : index
    %91 = vector.load %arg13[%c0_49, %c0_50, %c0_51] : memref<2x1x1xf32, #tpu.memory_space<vmem>>, vector<1x1x1xf32>
    %92 = vector.shape_cast %91 : vector<1x1x1xf32> to vector<1x1xf32>
    %93 = vector.broadcast %92 : vector<1x1xf32> to vector<8x1xf32>
    %94 = arith.addf %90, %93 : vector<8x1xf32>
    %c0_52 = arith.constant 0 : index
    %c0_53 = arith.constant 0 : index
    %c0_54 = arith.constant 0 : index
    %95 = vector.load %arg14[%c0_52, %c0_53, %c0_54] : memref<2x1x32xf32, #tpu.memory_space<vmem>>, vector<1x1x32xf32>
    %96 = vector.shape_cast %95 : vector<1x1x32xf32> to vector<1x32xf32>
    %97 = vector.broadcast %96 : vector<1x32xf32> to vector<128x32xf32>
    %98 = arith.mulf %84, %97 : vector<128x32xf32>
    %cst_55 = arith.constant dense<0.000000e+00> : vector<128xf32>
    %99 = vector.multi_reduction <add>, %98, %cst_55 [1] : vector<128x32xf32> to vector<128xf32>
    %100 = vector.shape_cast %99 : vector<128xf32> to vector<128x1xf32>
    %c0_56 = arith.constant 0 : index
    %c0_57 = arith.constant 0 : index
    %c0_58 = arith.constant 0 : index
    %101 = vector.load %arg15[%c0_56, %c0_57, %c0_58] : memref<2x1x1xf32, #tpu.memory_space<vmem>>, vector<1x1x1xf32>
    %102 = vector.shape_cast %101 : vector<1x1x1xf32> to vector<1x1xf32>
    %103 = vector.broadcast %102 : vector<1x1xf32> to vector<128x1xf32>
    %104 = arith.addf %100, %103 : vector<128x1xf32>
    %cst_59 = arith.constant dense<0xFF800000> : vector<1xf32>
    %105 = vector.multi_reduction <maximumf>, %94, %cst_59 [0] : vector<8x1xf32> to vector<1xf32>
    %106 = vector.shape_cast %105 : vector<1xf32> to vector<1x1xf32>
    %107 = vector.broadcast %106 : vector<1x1xf32> to vector<8x1xf32>
    %108 = arith.subf %94, %107 : vector<8x1xf32>
    %109 = math.exp %108 : vector<8x1xf32>
    %110 = arith.mulf %109, %11 : vector<8x1xf32>
    %cst_60 = arith.constant dense<0.000000e+00> : vector<1xf32>
    %111 = vector.multi_reduction <add>, %110, %cst_60 [0] : vector<8x1xf32> to vector<1xf32>
    %112 = vector.shape_cast %111 : vector<1xf32> to vector<1x1xf32>
    %cst_61 = arith.constant 9.99999997E-7 : f32
    %113 = vector.broadcast %cst_61 : f32 to vector<1x1xf32>
    %114 = arith.addf %112, %113 : vector<1x1xf32>
    %115 = vector.broadcast %114 : vector<1x1xf32> to vector<8x1xf32>
    %116 = arith.divf %110, %115 : vector<8x1xf32>
    %cst_62 = arith.constant dense<0xFF800000> : vector<1xf32>
    %117 = vector.multi_reduction <maximumf>, %104, %cst_62 [0] : vector<128x1xf32> to vector<1xf32>
    %118 = vector.shape_cast %117 : vector<1xf32> to vector<1x1xf32>
    %119 = vector.broadcast %118 : vector<1x1xf32> to vector<128x1xf32>
    %120 = arith.subf %104, %119 : vector<128x1xf32>
    %121 = math.exp %120 : vector<128x1xf32>
    %122 = arith.mulf %121, %14 : vector<128x1xf32>
    %cst_63 = arith.constant dense<0.000000e+00> : vector<1xf32>
    %123 = vector.multi_reduction <add>, %122, %cst_63 [0] : vector<128x1xf32> to vector<1xf32>
    %124 = vector.shape_cast %123 : vector<1xf32> to vector<1x1xf32>
    %cst_64 = arith.constant 9.99999997E-7 : f32
    %125 = vector.broadcast %cst_64 : f32 to vector<1x1xf32>
    %126 = arith.addf %124, %125 : vector<1x1xf32>
    %127 = vector.broadcast %126 : vector<1x1xf32> to vector<128x1xf32>
    %128 = arith.divf %122, %127 : vector<128x1xf32>
    %129 = vector.broadcast %116 : vector<8x1xf32> to vector<8x32xf32>
    %130 = arith.mulf %9, %129 : vector<8x32xf32>
    %cst_65 = arith.constant dense<0.000000e+00> : vector<32xf32>
    %131 = vector.multi_reduction <add>, %130, %cst_65 [0] : vector<8x32xf32> to vector<32xf32>
    %132 = vector.shape_cast %131 : vector<32xf32> to vector<1x32xf32>
    %133 = vector.broadcast %128 : vector<128x1xf32> to vector<128x32xf32>
    %134 = arith.mulf %12, %133 : vector<128x32xf32>
    %cst_66 = arith.constant dense<0.000000e+00> : vector<32xf32>
    %135 = vector.multi_reduction <add>, %134, %cst_66 [0] : vector<128x32xf32> to vector<32xf32>
    %136 = vector.shape_cast %135 : vector<32xf32> to vector<1x32xf32>
    %137 = arith.mulf %132, %136 : vector<1x32xf32>
    %c0_67 = arith.constant 0 : index
    %c0_68 = arith.constant 0 : index
    %138 = vector.load %arg16[%c0_67, %c0_68] : memref<32x96xf32, #tpu.memory_space<vmem>>, vector<32x96xf32>
    %cst_69 = arith.constant dense<0.000000e+00> : vector<1x96xf32>
    %139 = tpu.matmul %45, %138, %cst_69 {dimension_numbers = #tpu.dot_dimension_numbers<[1], [0], [0], [1], [0, 0, 1, 1], [], []>} : vector<1x32xf32>, vector<32x96xf32>, vector<1x96xf32> -> vector<1x96xf32>
    %c0_70 = arith.constant 0 : index
    %c0_71 = arith.constant 0 : index
    %140 = vector.load %arg17[%c0_70, %c0_71] : memref<1x96xf32, #tpu.memory_space<vmem>>, vector<1x96xf32>
    %141 = arith.addf %139, %140 : vector<1x96xf32>
    %c0_72 = arith.constant 0 : index
    %c0_73 = arith.constant 0 : index
    %142 = vector.load %arg18[%c0_72, %c0_73] : memref<32x96xf32, #tpu.memory_space<vmem>>, vector<32x96xf32>
    %cst_74 = arith.constant dense<0.000000e+00> : vector<1x96xf32>
    %143 = tpu.matmul %137, %142, %cst_74 {dimension_numbers = #tpu.dot_dimension_numbers<[1], [0], [0], [1], [0, 0, 1, 1], [], []>} : vector<1x32xf32>, vector<32x96xf32>, vector<1x96xf32> -> vector<1x96xf32>
    %c0_75 = arith.constant 0 : index
    %c0_76 = arith.constant 0 : index
    %144 = vector.load %arg19[%c0_75, %c0_76] : memref<1x96xf32, #tpu.memory_space<vmem>>, vector<1x96xf32>
    %145 = arith.addf %143, %144 : vector<1x96xf32>
    %146 = vector.extract_strided_slice %141 {offsets = [0, 0], sizes = [1, 32], strides = [1, 1]} : vector<1x96xf32> to vector<1x32xf32>
    %147 = vector.extract_strided_slice %145 {offsets = [0, 0], sizes = [1, 32], strides = [1, 1]} : vector<1x96xf32> to vector<1x32xf32>
    %148 = arith.addf %146, %147 : vector<1x32xf32>
    %149 = arith.negf %148 : vector<1x32xf32>
    %150 = math.exp %149 : vector<1x32xf32>
    %cst_77 = arith.constant 1.000000e+00 : f32
    %151 = vector.broadcast %cst_77 : f32 to vector<1x32xf32>
    %152 = arith.addf %151, %150 : vector<1x32xf32>
    %153 = arith.divf %151, %152 : vector<1x32xf32>
    %154 = vector.extract_strided_slice %141 {offsets = [0, 32], sizes = [1, 32], strides = [1, 1]} : vector<1x96xf32> to vector<1x32xf32>
    %155 = vector.extract_strided_slice %145 {offsets = [0, 32], sizes = [1, 32], strides = [1, 1]} : vector<1x96xf32> to vector<1x32xf32>
    %156 = arith.addf %154, %155 : vector<1x32xf32>
    %157 = arith.negf %156 : vector<1x32xf32>
    %158 = math.exp %157 : vector<1x32xf32>
    %cst_78 = arith.constant 1.000000e+00 : f32
    %159 = vector.broadcast %cst_78 : f32 to vector<1x32xf32>
    %160 = arith.addf %159, %158 : vector<1x32xf32>
    %161 = arith.divf %159, %160 : vector<1x32xf32>
    %162 = vector.extract_strided_slice %141 {offsets = [0, 64], sizes = [1, 32], strides = [1, 1]} : vector<1x96xf32> to vector<1x32xf32>
    %163 = vector.extract_strided_slice %145 {offsets = [0, 64], sizes = [1, 32], strides = [1, 1]} : vector<1x96xf32> to vector<1x32xf32>
    %164 = arith.mulf %153, %163 : vector<1x32xf32>
    %165 = arith.addf %162, %164 : vector<1x32xf32>
    %166 = math.tanh %165 : vector<1x32xf32>
    %cst_79 = arith.constant 1.000000e+00 : f32
    %167 = vector.broadcast %cst_79 : f32 to vector<1x32xf32>
    %168 = arith.subf %167, %161 : vector<1x32xf32>
    %169 = arith.mulf %168, %166 : vector<1x32xf32>
    %170 = arith.mulf %161, %137 : vector<1x32xf32>
    %171 = arith.addf %169, %170 : vector<1x32xf32>
    %c1 = arith.constant 1 : index
    %c0_80 = arith.constant 0 : index
    %c0_81 = arith.constant 0 : index
    %172 = vector.load %arg6[%c1, %c0_80, %c0_81] : memref<2x32x64xf32, #tpu.memory_space<vmem>>, vector<1x32x64xf32>
    %173 = vector.shape_cast %172 : vector<1x32x64xf32> to vector<32x64xf32>
    %cst_82 = arith.constant dense<0.000000e+00> : vector<8x64xf32>
    %174 = tpu.matmul %9, %173, %cst_82 {dimension_numbers = #tpu.dot_dimension_numbers<[1], [0], [0], [1], [0, 0, 1, 1], [], []>} : vector<8x32xf32>, vector<32x64xf32>, vector<8x64xf32> -> vector<8x64xf32>
    %c1_83 = arith.constant 1 : index
    %c0_84 = arith.constant 0 : index
    %c0_85 = arith.constant 0 : index
    %175 = vector.load %arg7[%c1_83, %c0_84, %c0_85] : memref<2x1x64xf32, #tpu.memory_space<vmem>>, vector<1x1x64xf32>
    %176 = vector.shape_cast %175 : vector<1x1x64xf32> to vector<1x64xf32>
    %177 = vector.broadcast %176 : vector<1x64xf32> to vector<8x64xf32>
    %178 = arith.addf %174, %177 : vector<8x64xf32>
    %179 = math.tanh %178 : vector<8x64xf32>
    %c1_86 = arith.constant 1 : index
    %c0_87 = arith.constant 0 : index
    %c0_88 = arith.constant 0 : index
    %180 = vector.load %arg8[%c1_86, %c0_87, %c0_88] : memref<2x32x64xf32, #tpu.memory_space<vmem>>, vector<1x32x64xf32>
    %181 = vector.shape_cast %180 : vector<1x32x64xf32> to vector<32x64xf32>
    %cst_89 = arith.constant dense<0.000000e+00> : vector<128x64xf32>
    %182 = tpu.matmul %12, %181, %cst_89 {dimension_numbers = #tpu.dot_dimension_numbers<[1], [0], [0], [1], [0, 0, 1, 1], [], []>} : vector<128x32xf32>, vector<32x64xf32>, vector<128x64xf32> -> vector<128x64xf32>
    %c1_90 = arith.constant 1 : index
    %c0_91 = arith.constant 0 : index
    %c0_92 = arith.constant 0 : index
    %183 = vector.load %arg9[%c1_90, %c0_91, %c0_92] : memref<2x1x64xf32, #tpu.memory_space<vmem>>, vector<1x1x64xf32>
    %184 = vector.shape_cast %183 : vector<1x1x64xf32> to vector<1x64xf32>
    %185 = vector.broadcast %184 : vector<1x64xf32> to vector<128x64xf32>
    %186 = arith.addf %182, %185 : vector<128x64xf32>
    %187 = math.tanh %186 : vector<128x64xf32>
    %c1_93 = arith.constant 1 : index
    %c0_94 = arith.constant 0 : index
    %c0_95 = arith.constant 0 : index
    %188 = vector.load %arg10[%c1_93, %c0_94, %c0_95] : memref<2x32x64xf32, #tpu.memory_space<vmem>>, vector<1x32x64xf32>
    %189 = vector.shape_cast %188 : vector<1x32x64xf32> to vector<32x64xf32>
    %cst_96 = arith.constant dense<0.000000e+00> : vector<1x64xf32>
    %190 = tpu.matmul %171, %189, %cst_96 {dimension_numbers = #tpu.dot_dimension_numbers<[1], [0], [0], [1], [0, 0, 1, 1], [], []>} : vector<1x32xf32>, vector<32x64xf32>, vector<1x64xf32> -> vector<1x64xf32>
    %c1_97 = arith.constant 1 : index
    %c0_98 = arith.constant 0 : index
    %c0_99 = arith.constant 0 : index
    %191 = vector.load %arg11[%c1_97, %c0_98, %c0_99] : memref<2x1x64xf32, #tpu.memory_space<vmem>>, vector<1x1x64xf32>
    %192 = vector.shape_cast %191 : vector<1x1x64xf32> to vector<1x64xf32>
    %193 = arith.addf %190, %192 : vector<1x64xf32>
    %194 = math.tanh %193 : vector<1x64xf32>
    %195 = vector.extract_strided_slice %179 {offsets = [0, 0], sizes = [8, 32], strides = [1, 1]} : vector<8x64xf32> to vector<8x32xf32>
    %196 = vector.extract_strided_slice %179 {offsets = [0, 32], sizes = [8, 32], strides = [1, 1]} : vector<8x64xf32> to vector<8x32xf32>
    %197 = vector.extract_strided_slice %187 {offsets = [0, 0], sizes = [128, 32], strides = [1, 1]} : vector<128x64xf32> to vector<128x32xf32>
    %198 = vector.extract_strided_slice %187 {offsets = [0, 32], sizes = [128, 32], strides = [1, 1]} : vector<128x64xf32> to vector<128x32xf32>
    %199 = vector.extract_strided_slice %194 {offsets = [0, 0], sizes = [1, 32], strides = [1, 1]} : vector<1x64xf32> to vector<1x32xf32>
    %200 = vector.extract_strided_slice %194 {offsets = [0, 32], sizes = [1, 32], strides = [1, 1]} : vector<1x64xf32> to vector<1x32xf32>
    %201 = arith.truncf %195 : vector<8x32xf32> to vector<8x32xbf16>
    %cst_100 = arith.constant dense<0.000000e+00> : vector<128x32xf32>
    %202 = tpu.matmul %28, %201, %cst_100 {dimension_numbers = #tpu.dot_dimension_numbers<[0], [0], [1], [1], [0, 1, 1, 1], [], []>} : vector<8x128xbf16>, vector<8x32xbf16>, vector<128x32xf32> -> vector<128x32xf32>
    %203 = arith.truncf %197 : vector<128x32xf32> to vector<128x32xbf16>
    %cst_101 = arith.constant dense<0.000000e+00> : vector<8x32xf32>
    %204 = tpu.matmul %28, %203, %cst_101 {dimension_numbers = #tpu.dot_dimension_numbers<[1], [0], [0], [1], [0, 0, 1, 1], [], []>} : vector<8x128xbf16>, vector<128x32xbf16>, vector<8x32xf32> -> vector<8x32xf32>
    %205 = vector.broadcast %199 : vector<1x32xf32> to vector<8x32xf32>
    %206 = arith.mulf %196, %205 : vector<8x32xf32>
    %207 = arith.mulf %206, %204 : vector<8x32xf32>
    %208 = vector.broadcast %200 : vector<1x32xf32> to vector<128x32xf32>
    %209 = arith.mulf %198, %208 : vector<128x32xf32>
    %210 = arith.mulf %209, %202 : vector<128x32xf32>
    %c1_102 = arith.constant 1 : index
    %c0_103 = arith.constant 0 : index
    %c0_104 = arith.constant 0 : index
    %211 = vector.load %arg12[%c1_102, %c0_103, %c0_104] : memref<2x1x32xf32, #tpu.memory_space<vmem>>, vector<1x1x32xf32>
    %212 = vector.shape_cast %211 : vector<1x1x32xf32> to vector<1x32xf32>
    %213 = vector.broadcast %212 : vector<1x32xf32> to vector<8x32xf32>
    %214 = arith.mulf %207, %213 : vector<8x32xf32>
    %cst_105 = arith.constant dense<0.000000e+00> : vector<8xf32>
    %215 = vector.multi_reduction <add>, %214, %cst_105 [1] : vector<8x32xf32> to vector<8xf32>
    %216 = vector.shape_cast %215 : vector<8xf32> to vector<8x1xf32>
    %c1_106 = arith.constant 1 : index
    %c0_107 = arith.constant 0 : index
    %c0_108 = arith.constant 0 : index
    %217 = vector.load %arg13[%c1_106, %c0_107, %c0_108] : memref<2x1x1xf32, #tpu.memory_space<vmem>>, vector<1x1x1xf32>
    %218 = vector.shape_cast %217 : vector<1x1x1xf32> to vector<1x1xf32>
    %219 = vector.broadcast %218 : vector<1x1xf32> to vector<8x1xf32>
    %220 = arith.addf %216, %219 : vector<8x1xf32>
    %c1_109 = arith.constant 1 : index
    %c0_110 = arith.constant 0 : index
    %c0_111 = arith.constant 0 : index
    %221 = vector.load %arg14[%c1_109, %c0_110, %c0_111] : memref<2x1x32xf32, #tpu.memory_space<vmem>>, vector<1x1x32xf32>
    %222 = vector.shape_cast %221 : vector<1x1x32xf32> to vector<1x32xf32>
    %223 = vector.broadcast %222 : vector<1x32xf32> to vector<128x32xf32>
    %224 = arith.mulf %210, %223 : vector<128x32xf32>
    %cst_112 = arith.constant dense<0.000000e+00> : vector<128xf32>
    %225 = vector.multi_reduction <add>, %224, %cst_112 [1] : vector<128x32xf32> to vector<128xf32>
    %226 = vector.shape_cast %225 : vector<128xf32> to vector<128x1xf32>
    %c1_113 = arith.constant 1 : index
    %c0_114 = arith.constant 0 : index
    %c0_115 = arith.constant 0 : index
    %227 = vector.load %arg15[%c1_113, %c0_114, %c0_115] : memref<2x1x1xf32, #tpu.memory_space<vmem>>, vector<1x1x1xf32>
    %228 = vector.shape_cast %227 : vector<1x1x1xf32> to vector<1x1xf32>
    %229 = vector.broadcast %228 : vector<1x1xf32> to vector<128x1xf32>
    %230 = arith.addf %226, %229 : vector<128x1xf32>
    %cst_116 = arith.constant dense<0xFF800000> : vector<1xf32>
    %231 = vector.multi_reduction <maximumf>, %220, %cst_116 [0] : vector<8x1xf32> to vector<1xf32>
    %232 = vector.shape_cast %231 : vector<1xf32> to vector<1x1xf32>
    %233 = vector.broadcast %232 : vector<1x1xf32> to vector<8x1xf32>
    %234 = arith.subf %220, %233 : vector<8x1xf32>
    %235 = math.exp %234 : vector<8x1xf32>
    %236 = arith.mulf %235, %11 : vector<8x1xf32>
    %cst_117 = arith.constant dense<0.000000e+00> : vector<1xf32>
    %237 = vector.multi_reduction <add>, %236, %cst_117 [0] : vector<8x1xf32> to vector<1xf32>
    %238 = vector.shape_cast %237 : vector<1xf32> to vector<1x1xf32>
    %cst_118 = arith.constant 9.99999997E-7 : f32
    %239 = vector.broadcast %cst_118 : f32 to vector<1x1xf32>
    %240 = arith.addf %238, %239 : vector<1x1xf32>
    %241 = vector.broadcast %240 : vector<1x1xf32> to vector<8x1xf32>
    %242 = arith.divf %236, %241 : vector<8x1xf32>
    %cst_119 = arith.constant dense<0xFF800000> : vector<1xf32>
    %243 = vector.multi_reduction <maximumf>, %230, %cst_119 [0] : vector<128x1xf32> to vector<1xf32>
    %244 = vector.shape_cast %243 : vector<1xf32> to vector<1x1xf32>
    %245 = vector.broadcast %244 : vector<1x1xf32> to vector<128x1xf32>
    %246 = arith.subf %230, %245 : vector<128x1xf32>
    %247 = math.exp %246 : vector<128x1xf32>
    %248 = arith.mulf %247, %14 : vector<128x1xf32>
    %cst_120 = arith.constant dense<0.000000e+00> : vector<1xf32>
    %249 = vector.multi_reduction <add>, %248, %cst_120 [0] : vector<128x1xf32> to vector<1xf32>
    %250 = vector.shape_cast %249 : vector<1xf32> to vector<1x1xf32>
    %cst_121 = arith.constant 9.99999997E-7 : f32
    %251 = vector.broadcast %cst_121 : f32 to vector<1x1xf32>
    %252 = arith.addf %250, %251 : vector<1x1xf32>
    %253 = vector.broadcast %252 : vector<1x1xf32> to vector<128x1xf32>
    %254 = arith.divf %248, %253 : vector<128x1xf32>
    %255 = vector.broadcast %242 : vector<8x1xf32> to vector<8x32xf32>
    %256 = arith.mulf %9, %255 : vector<8x32xf32>
    %cst_122 = arith.constant dense<0.000000e+00> : vector<32xf32>
    %257 = vector.multi_reduction <add>, %256, %cst_122 [0] : vector<8x32xf32> to vector<32xf32>
    %258 = vector.shape_cast %257 : vector<32xf32> to vector<1x32xf32>
    %259 = vector.broadcast %254 : vector<128x1xf32> to vector<128x32xf32>
    %260 = arith.mulf %12, %259 : vector<128x32xf32>
    %cst_123 = arith.constant dense<0.000000e+00> : vector<32xf32>
    %261 = vector.multi_reduction <add>, %260, %cst_123 [0] : vector<128x32xf32> to vector<32xf32>
    %262 = vector.shape_cast %261 : vector<32xf32> to vector<1x32xf32>
    %c0_124 = arith.constant 0 : index
    %c0_125 = arith.constant 0 : index
    %c0_126 = arith.constant 0 : index
    %263 = vector.load %arg21[%c0_124, %c0_125, %c0_126] : memref<1x1x32xf32, #tpu.memory_space<vmem>>, vector<1x1x32xf32>
    %264 = vector.shape_cast %263 : vector<1x1x32xf32> to vector<1x32xf32>
    %265 = vector.shape_cast %258 : vector<1x32xf32> to vector<1x1x32xf32>
    tpu.vector_store %arg21[%c0_124, %c0_125, %c0_126], %265 {strides = array<i32>} : memref<1x1x32xf32, #tpu.memory_space<vmem>>, vector<1x1x32xf32>,
    %c0_127 = arith.constant 0 : index
    %c0_128 = arith.constant 0 : index
    %c0_129 = arith.constant 0 : index
    %266 = vector.load %arg22[%c0_127, %c0_128, %c0_129] : memref<1x1x32xf32, #tpu.memory_space<vmem>>, vector<1x1x32xf32>
    %267 = vector.shape_cast %266 : vector<1x1x32xf32> to vector<1x32xf32>
    %268 = vector.shape_cast %262 : vector<1x32xf32> to vector<1x1x32xf32>
    tpu.vector_store %arg22[%c0_127, %c0_128, %c0_129], %268 {strides = array<i32>} : memref<1x1x32xf32, #tpu.memory_space<vmem>>, vector<1x1x32xf32>,
    return
  }
  func.func @transform_0(%arg0: i32) -> (i32, i32, i32) {
    %c0_i32 = arith.constant 0 : i32
    %c0_i32_0 = arith.constant 0 : i32
    %c0_i32_1 = arith.constant 0 : i32
    return %arg0, %c0_i32, %c0_i32_0 : i32, i32, i32
  }
  func.func @transform_1(%arg0: i32) -> (i32, i32, i32) {
    %c0_i32 = arith.constant 0 : i32
    %c0_i32_0 = arith.constant 0 : i32
    %c0_i32_1 = arith.constant 0 : i32
    return %arg0, %c0_i32, %c0_i32_0 : i32, i32, i32
  }
  func.func @transform_2(%arg0: i32) -> (i32, i32) {
    %c0_i32 = arith.constant 0 : i32
    %c0_i32_0 = arith.constant 0 : i32
    %c0_i32_1 = arith.constant 0 : i32
    return %c0_i32, %c0_i32_0 : i32, i32
  }
  func.func @transform_3(%arg0: i32) -> (i32, i32) {
    %c0_i32 = arith.constant 0 : i32
    %c0_i32_0 = arith.constant 0 : i32
    %c0_i32_1 = arith.constant 0 : i32
    return %c0_i32, %c0_i32_0 : i32, i32
  }
  func.func @transform_4(%arg0: i32) -> (i32, i32) {
    %c0_i32 = arith.constant 0 : i32
    %c0_i32_0 = arith.constant 0 : i32
    %c0_i32_1 = arith.constant 0 : i32
    return %c0_i32, %c0_i32_0 : i32, i32
  }
  func.func @transform_5(%arg0: i32) -> (i32, i32, i32) {
    %c0_i32 = arith.constant 0 : i32
    %c0_i32_0 = arith.constant 0 : i32
    %c0_i32_1 = arith.constant 0 : i32
    %c0_i32_2 = arith.constant 0 : i32
    return %c0_i32, %c0_i32_0, %c0_i32_1 : i32, i32, i32
  }
  func.func @transform_6(%arg0: i32) -> (i32, i32, i32) {
    %c0_i32 = arith.constant 0 : i32
    %c0_i32_0 = arith.constant 0 : i32
    %c0_i32_1 = arith.constant 0 : i32
    %c0_i32_2 = arith.constant 0 : i32
    return %c0_i32, %c0_i32_0, %c0_i32_1 : i32, i32, i32
  }
  func.func @transform_7(%arg0: i32) -> (i32, i32, i32) {
    %c0_i32 = arith.constant 0 : i32
    %c0_i32_0 = arith.constant 0 : i32
    %c0_i32_1 = arith.constant 0 : i32
    %c0_i32_2 = arith.constant 0 : i32
    return %c0_i32, %c0_i32_0, %c0_i32_1 : i32, i32, i32
  }
  func.func @transform_8(%arg0: i32) -> (i32, i32, i32) {
    %c0_i32 = arith.constant 0 : i32
    %c0_i32_0 = arith.constant 0 : i32
    %c0_i32_1 = arith.constant 0 : i32
    %c0_i32_2 = arith.constant 0 : i32
    return %c0_i32, %c0_i32_0, %c0_i32_1 : i32, i32, i32
  }
  func.func @transform_9(%arg0: i32) -> (i32, i32, i32) {
    %c0_i32 = arith.constant 0 : i32
    %c0_i32_0 = arith.constant 0 : i32
    %c0_i32_1 = arith.constant 0 : i32
    %c0_i32_2 = arith.constant 0 : i32
    return %c0_i32, %c0_i32_0, %c0_i32_1 : i32, i32, i32
  }
  func.func @transform_10(%arg0: i32) -> (i32, i32, i32) {
    %c0_i32 = arith.constant 0 : i32
    %c0_i32_0 = arith.constant 0 : i32
    %c0_i32_1 = arith.constant 0 : i32
    %c0_i32_2 = arith.constant 0 : i32
    return %c0_i32, %c0_i32_0, %c0_i32_1 : i32, i32, i32
  }
  func.func @transform_11(%arg0: i32) -> (i32, i32, i32) {
    %c0_i32 = arith.constant 0 : i32
    %c0_i32_0 = arith.constant 0 : i32
    %c0_i32_1 = arith.constant 0 : i32
    %c0_i32_2 = arith.constant 0 : i32
    return %c0_i32, %c0_i32_0, %c0_i32_1 : i32, i32, i32
  }
  func.func @transform_12(%arg0: i32) -> (i32, i32, i32) {
    %c0_i32 = arith.constant 0 : i32
    %c0_i32_0 = arith.constant 0 : i32
    %c0_i32_1 = arith.constant 0 : i32
    %c0_i32_2 = arith.constant 0 : i32
    return %c0_i32, %c0_i32_0, %c0_i32_1 : i32, i32, i32
  }
  func.func @transform_13(%arg0: i32) -> (i32, i32, i32) {
    %c0_i32 = arith.constant 0 : i32
    %c0_i32_0 = arith.constant 0 : i32
    %c0_i32_1 = arith.constant 0 : i32
    %c0_i32_2 = arith.constant 0 : i32
    return %c0_i32, %c0_i32_0, %c0_i32_1 : i32, i32, i32
  }
  func.func @transform_14(%arg0: i32) -> (i32, i32, i32) {
    %c0_i32 = arith.constant 0 : i32
    %c0_i32_0 = arith.constant 0 : i32
    %c0_i32_1 = arith.constant 0 : i32
    %c0_i32_2 = arith.constant 0 : i32
    return %c0_i32, %c0_i32_0, %c0_i32_1 : i32, i32, i32
  }
  func.func @transform_15(%arg0: i32) -> (i32, i32) {
    %c0_i32 = arith.constant 0 : i32
    %c0_i32_0 = arith.constant 0 : i32
    %c0_i32_1 = arith.constant 0 : i32
    return %c0_i32, %c0_i32_0 : i32, i32
  }
  func.func @transform_16(%arg0: i32) -> (i32, i32) {
    %c0_i32 = arith.constant 0 : i32
    %c0_i32_0 = arith.constant 0 : i32
    %c0_i32_1 = arith.constant 0 : i32
    return %c0_i32, %c0_i32_0 : i32, i32
  }
  func.func @transform_17(%arg0: i32) -> (i32, i32) {
    %c0_i32 = arith.constant 0 : i32
    %c0_i32_0 = arith.constant 0 : i32
    %c0_i32_1 = arith.constant 0 : i32
    return %c0_i32, %c0_i32_0 : i32, i32
  }
  func.func @transform_18(%arg0: i32) -> (i32, i32) {
    %c0_i32 = arith.constant 0 : i32
    %c0_i32_0 = arith.constant 0 : i32
    %c0_i32_1 = arith.constant 0 : i32
    return %c0_i32, %c0_i32_0 : i32, i32
  }
  func.func @transform_19(%arg0: i32) -> (i32, i32, i32) {
    %c0_i32 = arith.constant 0 : i32
    %c0_i32_0 = arith.constant 0 : i32
    %c0_i32_1 = arith.constant 0 : i32
    return %arg0, %c0_i32, %c0_i32_0 : i32, i32, i32
  }
  func.func @transform_20(%arg0: i32) -> (i32, i32, i32) {
    %c0_i32 = arith.constant 0 : i32
    %c0_i32_0 = arith.constant 0 : i32
    %c0_i32_1 = arith.constant 0 : i32
    return %arg0, %c0_i32, %c0_i32_0 : i32, i32, i32
  }
  func.func @transform_21(%arg0: i32) -> (i32, i32, i32) {
    %c0_i32 = arith.constant 0 : i32
    %c0_i32_0 = arith.constant 0 : i32
    %c0_i32_1 = arith.constant 0 : i32
    return %arg0, %c0_i32, %c0_i32_0 : i32, i32, i32
  }
}

module attributes {stable_mosaic.version = 11 : i64} {
  func.func @_pred_head_kernel(%arg0: i32, %arg1: memref<2x2048xf32, #tpu.memory_space<vmem>>, %arg2: memref<2048x32xf32, #tpu.memory_space<vmem>>, %arg3: memref<1x32xf32, #tpu.memory_space<vmem>>, %arg4: memref<32x32xf32, #tpu.memory_space<vmem>>, %arg5: memref<1x32xf32, #tpu.memory_space<vmem>>, %arg6: memref<32x32xf32, #tpu.memory_space<vmem>>, %arg7: memref<1x32xf32, #tpu.memory_space<vmem>>, %arg8: memref<32x1xf32, #tpu.memory_space<vmem>>, %arg9: memref<1x1xf32, #tpu.memory_space<vmem>>, %arg10: memref<2x1xf32, #tpu.memory_space<vmem>>) attributes {dimension_semantics = [#tpu.dimension_semantics<arbitrary>], iteration_bounds = array<i64: 1>, scalar_prefetch = 0 : i64, scratch_operands = 0 : i64, tpu.core_type = #tpu.core_type<tc>, window_params = [{pipeline_mode = #tpu.pipeline_mode<synchronous>, transform_indices = @transform_0, window_bounds = array<i64: 2, 2048>}, {pipeline_mode = #tpu.pipeline_mode<synchronous>, transform_indices = @transform_1, window_bounds = array<i64: 2048, 32>}, {pipeline_mode = #tpu.pipeline_mode<synchronous>, transform_indices = @transform_2, window_bounds = array<i64: 1, 32>}, {pipeline_mode = #tpu.pipeline_mode<synchronous>, transform_indices = @transform_3, window_bounds = array<i64: 32, 32>}, {pipeline_mode = #tpu.pipeline_mode<synchronous>, transform_indices = @transform_4, window_bounds = array<i64: 1, 32>}, {pipeline_mode = #tpu.pipeline_mode<synchronous>, transform_indices = @transform_5, window_bounds = array<i64: 32, 32>}, {pipeline_mode = #tpu.pipeline_mode<synchronous>, transform_indices = @transform_6, window_bounds = array<i64: 1, 32>}, {pipeline_mode = #tpu.pipeline_mode<synchronous>, transform_indices = @transform_7, window_bounds = array<i64: 32, 1>}, {pipeline_mode = #tpu.pipeline_mode<synchronous>, transform_indices = @transform_8, window_bounds = array<i64: 1, 1>}, {pipeline_mode = #tpu.pipeline_mode<synchronous>, transform_indices = @transform_9, window_bounds = array<i64: 2, 1>}]} {
    %c0 = arith.constant 0 : index
    %c0_0 = arith.constant 0 : index
    %0 = vector.load %arg1[%c0, %c0_0] : memref<2x2048xf32, #tpu.memory_space<vmem>>, vector<2x2048xf32>
    %c0_1 = arith.constant 0 : index
    %c0_2 = arith.constant 0 : index
    %1 = vector.load %arg2[%c0_1, %c0_2] : memref<2048x32xf32, #tpu.memory_space<vmem>>, vector<2048x32xf32>
    %c0_3 = arith.constant 0 : index
    %c0_4 = arith.constant 0 : index
    %2 = vector.load %arg3[%c0_3, %c0_4] : memref<1x32xf32, #tpu.memory_space<vmem>>, vector<1x32xf32>
    %3 = arith.truncf %0 : vector<2x2048xf32> to vector<2x2048xbf16>
    %4 = arith.truncf %1 : vector<2048x32xf32> to vector<2048x32xbf16>
    %cst = arith.constant dense<0.000000e+00> : vector<2x32xf32>
    %5 = tpu.matmul %3, %4, %cst {dimension_numbers = #tpu.dot_dimension_numbers<[1], [0], [0], [1], [0, 0, 1, 1], [], []>} : vector<2x2048xbf16>, vector<2048x32xbf16>, vector<2x32xf32> -> vector<2x32xf32>
    %6 = vector.broadcast %2 : vector<1x32xf32> to vector<2x32xf32>
    %7 = arith.addf %5, %6 : vector<2x32xf32>
    %cst_5 = arith.constant 0.000000e+00 : f32
    %8 = vector.broadcast %cst_5 : f32 to vector<2x32xf32>
    %9 = arith.cmpf ogt, %7, %8 : vector<2x32xf32>
    %cst_6 = arith.constant 0.000000e+00 : f32
    %10 = vector.broadcast %cst_6 : f32 to vector<2x32xf32>
    %11 = arith.minimumf %7, %10 : vector<2x32xf32>
    %12 = math.exp %11 : vector<2x32xf32>
    %cst_7 = arith.constant 1.000000e+00 : f32
    %13 = vector.broadcast %cst_7 : f32 to vector<2x32xf32>
    %14 = arith.subf %12, %13 : vector<2x32xf32>
    %15 = arith.select %9, %7, %14 : vector<2x32xi1>, vector<2x32xf32>
    %c0_8 = arith.constant 0 : index
    %c0_9 = arith.constant 0 : index
    %16 = vector.load %arg4[%c0_8, %c0_9] : memref<32x32xf32, #tpu.memory_space<vmem>>, vector<32x32xf32>
    %c0_10 = arith.constant 0 : index
    %c0_11 = arith.constant 0 : index
    %17 = vector.load %arg5[%c0_10, %c0_11] : memref<1x32xf32, #tpu.memory_space<vmem>>, vector<1x32xf32>
    %cst_12 = arith.constant dense<0.000000e+00> : vector<2x32xf32>
    %18 = tpu.matmul %15, %16, %cst_12 {dimension_numbers = #tpu.dot_dimension_numbers<[1], [0], [0], [1], [0, 0, 1, 1], [], []>} : vector<2x32xf32>, vector<32x32xf32>, vector<2x32xf32> -> vector<2x32xf32>
    %19 = vector.broadcast %17 : vector<1x32xf32> to vector<2x32xf32>
    %20 = arith.addf %18, %19 : vector<2x32xf32>
    %cst_13 = arith.constant 0.000000e+00 : f32
    %21 = vector.broadcast %cst_13 : f32 to vector<2x32xf32>
    %22 = arith.cmpf ogt, %20, %21 : vector<2x32xf32>
    %cst_14 = arith.constant 0.000000e+00 : f32
    %23 = vector.broadcast %cst_14 : f32 to vector<2x32xf32>
    %24 = arith.minimumf %20, %23 : vector<2x32xf32>
    %25 = math.exp %24 : vector<2x32xf32>
    %cst_15 = arith.constant 1.000000e+00 : f32
    %26 = vector.broadcast %cst_15 : f32 to vector<2x32xf32>
    %27 = arith.subf %25, %26 : vector<2x32xf32>
    %28 = arith.select %22, %20, %27 : vector<2x32xi1>, vector<2x32xf32>
    %c0_16 = arith.constant 0 : index
    %c0_17 = arith.constant 0 : index
    %29 = vector.load %arg6[%c0_16, %c0_17] : memref<32x32xf32, #tpu.memory_space<vmem>>, vector<32x32xf32>
    %c0_18 = arith.constant 0 : index
    %c0_19 = arith.constant 0 : index
    %30 = vector.load %arg7[%c0_18, %c0_19] : memref<1x32xf32, #tpu.memory_space<vmem>>, vector<1x32xf32>
    %cst_20 = arith.constant dense<0.000000e+00> : vector<2x32xf32>
    %31 = tpu.matmul %28, %29, %cst_20 {dimension_numbers = #tpu.dot_dimension_numbers<[1], [0], [0], [1], [0, 0, 1, 1], [], []>} : vector<2x32xf32>, vector<32x32xf32>, vector<2x32xf32> -> vector<2x32xf32>
    %32 = vector.broadcast %30 : vector<1x32xf32> to vector<2x32xf32>
    %33 = arith.addf %31, %32 : vector<2x32xf32>
    %cst_21 = arith.constant 0.000000e+00 : f32
    %34 = vector.broadcast %cst_21 : f32 to vector<2x32xf32>
    %35 = arith.cmpf ogt, %33, %34 : vector<2x32xf32>
    %cst_22 = arith.constant 0.000000e+00 : f32
    %36 = vector.broadcast %cst_22 : f32 to vector<2x32xf32>
    %37 = arith.minimumf %33, %36 : vector<2x32xf32>
    %38 = math.exp %37 : vector<2x32xf32>
    %cst_23 = arith.constant 1.000000e+00 : f32
    %39 = vector.broadcast %cst_23 : f32 to vector<2x32xf32>
    %40 = arith.subf %38, %39 : vector<2x32xf32>
    %41 = arith.select %35, %33, %40 : vector<2x32xi1>, vector<2x32xf32>
    %c0_24 = arith.constant 0 : index
    %c0_25 = arith.constant 0 : index
    %42 = vector.load %arg8[%c0_24, %c0_25] : memref<32x1xf32, #tpu.memory_space<vmem>>, vector<32x1xf32>
    %c0_26 = arith.constant 0 : index
    %c0_27 = arith.constant 0 : index
    %43 = vector.load %arg9[%c0_26, %c0_27] : memref<1x1xf32, #tpu.memory_space<vmem>>, vector<1x1xf32>
    %cst_28 = arith.constant dense<0.000000e+00> : vector<2x1xf32>
    %44 = tpu.matmul %41, %42, %cst_28 {dimension_numbers = #tpu.dot_dimension_numbers<[1], [0], [0], [1], [0, 0, 1, 1], [], []>} : vector<2x32xf32>, vector<32x1xf32>, vector<2x1xf32> -> vector<2x1xf32>
    %45 = vector.broadcast %43 : vector<1x1xf32> to vector<2x1xf32>
    %46 = arith.addf %44, %45 : vector<2x1xf32>
    %c0_29 = arith.constant 0 : index
    %c0_30 = arith.constant 0 : index
    %47 = vector.load %arg10[%c0_29, %c0_30] : memref<2x1xf32, #tpu.memory_space<vmem>>, vector<2x1xf32>
    tpu.vector_store %arg10[%c0_29, %c0_30], %46 {strides = array<i32>} : memref<2x1xf32, #tpu.memory_space<vmem>>, vector<2x1xf32>,
    return
  }
  func.func @transform_0(%arg0: i32) -> (i32, i32) {
    %c0_i32 = arith.constant 0 : i32
    %c0_i32_0 = arith.constant 0 : i32
    %c0_i32_1 = arith.constant 0 : i32
    return %c0_i32, %c0_i32_0 : i32, i32
  }
  func.func @transform_1(%arg0: i32) -> (i32, i32) {
    %c0_i32 = arith.constant 0 : i32
    %c0_i32_0 = arith.constant 0 : i32
    %c0_i32_1 = arith.constant 0 : i32
    return %c0_i32, %c0_i32_0 : i32, i32
  }
  func.func @transform_2(%arg0: i32) -> (i32, i32) {
    %c0_i32 = arith.constant 0 : i32
    %c0_i32_0 = arith.constant 0 : i32
    %c0_i32_1 = arith.constant 0 : i32
    return %c0_i32, %c0_i32_0 : i32, i32
  }
  func.func @transform_3(%arg0: i32) -> (i32, i32) {
    %c0_i32 = arith.constant 0 : i32
    %c0_i32_0 = arith.constant 0 : i32
    %c0_i32_1 = arith.constant 0 : i32
    return %c0_i32, %c0_i32_0 : i32, i32
  }
  func.func @transform_4(%arg0: i32) -> (i32, i32) {
    %c0_i32 = arith.constant 0 : i32
    %c0_i32_0 = arith.constant 0 : i32
    %c0_i32_1 = arith.constant 0 : i32
    return %c0_i32, %c0_i32_0 : i32, i32
  }
  func.func @transform_5(%arg0: i32) -> (i32, i32) {
    %c0_i32 = arith.constant 0 : i32
    %c0_i32_0 = arith.constant 0 : i32
    %c0_i32_1 = arith.constant 0 : i32
    return %c0_i32, %c0_i32_0 : i32, i32
  }
  func.func @transform_6(%arg0: i32) -> (i32, i32) {
    %c0_i32 = arith.constant 0 : i32
    %c0_i32_0 = arith.constant 0 : i32
    %c0_i32_1 = arith.constant 0 : i32
    return %c0_i32, %c0_i32_0 : i32, i32
  }
  func.func @transform_7(%arg0: i32) -> (i32, i32) {
    %c0_i32 = arith.constant 0 : i32
    %c0_i32_0 = arith.constant 0 : i32
    %c0_i32_1 = arith.constant 0 : i32
    return %c0_i32, %c0_i32_0 : i32, i32
  }
  func.func @transform_8(%arg0: i32) -> (i32, i32) {
    %c0_i32 = arith.constant 0 : i32
    %c0_i32_0 = arith.constant 0 : i32
    %c0_i32_1 = arith.constant 0 : i32
    return %c0_i32, %c0_i32_0 : i32, i32
  }
  func.func @transform_9(%arg0: i32) -> (i32, i32) {
    %c0_i32 = arith.constant 0 : i32
    %c0_i32_0 = arith.constant 0 : i32
    %c0_i32_1 = arith.constant 0 : i32
    return %c0_i32, %c0_i32_0 : i32, i32
  }
}

</mosaic_0001>

<llo_original>
// kernel: gin_ac_forward.5
$region0: #{gin_ac_forward.5}
  #allocation0 [shape = 'u32[]', space=smem, size = 0x4, offset = 0x4, fixed_abs, tag = 'smem constant byte address 0x4 - core index']
  #allocation1 [shape = 'u32[144,128]{1,0:T(1,128)}', space=vmem, size = 0x12000, scoped, tag = 'internal scratch']
  %s0 = inlined_call_operand.vmem [shape: f32[12,128], index: 0, kind: input, shape index: {}]
  %s1 = inlined_call_operand.vmem [shape: f32[2,12], index: 1, kind: input, shape index: {}]
  %s2 = inlined_call_operand.vmem [shape: f32[128,32], index: 2, kind: input, shape index: {}]
  %s3 = inlined_call_operand.vmem [shape: f32[1,32], index: 3, kind: input, shape index: {}]
  %s4 = inlined_call_operand.vmem [shape: f32[32,32], index: 4, kind: input, shape index: {}]
  %s5 = inlined_call_operand.vmem [shape: f32[1,32], index: 5, kind: input, shape index: {}]
  %s6 = inlined_call_operand.vmem [shape: f32[32,32], index: 6, kind: input, shape index: {}]
  %s7 = inlined_call_operand.vmem [shape: f32[1,32], index: 7, kind: input, shape index: {}]
  %s8 = inlined_call_operand.vmem [shape: f32[128,64], index: 8, kind: input, shape index: {}]
  %s9 = inlined_call_operand.vmem [shape: f32[64,32], index: 9, kind: input, shape index: {}]
  %s10 = inlined_call_operand.vmem [shape: f32[1,32], index: 10, kind: input, shape index: {}]
  %s11 = inlined_call_operand.vmem [shape: f32[2,32], index: 11, kind: output, shape index: {0}]
  %s12 = inlined_call_operand.vmem [shape: f32[128,32], index: 12, kind: output, shape index: {1}]
  %13 = xla_tuple %s11, %s12
  %s14 = sld [smem:[#allocation0]]
  $region62: #{gin_ac_forward.5} parent=0
    _
  %s16 = ssub.s32 1, %s14
  %s17 = scalar_select 0, %s16, %s14
  // Predicated region
  $region2: #{gin_ac_forward.5} parent=0 // pred_check
    _
  $region3: #{gin_ac_forward.5} parent=0 // pred_check_branch
    %19 = sbr.rel (0) target = $region5
  $region4: #{gin_ac_forward.5} parent=0 // pred_region
    _
  $region5: #{gin_ac_forward.5} parent=0 // pred_fallthru
    _
  // Predicated region
  $region6: #{gin_ac_forward.5} parent=0 // pred_check
    _
  $region7: #{gin_ac_forward.5} parent=0 // pred_check_branch
    %21 = sbr.rel (0) target = $region9
  $region8: #{gin_ac_forward.5} parent=0 // pred_region
    _
  $region9: #{gin_ac_forward.5} parent=0 // pred_fallthru
    _
  // Predicated region
  $region10: #{gin_ac_forward.5} parent=0 // pred_check
    _
  $region11: #{gin_ac_forward.5} parent=0 // pred_check_branch
    %23 = sbr.rel (0) target = $region13
  $region12: #{gin_ac_forward.5} parent=0 // pred_region
    _
  $region13: #{gin_ac_forward.5} parent=0 // pred_fallthru
    _
  // Predicated region
  $region14: #{gin_ac_forward.5} parent=0 // pred_check
    _
  $region15: #{gin_ac_forward.5} parent=0 // pred_check_branch
    %25 = sbr.rel (0) target = $region17
  $region16: #{gin_ac_forward.5} parent=0 // pred_region
    _
  $region17: #{gin_ac_forward.5} parent=0 // pred_fallthru
    _
  // Predicated region
  $region18: #{gin_ac_forward.5} parent=0 // pred_check
    _
  $region19: #{gin_ac_forward.5} parent=0 // pred_check_branch
    %27 = sbr.rel (0) target = $region21
  $region20: #{gin_ac_forward.5} parent=0 // pred_region
    _
  $region21: #{gin_ac_forward.5} parent=0 // pred_fallthru
    _
  // Predicated region
  $region22: #{gin_ac_forward.5} parent=0 // pred_check
    _
  $region23: #{gin_ac_forward.5} parent=0 // pred_check_branch
    %29 = sbr.rel (0) target = $region25
  $region24: #{gin_ac_forward.5} parent=0 // pred_region
    _
  $region25: #{gin_ac_forward.5} parent=0 // pred_fallthru
    _
  // Predicated region
  $region26: #{gin_ac_forward.5} parent=0 // pred_check
    _
  $region27: #{gin_ac_forward.5} parent=0 // pred_check_branch
    %31 = sbr.rel (0) target = $region29
  $region28: #{gin_ac_forward.5} parent=0 // pred_region
    _
  $region29: #{gin_ac_forward.5} parent=0 // pred_fallthru
    _
  // Predicated region
  $region30: #{gin_ac_forward.5} parent=0 // pred_check
    _
  $region31: #{gin_ac_forward.5} parent=0 // pred_check_branch
    %33 = sbr.rel (0) target = $region33
  $region32: #{gin_ac_forward.5} parent=0 // pred_region
    _
  $region33: #{gin_ac_forward.5} parent=0 // pred_fallthru
    _
  // Predicated region
  $region34: #{gin_ac_forward.5} parent=0 // pred_check
    _
  $region35: #{gin_ac_forward.5} parent=0 // pred_check_branch
    %35 = sbr.rel (0) target = $region37
  $region36: #{gin_ac_forward.5} parent=0 // pred_region
    _
  $region37: #{gin_ac_forward.5} parent=0 // pred_fallthru
    _
  // Predicated region
  $region38: #{gin_ac_forward.5} parent=0 // pred_check
    _
  $region39: #{gin_ac_forward.5} parent=0 // pred_check_branch
    %37 = sbr.rel (0) target = $region41
  $region40: #{gin_ac_forward.5} parent=0 // pred_region
    _
  $region41: #{gin_ac_forward.5} parent=0 // pred_fallthru
    _
  // Predicated region
  $region42: #{gin_ac_forward.5} parent=0 // pred_check
    _
  $region43: #{gin_ac_forward.5} parent=0 // pred_check_branch
    %39 = sbr.rel (0) target = $region45
  $region44: #{gin_ac_forward.5} parent=0 // pred_region
    _
  $region45: #{gin_ac_forward.5} parent=0 // pred_fallthru
    _
  %v40 = vld [vmem:[%s1] sm:$0x3]
  %v41 = vld [vmem:[%s0] sm:$0xff]
  %v42 = vld [vmem:[%s0 + $0x8] sm:$0xf]
  %vm43 = vcmask 97280
  %v45 = vsel %vm43, %v40, 0
  %vm47 = vcmask 1043456
  %v49 = vsel %vm47, %v42, 0
  %51 = vmatprep.subr.mxu0 0.0
  %52 = vmatpush1.msra.mxu0 %v41
  %53 = vmatprep.subr.mxu0 0.0
  %54 = vmatpush1.msra.mxu0 %v49
  %55 = vmatprep.subr.mxu0 0.0
  %56 = vmatpush1.msra.mxu0 0.0
  %57 = vmatprep.subr.mxu0 0.0
  %58 = vmatpush1.msra.mxu0 0.0
  %59 = vmatprep.subr.mxu0 0.0
  %60 = vmatpush1.msra.mxu0 0.0
  %61 = vmatprep.subr.mxu0 0.0
  %62 = vmatpush1.msra.mxu0 0.0
  %63 = vmatprep.subr.mxu0 0.0
  %64 = vmatpush1.msra.mxu0 0.0
  %65 = vmatprep.subr.mxu0 0.0
  %66 = vmatpush1.msra.mxu0 0.0
  %67 = vmatprep.subr.mxu0 0.0
  %68 = vmatpush1.msra.mxu0 0.0
  %69 = vmatprep.subr.mxu0 0.0
  %70 = vmatpush1.msra.mxu0 0.0
  %71 = vmatprep.subr.mxu0 0.0
  %72 = vmatpush1.msra.mxu0 0.0
  %73 = vmatprep.subr.mxu0 0.0
  %74 = vmatpush1.msra.mxu0 0.0
  %75 = vmatprep.subr.mxu0 0.0
  %76 = vmatpush1.msra.mxu0 0.0
  %77 = vmatprep.subr.mxu0 0.0
  %78 = vmatpush1.msra.mxu0 0.0
  %79 = vmatprep.subr.mxu0 0.0
  %80 = vmatpush1.msra.mxu0 0.0
  %81 = vmatprep.subr.mxu0 0.0
  %82 = vmatpush1.msra.mxu0 0.0
  %83 = vmatprep.subr.mxu0 0.0
  %84 = vmatpush1.msra.mxu0 0.0
  %85 = vmatprep.subr.mxu0 0.0
  %86 = vmatpush1.msra.mxu0 0.0
  %87 = vmatprep.subr.mxu0 0.0
  %88 = vmatpush1.msra.mxu0 0.0
  %89 = vmatprep.subr.mxu0 0.0
  %90 = vmatpush1.msra.mxu0 0.0
  %91 = vmatprep.subr.mxu0 0.0
  %92 = vmatpush1.msra.mxu0 0.0
  %93 = vmatprep.subr.mxu0 0.0
  %94 = vmatpush1.msra.mxu0 0.0
  %95 = vmatprep.subr.mxu0 0.0
  %96 = vmatpush1.msra.mxu0 0.0
  %97 = vmatprep.subr.mxu0 0.0
  %98 = vmatpush1.msra.mxu0 0.0
  %99 = vmatprep.subr.mxu0 0.0
  %100 = vmatpush1.msra.mxu0 0.0
  %101 = vmatprep.subr.mxu0 0.0
  %102 = vmatpush1.msra.mxu0 0.0
  %103 = vmatprep.subr.mxu0 0.0
  %104 = vmatpush1.msra.mxu0 0.0
  %105 = vmatprep.subr.mxu0 0.0
  %106 = vmatpush1.msra.mxu0 0.0
  %107 = vmatprep.subr.mxu0 0.0
  %108 = vmatpush1.msra.mxu0 0.0
  %109 = vmatprep.subr.mxu0 0.0
  %110 = vmatpush1.msra.mxu0 0.0
  %111 = vmatprep.subr.mxu0 0.0
  %112 = vmatpush1.msra.mxu0 0.0
  %113 = vmatprep.subr.mxu0 0.0
  %114 = vmatpush1.msra.mxu0 0.0
  %115 = vmatprep.mubr.f32.mxu0 0.0
  %116 = vmatmul.mubr.f32.gmra.mrb[0].mxu0 %v45
  %v117 = vpop.f32.mrb[0].mxu0
  %v118 = vadd.f32 0.0, %v117
  %v119 = vpop.f32.mrb[0].mxu0
  %120 = vdwg.mxu0
  %v121 = vld [vmem:[%s2] sm:$0xff]
  %v122 = vld [vmem:[%s2 + $0x8] sm:$0xff]
  %v123 = vld [vmem:[%s2 + $0x10] sm:$0xff]
  %v124 = vld [vmem:[%s2 + $0x18] sm:$0xff]
  %v125 = vld [vmem:[%s2 + $0x20] sm:$0xff]
  %v126 = vld [vmem:[%s2 + $0x28] sm:$0xff]
  %v127 = vld [vmem:[%s2 + $0x30] sm:$0xff]
  %v128 = vld [vmem:[%s2 + $0x38] sm:$0xff]
  %v129 = vld [vmem:[%s2 + $0x40] sm:$0xff]
  %v130 = vld [vmem:[%s2 + $0x48] sm:$0xff]
  %v131 = vld [vmem:[%s2 + $0x50] sm:$0xff]
  %v132 = vld [vmem:[%s2 + $0x58] sm:$0xff]
  %v133 = vld [vmem:[%s2 + $0x60] sm:$0xff]
  %v134 = vld [vmem:[%s2 + $0x68] sm:$0xff]
  %v135 = vld [vmem:[%s2 + $0x70] sm:$0xff]
  %v136 = vld [vmem:[%s2 + $0x78] sm:$0xff]
  %v137 = vld [vmem:[%s3] sm:$0x1]
  %v139 = vlaneseq
  %v140 = vshrl.u32 %v139, 7
  %v141 = vsub.s32 0, %v140
  %v142 = vrot.slane %v137, %v141
  %144 = vmatprep.subr.mxu0 0.0
  %145 = vmatpush1.msra.mxu0 %v121
  %146 = vmatprep.subr.mxu0 0.0
  %147 = vmatpush1.msra.mxu0 %v122
  %148 = vmatprep.subr.mxu0 0.0
  %149 = vmatpush1.msra.mxu0 %v123
  %150 = vmatprep.subr.mxu0 0.0
  %151 = vmatpush1.msra.mxu0 %v124
  %152 = vmatprep.subr.mxu0 0.0
  %153 = vmatpush1.msra.mxu0 %v125
  %154 = vmatprep.subr.mxu0 0.0
  %155 = vmatpush1.msra.mxu0 %v126
  %156 = vmatprep.subr.mxu0 0.0
  %157 = vmatpush1.msra.mxu0 %v127
  %158 = vmatprep.subr.mxu0 0.0
  %159 = vmatpush1.msra.mxu0 %v128
  %160 = vmatprep.subr.mxu0 0.0
  %161 = vmatpush1.msra.mxu0 %v129
  %162 = vmatprep.subr.mxu0 0.0
  %163 = vmatpush1.msra.mxu0 %v130
  %164 = vmatprep.subr.mxu0 0.0
  %165 = vmatpush1.msra.mxu0 %v131
  %166 = vmatprep.subr.mxu0 0.0
  %167 = vmatpush1.msra.mxu0 %v132
  %168 = vmatprep.subr.mxu0 0.0
  %169 = vmatpush1.msra.mxu0 %v133
  %170 = vmatprep.subr.mxu0 0.0
  %171 = vmatpush1.msra.mxu0 %v134
  %172 = vmatprep.subr.mxu0 0.0
  %173 = vmatpush1.msra.mxu0 %v135
  %174 = vmatprep.subr.mxu0 0.0
  %175 = vmatpush1.msra.mxu0 %v136
  %176 = vmatprep.subr.mxu0 0.0
  %177 = vmatpush1.msra.mxu0 0.0
  %178 = vmatprep.subr.mxu0 0.0
  %179 = vmatpush1.msra.mxu0 0.0
  %180 = vmatprep.subr.mxu0 0.0
  %181 = vmatpush1.msra.mxu0 0.0
  %182 = vmatprep.subr.mxu0 0.0
  %183 = vmatpush1.msra.mxu0 0.0
  %184 = vmatprep.subr.mxu0 0.0
  %185 = vmatpush1.msra.mxu0 0.0
  %186 = vmatprep.subr.mxu0 0.0
  %187 = vmatpush1.msra.mxu0 0.0
  %188 = vmatprep.subr.mxu0 0.0
  %189 = vmatpush1.msra.mxu0 0.0
  %190 = vmatprep.subr.mxu0 0.0
  %191 = vmatpush1.msra.mxu0 0.0
  %192 = vmatprep.subr.mxu0 0.0
  %193 = vmatpush1.msra.mxu0 0.0
  %194 = vmatprep.subr.mxu0 0.0
  %195 = vmatpush1.msra.mxu0 0.0
  %196 = vmatprep.subr.mxu0 0.0
  %197 = vmatpush1.msra.mxu0 0.0
  %198 = vmatprep.subr.mxu0 0.0
  %199 = vmatpush1.msra.mxu0 0.0
  %200 = vmatprep.subr.mxu0 0.0
  %201 = vmatpush1.msra.mxu0 0.0
  %202 = vmatprep.subr.mxu0 0.0
  %203 = vmatpush1.msra.mxu0 0.0
  %204 = vmatprep.subr.mxu0 0.0
  %205 = vmatpush1.msra.mxu0 0.0
  %206 = vmatprep.subr.mxu0 0.0
  %207 = vmatpush1.msra.mxu0 0.0
  %208 = vmatprep.mubr.f32.mxu0 0.0
  %209 = vmatmul.mubr.f32.gmra.mrb[0].mxu0 %v118
  %v210 = vpop.f32.mrb[0].mxu0
  %v211 = vadd.f32 %v142, %v210
  %v212 = vpop.f32.mrb[0].mxu0
  %213 = vdwg.mxu0
  %v214 = vmax.f32 %v211, 0.0
  %v215 = vld [vmem:[%s4] sm:$0xff]
  %v216 = vld [vmem:[%s4 + $0x8] sm:$0xff]
  %v217 = vld [vmem:[%s4 + $0x10] sm:$0xff]
  %v218 = vld [vmem:[%s4 + $0x18] sm:$0xff]
  %v219 = vld [vmem:[%s5] sm:$0x1]
  %v221 = vlaneseq
  %v222 = vshrl.u32 %v221, 7
  %v223 = vsub.s32 0, %v222
  %v224 = vrot.slane %v219, %v223
  %vm226 = vcmask 261120
  %v228 = vsel %vm226, %v214, 0
  %230 = vmatprep.subr.mxu0 0.0
  %231 = vmatpush1.msra.mxu0 %v215
  %232 = vmatprep.subr.mxu0 0.0
  %233 = vmatpush1.msra.mxu0 %v216
  %234 = vmatprep.subr.mxu0 0.0
  %235 = vmatpush1.msra.mxu0 %v217
  %236 = vmatprep.subr.mxu0 0.0
  %237 = vmatpush1.msra.mxu0 %v218
  %238 = vmatprep.subr.mxu0 0.0
  %239 = vmatpush1.msra.mxu0 0.0
  %240 = vmatprep.subr.mxu0 0.0
  %241 = vmatpush1.msra.mxu0 0.0
  %242 = vmatprep.subr.mxu0 0.0
  %243 = vmatpush1.msra.mxu0 0.0
  %244 = vmatprep.subr.mxu0 0.0
  %245 = vmatpush1.msra.mxu0 0.0
  %246 = vmatprep.subr.mxu0 0.0
  %247 = vmatpush1.msra.mxu0 0.0
  %248 = vmatprep.subr.mxu0 0.0
  %249 = vmatpush1.msra.mxu0 0.0
  %250 = vmatprep.subr.mxu0 0.0
  %251 = vmatpush1.msra.mxu0 0.0
  %252 = vmatprep.subr.mxu0 0.0
  %253 = vmatpush1.msra.mxu0 0.0
  %254 = vmatprep.subr.mxu0 0.0
  %255 = vmatpush1.msra.mxu0 0.0
  %256 = vmatprep.subr.mxu0 0.0
  %257 = vmatpush1.msra.mxu0 0.0
  %258 = vmatprep.subr.mxu0 0.0
  %259 = vmatpush1.msra.mxu0 0.0
  %260 = vmatprep.subr.mxu0 0.0
  %261 = vmatpush1.msra.mxu0 0.0
  %262 = vmatprep.subr.mxu0 0.0
  %263 = vmatpush1.msra.mxu0 0.0
  %264 = vmatprep.subr.mxu0 0.0
  %265 = vmatpush1.msra.mxu0 0.0
  %266 = vmatprep.subr.mxu0 0.0
  %267 = vmatpush1.msra.mxu0 0.0
  %268 = vmatprep.subr.mxu0 0.0
  %269 = vmatpush1.msra.mxu0 0.0
  %270 = vmatprep.subr.mxu0 0.0
  %271 = vmatpush1.msra.mxu0 0.0
  %272 = vmatprep.subr.mxu0 0.0
  %273 = vmatpush1.msra.mxu0 0.0
  %274 = vmatprep.subr.mxu0 0.0
  %275 = vmatpush1.msra.mxu0 0.0
  %276 = vmatprep.subr.mxu0 0.0
  %277 = vmatpush1.msra.mxu0 0.0
  %278 = vmatprep.subr.mxu0 0.0
  %279 = vmatpush1.msra.mxu0 0.0
  %280 = vmatprep.subr.mxu0 0.0
  %281 = vmatpush1.msra.mxu0 0.0
  %282 = vmatprep.subr.mxu0 0.0
  %283 = vmatpush1.msra.mxu0 0.0
  %284 = vmatprep.subr.mxu0 0.0
  %285 = vmatpush1.msra.mxu0 0.0
  %286 = vmatprep.subr.mxu0 0.0
  %287 = vmatpush1.msra.mxu0 0.0
  %288 = vmatprep.subr.mxu0 0.0
  %289 = vmatpush1.msra.mxu0 0.0
  %290 = vmatprep.subr.mxu0 0.0
  %291 = vmatpush1.msra.mxu0 0.0
  %292 = vmatprep.subr.mxu0 0.0
  %293 = vmatpush1.msra.mxu0 0.0
  %294 = vmatprep.mubr.f32.mxu0 0.0
  %295 = vmatmul.mubr.f32.gmra.mrb[0].mxu0 %v228
  %v296 = vpop.f32.mrb[0].mxu0
  %v297 = vadd.f32 %v224, %v296
  %v298 = vpop.f32.mrb[0].mxu0
  %299 = vdwg.mxu0
  %v300 = vld [vmem:[%s6] sm:$0xff]
  %v301 = vld [vmem:[%s6 + $0x8] sm:$0xff]
  %v302 = vld [vmem:[%s6 + $0x10] sm:$0xff]
  %v303 = vld [vmem:[%s6 + $0x18] sm:$0xff]
  %v304 = vld [vmem:[%s7] sm:$0x1]
  %v306 = vlaneseq
  %v307 = vshrl.u32 %v306, 7
  %v308 = vsub.s32 0, %v307
  %v309 = vrot.slane %v304, %v308
  %v312 = vsel %vm226, %v297, 0
  %314 = vmatprep.subr.mxu0 0.0
  %315 = vmatpush1.msra.mxu0 %v300
  %316 = vmatprep.subr.mxu0 0.0
  %317 = vmatpush1.msra.mxu0 %v301
  %318 = vmatprep.subr.mxu0 0.0
  %319 = vmatpush1.msra.mxu0 %v302
  %320 = vmatprep.subr.mxu0 0.0
  %321 = vmatpush1.msra.mxu0 %v303
  %322 = vmatprep.subr.mxu0 0.0
  %323 = vmatpush1.msra.mxu0 0.0
  %324 = vmatprep.subr.mxu0 0.0
  %325 = vmatpush1.msra.mxu0 0.0
  %326 = vmatprep.subr.mxu0 0.0
  %327 = vmatpush1.msra.mxu0 0.0
  %328 = vmatprep.subr.mxu0 0.0
  %329 = vmatpush1.msra.mxu0 0.0
  %330 = vmatprep.subr.mxu0 0.0
  %331 = vmatpush1.msra.mxu0 0.0
  %332 = vmatprep.subr.mxu0 0.0
  %333 = vmatpush1.msra.mxu0 0.0
  %334 = vmatprep.subr.mxu0 0.0
  %335 = vmatpush1.msra.mxu0 0.0
  %336 = vmatprep.subr.mxu0 0.0
  %337 = vmatpush1.msra.mxu0 0.0
  %338 = vmatprep.subr.mxu0 0.0
  %339 = vmatpush1.msra.mxu0 0.0
  %340 = vmatprep.subr.mxu0 0.0
  %341 = vmatpush1.msra.mxu0 0.0
  %342 = vmatprep.subr.mxu0 0.0
  %343 = vmatpush1.msra.mxu0 0.0
  %344 = vmatprep.subr.mxu0 0.0
  %345 = vmatpush1.msra.mxu0 0.0
  %346 = vmatprep.subr.mxu0 0.0
  %347 = vmatpush1.msra.mxu0 0.0
  %348 = vmatprep.subr.mxu0 0.0
  %349 = vmatpush1.msra.mxu0 0.0
  %350 = vmatprep.subr.mxu0 0.0
  %351 = vmatpush1.msra.mxu0 0.0
  %352 = vmatprep.subr.mxu0 0.0
  %353 = vmatpush1.msra.mxu0 0.0
  %354 = vmatprep.subr.mxu0 0.0
  %355 = vmatpush1.msra.mxu0 0.0
  %356 = vmatprep.subr.mxu0 0.0
  %357 = vmatpush1.msra.mxu0 0.0
  %358 = vmatprep.subr.mxu0 0.0
  %359 = vmatpush1.msra.mxu0 0.0
  %360 = vmatprep.subr.mxu0 0.0
  %361 = vmatpush1.msra.mxu0 0.0
  %362 = vmatprep.subr.mxu0 0.0
  %363 = vmatpush1.msra.mxu0 0.0
  %364 = vmatprep.subr.mxu0 0.0
  %365 = vmatpush1.msra.mxu0 0.0
  %366 = vmatprep.subr.mxu0 0.0
  %367 = vmatpush1.msra.mxu0 0.0
  %368 = vmatprep.subr.mxu0 0.0
  %369 = vmatpush1.msra.mxu0 0.0
  %370 = vmatprep.subr.mxu0 0.0
  %371 = vmatpush1.msra.mxu0 0.0
  %372 = vmatprep.subr.mxu0 0.0
  %373 = vmatpush1.msra.mxu0 0.0
  %374 = vmatprep.subr.mxu0 0.0
  %375 = vmatpush1.msra.mxu0 0.0
  %376 = vmatprep.subr.mxu0 0.0
  %377 = vmatpush1.msra.mxu0 0.0
  %378 = vmatprep.mubr.f32.mxu0 0.0
  %379 = vmatmul.mubr.f32.gmra.mrb[0].mxu0 %v312
  %v380 = vpop.f32.mrb[0].mxu0
  %v381 = vadd.f32 %v309, %v380
  %v382 = vpop.f32.mrb[0].mxu0
  %383 = vdwg.mxu0
  %vm384 = vcmp.gt.f32.partialorder %v381, 0.0
  %v385 = vmin.f32 %v381, 0.0
  %v386 = vmul.f32 %v385, 1.442695
  %v387 = vpow.pop %v386
  %v388 = vsub.f32 %v387, 1.0
  %v389 = vsel %vm384, %v381, %v388
  %vm390 = vcmask 254976
  %391 = vst.msk [vmem:[%s11] sm:$0x3] %vm390, %v389
  %v392 = vld [vmem:[%s8] sm:$0xff]
  %v393 = vld [vmem:[%s8 + $0x8] sm:$0xff]
  %v394 = vld [vmem:[%s8 + $0x10] sm:$0xff]
  %v395 = vld [vmem:[%s8 + $0x18] sm:$0xff]
  %v396 = vld [vmem:[%s8 + $0x20] sm:$0xff]
  %v397 = vld [vmem:[%s8 + $0x28] sm:$0xff]
  %v398 = vld [vmem:[%s8 + $0x30] sm:$0xff]
  %v399 = vld [vmem:[%s8 + $0x38] sm:$0xff]
  %v400 = vld [vmem:[%s8 + $0x40] sm:$0xff]
  %v401 = vld [vmem:[%s8 + $0x48] sm:$0xff]
  %v402 = vld [vmem:[%s8 + $0x50] sm:$0xff]
  %v403 = vld [vmem:[%s8 + $0x58] sm:$0xff]
  %v404 = vld [vmem:[%s8 + $0x60] sm:$0xff]
  %v405 = vld [vmem:[%s8 + $0x68] sm:$0xff]
  %v406 = vld [vmem:[%s8 + $0x70] sm:$0xff]
  %v407 = vld [vmem:[%s8 + $0x78] sm:$0xff]
  %v408 = vld [vmem:[%s9] sm:$0xff]
  %v409 = vld [vmem:[%s9 + $0x8] sm:$0xff]
  %v410 = vld [vmem:[%s9 + $0x10] sm:$0xff]
  %v411 = vld [vmem:[%s9 + $0x18] sm:$0xff]
  %v412 = vld [vmem:[%s9 + $0x20] sm:$0xff]
  %v413 = vld [vmem:[%s9 + $0x28] sm:$0xff]
  %v414 = vld [vmem:[%s9 + $0x30] sm:$0xff]
  %v415 = vld [vmem:[%s9 + $0x38] sm:$0xff]
  %v416 = vld [vmem:[%s10] sm:$0x1]
  %v418 = vlaneseq
  %v419 = vshrl.u32 %v418, 7
  %v420 = vsub.s32 0, %v419
  %v421 = vrot.slane %v416, %v420
  %vm423 = vcmask 523264
  %v425 = vsel %vm423, %v392, 0
  %v428 = vsel %vm423, %v393, 0
  %v431 = vsel %vm423, %v394, 0
  %v434 = vsel %vm423, %v395, 0
  %v437 = vsel %vm423, %v396, 0
  %v440 = vsel %vm423, %v397, 0
  %v443 = vsel %vm423, %v398, 0
  %v446 = vsel %vm423, %v399, 0
  %v449 = vsel %vm423, %v400, 0
  %v452 = vsel %vm423, %v401, 0
  %v455 = vsel %vm423, %v402, 0
  %v458 = vsel %vm423, %v403, 0
  %v461 = vsel %vm423, %v404, 0
  %v464 = vsel %vm423, %v405, 0
  %v467 = vsel %vm423, %v406, 0
  %v470 = vsel %vm423, %v407, 0
  %472 = vmatprep.subr.mxu0 0.0
  %473 = vmatpush1.msra.mxu0 %v408
  %474 = vmatprep.subr.mxu0 0.0
  %475 = vmatpush1.msra.mxu0 %v409
  %476 = vmatprep.subr.mxu0 0.0
  %477 = vmatpush1.msra.mxu0 %v410
  %478 = vmatprep.subr.mxu0 0.0
  %479 = vmatpush1.msra.mxu0 %v411
  %480 = vmatprep.subr.mxu0 0.0
  %481 = vmatpush1.msra.mxu0 %v412
  %482 = vmatprep.subr.mxu0 0.0
  %483 = vmatpush1.msra.mxu0 %v413
  %484 = vmatprep.subr.mxu0 0.0
  %485 = vmatpush1.msra.mxu0 %v414
  %486 = vmatprep.subr.mxu0 0.0
  %487 = vmatpush1.msra.mxu0 %v415
  %488 = vmatprep.subr.mxu0 0.0
  %489 = vmatpush1.msra.mxu0 0.0
  %490 = vmatprep.subr.mxu0 0.0
  %491 = vmatpush1.msra.mxu0 0.0
  %492 = vmatprep.subr.mxu0 0.0
  %493 = vmatpush1.msra.mxu0 0.0
  %494 = vmatprep.subr.mxu0 0.0
  %495 = vmatpush1.msra.mxu0 0.0
  %496 = vmatprep.subr.mxu0 0.0
  %497 = vmatpush1.msra.mxu0 0.0
  %498 = vmatprep.subr.mxu0 0.0
  %499 = vmatpush1.msra.mxu0 0.0
  %500 = vmatprep.subr.mxu0 0.0
  %501 = vmatpush1.msra.mxu0 0.0
  %502 = vmatprep.subr.mxu0 0.0
  %503 = vmatpush1.msra.mxu0 0.0
  %504 = vmatprep.subr.mxu0 0.0
  %505 = vmatpush1.msra.mxu0 0.0
  %506 = vmatprep.subr.mxu0 0.0
  %507 = vmatpush1.msra.mxu0 0.0
  %508 = vmatprep.subr.mxu0 0.0
  %509 = vmatpush1.msra.mxu0 0.0
  %510 = vmatprep.subr.mxu0 0.0
  %511 = vmatpush1.msra.mxu0 0.0
  %512 = vmatprep.subr.mxu0 0.0
  %513 = vmatpush1.msra.mxu0 0.0
  %514 = vmatprep.subr.mxu0 0.0
  %515 = vmatpush1.msra.mxu0 0.0
  %516 = vmatprep.subr.mxu0 0.0
  %517 = vmatpush1.msra.mxu0 0.0
  %518 = vmatprep.subr.mxu0 0.0
  %519 = vmatpush1.msra.mxu0 0.0
  %520 = vmatprep.subr.mxu0 0.0
  %521 = vmatpush1.msra.mxu0 0.0
  %522 = vmatprep.subr.mxu0 0.0
  %523 = vmatpush1.msra.mxu0 0.0
  %524 = vmatprep.subr.mxu0 0.0
  %525 = vmatpush1.msra.mxu0 0.0
  %526 = vmatprep.subr.mxu0 0.0
  %527 = vmatpush1.msra.mxu0 0.0
  %528 = vmatprep.subr.mxu0 0.0
  %529 = vmatpush1.msra.mxu0 0.0
  %530 = vmatprep.subr.mxu0 0.0
  %531 = vmatpush1.msra.mxu0 0.0
  %532 = vmatprep.subr.mxu0 0.0
  %533 = vmatpush1.msra.mxu0 0.0
  %534 = vmatprep.subr.mxu0 0.0
  %535 = vmatpush1.msra.mxu0 0.0
  %536 = vmatprep.mubr.f32.mxu0 0.0
  %537 = vmatmul.mubr.f32.gmra.mrb[0].mxu0 %v425
  %v538 = vpop.f32.mrb[0].mxu0
  %v539 = vadd.f32 %v421, %v538
  %v540 = vpop.f32.mrb[0].mxu0
  %541 = vmatprep.mubr.f32.mxu0 0.0
  %542 = vmatmul.mubr.f32.gmra.mrb[0].mxu0 %v428
  %v543 = vpop.f32.mrb[0].mxu0
  %v544 = vadd.f32 %v421, %v543
  %v545 = vpop.f32.mrb[0].mxu0
  %546 = vmatprep.mubr.f32.mxu0 0.0
  %547 = vmatmul.mubr.f32.gmra.mrb[0].mxu0 %v431
  %v548 = vpop.f32.mrb[0].mxu0
  %v549 = vadd.f32 %v421, %v548
  %v550 = vpop.f32.mrb[0].mxu0
  %551 = vmatprep.mubr.f32.mxu0 0.0
  %552 = vmatmul.mubr.f32.gmra.mrb[0].mxu0 %v434
  %v553 = vpop.f32.mrb[0].mxu0
  %v554 = vadd.f32 %v421, %v553
  %v555 = vpop.f32.mrb[0].mxu0
  %556 = vmatprep.mubr.f32.mxu0 0.0
  %557 = vmatmul.mubr.f32.gmra.mrb[0].mxu0 %v437
  %v558 = vpop.f32.mrb[0].mxu0
  %v559 = vadd.f32 %v421, %v558
  %v560 = vpop.f32.mrb[0].mxu0
  %561 = vmatprep.mubr.f32.mxu0 0.0
  %562 = vmatmul.mubr.f32.gmra.mrb[0].mxu0 %v440
  %v563 = vpop.f32.mrb[0].mxu0
  %v564 = vadd.f32 %v421, %v563
  %v565 = vpop.f32.mrb[0].mxu0
  %566 = vmatprep.mubr.f32.mxu0 0.0
  %567 = vmatmul.mubr.f32.gmra.mrb[0].mxu0 %v443
  %v568 = vpop.f32.mrb[0].mxu0
  %v569 = vadd.f32 %v421, %v568
  %v570 = vpop.f32.mrb[0].mxu0
  %571 = vmatprep.mubr.f32.mxu0 0.0
  %572 = vmatmul.mubr.f32.gmra.mrb[0].mxu0 %v446
  %v573 = vpop.f32.mrb[0].mxu0
  %v574 = vadd.f32 %v421, %v573
  %v575 = vpop.f32.mrb[0].mxu0
  %576 = vmatprep.mubr.f32.mxu0 0.0
  %577 = vmatmul.mubr.f32.gmra.mrb[0].mxu0 %v449
  %v578 = vpop.f32.mrb[0].mxu0
  %v579 = vadd.f32 %v421, %v578
  %v580 = vpop.f32.mrb[0].mxu0
  %581 = vmatprep.mubr.f32.mxu0 0.0
  %582 = vmatmul.mubr.f32.gmra.mrb[0].mxu0 %v452
  %v583 = vpop.f32.mrb[0].mxu0
  %v584 = vadd.f32 %v421, %v583
  %v585 = vpop.f32.mrb[0].mxu0
  %586 = vmatprep.mubr.f32.mxu0 0.0
  %587 = vmatmul.mubr.f32.gmra.mrb[0].mxu0 %v455
  %v588 = vpop.f32.mrb[0].mxu0
  %v589 = vadd.f32 %v421, %v588
  %v590 = vpop.f32.mrb[0].mxu0
  %591 = vmatprep.mubr.f32.mxu0 0.0
  %592 = vmatmul.mubr.f32.gmra.mrb[0].mxu0 %v458
  %v593 = vpop.f32.mrb[0].mxu0
  %v594 = vadd.f32 %v421, %v593
  %v595 = vpop.f32.mrb[0].mxu0
  %596 = vmatprep.mubr.f32.mxu0 0.0
  %597 = vmatmul.mubr.f32.gmra.mrb[0].mxu0 %v461
  %v598 = vpop.f32.mrb[0].mxu0
  %v599 = vadd.f32 %v421, %v598
  %v600 = vpop.f32.mrb[0].mxu0
  %601 = vmatprep.mubr.f32.mxu0 0.0
  %602 = vmatmul.mubr.f32.gmra.mrb[0].mxu0 %v464
  %v603 = vpop.f32.mrb[0].mxu0
  %v604 = vadd.f32 %v421, %v603
  %v605 = vpop.f32.mrb[0].mxu0
  %606 = vmatprep.mubr.f32.mxu0 0.0
  %607 = vmatmul.mubr.f32.gmra.mrb[0].mxu0 %v467
  %v608 = vpop.f32.mrb[0].mxu0
  %v609 = vadd.f32 %v421, %v608
  %v610 = vpop.f32.mrb[0].mxu0
  %611 = vmatprep.mubr.f32.mxu0 0.0
  %612 = vmatmul.mubr.f32.gmra.mrb[0].mxu0 %v470
  %v613 = vpop.f32.mrb[0].mxu0
  %v614 = vadd.f32 %v421, %v613
  %v615 = vpop.f32.mrb[0].mxu0
  %616 = vdwg.mxu0
  %v617 = vmax.f32 %v539, 0.0
  %v618 = vmax.f32 %v544, 0.0
  %v619 = vmax.f32 %v549, 0.0
  %v620 = vmax.f32 %v554, 0.0
  %v621 = vmax.f32 %v559, 0.0
  %v622 = vmax.f32 %v564, 0.0
  %v623 = vmax.f32 %v569, 0.0
  %v624 = vmax.f32 %v574, 0.0
  %v625 = vmax.f32 %v579, 0.0
  %v626 = vmax.f32 %v584, 0.0
  %v627 = vmax.f32 %v589, 0.0
  %v628 = vmax.f32 %v594, 0.0
  %v629 = vmax.f32 %v599, 0.0
  %v630 = vmax.f32 %v604, 0.0
  %v631 = vmax.f32 %v609, 0.0
  %v632 = vmax.f32 %v614, 0.0
  %633 = vst.msk [vmem:[%s12] sm:$0xff] %vm226, %v617
  %634 = vst.msk [vmem:[%s12 + $0x8] sm:$0xff] %vm226, %v618
  %635 = vst.msk [vmem:[%s12 + $0x10] sm:$0xff] %vm226, %v619
  %636 = vst.msk [vmem:[%s12 + $0x18] sm:$0xff] %vm226, %v620
  %637 = vst.msk [vmem:[%s12 + $0x20] sm:$0xff] %vm226, %v621
  %638 = vst.msk [vmem:[%s12 + $0x28] sm:$0xff] %vm226, %v622
  %639 = vst.msk [vmem:[%s12 + $0x30] sm:$0xff] %vm226, %v623
  %640 = vst.msk [vmem:[%s12 + $0x38] sm:$0xff] %vm226, %v624
  %641 = vst.msk [vmem:[%s12 + $0x40] sm:$0xff] %vm226, %v625
  %642 = vst.msk [vmem:[%s12 + $0x48] sm:$0xff] %vm226, %v626
  %643 = vst.msk [vmem:[%s12 + $0x50] sm:$0xff] %vm226, %v627
  %644 = vst.msk [vmem:[%s12 + $0x58] sm:$0xff] %vm226, %v628
  %645 = vst.msk [vmem:[%s12 + $0x60] sm:$0xff] %vm226, %v629
  %646 = vst.msk [vmem:[%s12 + $0x68] sm:$0xff] %vm226, %v630
  %647 = vst.msk [vmem:[%s12 + $0x70] sm:$0xff] %vm226, %v631
  %648 = vst.msk [vmem:[%s12 + $0x78] sm:$0xff] %vm226, %v632
  // Predicated region
  $region46: #{gin_ac_forward.5} parent=0 // pred_check
    _
  $region47: #{gin_ac_forward.5} parent=0 // pred_check_branch
    %650 = sbr.rel (0) target = $region49
  $region48: #{gin_ac_forward.5} parent=0 // pred_region
    _
  $region49: #{gin_ac_forward.5} parent=0 // pred_fallthru
    _
  // Predicated region
  $region50: #{gin_ac_forward.5} parent=0 // pred_check
    _
  $region51: #{gin_ac_forward.5} parent=0 // pred_check_branch
    %652 = sbr.rel (0) target = $region53
  $region52: #{gin_ac_forward.5} parent=0 // pred_region
    _
  $region53: #{gin_ac_forward.5} parent=0 // pred_fallthru
    _
  // Predicated region
  $region54: #{gin_ac_forward.5} parent=0 // pred_check
    _
  $region55: #{gin_ac_forward.5} parent=0 // pred_check_branch
    %654 = sbr.rel (0) target = $region57
  $region56: #{gin_ac_forward.5} parent=0 // pred_region
    _
  $region57: #{gin_ac_forward.5} parent=0 // pred_fallthru
    _
  // Predicated region
  $region58: #{gin_ac_forward.5} parent=0 // pred_check
    _
  $region59: #{gin_ac_forward.5} parent=0 // pred_check_branch
    %656 = sbr.rel (0) target = $region61
  $region60: #{gin_ac_forward.5} parent=0 // pred_region
    _
  $region61: #{gin_ac_forward.5} parent=0 // pred_fallthru
    _

// kernel: gin_ac_forward.4
$region0: #{gin_ac_forward.4}
  #allocation0 [shape = 'u32[]', space=smem, size = 0x4, offset = 0x4, fixed_abs, tag = 'smem constant byte address 0x4 - core index']
  #allocation1 [shape = 'u32[144,128]{1,0:T(1,128)}', space=vmem, size = 0x12000, scoped, tag = 'internal scratch']
  #allocation2 [shape = 'f32[1,1]{1,0:T(1,128)S(1)}', space=vmem, size = 0x200, scoped, tag = 'scoped memory for gin_ac_forward.4']
  #allocation3 [shape = 'f32[1,1]{1,0:T(1,128)S(1)}', space=vmem, size = 0x200, scoped, tag = 'scoped memory for gin_ac_forward.4']
  #allocation4 [shape = 'f32[1,1]{1,0:T(1,128)S(1)}', space=vmem, size = 0x200, scoped, tag = 'scoped memory for gin_ac_forward.4']
  #allocation5 [shape = 'f32[1,1]{1,0:T(1,128)S(1)}', space=vmem, size = 0x200, scoped, tag = 'scoped memory for gin_ac_forward.4']
  %s0 = inlined_call_operand.smem [shape: u32[41], index: -1, kind: input, shape index: {}]
  %s1 = sld [smem:[%s0]]
  %s2 = scalar_lea.smem %s0, 1
  %s3 = sld [smem:[%s2]]
  %s4 = scalar_lea.smem %s0, 2
  %s5 = sld [smem:[%s4]]
  %s6 = scalar_lea.smem %s0, 3
  %s7 = sld [smem:[%s6]]
  %s8 = scalar_lea.smem %s0, 4
  %s9 = sld [smem:[%s8]]
  %s10 = scalar_lea.smem %s0, 5
  %s11 = sld [smem:[%s10]]
  %s12 = scalar_lea.smem %s0, 6
  %s13 = sld [smem:[%s12]]
  %s14 = scalar_lea.smem %s0, 7
  %s15 = sld [smem:[%s14]]
  %s16 = scalar_lea.smem %s0, 8
  %s17 = sld [smem:[%s16]]
  %s18 = scalar_lea.smem %s0, 9
  %s19 = sld [smem:[%s18]]
  %s20 = scalar_lea.smem %s0, 10
  %s21 = sld [smem:[%s20]]
  %s22 = scalar_lea.smem %s0, 11
  %s23 = sld [smem:[%s22]]
  %s24 = scalar_lea.smem %s0, 12
  %s25 = sld [smem:[%s24]]
  %s26 = scalar_lea.smem %s0, 13
  %s27 = sld [smem:[%s26]]
  %s28 = scalar_lea.smem %s0, 14
  %s29 = sld [smem:[%s28]]
  %s30 = scalar_lea.smem %s0, 15
  %s31 = sld [smem:[%s30]]
  %s32 = scalar_lea.smem %s0, 16
  %s33 = sld [smem:[%s32]]
  %s34 = scalar_lea.smem %s0, 17
  %s35 = sld [smem:[%s34]]
  %s36 = scalar_lea.smem %s0, 18
  %s37 = sld [smem:[%s36]]
  %s38 = scalar_lea.smem %s0, 19
  %s39 = sld [smem:[%s38]]
  %s40 = scalar_lea.smem %s0, 20
  %s41 = sld [smem:[%s40]]
  %s42 = scalar_lea.smem %s0, 21
  %s43 = sld [smem:[%s42]]
  %s44 = scalar_lea.smem %s0, 22
  %s45 = sld [smem:[%s44]]
  %s46 = scalar_lea.smem %s0, 23
  %s47 = sld [smem:[%s46]]
  %s48 = scalar_lea.smem %s0, 24
  %s49 = sld [smem:[%s48]]
  %s50 = scalar_lea.smem %s0, 25
  %s51 = sld [smem:[%s50]]
  %s52 = scalar_lea.smem %s0, 26
  %s53 = sld [smem:[%s52]]
  %s54 = scalar_lea.smem %s0, 27
  %s55 = sld [smem:[%s54]]
  %s56 = scalar_lea.smem %s0, 28
  %s57 = sld [smem:[%s56]]
  %s58 = scalar_lea.smem %s0, 29
  %s59 = sld [smem:[%s58]]
  %s60 = scalar_lea.smem %s0, 30
  %s61 = sld [smem:[%s60]]
  %s62 = scalar_lea.smem %s0, 31
  %s63 = sld [smem:[%s62]]
  %s64 = scalar_lea.smem %s0, 32
  %s65 = sld [smem:[%s64]]
  %s66 = scalar_lea.smem %s0, 33
  %s67 = sld [smem:[%s66]]
  %s68 = scalar_lea.smem %s0, 34
  %s69 = sld [smem:[%s68]]
  %s70 = scalar_lea.smem %s0, 35
  %s71 = sld [smem:[%s70]]
  %s72 = scalar_lea.smem %s0, 36
  %s73 = sld [smem:[%s72]]
  %s74 = scalar_lea.smem %s0, 37
  %s75 = sld [smem:[%s74]]
  %s76 = scalar_lea.smem %s0, 38
  %s77 = sld [smem:[%s76]]
  %s78 = scalar_lea.smem %s0, 39
  %s79 = sld [smem:[%s78]]
  %s80 = scalar_lea.smem %s0, 40
  %s81 = sld [smem:[%s80]]
  %s82 = sld [smem:[#allocation0]]
  $region170: #{gin_ac_forward.4} parent=0
    _
  %s84 = ssub.s32 1, %s82
  %s85 = scalar_select 0, %s84, %s82
  %v86 = vstv %s21
  %87 = vst [vmem:[#allocation2] sm:$0x1] %v86
  %v88 = vstv %s39
  %89 = vst [vmem:[#allocation3] sm:$0x1] %v88
  %v90 = vstv %s57
  %91 = vst [vmem:[#allocation4] sm:$0x1] %v90
  %v92 = vstv %s75
  %93 = vst [vmem:[#allocation5] sm:$0x1] %v92
  // Predicated region
  $region2: #{gin_ac_forward.4} parent=0 // pred_check
    _
  $region3: #{gin_ac_forward.4} parent=0 // pred_check_branch
    %95 = sbr.rel (0) target = $region5
  $region4: #{gin_ac_forward.4} parent=0 // pred_region
    _
  $region5: #{gin_ac_forward.4} parent=0 // pred_fallthru
    _
  // Predicated region
  $region6: #{gin_ac_forward.4} parent=0 // pred_check
    _
  $region7: #{gin_ac_forward.4} parent=0 // pred_check_branch
    %97 = sbr.rel (0) target = $region9
  $region8: #{gin_ac_forward.4} parent=0 // pred_region
    _
  $region9: #{gin_ac_forward.4} parent=0 // pred_fallthru
    _
  // Predicated region
  $region10: #{gin_ac_forward.4} parent=0 // pred_check
    _
  $region11: #{gin_ac_forward.4} parent=0 // pred_check_branch
    %99 = sbr.rel (0) target = $region13
  $region12: #{gin_ac_forward.4} parent=0 // pred_region
    _
  $region13: #{gin_ac_forward.4} parent=0 // pred_fallthru
    _
  // Predicated region
  $region14: #{gin_ac_forward.4} parent=0 // pred_check
    _
  $region15: #{gin_ac_forward.4} parent=0 // pred_check_branch
    %101 = sbr.rel (0) target = $region17
  $region16: #{gin_ac_forward.4} parent=0 // pred_region
    _
  $region17: #{gin_ac_forward.4} parent=0 // pred_fallthru
    _
  // Predicated region
  $region18: #{gin_ac_forward.4} parent=0 // pred_check
    _
  $region19: #{gin_ac_forward.4} parent=0 // pred_check_branch
    %103 = sbr.rel (0) target = $region21
  $region20: #{gin_ac_forward.4} parent=0 // pred_region
    _
  $region21: #{gin_ac_forward.4} parent=0 // pred_fallthru
    _
  // Predicated region
  $region22: #{gin_ac_forward.4} parent=0 // pred_check
    _
  $region23: #{gin_ac_forward.4} parent=0 // pred_check_branch
    %105 = sbr.rel (0) target = $region25
  $region24: #{gin_ac_forward.4} parent=0 // pred_region
    _
  $region25: #{gin_ac_forward.4} parent=0 // pred_fallthru
    _
  // Predicated region
  $region26: #{gin_ac_forward.4} parent=0 // pred_check
    _
  $region27: #{gin_ac_forward.4} parent=0 // pred_check_branch
    %107 = sbr.rel (0) target = $region29
  $region28: #{gin_ac_forward.4} parent=0 // pred_region
    _
  $region29: #{gin_ac_forward.4} parent=0 // pred_fallthru
    _
  // Predicated region
  $region30: #{gin_ac_forward.4} parent=0 // pred_check
    _
  $region31: #{gin_ac_forward.4} parent=0 // pred_check_branch
    %109 = sbr.rel (0) target = $region33
  $region32: #{gin_ac_forward.4} parent=0 // pred_region
    _
  $region33: #{gin_ac_forward.4} parent=0 // pred_fallthru
    _
  // Predicated region
  $region34: #{gin_ac_forward.4} parent=0 // pred_check
    _
  $region35: #{gin_ac_forward.4} parent=0 // pred_check_branch
    %111 = sbr.rel (0) target = $region37
  $region36: #{gin_ac_forward.4} parent=0 // pred_region
    _
  $region37: #{gin_ac_forward.4} parent=0 // pred_fallthru
    _
  // Predicated region
  $region38: #{gin_ac_forward.4} parent=0 // pred_check
    _
  $region39: #{gin_ac_forward.4} parent=0 // pred_check_branch
    %113 = sbr.rel (0) target = $region41
  $region40: #{gin_ac_forward.4} parent=0 // pred_region
    _
  $region41: #{gin_ac_forward.4} parent=0 // pred_fallthru
    _
  // Predicated region
  $region42: #{gin_ac_forward.4} parent=0 // pred_check
    _
  $region43: #{gin_ac_forward.4} parent=0 // pred_check_branch
    %115 = sbr.rel (0) target = $region45
  $region44: #{gin_ac_forward.4} parent=0 // pred_region
    _
  $region45: #{gin_ac_forward.4} parent=0 // pred_fallthru
    _
  // Predicated region
  $region46: #{gin_ac_forward.4} parent=0 // pred_check
    _
  $region47: #{gin_ac_forward.4} parent=0 // pred_check_branch
    %117 = sbr.rel (0) target = $region49
  $region48: #{gin_ac_forward.4} parent=0 // pred_region
    _
  $region49: #{gin_ac_forward.4} parent=0 // pred_fallthru
    _
  // Predicated region
  $region50: #{gin_ac_forward.4} parent=0 // pred_check
    _
  $region51: #{gin_ac_forward.4} parent=0 // pred_check_branch
    %119 = sbr.rel (0) target = $region53
  $region52: #{gin_ac_forward.4} parent=0 // pred_region
    _
  $region53: #{gin_ac_forward.4} parent=0 // pred_fallthru
    _
  // Predicated region
  $region54: #{gin_ac_forward.4} parent=0 // pred_check
    _
  $region55: #{gin_ac_forward.4} parent=0 // pred_check_branch
    %121 = sbr.rel (0) target = $region57
  $region56: #{gin_ac_forward.4} parent=0 // pred_region
    _
  $region57: #{gin_ac_forward.4} parent=0 // pred_fallthru
    _
  // Predicated region
  $region58: #{gin_ac_forward.4} parent=0 // pred_check
    _
  $region59: #{gin_ac_forward.4} parent=0 // pred_check_branch
    %123 = sbr.rel (0) target = $region61
  $region60: #{gin_ac_forward.4} parent=0 // pred_region
    _
  $region61: #{gin_ac_forward.4} parent=0 // pred_fallthru
    _
  // Predicated region
  $region62: #{gin_ac_forward.4} parent=0 // pred_check
    _
  $region63: #{gin_ac_forward.4} parent=0 // pred_check_branch
    %125 = sbr.rel (0) target = $region65
  $region64: #{gin_ac_forward.4} parent=0 // pred_region
    _
  $region65: #{gin_ac_forward.4} parent=0 // pred_fallthru
    _
  // Predicated region
  $region66: #{gin_ac_forward.4} parent=0 // pred_check
    _
  $region67: #{gin_ac_forward.4} parent=0 // pred_check_branch
    %127 = sbr.rel (0) target = $region69
  $region68: #{gin_ac_forward.4} parent=0 // pred_region
    _
  $region69: #{gin_ac_forward.4} parent=0 // pred_fallthru
    _
  // Predicated region
  $region70: #{gin_ac_forward.4} parent=0 // pred_check
    _
  $region71: #{gin_ac_forward.4} parent=0 // pred_check_branch
    %129 = sbr.rel (0) target = $region73
  $region72: #{gin_ac_forward.4} parent=0 // pred_region
    _
  $region73: #{gin_ac_forward.4} parent=0 // pred_fallthru
    _
  // Predicated region
  $region74: #{gin_ac_forward.4} parent=0 // pred_check
    _
  $region75: #{gin_ac_forward.4} parent=0 // pred_check_branch
    %131 = sbr.rel (0) target = $region77
  $region76: #{gin_ac_forward.4} parent=0 // pred_region
    _
  $region77: #{gin_ac_forward.4} parent=0 // pred_fallthru
    _
  // Predicated region
  $region78: #{gin_ac_forward.4} parent=0 // pred_check
    _
  $region79: #{gin_ac_forward.4} parent=0 // pred_check_branch
    %133 = sbr.rel (0) target = $region81
  $region80: #{gin_ac_forward.4} parent=0 // pred_region
    _
  $region81: #{gin_ac_forward.4} parent=0 // pred_fallthru
    _
  // Predicated region
  $region82: #{gin_ac_forward.4} parent=0 // pred_check
    _
  $region83: #{gin_ac_forward.4} parent=0 // pred_check_branch
    %135 = sbr.rel (0) target = $region85
  $region84: #{gin_ac_forward.4} parent=0 // pred_region
    _
  $region85: #{gin_ac_forward.4} parent=0 // pred_fallthru
    _
  // Predicated region
  $region86: #{gin_ac_forward.4} parent=0 // pred_check
    _
  $region87: #{gin_ac_forward.4} parent=0 // pred_check_branch
    %137 = sbr.rel (0) target = $region89
  $region88: #{gin_ac_forward.4} parent=0 // pred_region
    _
  $region89: #{gin_ac_forward.4} parent=0 // pred_fallthru
    _
  // Predicated region
  $region90: #{gin_ac_forward.4} parent=0 // pred_check
    _
  $region91: #{gin_ac_forward.4} parent=0 // pred_check_branch
    %139 = sbr.rel (0) target = $region93
  $region92: #{gin_ac_forward.4} parent=0 // pred_region
    _
  $region93: #{gin_ac_forward.4} parent=0 // pred_fallthru
    _
  // Predicated region
  $region94: #{gin_ac_forward.4} parent=0 // pred_check
    _
  $region95: #{gin_ac_forward.4} parent=0 // pred_check_branch
    %141 = sbr.rel (0) target = $region97
  $region96: #{gin_ac_forward.4} parent=0 // pred_region
    _
  $region97: #{gin_ac_forward.4} parent=0 // pred_fallthru
    _
  // Predicated region
  $region98: #{gin_ac_forward.4} parent=0 // pred_check
    _
  $region99: #{gin_ac_forward.4} parent=0 // pred_check_branch
    %143 = sbr.rel (0) target = $region101
  $region100: #{gin_ac_forward.4} parent=0 // pred_region
    _
  $region101: #{gin_ac_forward.4} parent=0 // pred_fallthru
    _
  // Predicated region
  $region102: #{gin_ac_forward.4} parent=0 // pred_check
    _
  $region103: #{gin_ac_forward.4} parent=0 // pred_check_branch
    %145 = sbr.rel (0) target = $region105
  $region104: #{gin_ac_forward.4} parent=0 // pred_region
    _
  $region105: #{gin_ac_forward.4} parent=0 // pred_fallthru
    _
  // Predicated region
  $region106: #{gin_ac_forward.4} parent=0 // pred_check
    _
  $region107: #{gin_ac_forward.4} parent=0 // pred_check_branch
    %147 = sbr.rel (0) target = $region109
  $region108: #{gin_ac_forward.4} parent=0 // pred_region
    _
  $region109: #{gin_ac_forward.4} parent=0 // pred_fallthru
    _
  // Predicated region
  $region110: #{gin_ac_forward.4} parent=0 // pred_check
    _
  $region111: #{gin_ac_forward.4} parent=0 // pred_check_branch
    %149 = sbr.rel (0) target = $region113
  $region112: #{gin_ac_forward.4} parent=0 // pred_region
    _
  $region113: #{gin_ac_forward.4} parent=0 // pred_fallthru
    _
  // Predicated region
  $region114: #{gin_ac_forward.4} parent=0 // pred_check
    _
  $region115: #{gin_ac_forward.4} parent=0 // pred_check_branch
    %151 = sbr.rel (0) target = $region117
  $region116: #{gin_ac_forward.4} parent=0 // pred_region
    _
  $region117: #{gin_ac_forward.4} parent=0 // pred_fallthru
    _
  // Predicated region
  $region118: #{gin_ac_forward.4} parent=0 // pred_check
    _
  $region119: #{gin_ac_forward.4} parent=0 // pred_check_branch
    %153 = sbr.rel (0) target = $region121
  $region120: #{gin_ac_forward.4} parent=0 // pred_region
    _
  $region121: #{gin_ac_forward.4} parent=0 // pred_fallthru
    _
  // Predicated region
  $region122: #{gin_ac_forward.4} parent=0 // pred_check
    _
  $region123: #{gin_ac_forward.4} parent=0 // pred_check_branch
    %155 = sbr.rel (0) target = $region125
  $region124: #{gin_ac_forward.4} parent=0 // pred_region
    _
  $region125: #{gin_ac_forward.4} parent=0 // pred_fallthru
    _
  // Predicated region
  $region126: #{gin_ac_forward.4} parent=0 // pred_check
    _
  $region127: #{gin_ac_forward.4} parent=0 // pred_check_branch
    %157 = sbr.rel (0) target = $region129
  $region128: #{gin_ac_forward.4} parent=0 // pred_region
    _
  $region129: #{gin_ac_forward.4} parent=0 // pred_fallthru
    _
  // Predicated region
  $region130: #{gin_ac_forward.4} parent=0 // pred_check
    _
  $region131: #{gin_ac_forward.4} parent=0 // pred_check_branch
    %159 = sbr.rel (0) target = $region133
  $region132: #{gin_ac_forward.4} parent=0 // pred_region
    _
  $region133: #{gin_ac_forward.4} parent=0 // pred_fallthru
    _
  // Predicated region
  $region134: #{gin_ac_forward.4} parent=0 // pred_check
    _
  $region135: #{gin_ac_forward.4} parent=0 // pred_check_branch
    %161 = sbr.rel (0) target = $region137
  $region136: #{gin_ac_forward.4} parent=0 // pred_region
    _
  $region137: #{gin_ac_forward.4} parent=0 // pred_fallthru
    _
  // Predicated region
  $region138: #{gin_ac_forward.4} parent=0 // pred_check
    _
  $region139: #{gin_ac_forward.4} parent=0 // pred_check_branch
    %163 = sbr.rel (0) target = $region141
  $region140: #{gin_ac_forward.4} parent=0 // pred_region
    _
  $region141: #{gin_ac_forward.4} parent=0 // pred_fallthru
    _
  // Predicated region
  $region142: #{gin_ac_forward.4} parent=0 // pred_check
    _
  $region143: #{gin_ac_forward.4} parent=0 // pred_check_branch
    %165 = sbr.rel (0) target = $region145
  $region144: #{gin_ac_forward.4} parent=0 // pred_region
    _
  $region145: #{gin_ac_forward.4} parent=0 // pred_fallthru
    _
  // Predicated region
  $region146: #{gin_ac_forward.4} parent=0 // pred_check
    _
  $region147: #{gin_ac_forward.4} parent=0 // pred_check_branch
    %167 = sbr.rel (0) target = $region149
  $region148: #{gin_ac_forward.4} parent=0 // pred_region
    _
  $region149: #{gin_ac_forward.4} parent=0 // pred_fallthru
    _
  // Predicated region
  $region150: #{gin_ac_forward.4} parent=0 // pred_check
    _
  $region151: #{gin_ac_forward.4} parent=0 // pred_check_branch
    %169 = sbr.rel (0) target = $region153
  $region152: #{gin_ac_forward.4} parent=0 // pred_region
    _
  $region153: #{gin_ac_forward.4} parent=0 // pred_fallthru
    _
  // Predicated region
  $region154: #{gin_ac_forward.4} parent=0 // pred_check
    _
  $region155: #{gin_ac_forward.4} parent=0 // pred_check_branch
    %171 = sbr.rel (0) target = $region157
  $region156: #{gin_ac_forward.4} parent=0 // pred_region
    _
  $region157: #{gin_ac_forward.4} parent=0 // pred_fallthru
    _
  // Predicated region
  $region158: #{gin_ac_forward.4} parent=0 // pred_check
    _
  $region159: #{gin_ac_forward.4} parent=0 // pred_check_branch
    %173 = sbr.rel (0) target = $region161
  $region160: #{gin_ac_forward.4} parent=0 // pred_region
    _
  $region161: #{gin_ac_forward.4} parent=0 // pred_fallthru
    _
  %v174 = vld [vmem:[%s1] sm:$0xff]
  %v175 = vld [vmem:[%s1 + $0x8] sm:$0xf]
  %v176 = vld [vmem:[%s3] sm:$0xff]
  %v177 = vld [vmem:[%s3 + $0x8] sm:$0xff]
  %v178 = vld [vmem:[%s3 + $0x10] sm:$0xff]
  %v179 = vld [vmem:[%s5] sm:$0xff]
  %v180 = vld [vmem:[%s5 + $0x8] sm:$0xff]
  %v181 = vld [vmem:[%s5 + $0x10] sm:$0xff]
  %v182 = vld [vmem:[%s7] sm:$0xff]
  %v183 = vld [vmem:[%s7 + $0x8] sm:$0xf]
  %v184 = vld [vmem:[%s9] sm:$0xff]
  %v185 = vld [vmem:[%s9 + $0x8] sm:$0x3]
  %v186 = vld [vmem:[%s11] sm:$0x1]
  %v188 = vlaneseq
  %v189 = vshrl.u32 %v188, 7
  %v190 = vsub.s32 0, %v189
  %v191 = vrot.slane %v186, %v190
  %vm193 = vcmask 80896
  %v195 = vsel %vm193, %v176, 0
  %v198 = vsel %vm193, %v177, 0
  %v201 = vsel %vm193, %v178, 0
  %vm203 = vcmask 1041408
  %v205 = vsel %vm203, %v185, 0
  %207 = vmatprep.subr.mxu0 0.0
  %208 = vmatpush1.msra.mxu0 %v184
  %209 = vmatprep.subr.mxu0 0.0
  %210 = vmatpush1.msra.mxu0 %v205
  %211 = vmatprep.subr.mxu0 0.0
  %212 = vmatpush1.msra.mxu0 0.0
  %213 = vmatprep.subr.mxu0 0.0
  %214 = vmatpush1.msra.mxu0 0.0
  %215 = vmatprep.subr.mxu0 0.0
  %216 = vmatpush1.msra.mxu0 0.0
  %217 = vmatprep.subr.mxu0 0.0
  %218 = vmatpush1.msra.mxu0 0.0
  %219 = vmatprep.subr.mxu0 0.0
  %220 = vmatpush1.msra.mxu0 0.0
  %221 = vmatprep.subr.mxu0 0.0
  %222 = vmatpush1.msra.mxu0 0.0
  %223 = vmatprep.subr.mxu0 0.0
  %224 = vmatpush1.msra.mxu0 0.0
  %225 = vmatprep.subr.mxu0 0.0
  %226 = vmatpush1.msra.mxu0 0.0
  %227 = vmatprep.subr.mxu0 0.0
  %228 = vmatpush1.msra.mxu0 0.0
  %229 = vmatprep.subr.mxu0 0.0
  %230 = vmatpush1.msra.mxu0 0.0
  %231 = vmatprep.subr.mxu0 0.0
  %232 = vmatpush1.msra.mxu0 0.0
  %233 = vmatprep.subr.mxu0 0.0
  %234 = vmatpush1.msra.mxu0 0.0
  %235 = vmatprep.subr.mxu0 0.0
  %236 = vmatpush1.msra.mxu0 0.0
  %237 = vmatprep.subr.mxu0 0.0
  %238 = vmatpush1.msra.mxu0 0.0
  %239 = vmatprep.subr.mxu0 0.0
  %240 = vmatpush1.msra.mxu0 0.0
  %241 = vmatprep.subr.mxu0 0.0
  %242 = vmatpush1.msra.mxu0 0.0
  %243 = vmatprep.subr.mxu0 0.0
  %244 = vmatpush1.msra.mxu0 0.0
  %245 = vmatprep.subr.mxu0 0.0
  %246 = vmatpush1.msra.mxu0 0.0
  %247 = vmatprep.subr.mxu0 0.0
  %248 = vmatpush1.msra.mxu0 0.0
  %249 = vmatprep.subr.mxu0 0.0
  %250 = vmatpush1.msra.mxu0 0.0
  %251 = vmatprep.subr.mxu0 0.0
  %252 = vmatpush1.msra.mxu0 0.0
  %253 = vmatprep.subr.mxu0 0.0
  %254 = vmatpush1.msra.mxu0 0.0
  %255 = vmatprep.subr.mxu0 0.0
  %256 = vmatpush1.msra.mxu0 0.0
  %257 = vmatprep.subr.mxu0 0.0
  %258 = vmatpush1.msra.mxu0 0.0
  %259 = vmatprep.subr.mxu0 0.0
  %260 = vmatpush1.msra.mxu0 0.0
  %261 = vmatprep.subr.mxu0 0.0
  %262 = vmatpush1.msra.mxu0 0.0
  %263 = vmatprep.subr.mxu0 0.0
  %264 = vmatpush1.msra.mxu0 0.0
  %265 = vmatprep.subr.mxu0 0.0
  %266 = vmatpush1.msra.mxu0 0.0
  %267 = vmatprep.subr.mxu0 0.0
  %268 = vmatpush1.msra.mxu0 0.0
  %269 = vmatprep.subr.mxu0 0.0
  %270 = vmatpush1.msra.mxu0 0.0
  %271 = vmatprep.mubr.f32.mxu0 0.0
  %272 = vmatmul.mubr.f32.gmra.mrb[0].mxu0 %v195
  %v273 = vpop.f32.mrb[0].mxu0
  %v274 = vadd.f32 %v191, %v273
  %v275 = vpop.f32.mrb[0].mxu0
  %276 = vmatprep.mubr.f32.mxu0 0.0
  %277 = vmatmul.mubr.f32.gmra.mrb[0].mxu0 %v198
  %v278 = vpop.f32.mrb[0].mxu0
  %v279 = vadd.f32 %v191, %v278
  %v280 = vpop.f32.mrb[0].mxu0
  %281 = vmatprep.mubr.f32.mxu0 0.0
  %282 = vmatmul.mubr.f32.gmra.mrb[0].mxu0 %v201
  %v283 = vpop.f32.mrb[0].mxu0
  %v284 = vadd.f32 %v191, %v283
  %v285 = vpop.f32.mrb[0].mxu0
  %286 = vdwg.mxu0
  %vm287 = vcmask 97280
  %v289 = vsel %vm287, %v179, 0
  %v292 = vsel %vm287, %v180, 0
  %v295 = vsel %vm287, %v181, 0
  %vm297 = vcmask 1043456
  %v299 = vsel %vm297, %v175, 0
  %301 = vmatprep.subr.mxu0 0.0
  %302 = vmatpush1.msra.mxu0 %v174
  %303 = vmatprep.subr.mxu0 0.0
  %304 = vmatpush1.msra.mxu0 %v299
  %305 = vmatprep.subr.mxu0 0.0
  %306 = vmatpush1.msra.mxu0 0.0
  %307 = vmatprep.subr.mxu0 0.0
  %308 = vmatpush1.msra.mxu0 0.0
  %309 = vmatprep.subr.mxu0 0.0
  %310 = vmatpush1.msra.mxu0 0.0
  %311 = vmatprep.subr.mxu0 0.0
  %312 = vmatpush1.msra.mxu0 0.0
  %313 = vmatprep.subr.mxu0 0.0
  %314 = vmatpush1.msra.mxu0 0.0
  %315 = vmatprep.subr.mxu0 0.0
  %316 = vmatpush1.msra.mxu0 0.0
  %317 = vmatprep.subr.mxu0 0.0
  %318 = vmatpush1.msra.mxu0 0.0
  %319 = vmatprep.subr.mxu0 0.0
  %320 = vmatpush1.msra.mxu0 0.0
  %321 = vmatprep.subr.mxu0 0.0
  %322 = vmatpush1.msra.mxu0 0.0
  %323 = vmatprep.subr.mxu0 0.0
  %324 = vmatpush1.msra.mxu0 0.0
  %325 = vmatprep.subr.mxu0 0.0
  %326 = vmatpush1.msra.mxu0 0.0
  %327 = vmatprep.subr.mxu0 0.0
  %328 = vmatpush1.msra.mxu0 0.0
  %329 = vmatprep.subr.mxu0 0.0
  %330 = vmatpush1.msra.mxu0 0.0
  %331 = vmatprep.subr.mxu0 0.0
  %332 = vmatpush1.msra.mxu0 0.0
  %333 = vmatprep.subr.mxu0 0.0
  %334 = vmatpush1.msra.mxu0 0.0
  %335 = vmatprep.subr.mxu0 0.0
  %336 = vmatpush1.msra.mxu0 0.0
  %337 = vmatprep.subr.mxu0 0.0
  %338 = vmatpush1.msra.mxu0 0.0
  %339 = vmatprep.subr.mxu0 0.0
  %340 = vmatpush1.msra.mxu0 0.0
  %341 = vmatprep.subr.mxu0 0.0
  %342 = vmatpush1.msra.mxu0 0.0
  %343 = vmatprep.subr.mxu0 0.0
  %344 = vmatpush1.msra.mxu0 0.0
  %345 = vmatprep.subr.mxu0 0.0
  %346 = vmatpush1.msra.mxu0 0.0
  %347 = vmatprep.subr.mxu0 0.0
  %348 = vmatpush1.msra.mxu0 0.0
  %349 = vmatprep.subr.mxu0 0.0
  %350 = vmatpush1.msra.mxu0 0.0
  %351 = vmatprep.subr.mxu0 0.0
  %352 = vmatpush1.msra.mxu0 0.0
  %353 = vmatprep.subr.mxu0 0.0
  %354 = vmatpush1.msra.mxu0 0.0
  %355 = vmatprep.subr.mxu0 0.0
  %356 = vmatpush1.msra.mxu0 0.0
  %357 = vmatprep.subr.mxu0 0.0
  %358 = vmatpush1.msra.mxu0 0.0
  %359 = vmatprep.subr.mxu0 0.0
  %360 = vmatpush1.msra.mxu0 0.0
  %361 = vmatprep.subr.mxu0 0.0
  %362 = vmatpush1.msra.mxu0 0.0
  %363 = vmatprep.subr.mxu0 0.0
  %364 = vmatpush1.msra.mxu0 0.0
  %365 = vmatprep.mubr.f32.mxu0 0.0
  %366 = vmatmul.mubr.f32.gmra.mrb[0].mxu0 %v289
  %v367 = vpop.f32.mrb[0].mxu0
  %v368 = vadd.f32 %v274, %v367
  %v369 = vpop.f32.mrb[0].mxu0
  %370 = vmatprep.mubr.f32.mxu0 0.0
  %371 = vmatmul.mubr.f32.gmra.mrb[0].mxu0 %v292
  %v372 = vpop.f32.mrb[0].mxu0
  %v373 = vadd.f32 %v279, %v372
  %v374 = vpop.f32.mrb[0].mxu0
  %375 = vmatprep.mubr.f32.mxu0 0.0
  %376 = vmatmul.mubr.f32.gmra.mrb[0].mxu0 %v295
  %v377 = vpop.f32.mrb[0].mxu0
  %v378 = vadd.f32 %v284, %v377
  %v379 = vpop.f32.mrb[0].mxu0
  %380 = vdwg.mxu0
  %v381 = vmax.f32 %v368, 0.0
  %v382 = vmax.f32 %v373, 0.0
  %v383 = vmax.f32 %v378, 0.0
  %vm384 = vcmask 195584
  %v386 = vsel %vm384, %v182, 0
  %v389 = vsel %vm384, %v183, 0
  %391 = vmatprep.subr.mxu0 0.0
  %392 = vmatpush1.msra.mxu0 %v381
  %393 = vmatprep.subr.mxu0 0.0
  %394 = vmatpush1.msra.mxu0 %v382
  %395 = vmatprep.subr.mxu0 0.0
  %396 = vmatpush1.msra.mxu0 %v383
  %397 = vmatprep.subr.mxu0 0.0
  %398 = vmatpush1.msra.mxu0 0.0
  %399 = vmatprep.subr.mxu0 0.0
  %400 = vmatpush1.msra.mxu0 0.0
  %401 = vmatprep.subr.mxu0 0.0
  %402 = vmatpush1.msra.mxu0 0.0
  %403 = vmatprep.subr.mxu0 0.0
  %404 = vmatpush1.msra.mxu0 0.0
  %405 = vmatprep.subr.mxu0 0.0
  %406 = vmatpush1.msra.mxu0 0.0
  %407 = vmatprep.subr.mxu0 0.0
  %408 = vmatpush1.msra.mxu0 0.0
  %409 = vmatprep.subr.mxu0 0.0
  %410 = vmatpush1.msra.mxu0 0.0
  %411 = vmatprep.subr.mxu0 0.0
  %412 = vmatpush1.msra.mxu0 0.0
  %413 = vmatprep.subr.mxu0 0.0
  %414 = vmatpush1.msra.mxu0 0.0
  %415 = vmatprep.subr.mxu0 0.0
  %416 = vmatpush1.msra.mxu0 0.0
  %417 = vmatprep.subr.mxu0 0.0
  %418 = vmatpush1.msra.mxu0 0.0
  %419 = vmatprep.subr.mxu0 0.0
  %420 = vmatpush1.msra.mxu0 0.0
  %421 = vmatprep.subr.mxu0 0.0
  %422 = vmatpush1.msra.mxu0 0.0
  %423 = vmatprep.subr.mxu0 0.0
  %424 = vmatpush1.msra.mxu0 0.0
  %425 = vmatprep.subr.mxu0 0.0
  %426 = vmatpush1.msra.mxu0 0.0
  %427 = vmatprep.subr.mxu0 0.0
  %428 = vmatpush1.msra.mxu0 0.0
  %429 = vmatprep.subr.mxu0 0.0
  %430 = vmatpush1.msra.mxu0 0.0
  %431 = vmatprep.subr.mxu0 0.0
  %432 = vmatpush1.msra.mxu0 0.0
  %433 = vmatprep.subr.mxu0 0.0
  %434 = vmatpush1.msra.mxu0 0.0
  %435 = vmatprep.subr.mxu0 0.0
  %436 = vmatpush1.msra.mxu0 0.0
  %437 = vmatprep.subr.mxu0 0.0
  %438 = vmatpush1.msra.mxu0 0.0
  %439 = vmatprep.subr.mxu0 0.0
  %440 = vmatpush1.msra.mxu0 0.0
  %441 = vmatprep.subr.mxu0 0.0
  %442 = vmatpush1.msra.mxu0 0.0
  %443 = vmatprep.subr.mxu0 0.0
  %444 = vmatpush1.msra.mxu0 0.0
  %445 = vmatprep.subr.mxu0 0.0
  %446 = vmatpush1.msra.mxu0 0.0
  %447 = vmatprep.subr.mxu0 0.0
  %448 = vmatpush1.msra.mxu0 0.0
  %449 = vmatprep.subr.mxu0 0.0
  %450 = vmatpush1.msra.mxu0 0.0
  %451 = vmatprep.subr.mxu0 0.0
  %452 = vmatpush1.msra.mxu0 0.0
  %453 = vmatprep.subr.mxu0 0.0
  %454 = vmatpush1.msra.mxu0 0.0
  %455 = vmatprep.mubr.f32.mxu0 0.0
  %456 = vmatmul.mubr.f32.gmra.mrb[0].mxu0 %v386
  %v457 = vpop.f32.mrb[0].mxu0
  %v458 = vadd.f32 0.0, %v457
  %v459 = vpop.f32.mrb[0].mxu0
  %460 = vmatprep.mubr.f32.mxu0 0.0
  %461 = vmatmul.mubr.f32.gmra.mrb[0].mxu0 %v389
  %v462 = vpop.f32.mrb[0].mxu0
  %v463 = vadd.f32 0.0, %v462
  %v464 = vpop.f32.mrb[0].mxu0
  %465 = vdwg.mxu0
  %v466 = vld [vmem:[#allocation2] sm:$0x1]
  %v467 = vadd.f32 %v466, 1.0
  %v469 = vlaneseq
  %v470 = vshrl.u32 %v469, 7
  %v471 = vsub.s32 0, %v470
  %v472 = vrot.slane %v467, %v471
  %473 = vset.pattern.permute.xlu0 0
  %474 = vperm.xlu0 %473, %v472
  %v475 = vpop.permute.xlu0 %474
  %v477 = vmul.f32 %v174, %v475
  %v478 = vmul.f32 %v175, %v475
  %v479 = vadd.f32 %v477, %v458
  %v480 = vadd.f32 %v478, %v463
  %v481 = vld [vmem:[%s13] sm:$0xff]
  %v482 = vld [vmem:[%s13 + $0x8] sm:$0xff]
  %v483 = vld [vmem:[%s13 + $0x10] sm:$0xff]
  %v484 = vld [vmem:[%s13 + $0x18] sm:$0xff]
  %v485 = vld [vmem:[%s13 + $0x20] sm:$0xff]
  %v486 = vld [vmem:[%s13 + $0x28] sm:$0xff]
  %v487 = vld [vmem:[%s13 + $0x30] sm:$0xf]
  %v488 = vld [vmem:[%s15] sm:$0x1]
  %v490 = vlaneseq
  %v491 = vshrl.u32 %v490, 7
  %v492 = vsub.s32 0, %v491
  %v493 = vrot.slane %v488, %v492
  %vm495 = vcmask 424960
  %v497 = vsel %vm495, %v479, 0
  %v500 = vsel %vm495, %v480, 0
  %v503 = vsel %vm297, %v487, 0
  %505 = vmatprep.subr.mxu0 0.0
  %506 = vmatpush1.msra.mxu0 %v481
  %507 = vmatprep.subr.mxu0 0.0
  %508 = vmatpush1.msra.mxu0 %v482
  %509 = vmatprep.subr.mxu0 0.0
  %510 = vmatpush1.msra.mxu0 %v483
  %511 = vmatprep.subr.mxu0 0.0
  %512 = vmatpush1.msra.mxu0 %v484
  %513 = vmatprep.subr.mxu0 0.0
  %514 = vmatpush1.msra.mxu0 %v485
  %515 = vmatprep.subr.mxu0 0.0
  %516 = vmatpush1.msra.mxu0 %v486
  %517 = vmatprep.subr.mxu0 0.0
  %518 = vmatpush1.msra.mxu0 %v503
  %519 = vmatprep.subr.mxu0 0.0
  %520 = vmatpush1.msra.mxu0 0.0
  %521 = vmatprep.subr.mxu0 0.0
  %522 = vmatpush1.msra.mxu0 0.0
  %523 = vmatprep.subr.mxu0 0.0
  %524 = vmatpush1.msra.mxu0 0.0
  %525 = vmatprep.subr.mxu0 0.0
  %526 = vmatpush1.msra.mxu0 0.0
  %527 = vmatprep.subr.mxu0 0.0
  %528 = vmatpush1.msra.mxu0 0.0
  %529 = vmatprep.subr.mxu0 0.0
  %530 = vmatpush1.msra.mxu0 0.0
  %531 = vmatprep.subr.mxu0 0.0
  %532 = vmatpush1.msra.mxu0 0.0
  %533 = vmatprep.subr.mxu0 0.0
  %534 = vmatpush1.msra.mxu0 0.0
  %535 = vmatprep.subr.mxu0 0.0
  %536 = vmatpush1.msra.mxu0 0.0
  %537 = vmatprep.subr.mxu0 0.0
  %538 = vmatpush1.msra.mxu0 0.0
  %539 = vmatprep.subr.mxu0 0.0
  %540 = vmatpush1.msra.mxu0 0.0
  %541 = vmatprep.subr.mxu0 0.0
  %542 = vmatpush1.msra.mxu0 0.0
  %543 = vmatprep.subr.mxu0 0.0
  %544 = vmatpush1.msra.mxu0 0.0
  %545 = vmatprep.subr.mxu0 0.0
  %546 = vmatpush1.msra.mxu0 0.0
  %547 = vmatprep.subr.mxu0 0.0
  %548 = vmatpush1.msra.mxu0 0.0
  %549 = vmatprep.subr.mxu0 0.0
  %550 = vmatpush1.msra.mxu0 0.0
  %551 = vmatprep.subr.mxu0 0.0
  %552 = vmatpush1.msra.mxu0 0.0
  %553 = vmatprep.subr.mxu0 0.0
  %554 = vmatpush1.msra.mxu0 0.0
  %555 = vmatprep.subr.mxu0 0.0
  %556 = vmatpush1.msra.mxu0 0.0
  %557 = vmatprep.subr.mxu0 0.0
  %558 = vmatpush1.msra.mxu0 0.0
  %559 = vmatprep.subr.mxu0 0.0
  %560 = vmatpush1.msra.mxu0 0.0
  %561 = vmatprep.subr.mxu0 0.0
  %562 = vmatpush1.msra.mxu0 0.0
  %563 = vmatprep.subr.mxu0 0.0
  %564 = vmatpush1.msra.mxu0 0.0
  %565 = vmatprep.subr.mxu0 0.0
  %566 = vmatpush1.msra.mxu0 0.0
  %567 = vmatprep.subr.mxu0 0.0
  %568 = vmatpush1.msra.mxu0 0.0
  %569 = vmatprep.mubr.f32.mxu0 0.0
  %570 = vmatmul.mubr.f32.gmra.mrb[0].mxu0 %v497
  %v571 = vpop.f32.mrb[0].mxu0
  %v572 = vadd.f32 %v493, %v571
  %v573 = vpop.f32.mrb[0].mxu0
  %574 = vmatprep.mubr.f32.mxu0 0.0
  %575 = vmatmul.mubr.f32.gmra.mrb[0].mxu0 %v500
  %v576 = vpop.f32.mrb[0].mxu0
  %v577 = vadd.f32 %v493, %v576
  %v578 = vpop.f32.mrb[0].mxu0
  %579 = vdwg.mxu0
  %v580 = vmax.f32 %v572, 0.0
  %v581 = vmax.f32 %v577, 0.0
  %v582 = vld [vmem:[%s17] sm:$0xff]
  %v583 = vld [vmem:[%s17 + $0x8] sm:$0xff]
  %v584 = vld [vmem:[%s17 + $0x10] sm:$0xff]
  %v585 = vld [vmem:[%s17 + $0x18] sm:$0xff]
  %v586 = vld [vmem:[%s19] sm:$0x1]
  %v588 = vlaneseq
  %v589 = vshrl.u32 %v588, 7
  %v590 = vsub.s32 0, %v589
  %v591 = vrot.slane %v586, %v590
  %vm593 = vcmask 261120
  %v595 = vsel %vm593, %v580, 0
  %v598 = vsel %vm593, %v581, 0
  %600 = vmatprep.subr.mxu0 0.0
  %601 = vmatpush1.msra.mxu0 %v582
  %602 = vmatprep.subr.mxu0 0.0
  %603 = vmatpush1.msra.mxu0 %v583
  %604 = vmatprep.subr.mxu0 0.0
  %605 = vmatpush1.msra.mxu0 %v584
  %606 = vmatprep.subr.mxu0 0.0
  %607 = vmatpush1.msra.mxu0 %v585
  %608 = vmatprep.subr.mxu0 0.0
  %609 = vmatpush1.msra.mxu0 0.0
  %610 = vmatprep.subr.mxu0 0.0
  %611 = vmatpush1.msra.mxu0 0.0
  %612 = vmatprep.subr.mxu0 0.0
  %613 = vmatpush1.msra.mxu0 0.0
  %614 = vmatprep.subr.mxu0 0.0
  %615 = vmatpush1.msra.mxu0 0.0
  %616 = vmatprep.subr.mxu0 0.0
  %617 = vmatpush1.msra.mxu0 0.0
  %618 = vmatprep.subr.mxu0 0.0
  %619 = vmatpush1.msra.mxu0 0.0
  %620 = vmatprep.subr.mxu0 0.0
  %621 = vmatpush1.msra.mxu0 0.0
  %622 = vmatprep.subr.mxu0 0.0
  %623 = vmatpush1.msra.mxu0 0.0
  %624 = vmatprep.subr.mxu0 0.0
  %625 = vmatpush1.msra.mxu0 0.0
  %626 = vmatprep.subr.mxu0 0.0
  %627 = vmatpush1.msra.mxu0 0.0
  %628 = vmatprep.subr.mxu0 0.0
  %629 = vmatpush1.msra.mxu0 0.0
  %630 = vmatprep.subr.mxu0 0.0
  %631 = vmatpush1.msra.mxu0 0.0
  %632 = vmatprep.subr.mxu0 0.0
  %633 = vmatpush1.msra.mxu0 0.0
  %634 = vmatprep.subr.mxu0 0.0
  %635 = vmatpush1.msra.mxu0 0.0
  %636 = vmatprep.subr.mxu0 0.0
  %637 = vmatpush1.msra.mxu0 0.0
  %638 = vmatprep.subr.mxu0 0.0
  %639 = vmatpush1.msra.mxu0 0.0
  %640 = vmatprep.subr.mxu0 0.0
  %641 = vmatpush1.msra.mxu0 0.0
  %642 = vmatprep.subr.mxu0 0.0
  %643 = vmatpush1.msra.mxu0 0.0
  %644 = vmatprep.subr.mxu0 0.0
  %645 = vmatpush1.msra.mxu0 0.0
  %646 = vmatprep.subr.mxu0 0.0
  %647 = vmatpush1.msra.mxu0 0.0
  %648 = vmatprep.subr.mxu0 0.0
  %649 = vmatpush1.msra.mxu0 0.0
  %650 = vmatprep.subr.mxu0 0.0
  %651 = vmatpush1.msra.mxu0 0.0
  %652 = vmatprep.subr.mxu0 0.0
  %653 = vmatpush1.msra.mxu0 0.0
  %654 = vmatprep.subr.mxu0 0.0
  %655 = vmatpush1.msra.mxu0 0.0
  %656 = vmatprep.subr.mxu0 0.0
  %657 = vmatpush1.msra.mxu0 0.0
  %658 = vmatprep.subr.mxu0 0.0
  %659 = vmatpush1.msra.mxu0 0.0
  %660 = vmatprep.subr.mxu0 0.0
  %661 = vmatpush1.msra.mxu0 0.0
  %662 = vmatprep.subr.mxu0 0.0
  %663 = vmatpush1.msra.mxu0 0.0
  %664 = vmatprep.mubr.f32.mxu0 0.0
  %665 = vmatmul.mubr.f32.gmra.mrb[0].mxu0 %v595
  %v666 = vpop.f32.mrb[0].mxu0
  %v667 = vadd.f32 %v591, %v666
  %v668 = vpop.f32.mrb[0].mxu0
  %669 = vmatprep.mubr.f32.mxu0 0.0
  %670 = vmatmul.mubr.f32.gmra.mrb[0].mxu0 %v598
  %v671 = vpop.f32.mrb[0].mxu0
  %v672 = vadd.f32 %v591, %v671
  %v673 = vpop.f32.mrb[0].mxu0
  %674 = vdwg.mxu0
  %v675 = vmax.f32 %v667, 0.0
  %v676 = vmax.f32 %v672, 0.0
  %v677 = vsel %vm593, %v675, 0.0
  %vm678 = vcmask 257024
  %v679 = vsel %vm678, %v676, 0.0
  %v680 = vadd.f32 %v677, %v679
  %v681 = vrot.slane %v680, 4
  %v682 = vadd.f32 %v680, %v681
  %v683 = vrot.slane %v682, 2
  %v684 = vadd.f32 %v682, %v683
  %v685 = vrot.slane %v684, 1
  %v686 = vadd.f32 %v684, %v685
  %v687 = vrcp.pop 12.0
  %v688 = vmul.f32 %v686, %v687
  %v689 = vsub.f32 %v675, %v688
  %v690 = vsub.f32 %v676, %v688
  %v691 = vmul.f32 %v689, %v689
  %v692 = vmul.f32 %v690, %v690
  %v693 = vsel %vm593, %v691, 0.0
  %v694 = vsel %vm678, %v692, 0.0
  %v695 = vadd.f32 %v693, %v694
  %v696 = vrot.slane %v695, 4
  %v697 = vadd.f32 %v695, %v696
  %v698 = vrot.slane %v697, 2
  %v699 = vadd.f32 %v697, %v698
  %v700 = vrot.slane %v699, 1
  %v701 = vadd.f32 %v699, %v700
  %v702 = vmul.f32 %v701, %v687
  %v703 = vadd.f32 %v702, 1e-05
  %v704 = vrsqrt.pop %v703
  %v705 = vmul.f32 %v689, %v704
  %v706 = vmul.f32 %v690, %v704
  %v707 = vld [vmem:[%s23] sm:$0x1]
  %v709 = vlaneseq
  %v710 = vshrl.u32 %v709, 7
  %v711 = vsub.s32 0, %v710
  %v712 = vrot.slane %v707, %v711
  %v714 = vmul.f32 %v705, %v712
  %v715 = vmul.f32 %v706, %v712
  %v716 = vld [vmem:[%s25] sm:$0x1]
  %v718 = vlaneseq
  %v719 = vshrl.u32 %v718, 7
  %v720 = vsub.s32 0, %v719
  %v721 = vrot.slane %v716, %v720
  %v723 = vadd.f32 %v714, %v721
  %v724 = vadd.f32 %v715, %v721
  %725 = vst.msk [vmem:[%s81] sm:$0xff] %vm593, %v723
  %726 = vst.msk [vmem:[%s81 + $0x8] sm:$0xf] %vm678, %v724
  %v727 = vld [vmem:[%s27] sm:$0xff]
  %v728 = vld [vmem:[%s27 + $0x8] sm:$0x3]
  %v729 = vld [vmem:[%s29] sm:$0x1]
  %v731 = vlaneseq
  %v732 = vshrl.u32 %v731, 7
  %v733 = vsub.s32 0, %v732
  %v734 = vrot.slane %v729, %v733
  %v737 = vsel %vm203, %v728, 0
  %739 = vmatprep.subr.mxu0 0.0
  %740 = vmatpush1.msra.mxu0 %v727
  %741 = vmatprep.subr.mxu0 0.0
  %742 = vmatpush1.msra.mxu0 %v737
  %743 = vmatprep.subr.mxu0 0.0
  %744 = vmatpush1.msra.mxu0 0.0
  %745 = vmatprep.subr.mxu0 0.0
  %746 = vmatpush1.msra.mxu0 0.0
  %747 = vmatprep.subr.mxu0 0.0
  %748 = vmatpush1.msra.mxu0 0.0
  %749 = vmatprep.subr.mxu0 0.0
  %750 = vmatpush1.msra.mxu0 0.0
  %751 = vmatprep.subr.mxu0 0.0
  %752 = vmatpush1.msra.mxu0 0.0
  %753 = vmatprep.subr.mxu0 0.0
  %754 = vmatpush1.msra.mxu0 0.0
  %755 = vmatprep.subr.mxu0 0.0
  %756 = vmatpush1.msra.mxu0 0.0
  %757 = vmatprep.subr.mxu0 0.0
  %758 = vmatpush1.msra.mxu0 0.0
  %759 = vmatprep.subr.mxu0 0.0
  %760 = vmatpush1.msra.mxu0 0.0
  %761 = vmatprep.subr.mxu0 0.0
  %762 = vmatpush1.msra.mxu0 0.0
  %763 = vmatprep.subr.mxu0 0.0
  %764 = vmatpush1.msra.mxu0 0.0
  %765 = vmatprep.subr.mxu0 0.0
  %766 = vmatpush1.msra.mxu0 0.0
  %767 = vmatprep.subr.mxu0 0.0
  %768 = vmatpush1.msra.mxu0 0.0
  %769 = vmatprep.subr.mxu0 0.0
  %770 = vmatpush1.msra.mxu0 0.0
  %771 = vmatprep.subr.mxu0 0.0
  %772 = vmatpush1.msra.mxu0 0.0
  %773 = vmatprep.subr.mxu0 0.0
  %774 = vmatpush1.msra.mxu0 0.0
  %775 = vmatprep.subr.mxu0 0.0
  %776 = vmatpush1.msra.mxu0 0.0
  %777 = vmatprep.subr.mxu0 0.0
  %778 = vmatpush1.msra.mxu0 0.0
  %779 = vmatprep.subr.mxu0 0.0
  %780 = vmatpush1.msra.mxu0 0.0
  %781 = vmatprep.subr.mxu0 0.0
  %782 = vmatpush1.msra.mxu0 0.0
  %783 = vmatprep.subr.mxu0 0.0
  %784 = vmatpush1.msra.mxu0 0.0
  %785 = vmatprep.subr.mxu0 0.0
  %786 = vmatpush1.msra.mxu0 0.0
  %787 = vmatprep.subr.mxu0 0.0
  %788 = vmatpush1.msra.mxu0 0.0
  %789 = vmatprep.subr.mxu0 0.0
  %790 = vmatpush1.msra.mxu0 0.0
  %791 = vmatprep.subr.mxu0 0.0
  %792 = vmatpush1.msra.mxu0 0.0
  %793 = vmatprep.subr.mxu0 0.0
  %794 = vmatpush1.msra.mxu0 0.0
  %795 = vmatprep.subr.mxu0 0.0
  %796 = vmatpush1.msra.mxu0 0.0
  %797 = vmatprep.subr.mxu0 0.0
  %798 = vmatpush1.msra.mxu0 0.0
  %799 = vmatprep.subr.mxu0 0.0
  %800 = vmatpush1.msra.mxu0 0.0
  %801 = vmatprep.subr.mxu0 0.0
  %802 = vmatpush1.msra.mxu0 0.0
  %803 = vmatprep.mubr.f32.mxu0 0.0
  %804 = vmatmul.mubr.f32.gmra.mrb[0].mxu0 %v195
  %v805 = vpop.f32.mrb[0].mxu0
  %v806 = vadd.f32 %v734, %v805
  %v807 = vpop.f32.mrb[0].mxu0
  %808 = vmatprep.mubr.f32.mxu0 0.0
  %809 = vmatmul.mubr.f32.gmra.mrb[0].mxu0 %v198
  %v810 = vpop.f32.mrb[0].mxu0
  %v811 = vadd.f32 %v734, %v810
  %v812 = vpop.f32.mrb[0].mxu0
  %813 = vmatprep.mubr.f32.mxu0 0.0
  %814 = vmatmul.mubr.f32.gmra.mrb[0].mxu0 %v201
  %v815 = vpop.f32.mrb[0].mxu0
  %v816 = vadd.f32 %v734, %v815
  %v817 = vpop.f32.mrb[0].mxu0
  %818 = vdwg.mxu0
  %v820 = vsel %vm297, %v724, 0
  %822 = vmatprep.subr.mxu0 0.0
  %823 = vmatpush1.msra.mxu0 %v723
  %824 = vmatprep.subr.mxu0 0.0
  %825 = vmatpush1.msra.mxu0 %v820
  %826 = vmatprep.subr.mxu0 0.0
  %827 = vmatpush1.msra.mxu0 0.0
  %828 = vmatprep.subr.mxu0 0.0
  %829 = vmatpush1.msra.mxu0 0.0
  %830 = vmatprep.subr.mxu0 0.0
  %831 = vmatpush1.msra.mxu0 0.0
  %832 = vmatprep.subr.mxu0 0.0
  %833 = vmatpush1.msra.mxu0 0.0
  %834 = vmatprep.subr.mxu0 0.0
  %835 = vmatpush1.msra.mxu0 0.0
  %836 = vmatprep.subr.mxu0 0.0
  %837 = vmatpush1.msra.mxu0 0.0
  %838 = vmatprep.subr.mxu0 0.0
  %839 = vmatpush1.msra.mxu0 0.0
  %840 = vmatprep.subr.mxu0 0.0
  %841 = vmatpush1.msra.mxu0 0.0
  %842 = vmatprep.subr.mxu0 0.0
  %843 = vmatpush1.msra.mxu0 0.0
  %844 = vmatprep.subr.mxu0 0.0
  %845 = vmatpush1.msra.mxu0 0.0
  %846 = vmatprep.subr.mxu0 0.0
  %847 = vmatpush1.msra.mxu0 0.0
  %848 = vmatprep.subr.mxu0 0.0
  %849 = vmatpush1.msra.mxu0 0.0
  %850 = vmatprep.subr.mxu0 0.0
  %851 = vmatpush1.msra.mxu0 0.0
  %852 = vmatprep.subr.mxu0 0.0
  %853 = vmatpush1.msra.mxu0 0.0
  %854 = vmatprep.subr.mxu0 0.0
  %855 = vmatpush1.msra.mxu0 0.0
  %856 = vmatprep.subr.mxu0 0.0
  %857 = vmatpush1.msra.mxu0 0.0
  %858 = vmatprep.subr.mxu0 0.0
  %859 = vmatpush1.msra.mxu0 0.0
  %860 = vmatprep.subr.mxu0 0.0
  %861 = vmatpush1.msra.mxu0 0.0
  %862 = vmatprep.subr.mxu0 0.0
  %863 = vmatpush1.msra.mxu0 0.0
  %864 = vmatprep.subr.mxu0 0.0
  %865 = vmatpush1.msra.mxu0 0.0
  %866 = vmatprep.subr.mxu0 0.0
  %867 = vmatpush1.msra.mxu0 0.0
  %868 = vmatprep.subr.mxu0 0.0
  %869 = vmatpush1.msra.mxu0 0.0
  %870 = vmatprep.subr.mxu0 0.0
  %871 = vmatpush1.msra.mxu0 0.0
  %872 = vmatprep.subr.mxu0 0.0
  %873 = vmatpush1.msra.mxu0 0.0
  %874 = vmatprep.subr.mxu0 0.0
  %875 = vmatpush1.msra.mxu0 0.0
  %876 = vmatprep.subr.mxu0 0.0
  %877 = vmatpush1.msra.mxu0 0.0
  %878 = vmatprep.subr.mxu0 0.0
  %879 = vmatpush1.msra.mxu0 0.0
  %880 = vmatprep.subr.mxu0 0.0
  %881 = vmatpush1.msra.mxu0 0.0
  %882 = vmatprep.subr.mxu0 0.0
  %883 = vmatpush1.msra.mxu0 0.0
  %884 = vmatprep.subr.mxu0 0.0
  %885 = vmatpush1.msra.mxu0 0.0
  %886 = vmatprep.mubr.f32.mxu0 0.0
  %887 = vmatmul.mubr.f32.gmra.mrb[0].mxu0 %v289
  %v888 = vpop.f32.mrb[0].mxu0
  %v889 = vadd.f32 %v806, %v888
  %v890 = vpop.f32.mrb[0].mxu0
  %891 = vmatprep.mubr.f32.mxu0 0.0
  %892 = vmatmul.mubr.f32.gmra.mrb[0].mxu0 %v292
  %v893 = vpop.f32.mrb[0].mxu0
  %v894 = vadd.f32 %v811, %v893
  %v895 = vpop.f32.mrb[0].mxu0
  %896 = vmatprep.mubr.f32.mxu0 0.0
  %897 = vmatmul.mubr.f32.gmra.mrb[0].mxu0 %v295
  %v898 = vpop.f32.mrb[0].mxu0
  %v899 = vadd.f32 %v816, %v898
  %v900 = vpop.f32.mrb[0].mxu0
  %901 = vdwg.mxu0
  %v902 = vmax.f32 %v889, 0.0
  %v903 = vmax.f32 %v894, 0.0
  %v904 = vmax.f32 %v899, 0.0
  %905 = vmatprep.subr.mxu0 0.0
  %906 = vmatpush1.msra.mxu0 %v902
  %907 = vmatprep.subr.mxu0 0.0
  %908 = vmatpush1.msra.mxu0 %v903
  %909 = vmatprep.subr.mxu0 0.0
  %910 = vmatpush1.msra.mxu0 %v904
  %911 = vmatprep.subr.mxu0 0.0
  %912 = vmatpush1.msra.mxu0 0.0
  %913 = vmatprep.subr.mxu0 0.0
  %914 = vmatpush1.msra.mxu0 0.0
  %915 = vmatprep.subr.mxu0 0.0
  %916 = vmatpush1.msra.mxu0 0.0
  %917 = vmatprep.subr.mxu0 0.0
  %918 = vmatpush1.msra.mxu0 0.0
  %919 = vmatprep.subr.mxu0 0.0
  %920 = vmatpush1.msra.mxu0 0.0
  %921 = vmatprep.subr.mxu0 0.0
  %922 = vmatpush1.msra.mxu0 0.0
  %923 = vmatprep.subr.mxu0 0.0
  %924 = vmatpush1.msra.mxu0 0.0
  %925 = vmatprep.subr.mxu0 0.0
  %926 = vmatpush1.msra.mxu0 0.0
  %927 = vmatprep.subr.mxu0 0.0
  %928 = vmatpush1.msra.mxu0 0.0
  %929 = vmatprep.subr.mxu0 0.0
  %930 = vmatpush1.msra.mxu0 0.0
  %931 = vmatprep.subr.mxu0 0.0
  %932 = vmatpush1.msra.mxu0 0.0
  %933 = vmatprep.subr.mxu0 0.0
  %934 = vmatpush1.msra.mxu0 0.0
  %935 = vmatprep.subr.mxu0 0.0
  %936 = vmatpush1.msra.mxu0 0.0
  %937 = vmatprep.subr.mxu0 0.0
  %938 = vmatpush1.msra.mxu0 0.0
  %939 = vmatprep.subr.mxu0 0.0
  %940 = vmatpush1.msra.mxu0 0.0
  %941 = vmatprep.subr.mxu0 0.0
  %942 = vmatpush1.msra.mxu0 0.0
  %943 = vmatprep.subr.mxu0 0.0
  %944 = vmatpush1.msra.mxu0 0.0
  %945 = vmatprep.subr.mxu0 0.0
  %946 = vmatpush1.msra.mxu0 0.0
  %947 = vmatprep.subr.mxu0 0.0
  %948 = vmatpush1.msra.mxu0 0.0
  %949 = vmatprep.subr.mxu0 0.0
  %950 = vmatpush1.msra.mxu0 0.0
  %951 = vmatprep.subr.mxu0 0.0
  %952 = vmatpush1.msra.mxu0 0.0
  %953 = vmatprep.subr.mxu0 0.0
  %954 = vmatpush1.msra.mxu0 0.0
  %955 = vmatprep.subr.mxu0 0.0
  %956 = vmatpush1.msra.mxu0 0.0
  %957 = vmatprep.subr.mxu0 0.0
  %958 = vmatpush1.msra.mxu0 0.0
  %959 = vmatprep.subr.mxu0 0.0
  %960 = vmatpush1.msra.mxu0 0.0
  %961 = vmatprep.subr.mxu0 0.0
  %962 = vmatpush1.msra.mxu0 0.0
  %963 = vmatprep.subr.mxu0 0.0
  %964 = vmatpush1.msra.mxu0 0.0
  %965 = vmatprep.subr.mxu0 0.0
  %966 = vmatpush1.msra.mxu0 0.0
  %967 = vmatprep.subr.mxu0 0.0
  %968 = vmatpush1.msra.mxu0 0.0
  %969 = vmatprep.mubr.f32.mxu0 0.0
  %970 = vmatmul.mubr.f32.gmra.mrb[0].mxu0 %v386
  %v971 = vpop.f32.mrb[0].mxu0
  %v972 = vadd.f32 0.0, %v971
  %v973 = vpop.f32.mrb[0].mxu0
  %974 = vmatprep.mubr.f32.mxu0 0.0
  %975 = vmatmul.mubr.f32.gmra.mrb[0].mxu0 %v389
  %v976 = vpop.f32.mrb[0].mxu0
  %v977 = vadd.f32 0.0, %v976
  %v978 = vpop.f32.mrb[0].mxu0
  %979 = vdwg.mxu0
  %v980 = vld [vmem:[#allocation3] sm:$0x1]
  %v981 = vadd.f32 %v980, 1.0
  %v983 = vlaneseq
  %v984 = vshrl.u32 %v983, 7
  %v985 = vsub.s32 0, %v984
  %v986 = vrot.slane %v981, %v985
  %987 = vset.pattern.permute.xlu0 0
  %988 = vperm.xlu0 %987, %v986
  %v989 = vpop.permute.xlu0 %988
  %v991 = vmul.f32 %v723, %v989
  %v992 = vmul.f32 %v724, %v989
  %v993 = vadd.f32 %v991, %v972
  %v994 = vadd.f32 %v992, %v977
  %v995 = vld [vmem:[%s31] sm:$0xff]
  %v996 = vld [vmem:[%s31 + $0x8] sm:$0xff]
  %v997 = vld [vmem:[%s31 + $0x10] sm:$0xff]
  %v998 = vld [vmem:[%s31 + $0x18] sm:$0xff]
  %v999 = vld [vmem:[%s33] sm:$0x1]
  %v1001 = vlaneseq
  %v1002 = vshrl.u32 %v1001, 7
  %v1003 = vsub.s32 0, %v1002
  %v1004 = vrot.slane %v999, %v1003
  %v1007 = vsel %vm593, %v993, 0
  %v1010 = vsel %vm593, %v994, 0
  %1012 = vmatprep.subr.mxu0 0.0
  %1013 = vmatpush1.msra.mxu0 %v995
  %1014 = vmatprep.subr.mxu0 0.0
  %1015 = vmatpush1.msra.mxu0 %v996
  %1016 = vmatprep.subr.mxu0 0.0
  %1017 = vmatpush1.msra.mxu0 %v997
  %1018 = vmatprep.subr.mxu0 0.0
  %1019 = vmatpush1.msra.mxu0 %v998
  %1020 = vmatprep.subr.mxu0 0.0
  %1021 = vmatpush1.msra.mxu0 0.0
  %1022 = vmatprep.subr.mxu0 0.0
  %1023 = vmatpush1.msra.mxu0 0.0
  %1024 = vmatprep.subr.mxu0 0.0
  %1025 = vmatpush1.msra.mxu0 0.0
  %1026 = vmatprep.subr.mxu0 0.0
  %1027 = vmatpush1.msra.mxu0 0.0
  %1028 = vmatprep.subr.mxu0 0.0
  %1029 = vmatpush1.msra.mxu0 0.0
  %1030 = vmatprep.subr.mxu0 0.0
  %1031 = vmatpush1.msra.mxu0 0.0
  %1032 = vmatprep.subr.mxu0 0.0
  %1033 = vmatpush1.msra.mxu0 0.0
  %1034 = vmatprep.subr.mxu0 0.0
  %1035 = vmatpush1.msra.mxu0 0.0
  %1036 = vmatprep.subr.mxu0 0.0
  %1037 = vmatpush1.msra.mxu0 0.0
  %1038 = vmatprep.subr.mxu0 0.0
  %1039 = vmatpush1.msra.mxu0 0.0
  %1040 = vmatprep.subr.mxu0 0.0
  %1041 = vmatpush1.msra.mxu0 0.0
  %1042 = vmatprep.subr.mxu0 0.0
  %1043 = vmatpush1.msra.mxu0 0.0
  %1044 = vmatprep.subr.mxu0 0.0
  %1045 = vmatpush1.msra.mxu0 0.0
  %1046 = vmatprep.subr.mxu0 0.0
  %1047 = vmatpush1.msra.mxu0 0.0
  %1048 = vmatprep.subr.mxu0 0.0
  %1049 = vmatpush1.msra.mxu0 0.0
  %1050 = vmatprep.subr.mxu0 0.0
  %1051 = vmatpush1.msra.mxu0 0.0
  %1052 = vmatprep.subr.mxu0 0.0
  %1053 = vmatpush1.msra.mxu0 0.0
  %1054 = vmatprep.subr.mxu0 0.0
  %1055 = vmatpush1.msra.mxu0 0.0
  %1056 = vmatprep.subr.mxu0 0.0
  %1057 = vmatpush1.msra.mxu0 0.0
  %1058 = vmatprep.subr.mxu0 0.0
  %1059 = vmatpush1.msra.mxu0 0.0
  %1060 = vmatprep.subr.mxu0 0.0
  %1061 = vmatpush1.msra.mxu0 0.0
  %1062 = vmatprep.subr.mxu0 0.0
  %1063 = vmatpush1.msra.mxu0 0.0
  %1064 = vmatprep.subr.mxu0 0.0
  %1065 = vmatpush1.msra.mxu0 0.0
  %1066 = vmatprep.subr.mxu0 0.0
  %1067 = vmatpush1.msra.mxu0 0.0
  %1068 = vmatprep.subr.mxu0 0.0
  %1069 = vmatpush1.msra.mxu0 0.0
  %1070 = vmatprep.subr.mxu0 0.0
  %1071 = vmatpush1.msra.mxu0 0.0
  %1072 = vmatprep.subr.mxu0 0.0
  %1073 = vmatpush1.msra.mxu0 0.0
  %1074 = vmatprep.subr.mxu0 0.0
  %1075 = vmatpush1.msra.mxu0 0.0
  %1076 = vmatprep.mubr.f32.mxu0 0.0
  %1077 = vmatmul.mubr.f32.gmra.mrb[0].mxu0 %v1007
  %v1078 = vpop.f32.mrb[0].mxu0
  %v1079 = vadd.f32 %v1004, %v1078
  %v1080 = vpop.f32.mrb[0].mxu0
  %1081 = vmatprep.mubr.f32.mxu0 0.0
  %1082 = vmatmul.mubr.f32.gmra.mrb[0].mxu0 %v1010
  %v1083 = vpop.f32.mrb[0].mxu0
  %v1084 = vadd.f32 %v1004, %v1083
  %v1085 = vpop.f32.mrb[0].mxu0
  %1086 = vdwg.mxu0
  %v1087 = vmax.f32 %v1079, 0.0
  %v1088 = vmax.f32 %v1084, 0.0
  %v1089 = vld [vmem:[%s35] sm:$0xff]
  %v1090 = vld [vmem:[%s35 + $0x8] sm:$0xff]
  %v1091 = vld [vmem:[%s35 + $0x10] sm:$0xff]
  %v1092 = vld [vmem:[%s35 + $0x18] sm:$0xff]
  %v1093 = vld [vmem:[%s37] sm:$0x1]
  %v1095 = vlaneseq
  %v1096 = vshrl.u32 %v1095, 7
  %v1097 = vsub.s32 0, %v1096
  %v1098 = vrot.slane %v1093, %v1097
  %v1101 = vsel %vm593, %v1087, 0
  %v1104 = vsel %vm593, %v1088, 0
  %1106 = vmatprep.subr.mxu0 0.0
  %1107 = vmatpush1.msra.mxu0 %v1089
  %1108 = vmatprep.subr.mxu0 0.0
  %1109 = vmatpush1.msra.mxu0 %v1090
  %1110 = vmatprep.subr.mxu0 0.0
  %1111 = vmatpush1.msra.mxu0 %v1091
  %1112 = vmatprep.subr.mxu0 0.0
  %1113 = vmatpush1.msra.mxu0 %v1092
  %1114 = vmatprep.subr.mxu0 0.0
  %1115 = vmatpush1.msra.mxu0 0.0
  %1116 = vmatprep.subr.mxu0 0.0
  %1117 = vmatpush1.msra.mxu0 0.0
  %1118 = vmatprep.subr.mxu0 0.0
  %1119 = vmatpush1.msra.mxu0 0.0
  %1120 = vmatprep.subr.mxu0 0.0
  %1121 = vmatpush1.msra.mxu0 0.0
  %1122 = vmatprep.subr.mxu0 0.0
  %1123 = vmatpush1.msra.mxu0 0.0
  %1124 = vmatprep.subr.mxu0 0.0
  %1125 = vmatpush1.msra.mxu0 0.0
  %1126 = vmatprep.subr.mxu0 0.0
  %1127 = vmatpush1.msra.mxu0 0.0
  %1128 = vmatprep.subr.mxu0 0.0
  %1129 = vmatpush1.msra.mxu0 0.0
  %1130 = vmatprep.subr.mxu0 0.0
  %1131 = vmatpush1.msra.mxu0 0.0
  %1132 = vmatprep.subr.mxu0 0.0
  %1133 = vmatpush1.msra.mxu0 0.0
  %1134 = vmatprep.subr.mxu0 0.0
  %1135 = vmatpush1.msra.mxu0 0.0
  %1136 = vmatprep.subr.mxu0 0.0
  %1137 = vmatpush1.msra.mxu0 0.0
  %1138 = vmatprep.subr.mxu0 0.0
  %1139 = vmatpush1.msra.mxu0 0.0
  %1140 = vmatprep.subr.mxu0 0.0
  %1141 = vmatpush1.msra.mxu0 0.0
  %1142 = vmatprep.subr.mxu0 0.0
  %1143 = vmatpush1.msra.mxu0 0.0
  %1144 = vmatprep.subr.mxu0 0.0
  %1145 = vmatpush1.msra.mxu0 0.0
  %1146 = vmatprep.subr.mxu0 0.0
  %1147 = vmatpush1.msra.mxu0 0.0
  %1148 = vmatprep.subr.mxu0 0.0
  %1149 = vmatpush1.msra.mxu0 0.0
  %1150 = vmatprep.subr.mxu0 0.0
  %1151 = vmatpush1.msra.mxu0 0.0
  %1152 = vmatprep.subr.mxu0 0.0
  %1153 = vmatpush1.msra.mxu0 0.0
  %1154 = vmatprep.subr.mxu0 0.0
  %1155 = vmatpush1.msra.mxu0 0.0
  %1156 = vmatprep.subr.mxu0 0.0
  %1157 = vmatpush1.msra.mxu0 0.0
  %1158 = vmatprep.subr.mxu0 0.0
  %1159 = vmatpush1.msra.mxu0 0.0
  %1160 = vmatprep.subr.mxu0 0.0
  %1161 = vmatpush1.msra.mxu0 0.0
  %1162 = vmatprep.subr.mxu0 0.0
  %1163 = vmatpush1.msra.mxu0 0.0
  %1164 = vmatprep.subr.mxu0 0.0
  %1165 = vmatpush1.msra.mxu0 0.0
  %1166 = vmatprep.subr.mxu0 0.0
  %1167 = vmatpush1.msra.mxu0 0.0
  %1168 = vmatprep.subr.mxu0 0.0
  %1169 = vmatpush1.msra.mxu0 0.0
  %1170 = vmatprep.mubr.f32.mxu0 0.0
  %1171 = vmatmul.mubr.f32.gmra.mrb[0].mxu0 %v1101
  %v1172 = vpop.f32.mrb[0].mxu0
  %v1173 = vadd.f32 %v1098, %v1172
  %v1174 = vpop.f32.mrb[0].mxu0
  %1175 = vmatprep.mubr.f32.mxu0 0.0
  %1176 = vmatmul.mubr.f32.gmra.mrb[0].mxu0 %v1104
  %v1177 = vpop.f32.mrb[0].mxu0
  %v1178 = vadd.f32 %v1098, %v1177
  %v1179 = vpop.f32.mrb[0].mxu0
  %1180 = vdwg.mxu0
  %v1181 = vmax.f32 %v1173, 0.0
  %v1182 = vmax.f32 %v1178, 0.0
  %v1183 = vsel %vm593, %v1181, 0.0
  %v1184 = vsel %vm678, %v1182, 0.0
  %v1185 = vadd.f32 %v1183, %v1184
  %v1186 = vrot.slane %v1185, 4
  %v1187 = vadd.f32 %v1185, %v1186
  %v1188 = vrot.slane %v1187, 2
  %v1189 = vadd.f32 %v1187, %v1188
  %v1190 = vrot.slane %v1189, 1
  %v1191 = vadd.f32 %v1189, %v1190
  %v1192 = vmul.f32 %v1191, %v687
  %v1193 = vsub.f32 %v1181, %v1192
  %v1194 = vsub.f32 %v1182, %v1192
  %v1195 = vmul.f32 %v1193, %v1193
  %v1196 = vmul.f32 %v1194, %v1194
  %v1197 = vsel %vm593, %v1195, 0.0
  %v1198 = vsel %vm678, %v1196, 0.0
  %v1199 = vadd.f32 %v1197, %v1198
  %v1200 = vrot.slane %v1199, 4
  %v1201 = vadd.f32 %v1199, %v1200
  %v1202 = vrot.slane %v1201, 2
  %v1203 = vadd.f32 %v1201, %v1202
  %v1204 = vrot.slane %v1203, 1
  %v1205 = vadd.f32 %v1203, %v1204
  %v1206 = vmul.f32 %v1205, %v687
  %v1207 = vadd.f32 %v1206, 1e-05
  %v1208 = vrsqrt.pop %v1207
  %v1209 = vmul.f32 %v1193, %v1208
  %v1210 = vmul.f32 %v1194, %v1208
  %v1211 = vld [vmem:[%s41] sm:$0x1]
  %v1213 = vlaneseq
  %v1214 = vshrl.u32 %v1213, 7
  %v1215 = vsub.s32 0, %v1214
  %v1216 = vrot.slane %v1211, %v1215
  %v1218 = vmul.f32 %v1209, %v1216
  %v1219 = vmul.f32 %v1210, %v1216
  %v1220 = vld [vmem:[%s43] sm:$0x1]
  %v1222 = vlaneseq
  %v1223 = vshrl.u32 %v1222, 7
  %v1224 = vsub.s32 0, %v1223
  %v1225 = vrot.slane %v1220, %v1224
  %v1227 = vadd.f32 %v1218, %v1225
  %v1228 = vadd.f32 %v1219, %v1225
  %1231 = vrot.lane.b32.xlu0 %v1227, 32
  %v1232 = vpop.permute.xlu0 %1231
  %1233 = vrot.lane.b32.xlu0 %v1228, 32
  %v1234 = vpop.permute.xlu0 %1233
  %vm1237 = vcmask 523520
  %1238 = vst.msk [vmem:[%s81] sm:$0xff] %vm1237, %v1232
  %vm1239 = vcmask 519424
  %1240 = vst.msk [vmem:[%s81 + $0x8] sm:$0xf] %vm1239, %v1234
  %v1241 = vld [vmem:[%s45] sm:$0xff]
  %v1242 = vld [vmem:[%s45 + $0x8] sm:$0x3]
  %v1243 = vld [vmem:[%s47] sm:$0x1]
  %v1245 = vlaneseq
  %v1246 = vshrl.u32 %v1245, 7
  %v1247 = vsub.s32 0, %v1246
  %v1248 = vrot.slane %v1243, %v1247
  %v1251 = vsel %vm203, %v1242, 0
  %1253 = vmatprep.subr.mxu0 0.0
  %1254 = vmatpush1.msra.mxu0 %v1241
  %1255 = vmatprep.subr.mxu0 0.0
  %1256 = vmatpush1.msra.mxu0 %v1251
  %1257 = vmatprep.subr.mxu0 0.0
  %1258 = vmatpush1.msra.mxu0 0.0
  %1259 = vmatprep.subr.mxu0 0.0
  %1260 = vmatpush1.msra.mxu0 0.0
  %1261 = vmatprep.subr.mxu0 0.0
  %1262 = vmatpush1.msra.mxu0 0.0
  %1263 = vmatprep.subr.mxu0 0.0
  %1264 = vmatpush1.msra.mxu0 0.0
  %1265 = vmatprep.subr.mxu0 0.0
  %1266 = vmatpush1.msra.mxu0 0.0
  %1267 = vmatprep.subr.mxu0 0.0
  %1268 = vmatpush1.msra.mxu0 0.0
  %1269 = vmatprep.subr.mxu0 0.0
  %1270 = vmatpush1.msra.mxu0 0.0
  %1271 = vmatprep.subr.mxu0 0.0
  %1272 = vmatpush1.msra.mxu0 0.0
  %1273 = vmatprep.subr.mxu0 0.0
  %1274 = vmatpush1.msra.mxu0 0.0
  %1275 = vmatprep.subr.mxu0 0.0
  %1276 = vmatpush1.msra.mxu0 0.0
  %1277 = vmatprep.subr.mxu0 0.0
  %1278 = vmatpush1.msra.mxu0 0.0
  %1279 = vmatprep.subr.mxu0 0.0
  %1280 = vmatpush1.msra.mxu0 0.0
  %1281 = vmatprep.subr.mxu0 0.0
  %1282 = vmatpush1.msra.mxu0 0.0
  %1283 = vmatprep.subr.mxu0 0.0
  %1284 = vmatpush1.msra.mxu0 0.0
  %1285 = vmatprep.subr.mxu0 0.0
  %1286 = vmatpush1.msra.mxu0 0.0
  %1287 = vmatprep.subr.mxu0 0.0
  %1288 = vmatpush1.msra.mxu0 0.0
  %1289 = vmatprep.subr.mxu0 0.0
  %1290 = vmatpush1.msra.mxu0 0.0
  %1291 = vmatprep.subr.mxu0 0.0
  %1292 = vmatpush1.msra.mxu0 0.0
  %1293 = vmatprep.subr.mxu0 0.0
  %1294 = vmatpush1.msra.mxu0 0.0
  %1295 = vmatprep.subr.mxu0 0.0
  %1296 = vmatpush1.msra.mxu0 0.0
  %1297 = vmatprep.subr.mxu0 0.0
  %1298 = vmatpush1.msra.mxu0 0.0
  %1299 = vmatprep.subr.mxu0 0.0
  %1300 = vmatpush1.msra.mxu0 0.0
  %1301 = vmatprep.subr.mxu0 0.0
  %1302 = vmatpush1.msra.mxu0 0.0
  %1303 = vmatprep.subr.mxu0 0.0
  %1304 = vmatpush1.msra.mxu0 0.0
  %1305 = vmatprep.subr.mxu0 0.0
  %1306 = vmatpush1.msra.mxu0 0.0
  %1307 = vmatprep.subr.mxu0 0.0
  %1308 = vmatpush1.msra.mxu0 0.0
  %1309 = vmatprep.subr.mxu0 0.0
  %1310 = vmatpush1.msra.mxu0 0.0
  %1311 = vmatprep.subr.mxu0 0.0
  %1312 = vmatpush1.msra.mxu0 0.0
  %1313 = vmatprep.subr.mxu0 0.0
  %1314 = vmatpush1.msra.mxu0 0.0
  %1315 = vmatprep.subr.mxu0 0.0
  %1316 = vmatpush1.msra.mxu0 0.0
  %1317 = vmatprep.mubr.f32.mxu0 0.0
  %1318 = vmatmul.mubr.f32.gmra.mrb[0].mxu0 %v195
  %v1319 = vpop.f32.mrb[0].mxu0
  %v1320 = vadd.f32 %v1248, %v1319
  %v1321 = vpop.f32.mrb[0].mxu0
  %1322 = vmatprep.mubr.f32.mxu0 0.0
  %1323 = vmatmul.mubr.f32.gmra.mrb[0].mxu0 %v198
  %v1324 = vpop.f32.mrb[0].mxu0
  %v1325 = vadd.f32 %v1248, %v1324
  %v1326 = vpop.f32.mrb[0].mxu0
  %1327 = vmatprep.mubr.f32.mxu0 0.0
  %1328 = vmatmul.mubr.f32.gmra.mrb[0].mxu0 %v201
  %v1329 = vpop.f32.mrb[0].mxu0
  %v1330 = vadd.f32 %v1248, %v1329
  %v1331 = vpop.f32.mrb[0].mxu0
  %1332 = vdwg.mxu0
  %v1333 = vsel %vm297, %v1228, 0
  %1335 = vmatprep.subr.mxu0 0.0
  %1336 = vmatpush1.msra.mxu0 %v1227
  %1337 = vmatprep.subr.mxu0 0.0
  %1338 = vmatpush1.msra.mxu0 %v1333
  %1339 = vmatprep.subr.mxu0 0.0
  %1340 = vmatpush1.msra.mxu0 0.0
  %1341 = vmatprep.subr.mxu0 0.0
  %1342 = vmatpush1.msra.mxu0 0.0
  %1343 = vmatprep.subr.mxu0 0.0
  %1344 = vmatpush1.msra.mxu0 0.0
  %1345 = vmatprep.subr.mxu0 0.0
  %1346 = vmatpush1.msra.mxu0 0.0
  %1347 = vmatprep.subr.mxu0 0.0
  %1348 = vmatpush1.msra.mxu0 0.0
  %1349 = vmatprep.subr.mxu0 0.0
  %1350 = vmatpush1.msra.mxu0 0.0
  %1351 = vmatprep.subr.mxu0 0.0
  %1352 = vmatpush1.msra.mxu0 0.0
  %1353 = vmatprep.subr.mxu0 0.0
  %1354 = vmatpush1.msra.mxu0 0.0
  %1355 = vmatprep.subr.mxu0 0.0
  %1356 = vmatpush1.msra.mxu0 0.0
  %1357 = vmatprep.subr.mxu0 0.0
  %1358 = vmatpush1.msra.mxu0 0.0
  %1359 = vmatprep.subr.mxu0 0.0
  %1360 = vmatpush1.msra.mxu0 0.0
  %1361 = vmatprep.subr.mxu0 0.0
  %1362 = vmatpush1.msra.mxu0 0.0
  %1363 = vmatprep.subr.mxu0 0.0
  %1364 = vmatpush1.msra.mxu0 0.0
  %1365 = vmatprep.subr.mxu0 0.0
  %1366 = vmatpush1.msra.mxu0 0.0
  %1367 = vmatprep.subr.mxu0 0.0
  %1368 = vmatpush1.msra.mxu0 0.0
  %1369 = vmatprep.subr.mxu0 0.0
  %1370 = vmatpush1.msra.mxu0 0.0
  %1371 = vmatprep.subr.mxu0 0.0
  %1372 = vmatpush1.msra.mxu0 0.0
  %1373 = vmatprep.subr.mxu0 0.0
  %1374 = vmatpush1.msra.mxu0 0.0
  %1375 = vmatprep.subr.mxu0 0.0
  %1376 = vmatpush1.msra.mxu0 0.0
  %1377 = vmatprep.subr.mxu0 0.0
  %1378 = vmatpush1.msra.mxu0 0.0
  %1379 = vmatprep.subr.mxu0 0.0
  %1380 = vmatpush1.msra.mxu0 0.0
  %1381 = vmatprep.subr.mxu0 0.0
  %1382 = vmatpush1.msra.mxu0 0.0
  %1383 = vmatprep.subr.mxu0 0.0
  %1384 = vmatpush1.msra.mxu0 0.0
  %1385 = vmatprep.subr.mxu0 0.0
  %1386 = vmatpush1.msra.mxu0 0.0
  %1387 = vmatprep.subr.mxu0 0.0
  %1388 = vmatpush1.msra.mxu0 0.0
  %1389 = vmatprep.subr.mxu0 0.0
  %1390 = vmatpush1.msra.mxu0 0.0
  %1391 = vmatprep.subr.mxu0 0.0
  %1392 = vmatpush1.msra.mxu0 0.0
  %1393 = vmatprep.subr.mxu0 0.0
  %1394 = vmatpush1.msra.mxu0 0.0
  %1395 = vmatprep.subr.mxu0 0.0
  %1396 = vmatpush1.msra.mxu0 0.0
  %1397 = vmatprep.subr.mxu0 0.0
  %1398 = vmatpush1.msra.mxu0 0.0
  %1399 = vmatprep.mubr.f32.mxu0 0.0
  %1400 = vmatmul.mubr.f32.gmra.mrb[0].mxu0 %v289
  %v1401 = vpop.f32.mrb[0].mxu0
  %v1402 = vadd.f32 %v1320, %v1401
  %v1403 = vpop.f32.mrb[0].mxu0
  %1404 = vmatprep.mubr.f32.mxu0 0.0
  %1405 = vmatmul.mubr.f32.gmra.mrb[0].mxu0 %v292
  %v1406 = vpop.f32.mrb[0].mxu0
  %v1407 = vadd.f32 %v1325, %v1406
  %v1408 = vpop.f32.mrb[0].mxu0
  %1409 = vmatprep.mubr.f32.mxu0 0.0
  %1410 = vmatmul.mubr.f32.gmra.mrb[0].mxu0 %v295
  %v1411 = vpop.f32.mrb[0].mxu0
  %v1412 = vadd.f32 %v1330, %v1411
  %v1413 = vpop.f32.mrb[0].mxu0
  %1414 = vdwg.mxu0
  %v1415 = vmax.f32 %v1402, 0.0
  %v1416 = vmax.f32 %v1407, 0.0
  %v1417 = vmax.f32 %v1412, 0.0
  %1418 = vmatprep.subr.mxu0 0.0
  %1419 = vmatpush1.msra.mxu0 %v1415
  %1420 = vmatprep.subr.mxu0 0.0
  %1421 = vmatpush1.msra.mxu0 %v1416
  %1422 = vmatprep.subr.mxu0 0.0
  %1423 = vmatpush1.msra.mxu0 %v1417
  %1424 = vmatprep.subr.mxu0 0.0
  %1425 = vmatpush1.msra.mxu0 0.0
  %1426 = vmatprep.subr.mxu0 0.0
  %1427 = vmatpush1.msra.mxu0 0.0
  %1428 = vmatprep.subr.mxu0 0.0
  %1429 = vmatpush1.msra.mxu0 0.0
  %1430 = vmatprep.subr.mxu0 0.0
  %1431 = vmatpush1.msra.mxu0 0.0
  %1432 = vmatprep.subr.mxu0 0.0
  %1433 = vmatpush1.msra.mxu0 0.0
  %1434 = vmatprep.subr.mxu0 0.0
  %1435 = vmatpush1.msra.mxu0 0.0
  %1436 = vmatprep.subr.mxu0 0.0
  %1437 = vmatpush1.msra.mxu0 0.0
  %1438 = vmatprep.subr.mxu0 0.0
  %1439 = vmatpush1.msra.mxu0 0.0
  %1440 = vmatprep.subr.mxu0 0.0
  %1441 = vmatpush1.msra.mxu0 0.0
  %1442 = vmatprep.subr.mxu0 0.0
  %1443 = vmatpush1.msra.mxu0 0.0
  %1444 = vmatprep.subr.mxu0 0.0
  %1445 = vmatpush1.msra.mxu0 0.0
  %1446 = vmatprep.subr.mxu0 0.0
  %1447 = vmatpush1.msra.mxu0 0.0
  %1448 = vmatprep.subr.mxu0 0.0
  %1449 = vmatpush1.msra.mxu0 0.0
  %1450 = vmatprep.subr.mxu0 0.0
  %1451 = vmatpush1.msra.mxu0 0.0
  %1452 = vmatprep.subr.mxu0 0.0
  %1453 = vmatpush1.msra.mxu0 0.0
  %1454 = vmatprep.subr.mxu0 0.0
  %1455 = vmatpush1.msra.mxu0 0.0
  %1456 = vmatprep.subr.mxu0 0.0
  %1457 = vmatpush1.msra.mxu0 0.0
  %1458 = vmatprep.subr.mxu0 0.0
  %1459 = vmatpush1.msra.mxu0 0.0
  %1460 = vmatprep.subr.mxu0 0.0
  %1461 = vmatpush1.msra.mxu0 0.0
  %1462 = vmatprep.subr.mxu0 0.0
  %1463 = vmatpush1.msra.mxu0 0.0
  %1464 = vmatprep.subr.mxu0 0.0
  %1465 = vmatpush1.msra.mxu0 0.0
  %1466 = vmatprep.subr.mxu0 0.0
  %1467 = vmatpush1.msra.mxu0 0.0
  %1468 = vmatprep.subr.mxu0 0.0
  %1469 = vmatpush1.msra.mxu0 0.0
  %1470 = vmatprep.subr.mxu0 0.0
  %1471 = vmatpush1.msra.mxu0 0.0
  %1472 = vmatprep.subr.mxu0 0.0
  %1473 = vmatpush1.msra.mxu0 0.0
  %1474 = vmatprep.subr.mxu0 0.0
  %1475 = vmatpush1.msra.mxu0 0.0
  %1476 = vmatprep.subr.mxu0 0.0
  %1477 = vmatpush1.msra.mxu0 0.0
  %1478 = vmatprep.subr.mxu0 0.0
  %1479 = vmatpush1.msra.mxu0 0.0
  %1480 = vmatprep.subr.mxu0 0.0
  %1481 = vmatpush1.msra.mxu0 0.0
  %1482 = vmatprep.mubr.f32.mxu0 0.0
  %1483 = vmatmul.mubr.f32.gmra.mrb[0].mxu0 %v386
  %v1484 = vpop.f32.mrb[0].mxu0
  %v1485 = vadd.f32 0.0, %v1484
  %v1486 = vpop.f32.mrb[0].mxu0
  %1487 = vmatprep.mubr.f32.mxu0 0.0
  %1488 = vmatmul.mubr.f32.gmra.mrb[0].mxu0 %v389
  %v1489 = vpop.f32.mrb[0].mxu0
  %v1490 = vadd.f32 0.0, %v1489
  %v1491 = vpop.f32.mrb[0].mxu0
  %1492 = vdwg.mxu0
  %v1493 = vld [vmem:[#allocation4] sm:$0x1]
  %v1494 = vadd.f32 %v1493, 1.0
  %v1496 = vlaneseq
  %v1497 = vshrl.u32 %v1496, 7
  %v1498 = vsub.s32 0, %v1497
  %v1499 = vrot.slane %v1494, %v1498
  %1500 = vset.pattern.permute.xlu0 0
  %1501 = vperm.xlu0 %1500, %v1499
  %v1502 = vpop.permute.xlu0 %1501
  %v1504 = vmul.f32 %v1227, %v1502
  %v1505 = vmul.f32 %v1228, %v1502
  %v1506 = vadd.f32 %v1504, %v1485
  %v1507 = vadd.f32 %v1505, %v1490
  %v1508 = vld [vmem:[%s49] sm:$0xff]
  %v1509 = vld [vmem:[%s49 + $0x8] sm:$0xff]
  %v1510 = vld [vmem:[%s49 + $0x10] sm:$0xff]
  %v1511 = vld [vmem:[%s49 + $0x18] sm:$0xff]
  %v1512 = vld [vmem:[%s51] sm:$0x1]
  %v1514 = vlaneseq
  %v1515 = vshrl.u32 %v1514, 7
  %v1516 = vsub.s32 0, %v1515
  %v1517 = vrot.slane %v1512, %v1516
  %v1520 = vsel %vm593, %v1506, 0
  %v1523 = vsel %vm593, %v1507, 0
  %1525 = vmatprep.subr.mxu0 0.0
  %1526 = vmatpush1.msra.mxu0 %v1508
  %1527 = vmatprep.subr.mxu0 0.0
  %1528 = vmatpush1.msra.mxu0 %v1509
  %1529 = vmatprep.subr.mxu0 0.0
  %1530 = vmatpush1.msra.mxu0 %v1510
  %1531 = vmatprep.subr.mxu0 0.0
  %1532 = vmatpush1.msra.mxu0 %v1511
  %1533 = vmatprep.subr.mxu0 0.0
  %1534 = vmatpush1.msra.mxu0 0.0
  %1535 = vmatprep.subr.mxu0 0.0
  %1536 = vmatpush1.msra.mxu0 0.0
  %1537 = vmatprep.subr.mxu0 0.0
  %1538 = vmatpush1.msra.mxu0 0.0
  %1539 = vmatprep.subr.mxu0 0.0
  %1540 = vmatpush1.msra.mxu0 0.0
  %1541 = vmatprep.subr.mxu0 0.0
  %1542 = vmatpush1.msra.mxu0 0.0
  %1543 = vmatprep.subr.mxu0 0.0
  %1544 = vmatpush1.msra.mxu0 0.0
  %1545 = vmatprep.subr.mxu0 0.0
  %1546 = vmatpush1.msra.mxu0 0.0
  %1547 = vmatprep.subr.mxu0 0.0
  %1548 = vmatpush1.msra.mxu0 0.0
  %1549 = vmatprep.subr.mxu0 0.0
  %1550 = vmatpush1.msra.mxu0 0.0
  %1551 = vmatprep.subr.mxu0 0.0
  %1552 = vmatpush1.msra.mxu0 0.0
  %1553 = vmatprep.subr.mxu0 0.0
  %1554 = vmatpush1.msra.mxu0 0.0
  %1555 = vmatprep.subr.mxu0 0.0
  %1556 = vmatpush1.msra.mxu0 0.0
  %1557 = vmatprep.subr.mxu0 0.0
  %1558 = vmatpush1.msra.mxu0 0.0
  %1559 = vmatprep.subr.mxu0 0.0
  %1560 = vmatpush1.msra.mxu0 0.0
  %1561 = vmatprep.subr.mxu0 0.0
  %1562 = vmatpush1.msra.mxu0 0.0
  %1563 = vmatprep.subr.mxu0 0.0
  %1564 = vmatpush1.msra.mxu0 0.0
  %1565 = vmatprep.subr.mxu0 0.0
  %1566 = vmatpush1.msra.mxu0 0.0
  %1567 = vmatprep.subr.mxu0 0.0
  %1568 = vmatpush1.msra.mxu0 0.0
  %1569 = vmatprep.subr.mxu0 0.0
  %1570 = vmatpush1.msra.mxu0 0.0
  %1571 = vmatprep.subr.mxu0 0.0
  %1572 = vmatpush1.msra.mxu0 0.0
  %1573 = vmatprep.subr.mxu0 0.0
  %1574 = vmatpush1.msra.mxu0 0.0
  %1575 = vmatprep.subr.mxu0 0.0
  %1576 = vmatpush1.msra.mxu0 0.0
  %1577 = vmatprep.subr.mxu0 0.0
  %1578 = vmatpush1.msra.mxu0 0.0
  %1579 = vmatprep.subr.mxu0 0.0
  %1580 = vmatpush1.msra.mxu0 0.0
  %1581 = vmatprep.subr.mxu0 0.0
  %1582 = vmatpush1.msra.mxu0 0.0
  %1583 = vmatprep.subr.mxu0 0.0
  %1584 = vmatpush1.msra.mxu0 0.0
  %1585 = vmatprep.subr.mxu0 0.0
  %1586 = vmatpush1.msra.mxu0 0.0
  %1587 = vmatprep.subr.mxu0 0.0
  %1588 = vmatpush1.msra.mxu0 0.0
  %1589 = vmatprep.mubr.f32.mxu0 0.0
  %1590 = vmatmul.mubr.f32.gmra.mrb[0].mxu0 %v1520
  %v1591 = vpop.f32.mrb[0].mxu0
  %v1592 = vadd.f32 %v1517, %v1591
  %v1593 = vpop.f32.mrb[0].mxu0
  %1594 = vmatprep.mubr.f32.mxu0 0.0
  %1595 = vmatmul.mubr.f32.gmra.mrb[0].mxu0 %v1523
  %v1596 = vpop.f32.mrb[0].mxu0
  %v1597 = vadd.f32 %v1517, %v1596
  %v1598 = vpop.f32.mrb[0].mxu0
  %1599 = vdwg.mxu0
  %v1600 = vmax.f32 %v1592, 0.0
  %v1601 = vmax.f32 %v1597, 0.0
  %v1602 = vld [vmem:[%s53] sm:$0xff]
  %v1603 = vld [vmem:[%s53 + $0x8] sm:$0xff]
  %v1604 = vld [vmem:[%s53 + $0x10] sm:$0xff]
  %v1605 = vld [vmem:[%s53 + $0x18] sm:$0xff]
  %v1606 = vld [vmem:[%s55] sm:$0x1]
  %v1608 = vlaneseq
  %v1609 = vshrl.u32 %v1608, 7
  %v1610 = vsub.s32 0, %v1609
  %v1611 = vrot.slane %v1606, %v1610
  %v1614 = vsel %vm593, %v1600, 0
  %v1617 = vsel %vm593, %v1601, 0
  %1619 = vmatprep.subr.mxu0 0.0
  %1620 = vmatpush1.msra.mxu0 %v1602
  %1621 = vmatprep.subr.mxu0 0.0
  %1622 = vmatpush1.msra.mxu0 %v1603
  %1623 = vmatprep.subr.mxu0 0.0
  %1624 = vmatpush1.msra.mxu0 %v1604
  %1625 = vmatprep.subr.mxu0 0.0
  %1626 = vmatpush1.msra.mxu0 %v1605
  %1627 = vmatprep.subr.mxu0 0.0
  %1628 = vmatpush1.msra.mxu0 0.0
  %1629 = vmatprep.subr.mxu0 0.0
  %1630 = vmatpush1.msra.mxu0 0.0
  %1631 = vmatprep.subr.mxu0 0.0
  %1632 = vmatpush1.msra.mxu0 0.0
  %1633 = vmatprep.subr.mxu0 0.0
  %1634 = vmatpush1.msra.mxu0 0.0
  %1635 = vmatprep.subr.mxu0 0.0
  %1636 = vmatpush1.msra.mxu0 0.0
  %1637 = vmatprep.subr.mxu0 0.0
  %1638 = vmatpush1.msra.mxu0 0.0
  %1639 = vmatprep.subr.mxu0 0.0
  %1640 = vmatpush1.msra.mxu0 0.0
  %1641 = vmatprep.subr.mxu0 0.0
  %1642 = vmatpush1.msra.mxu0 0.0
  %1643 = vmatprep.subr.mxu0 0.0
  %1644 = vmatpush1.msra.mxu0 0.0
  %1645 = vmatprep.subr.mxu0 0.0
  %1646 = vmatpush1.msra.mxu0 0.0
  %1647 = vmatprep.subr.mxu0 0.0
  %1648 = vmatpush1.msra.mxu0 0.0
  %1649 = vmatprep.subr.mxu0 0.0
  %1650 = vmatpush1.msra.mxu0 0.0
  %1651 = vmatprep.subr.mxu0 0.0
  %1652 = vmatpush1.msra.mxu0 0.0
  %1653 = vmatprep.subr.mxu0 0.0
  %1654 = vmatpush1.msra.mxu0 0.0
  %1655 = vmatprep.subr.mxu0 0.0
  %1656 = vmatpush1.msra.mxu0 0.0
  %1657 = vmatprep.subr.mxu0 0.0
  %1658 = vmatpush1.msra.mxu0 0.0
  %1659 = vmatprep.subr.mxu0 0.0
  %1660 = vmatpush1.msra.mxu0 0.0
  %1661 = vmatprep.subr.mxu0 0.0
  %1662 = vmatpush1.msra.mxu0 0.0
  %1663 = vmatprep.subr.mxu0 0.0
  %1664 = vmatpush1.msra.mxu0 0.0
  %1665 = vmatprep.subr.mxu0 0.0
  %1666 = vmatpush1.msra.mxu0 0.0
  %1667 = vmatprep.subr.mxu0 0.0
  %1668 = vmatpush1.msra.mxu0 0.0
  %1669 = vmatprep.subr.mxu0 0.0
  %1670 = vmatpush1.msra.mxu0 0.0
  %1671 = vmatprep.subr.mxu0 0.0
  %1672 = vmatpush1.msra.mxu0 0.0
  %1673 = vmatprep.subr.mxu0 0.0
  %1674 = vmatpush1.msra.mxu0 0.0
  %1675 = vmatprep.subr.mxu0 0.0
  %1676 = vmatpush1.msra.mxu0 0.0
  %1677 = vmatprep.subr.mxu0 0.0
  %1678 = vmatpush1.msra.mxu0 0.0
  %1679 = vmatprep.subr.mxu0 0.0
  %1680 = vmatpush1.msra.mxu0 0.0
  %1681 = vmatprep.subr.mxu0 0.0
  %1682 = vmatpush1.msra.mxu0 0.0
  %1683 = vmatprep.mubr.f32.mxu0 0.0
  %1684 = vmatmul.mubr.f32.gmra.mrb[0].mxu0 %v1614
  %v1685 = vpop.f32.mrb[0].mxu0
  %v1686 = vadd.f32 %v1611, %v1685
  %v1687 = vpop.f32.mrb[0].mxu0
  %1688 = vmatprep.mubr.f32.mxu0 0.0
  %1689 = vmatmul.mubr.f32.gmra.mrb[0].mxu0 %v1617
  %v1690 = vpop.f32.mrb[0].mxu0
  %v1691 = vadd.f32 %v1611, %v1690
  %v1692 = vpop.f32.mrb[0].mxu0
  %1693 = vdwg.mxu0
  %v1694 = vmax.f32 %v1686, 0.0
  %v1695 = vmax.f32 %v1691, 0.0
  %v1696 = vsel %vm593, %v1694, 0.0
  %v1697 = vsel %vm678, %v1695, 0.0
  %v1698 = vadd.f32 %v1696, %v1697
  %v1699 = vrot.slane %v1698, 4
  %v1700 = vadd.f32 %v1698, %v1699
  %v1701 = vrot.slane %v1700, 2
  %v1702 = vadd.f32 %v1700, %v1701
  %v1703 = vrot.slane %v1702, 1
  %v1704 = vadd.f32 %v1702, %v1703
  %v1705 = vmul.f32 %v1704, %v687
  %v1706 = vsub.f32 %v1694, %v1705
  %v1707 = vsub.f32 %v1695, %v1705
  %v1708 = vmul.f32 %v1706, %v1706
  %v1709 = vmul.f32 %v1707, %v1707
  %v1710 = vsel %vm593, %v1708, 0.0
  %v1711 = vsel %vm678, %v1709, 0.0
  %v1712 = vadd.f32 %v1710, %v1711
  %v1713 = vrot.slane %v1712, 4
  %v1714 = vadd.f32 %v1712, %v1713
  %v1715 = vrot.slane %v1714, 2
  %v1716 = vadd.f32 %v1714, %v1715
  %v1717 = vrot.slane %v1716, 1
  %v1718 = vadd.f32 %v1716, %v1717
  %v1719 = vmul.f32 %v1718, %v687
  %v1720 = vadd.f32 %v1719, 1e-05
  %v1721 = vrsqrt.pop %v1720
  %v1722 = vmul.f32 %v1706, %v1721
  %v1723 = vmul.f32 %v1707, %v1721
  %v1724 = vld [vmem:[%s59] sm:$0x1]
  %v1726 = vlaneseq
  %v1727 = vshrl.u32 %v1726, 7
  %v1728 = vsub.s32 0, %v1727
  %v1729 = vrot.slane %v1724, %v1728
  %v1731 = vmul.f32 %v1722, %v1729
  %v1732 = vmul.f32 %v1723, %v1729
  %v1733 = vld [vmem:[%s61] sm:$0x1]
  %v1735 = vlaneseq
  %v1736 = vshrl.u32 %v1735, 7
  %v1737 = vsub.s32 0, %v1736
  %v1738 = vrot.slane %v1733, %v1737
  %v1740 = vadd.f32 %v1731, %v1738
  %v1741 = vadd.f32 %v1732, %v1738
  %1744 = vrot.lane.b32.xlu0 %v1740, 64
  %v1745 = vpop.permute.xlu0 %1744
  %1746 = vrot.lane.b32.xlu0 %v1741, 64
  %v1747 = vpop.permute.xlu0 %1746
  %vm1750 = vcmask 785920
  %1751 = vst.msk [vmem:[%s81] sm:$0xff] %vm1750, %v1745
  %vm1752 = vcmask 781824
  %1753 = vst.msk [vmem:[%s81 + $0x8] sm:$0xf] %vm1752, %v1747
  %v1754 = vld [vmem:[%s63] sm:$0xff]
  %v1755 = vld [vmem:[%s63 + $0x8] sm:$0x3]
  %v1756 = vld [vmem:[%s65] sm:$0x1]
  %v1758 = vlaneseq
  %v1759 = vshrl.u32 %v1758, 7
  %v1760 = vsub.s32 0, %v1759
  %v1761 = vrot.slane %v1756, %v1760
  %v1764 = vsel %vm203, %v1755, 0
  %1766 = vmatprep.subr.mxu0 0.0
  %1767 = vmatpush1.msra.mxu0 %v1754
  %1768 = vmatprep.subr.mxu0 0.0
  %1769 = vmatpush1.msra.mxu0 %v1764
  %1770 = vmatprep.subr.mxu0 0.0
  %1771 = vmatpush1.msra.mxu0 0.0
  %1772 = vmatprep.subr.mxu0 0.0
  %1773 = vmatpush1.msra.mxu0 0.0
  %1774 = vmatprep.subr.mxu0 0.0
  %1775 = vmatpush1.msra.mxu0 0.0
  %1776 = vmatprep.subr.mxu0 0.0
  %1777 = vmatpush1.msra.mxu0 0.0
  %1778 = vmatprep.subr.mxu0 0.0
  %1779 = vmatpush1.msra.mxu0 0.0
  %1780 = vmatprep.subr.mxu0 0.0
  %1781 = vmatpush1.msra.mxu0 0.0
  %1782 = vmatprep.subr.mxu0 0.0
  %1783 = vmatpush1.msra.mxu0 0.0
  %1784 = vmatprep.subr.mxu0 0.0
  %1785 = vmatpush1.msra.mxu0 0.0
  %1786 = vmatprep.subr.mxu0 0.0
  %1787 = vmatpush1.msra.mxu0 0.0
  %1788 = vmatprep.subr.mxu0 0.0
  %1789 = vmatpush1.msra.mxu0 0.0
  %1790 = vmatprep.subr.mxu0 0.0
  %1791 = vmatpush1.msra.mxu0 0.0
  %1792 = vmatprep.subr.mxu0 0.0
  %1793 = vmatpush1.msra.mxu0 0.0
  %1794 = vmatprep.subr.mxu0 0.0
  %1795 = vmatpush1.msra.mxu0 0.0
  %1796 = vmatprep.subr.mxu0 0.0
  %1797 = vmatpush1.msra.mxu0 0.0
  %1798 = vmatprep.subr.mxu0 0.0
  %1799 = vmatpush1.msra.mxu0 0.0
  %1800 = vmatprep.subr.mxu0 0.0
  %1801 = vmatpush1.msra.mxu0 0.0
  %1802 = vmatprep.subr.mxu0 0.0
  %1803 = vmatpush1.msra.mxu0 0.0
  %1804 = vmatprep.subr.mxu0 0.0
  %1805 = vmatpush1.msra.mxu0 0.0
  %1806 = vmatprep.subr.mxu0 0.0
  %1807 = vmatpush1.msra.mxu0 0.0
  %1808 = vmatprep.subr.mxu0 0.0
  %1809 = vmatpush1.msra.mxu0 0.0
  %1810 = vmatprep.subr.mxu0 0.0
  %1811 = vmatpush1.msra.mxu0 0.0
  %1812 = vmatprep.subr.mxu0 0.0
  %1813 = vmatpush1.msra.mxu0 0.0
  %1814 = vmatprep.subr.mxu0 0.0
  %1815 = vmatpush1.msra.mxu0 0.0
  %1816 = vmatprep.subr.mxu0 0.0
  %1817 = vmatpush1.msra.mxu0 0.0
  %1818 = vmatprep.subr.mxu0 0.0
  %1819 = vmatpush1.msra.mxu0 0.0
  %1820 = vmatprep.subr.mxu0 0.0
  %1821 = vmatpush1.msra.mxu0 0.0
  %1822 = vmatprep.subr.mxu0 0.0
  %1823 = vmatpush1.msra.mxu0 0.0
  %1824 = vmatprep.subr.mxu0 0.0
  %1825 = vmatpush1.msra.mxu0 0.0
  %1826 = vmatprep.subr.mxu0 0.0
  %1827 = vmatpush1.msra.mxu0 0.0
  %1828 = vmatprep.subr.mxu0 0.0
  %1829 = vmatpush1.msra.mxu0 0.0
  %1830 = vmatprep.mubr.f32.mxu0 0.0
  %1831 = vmatmul.mubr.f32.gmra.mrb[0].mxu0 %v195
  %v1832 = vpop.f32.mrb[0].mxu0
  %v1833 = vadd.f32 %v1761, %v1832
  %v1834 = vpop.f32.mrb[0].mxu0
  %1835 = vmatprep.mubr.f32.mxu0 0.0
  %1836 = vmatmul.mubr.f32.gmra.mrb[0].mxu0 %v198
  %v1837 = vpop.f32.mrb[0].mxu0
  %v1838 = vadd.f32 %v1761, %v1837
  %v1839 = vpop.f32.mrb[0].mxu0
  %1840 = vmatprep.mubr.f32.mxu0 0.0
  %1841 = vmatmul.mubr.f32.gmra.mrb[0].mxu0 %v201
  %v1842 = vpop.f32.mrb[0].mxu0
  %v1843 = vadd.f32 %v1761, %v1842
  %v1844 = vpop.f32.mrb[0].mxu0
  %1845 = vdwg.mxu0
  %v1846 = vsel %vm297, %v1741, 0
  %1848 = vmatprep.subr.mxu0 0.0
  %1849 = vmatpush1.msra.mxu0 %v1740
  %1850 = vmatprep.subr.mxu0 0.0
  %1851 = vmatpush1.msra.mxu0 %v1846
  %1852 = vmatprep.subr.mxu0 0.0
  %1853 = vmatpush1.msra.mxu0 0.0
  %1854 = vmatprep.subr.mxu0 0.0
  %1855 = vmatpush1.msra.mxu0 0.0
  %1856 = vmatprep.subr.mxu0 0.0
  %1857 = vmatpush1.msra.mxu0 0.0
  %1858 = vmatprep.subr.mxu0 0.0
  %1859 = vmatpush1.msra.mxu0 0.0
  %1860 = vmatprep.subr.mxu0 0.0
  %1861 = vmatpush1.msra.mxu0 0.0
  %1862 = vmatprep.subr.mxu0 0.0
  %1863 = vmatpush1.msra.mxu0 0.0
  %1864 = vmatprep.subr.mxu0 0.0
  %1865 = vmatpush1.msra.mxu0 0.0
  %1866 = vmatprep.subr.mxu0 0.0
  %1867 = vmatpush1.msra.mxu0 0.0
  %1868 = vmatprep.subr.mxu0 0.0
  %1869 = vmatpush1.msra.mxu0 0.0
  %1870 = vmatprep.subr.mxu0 0.0
  %1871 = vmatpush1.msra.mxu0 0.0
  %1872 = vmatprep.subr.mxu0 0.0
  %1873 = vmatpush1.msra.mxu0 0.0
  %1874 = vmatprep.subr.mxu0 0.0
  %1875 = vmatpush1.msra.mxu0 0.0
  %1876 = vmatprep.subr.mxu0 0.0
  %1877 = vmatpush1.msra.mxu0 0.0
  %1878 = vmatprep.subr.mxu0 0.0
  %1879 = vmatpush1.msra.mxu0 0.0
  %1880 = vmatprep.subr.mxu0 0.0
  %1881 = vmatpush1.msra.mxu0 0.0
  %1882 = vmatprep.subr.mxu0 0.0
  %1883 = vmatpush1.msra.mxu0 0.0
  %1884 = vmatprep.subr.mxu0 0.0
  %1885 = vmatpush1.msra.mxu0 0.0
  %1886 = vmatprep.subr.mxu0 0.0
  %1887 = vmatpush1.msra.mxu0 0.0
  %1888 = vmatprep.subr.mxu0 0.0
  %1889 = vmatpush1.msra.mxu0 0.0
  %1890 = vmatprep.subr.mxu0 0.0
  %1891 = vmatpush1.msra.mxu0 0.0
  %1892 = vmatprep.subr.mxu0 0.0
  %1893 = vmatpush1.msra.mxu0 0.0
  %1894 = vmatprep.subr.mxu0 0.0
  %1895 = vmatpush1.msra.mxu0 0.0
  %1896 = vmatprep.subr.mxu0 0.0
  %1897 = vmatpush1.msra.mxu0 0.0
  %1898 = vmatprep.subr.mxu0 0.0
  %1899 = vmatpush1.msra.mxu0 0.0
  %1900 = vmatprep.subr.mxu0 0.0
  %1901 = vmatpush1.msra.mxu0 0.0
  %1902 = vmatprep.subr.mxu0 0.0
  %1903 = vmatpush1.msra.mxu0 0.0
  %1904 = vmatprep.subr.mxu0 0.0
  %1905 = vmatpush1.msra.mxu0 0.0
  %1906 = vmatprep.subr.mxu0 0.0
  %1907 = vmatpush1.msra.mxu0 0.0
  %1908 = vmatprep.subr.mxu0 0.0
  %1909 = vmatpush1.msra.mxu0 0.0
  %1910 = vmatprep.subr.mxu0 0.0
  %1911 = vmatpush1.msra.mxu0 0.0
  %1912 = vmatprep.mubr.f32.mxu0 0.0
  %1913 = vmatmul.mubr.f32.gmra.mrb[0].mxu0 %v289
  %v1914 = vpop.f32.mrb[0].mxu0
  %v1915 = vadd.f32 %v1833, %v1914
  %v1916 = vpop.f32.mrb[0].mxu0
  %1917 = vmatprep.mubr.f32.mxu0 0.0
  %1918 = vmatmul.mubr.f32.gmra.mrb[0].mxu0 %v292
  %v1919 = vpop.f32.mrb[0].mxu0
  %v1920 = vadd.f32 %v1838, %v1919
  %v1921 = vpop.f32.mrb[0].mxu0
  %1922 = vmatprep.mubr.f32.mxu0 0.0
  %1923 = vmatmul.mubr.f32.gmra.mrb[0].mxu0 %v295
  %v1924 = vpop.f32.mrb[0].mxu0
  %v1925 = vadd.f32 %v1843, %v1924
  %v1926 = vpop.f32.mrb[0].mxu0
  %1927 = vdwg.mxu0
  %v1928 = vmax.f32 %v1915, 0.0
  %v1929 = vmax.f32 %v1920, 0.0
  %v1930 = vmax.f32 %v1925, 0.0
  %1931 = vmatprep.subr.mxu0 0.0
  %1932 = vmatpush1.msra.mxu0 %v1928
  %1933 = vmatprep.subr.mxu0 0.0
  %1934 = vmatpush1.msra.mxu0 %v1929
  %1935 = vmatprep.subr.mxu0 0.0
  %1936 = vmatpush1.msra.mxu0 %v1930
  %1937 = vmatprep.subr.mxu0 0.0
  %1938 = vmatpush1.msra.mxu0 0.0
  %1939 = vmatprep.subr.mxu0 0.0
  %1940 = vmatpush1.msra.mxu0 0.0
  %1941 = vmatprep.subr.mxu0 0.0
  %1942 = vmatpush1.msra.mxu0 0.0
  %1943 = vmatprep.subr.mxu0 0.0
  %1944 = vmatpush1.msra.mxu0 0.0
  %1945 = vmatprep.subr.mxu0 0.0
  %1946 = vmatpush1.msra.mxu0 0.0
  %1947 = vmatprep.subr.mxu0 0.0
  %1948 = vmatpush1.msra.mxu0 0.0
  %1949 = vmatprep.subr.mxu0 0.0
  %1950 = vmatpush1.msra.mxu0 0.0
  %1951 = vmatprep.subr.mxu0 0.0
  %1952 = vmatpush1.msra.mxu0 0.0
  %1953 = vmatprep.subr.mxu0 0.0
  %1954 = vmatpush1.msra.mxu0 0.0
  %1955 = vmatprep.subr.mxu0 0.0
  %1956 = vmatpush1.msra.mxu0 0.0
  %1957 = vmatprep.subr.mxu0 0.0
  %1958 = vmatpush1.msra.mxu0 0.0
  %1959 = vmatprep.subr.mxu0 0.0
  %1960 = vmatpush1.msra.mxu0 0.0
  %1961 = vmatprep.subr.mxu0 0.0
  %1962 = vmatpush1.msra.mxu0 0.0
  %1963 = vmatprep.subr.mxu0 0.0
  %1964 = vmatpush1.msra.mxu0 0.0
  %1965 = vmatprep.subr.mxu0 0.0
  %1966 = vmatpush1.msra.mxu0 0.0
  %1967 = vmatprep.subr.mxu0 0.0
  %1968 = vmatpush1.msra.mxu0 0.0
  %1969 = vmatprep.subr.mxu0 0.0
  %1970 = vmatpush1.msra.mxu0 0.0
  %1971 = vmatprep.subr.mxu0 0.0
  %1972 = vmatpush1.msra.mxu0 0.0
  %1973 = vmatprep.subr.mxu0 0.0
  %1974 = vmatpush1.msra.mxu0 0.0
  %1975 = vmatprep.subr.mxu0 0.0
  %1976 = vmatpush1.msra.mxu0 0.0
  %1977 = vmatprep.subr.mxu0 0.0
  %1978 = vmatpush1.msra.mxu0 0.0
  %1979 = vmatprep.subr.mxu0 0.0
  %1980 = vmatpush1.msra.mxu0 0.0
  %1981 = vmatprep.subr.mxu0 0.0
  %1982 = vmatpush1.msra.mxu0 0.0
  %1983 = vmatprep.subr.mxu0 0.0
  %1984 = vmatpush1.msra.mxu0 0.0
  %1985 = vmatprep.subr.mxu0 0.0
  %1986 = vmatpush1.msra.mxu0 0.0
  %1987 = vmatprep.subr.mxu0 0.0
  %1988 = vmatpush1.msra.mxu0 0.0
  %1989 = vmatprep.subr.mxu0 0.0
  %1990 = vmatpush1.msra.mxu0 0.0
  %1991 = vmatprep.subr.mxu0 0.0
  %1992 = vmatpush1.msra.mxu0 0.0
  %1993 = vmatprep.subr.mxu0 0.0
  %1994 = vmatpush1.msra.mxu0 0.0
  %1995 = vmatprep.mubr.f32.mxu0 0.0
  %1996 = vmatmul.mubr.f32.gmra.mrb[0].mxu0 %v386
  %v1997 = vpop.f32.mrb[0].mxu0
  %v1998 = vadd.f32 0.0, %v1997
  %v1999 = vpop.f32.mrb[0].mxu0
  %2000 = vmatprep.mubr.f32.mxu0 0.0
  %2001 = vmatmul.mubr.f32.gmra.mrb[0].mxu0 %v389
  %v2002 = vpop.f32.mrb[0].mxu0
  %v2003 = vadd.f32 0.0, %v2002
  %v2004 = vpop.f32.mrb[0].mxu0
  %2005 = vdwg.mxu0
  %v2006 = vld [vmem:[#allocation5] sm:$0x1]
  %v2007 = vadd.f32 %v2006, 1.0
  %v2009 = vlaneseq
  %v2010 = vshrl.u32 %v2009, 7
  %v2011 = vsub.s32 0, %v2010
  %v2012 = vrot.slane %v2007, %v2011
  %2013 = vset.pattern.permute.xlu0 0
  %2014 = vperm.xlu0 %2013, %v2012
  %v2015 = vpop.permute.xlu0 %2014
  %v2017 = vmul.f32 %v1740, %v2015
  %v2018 = vmul.f32 %v1741, %v2015
  %v2019 = vadd.f32 %v2017, %v1998
  %v2020 = vadd.f32 %v2018, %v2003
  %v2021 = vld [vmem:[%s67] sm:$0xff]
  %v2022 = vld [vmem:[%s67 + $0x8] sm:$0xff]
  %v2023 = vld [vmem:[%s67 + $0x10] sm:$0xff]
  %v2024 = vld [vmem:[%s67 + $0x18] sm:$0xff]
  %v2025 = vld [vmem:[%s69] sm:$0x1]
  %v2027 = vlaneseq
  %v2028 = vshrl.u32 %v2027, 7
  %v2029 = vsub.s32 0, %v2028
  %v2030 = vrot.slane %v2025, %v2029
  %v2033 = vsel %vm593, %v2019, 0
  %v2036 = vsel %vm593, %v2020, 0
  %2038 = vmatprep.subr.mxu0 0.0
  %2039 = vmatpush1.msra.mxu0 %v2021
  %2040 = vmatprep.subr.mxu0 0.0
  %2041 = vmatpush1.msra.mxu0 %v2022
  %2042 = vmatprep.subr.mxu0 0.0
  %2043 = vmatpush1.msra.mxu0 %v2023
  %2044 = vmatprep.subr.mxu0 0.0
  %2045 = vmatpush1.msra.mxu0 %v2024
  %2046 = vmatprep.subr.mxu0 0.0
  %2047 = vmatpush1.msra.mxu0 0.0
  %2048 = vmatprep.subr.mxu0 0.0
  %2049 = vmatpush1.msra.mxu0 0.0
  %2050 = vmatprep.subr.mxu0 0.0
  %2051 = vmatpush1.msra.mxu0 0.0
  %2052 = vmatprep.subr.mxu0 0.0
  %2053 = vmatpush1.msra.mxu0 0.0
  %2054 = vmatprep.subr.mxu0 0.0
  %2055 = vmatpush1.msra.mxu0 0.0
  %2056 = vmatprep.subr.mxu0 0.0
  %2057 = vmatpush1.msra.mxu0 0.0
  %2058 = vmatprep.subr.mxu0 0.0
  %2059 = vmatpush1.msra.mxu0 0.0
  %2060 = vmatprep.subr.mxu0 0.0
  %2061 = vmatpush1.msra.mxu0 0.0
  %2062 = vmatprep.subr.mxu0 0.0
  %2063 = vmatpush1.msra.mxu0 0.0
  %2064 = vmatprep.subr.mxu0 0.0
  %2065 = vmatpush1.msra.mxu0 0.0
  %2066 = vmatprep.subr.mxu0 0.0
  %2067 = vmatpush1.msra.mxu0 0.0
  %2068 = vmatprep.subr.mxu0 0.0
  %2069 = vmatpush1.msra.mxu0 0.0
  %2070 = vmatprep.subr.mxu0 0.0
  %2071 = vmatpush1.msra.mxu0 0.0
  %2072 = vmatprep.subr.mxu0 0.0
  %2073 = vmatpush1.msra.mxu0 0.0
  %2074 = vmatprep.subr.mxu0 0.0
  %2075 = vmatpush1.msra.mxu0 0.0
  %2076 = vmatprep.subr.mxu0 0.0
  %2077 = vmatpush1.msra.mxu0 0.0
  %2078 = vmatprep.subr.mxu0 0.0
  %2079 = vmatpush1.msra.mxu0 0.0
  %2080 = vmatprep.subr.mxu0 0.0
  %2081 = vmatpush1.msra.mxu0 0.0
  %2082 = vmatprep.subr.mxu0 0.0
  %2083 = vmatpush1.msra.mxu0 0.0
  %2084 = vmatprep.subr.mxu0 0.0
  %2085 = vmatpush1.msra.mxu0 0.0
  %2086 = vmatprep.subr.mxu0 0.0
  %2087 = vmatpush1.msra.mxu0 0.0
  %2088 = vmatprep.subr.mxu0 0.0
  %2089 = vmatpush1.msra.mxu0 0.0
  %2090 = vmatprep.subr.mxu0 0.0
  %2091 = vmatpush1.msra.mxu0 0.0
  %2092 = vmatprep.subr.mxu0 0.0
  %2093 = vmatpush1.msra.mxu0 0.0
  %2094 = vmatprep.subr.mxu0 0.0
  %2095 = vmatpush1.msra.mxu0 0.0
  %2096 = vmatprep.subr.mxu0 0.0
  %2097 = vmatpush1.msra.mxu0 0.0
  %2098 = vmatprep.subr.mxu0 0.0
  %2099 = vmatpush1.msra.mxu0 0.0
  %2100 = vmatprep.subr.mxu0 0.0
  %2101 = vmatpush1.msra.mxu0 0.0
  %2102 = vmatprep.mubr.f32.mxu0 0.0
  %2103 = vmatmul.mubr.f32.gmra.mrb[0].mxu0 %v2033
  %v2104 = vpop.f32.mrb[0].mxu0
  %v2105 = vadd.f32 %v2030, %v2104
  %v2106 = vpop.f32.mrb[0].mxu0
  %2107 = vmatprep.mubr.f32.mxu0 0.0
  %2108 = vmatmul.mubr.f32.gmra.mrb[0].mxu0 %v2036
  %v2109 = vpop.f32.mrb[0].mxu0
  %v2110 = vadd.f32 %v2030, %v2109
  %v2111 = vpop.f32.mrb[0].mxu0
  %2112 = vdwg.mxu0
  %v2113 = vmax.f32 %v2105, 0.0
  %v2114 = vmax.f32 %v2110, 0.0
  %v2115 = vld [vmem:[%s71] sm:$0xff]
  %v2116 = vld [vmem:[%s71 + $0x8] sm:$0xff]
  %v2117 = vld [vmem:[%s71 + $0x10] sm:$0xff]
  %v2118 = vld [vmem:[%s71 + $0x18] sm:$0xff]
  %v2119 = vld [vmem:[%s73] sm:$0x1]
  %v2121 = vlaneseq
  %v2122 = vshrl.u32 %v2121, 7
  %v2123 = vsub.s32 0, %v2122
  %v2124 = vrot.slane %v2119, %v2123
  %v2127 = vsel %vm593, %v2113, 0
  %v2130 = vsel %vm593, %v2114, 0
  %2132 = vmatprep.subr.mxu0 0.0
  %2133 = vmatpush1.msra.mxu0 %v2115
  %2134 = vmatprep.subr.mxu0 0.0
  %2135 = vmatpush1.msra.mxu0 %v2116
  %2136 = vmatprep.subr.mxu0 0.0
  %2137 = vmatpush1.msra.mxu0 %v2117
  %2138 = vmatprep.subr.mxu0 0.0
  %2139 = vmatpush1.msra.mxu0 %v2118
  %2140 = vmatprep.subr.mxu0 0.0
  %2141 = vmatpush1.msra.mxu0 0.0
  %2142 = vmatprep.subr.mxu0 0.0
  %2143 = vmatpush1.msra.mxu0 0.0
  %2144 = vmatprep.subr.mxu0 0.0
  %2145 = vmatpush1.msra.mxu0 0.0
  %2146 = vmatprep.subr.mxu0 0.0
  %2147 = vmatpush1.msra.mxu0 0.0
  %2148 = vmatprep.subr.mxu0 0.0
  %2149 = vmatpush1.msra.mxu0 0.0
  %2150 = vmatprep.subr.mxu0 0.0
  %2151 = vmatpush1.msra.mxu0 0.0
  %2152 = vmatprep.subr.mxu0 0.0
  %2153 = vmatpush1.msra.mxu0 0.0
  %2154 = vmatprep.subr.mxu0 0.0
  %2155 = vmatpush1.msra.mxu0 0.0
  %2156 = vmatprep.subr.mxu0 0.0
  %2157 = vmatpush1.msra.mxu0 0.0
  %2158 = vmatprep.subr.mxu0 0.0
  %2159 = vmatpush1.msra.mxu0 0.0
  %2160 = vmatprep.subr.mxu0 0.0
  %2161 = vmatpush1.msra.mxu0 0.0
  %2162 = vmatprep.subr.mxu0 0.0
  %2163 = vmatpush1.msra.mxu0 0.0
  %2164 = vmatprep.subr.mxu0 0.0
  %2165 = vmatpush1.msra.mxu0 0.0
  %2166 = vmatprep.subr.mxu0 0.0
  %2167 = vmatpush1.msra.mxu0 0.0
  %2168 = vmatprep.subr.mxu0 0.0
  %2169 = vmatpush1.msra.mxu0 0.0
  %2170 = vmatprep.subr.mxu0 0.0
  %2171 = vmatpush1.msra.mxu0 0.0
  %2172 = vmatprep.subr.mxu0 0.0
  %2173 = vmatpush1.msra.mxu0 0.0
  %2174 = vmatprep.subr.mxu0 0.0
  %2175 = vmatpush1.msra.mxu0 0.0
  %2176 = vmatprep.subr.mxu0 0.0
  %2177 = vmatpush1.msra.mxu0 0.0
  %2178 = vmatprep.subr.mxu0 0.0
  %2179 = vmatpush1.msra.mxu0 0.0
  %2180 = vmatprep.subr.mxu0 0.0
  %2181 = vmatpush1.msra.mxu0 0.0
  %2182 = vmatprep.subr.mxu0 0.0
  %2183 = vmatpush1.msra.mxu0 0.0
  %2184 = vmatprep.subr.mxu0 0.0
  %2185 = vmatpush1.msra.mxu0 0.0
  %2186 = vmatprep.subr.mxu0 0.0
  %2187 = vmatpush1.msra.mxu0 0.0
  %2188 = vmatprep.subr.mxu0 0.0
  %2189 = vmatpush1.msra.mxu0 0.0
  %2190 = vmatprep.subr.mxu0 0.0
  %2191 = vmatpush1.msra.mxu0 0.0
  %2192 = vmatprep.subr.mxu0 0.0
  %2193 = vmatpush1.msra.mxu0 0.0
  %2194 = vmatprep.subr.mxu0 0.0
  %2195 = vmatpush1.msra.mxu0 0.0
  %2196 = vmatprep.mubr.f32.mxu0 0.0
  %2197 = vmatmul.mubr.f32.gmra.mrb[0].mxu0 %v2127
  %v2198 = vpop.f32.mrb[0].mxu0
  %v2199 = vadd.f32 %v2124, %v2198
  %v2200 = vpop.f32.mrb[0].mxu0
  %2201 = vmatprep.mubr.f32.mxu0 0.0
  %2202 = vmatmul.mubr.f32.gmra.mrb[0].mxu0 %v2130
  %v2203 = vpop.f32.mrb[0].mxu0
  %v2204 = vadd.f32 %v2124, %v2203
  %v2205 = vpop.f32.mrb[0].mxu0
  %2206 = vdwg.mxu0
  %v2207 = vmax.f32 %v2199, 0.0
  %v2208 = vmax.f32 %v2204, 0.0
  %v2209 = vsel %vm593, %v2207, 0.0
  %v2210 = vsel %vm678, %v2208, 0.0
  %v2211 = vadd.f32 %v2209, %v2210
  %v2212 = vrot.slane %v2211, 4
  %v2213 = vadd.f32 %v2211, %v2212
  %v2214 = vrot.slane %v2213, 2
  %v2215 = vadd.f32 %v2213, %v2214
  %v2216 = vrot.slane %v2215, 1
  %v2217 = vadd.f32 %v2215, %v2216
  %v2218 = vmul.f32 %v2217, %v687
  %v2219 = vsub.f32 %v2207, %v2218
  %v2220 = vsub.f32 %v2208, %v2218
  %v2221 = vmul.f32 %v2219, %v2219
  %v2222 = vmul.f32 %v2220, %v2220
  %v2223 = vsel %vm593, %v2221, 0.0
  %v2224 = vsel %vm678, %v2222, 0.0
  %v2225 = vadd.f32 %v2223, %v2224
  %v2226 = vrot.slane %v2225, 4
  %v2227 = vadd.f32 %v2225, %v2226
  %v2228 = vrot.slane %v2227, 2
  %v2229 = vadd.f32 %v2227, %v2228
  %v2230 = vrot.slane %v2229, 1
  %v2231 = vadd.f32 %v2229, %v2230
  %v2232 = vmul.f32 %v2231, %v687
  %v2233 = vadd.f32 %v2232, 1e-05
  %v2234 = vrsqrt.pop %v2233
  %v2235 = vmul.f32 %v2219, %v2234
  %v2236 = vmul.f32 %v2220, %v2234
  %v2237 = vld [vmem:[%s77] sm:$0x1]
  %v2239 = vlaneseq
  %v2240 = vshrl.u32 %v2239, 7
  %v2241 = vsub.s32 0, %v2240
  %v2242 = vrot.slane %v2237, %v2241
  %v2244 = vmul.f32 %v2235, %v2242
  %v2245 = vmul.f32 %v2236, %v2242
  %v2246 = vld [vmem:[%s79] sm:$0x1]
  %v2248 = vlaneseq
  %v2249 = vshrl.u32 %v2248, 7
  %v2250 = vsub.s32 0, %v2249
  %v2251 = vrot.slane %v2246, %v2250
  %v2253 = vadd.f32 %v2244, %v2251
  %v2254 = vadd.f32 %v2245, %v2251
  %2257 = vrot.lane.b32.xlu0 %v2253, 96
  %v2258 = vpop.permute.xlu0 %2257
  %2259 = vrot.lane.b32.xlu0 %v2254, 96
  %v2260 = vpop.permute.xlu0 %2259
  %vm2263 = vcmask 1048320
  %2264 = vst.msk [vmem:[%s81] sm:$0xff] %vm2263, %v2258
  %vm2265 = vcmask 1044224
  %2266 = vst.msk [vmem:[%s81 + $0x8] sm:$0xf] %vm2265, %v2260
  // Predicated region
  $region162: #{gin_ac_forward.4} parent=0 // pred_check
    _
  $region163: #{gin_ac_forward.4} parent=0 // pred_check_branch
    %2268 = sbr.rel (0) target = $region165
  $region164: #{gin_ac_forward.4} parent=0 // pred_region
    _
  $region165: #{gin_ac_forward.4} parent=0 // pred_fallthru
    _
  // Predicated region
  $region166: #{gin_ac_forward.4} parent=0 // pred_check
    _
  $region167: #{gin_ac_forward.4} parent=0 // pred_check_branch
    %2270 = sbr.rel (0) target = $region169
  $region168: #{gin_ac_forward.4} parent=0 // pred_region
    _
  $region169: #{gin_ac_forward.4} parent=0 // pred_fallthru
    _

// kernel: gin_ac_forward.6
$region0: #{gin_ac_forward.6}
  #allocation0 [shape = 'u32[]', space=smem, size = 0x4, offset = 0x4, fixed_abs, tag = 'smem constant byte address 0x4 - core index']
  #allocation1 [shape = 'u32[144,128]{1,0:T(1,128)}', space=vmem, size = 0x12000, scoped, tag = 'internal scratch']
  %s0 = inlined_call_operand.vmem [shape: f32[2,8,32], index: 0, kind: input, shape index: {}]
  %s1 = inlined_call_operand.vmem [shape: f32[2,8,1], index: 1, kind: input, shape index: {}]
  %s2 = inlined_call_operand.vmem [shape: f32[128,32], index: 2, kind: input, shape index: {}]
  %s3 = inlined_call_operand.vmem [shape: f32[1,128], index: 3, kind: input, shape index: {}]
  %s4 = inlined_call_operand.vmem [shape: f32[128,1], index: 4, kind: input, shape index: {}]
  %s5 = inlined_call_operand.vmem [shape: f32[2,32,64], index: 5, kind: input, shape index: {}]
  %s6 = inlined_call_operand.vmem [shape: f32[2,1,64], index: 6, kind: input, shape index: {}]
  %s7 = inlined_call_operand.vmem [shape: f32[2,32,64], index: 7, kind: input, shape index: {}]
  %s8 = inlined_call_operand.vmem [shape: f32[2,1,64], index: 8, kind: input, shape index: {}]
  %s9 = inlined_call_operand.vmem [shape: f32[2,32,64], index: 9, kind: input, shape index: {}]
  %s10 = inlined_call_operand.vmem [shape: f32[2,1,64], index: 10, kind: input, shape index: {}]
  %s11 = inlined_call_operand.vmem [shape: f32[2,1,32], index: 11, kind: input, shape index: {}]
  %s12 = inlined_call_operand.vmem [shape: f32[2,1,1], index: 12, kind: input, shape index: {}]
  %s13 = inlined_call_operand.vmem [shape: f32[2,1,32], index: 13, kind: input, shape index: {}]
  %s14 = inlined_call_operand.vmem [shape: f32[2,1,1], index: 14, kind: input, shape index: {}]
  %s15 = inlined_call_operand.vmem [shape: f32[32,96], index: 15, kind: input, shape index: {}]
  %s16 = inlined_call_operand.vmem [shape: f32[1,96], index: 16, kind: input, shape index: {}]
  %s17 = inlined_call_operand.vmem [shape: f32[32,96], index: 17, kind: input, shape index: {}]
  %s18 = inlined_call_operand.vmem [shape: f32[1,96], index: 18, kind: input, shape index: {}]
  %s19 = inlined_call_operand.vmem [shape: f32[2,8,128], index: 19, kind: output, shape index: {0}]
  %s20 = inlined_call_operand.vmem [shape: f32[2,1,32], index: 20, kind: output, shape index: {1}]
  %s21 = inlined_call_operand.vmem [shape: f32[2,1,32], index: 21, kind: output, shape index: {2}]
  %22 = xla_tuple %s19, %s20, %s21
  %s23 = sld [smem:[#allocation0]]
  $region125: #{gin_ac_forward.6} parent=0
    _
  %s25 = ssub.s32 1, %s23
  %s26 = scalar_select 0, %s25, %s23
  loop: start=0, step=1, limit=4
  $region2: #{gin_ac_forward.6} parent=0 // loop_pre_header
    _
  $region3: #{gin_ac_forward.6} parent=0 // loop_header
    %s28 = sphi 0, %s32
    %p29 = scmp.ge.s32.totalorder %s28, 4
    %s38 = sphi 0, %s40
    %s41 = sphi 0, %s38
    %s42 = sphi 0, %s41
    %s58 = sphi 0, %s42
    %s64 = sphi 0, %s66
    %s67 = sphi 0, %s64
    %s68 = sphi 0, %s67
    %s84 = sphi 0, %s68
    %s88 = sphi 0, %s88
    %s90 = sphi 0, %s88
    %s91 = sphi 0, %s90
    %s105 = sphi 0, %s91
    %s109 = sphi 0, %s109
    %s111 = sphi 0, %s109
    %s112 = sphi 0, %s111
    %s126 = sphi 0, %s112
    %s130 = sphi 0, %s130
    %s132 = sphi 0, %s130
    %s133 = sphi 0, %s132
    %s147 = sphi 0, %s133
    %s151 = sphi 0, %s151
    %s153 = sphi 0, %s151
    %s154 = sphi 0, %s153
    %s168 = sphi 0, %s154
    %s172 = sphi 0, %s172
    %s174 = sphi 0, %s172
    %s175 = sphi 0, %s174
    %s189 = sphi 0, %s175
    %s193 = sphi 0, %s193
    %s195 = sphi 0, %s193
    %s196 = sphi 0, %s195
    %s210 = sphi 0, %s196
    %s214 = sphi 0, %s214
    %s216 = sphi 0, %s214
    %s217 = sphi 0, %s216
    %s231 = sphi 0, %s217
    %s235 = sphi 0, %s235
    %s237 = sphi 0, %s235
    %s238 = sphi 0, %s237
    %s252 = sphi 0, %s238
    %s256 = sphi 0, %s256
    %s258 = sphi 0, %s256
    %s259 = sphi 0, %s258
    %s273 = sphi 0, %s259
    %s277 = sphi 0, %s277
    %s279 = sphi 0, %s277
    %s280 = sphi 0, %s279
    %s294 = sphi 0, %s280
    %s298 = sphi 0, %s298
    %s300 = sphi 0, %s298
    %s301 = sphi 0, %s300
    %s315 = sphi 0, %s301
    %s319 = sphi 0, %s319
    %s321 = sphi 0, %s319
    %s322 = sphi 0, %s321
    %s336 = sphi 0, %s322
    %s340 = sphi 0, %s340
    %s342 = sphi 0, %s340
    %s343 = sphi 0, %s342
    %s357 = sphi 0, %s343
    %s361 = sphi 0, %s361
    %s363 = sphi 0, %s361
    %s364 = sphi 0, %s363
    %s378 = sphi 0, %s364
    %s382 = sphi 0, %s382
    %s384 = sphi 0, %s382
    %s385 = sphi 0, %s384
    %s399 = sphi 0, %s385
    %s403 = sphi 0, %s403
    %s405 = sphi 0, %s403
    %s406 = sphi 0, %s405
    %s420 = sphi 0, %s406
    %s424 = sphi 0, %s424
    %s426 = sphi 0, %s424
    %s427 = sphi 0, %s426
    %s441 = sphi 0, %s427
    %s447 = sphi 0, %s449
    %s450 = sphi 0, %s447
    %s451 = sphi 0, %s450
    %s467 = sphi 0, %s451
    %s473 = sphi 0, %s475
    %s476 = sphi 0, %s473
    %s477 = sphi 0, %s476
    %s493 = sphi 0, %s477
    %s499 = sphi 0, %s501
    %s502 = sphi 0, %s499
    %s503 = sphi 0, %s502
    %s519 = sphi 0, %s503
  $region4: #{gin_ac_forward.6} parent=0 // loop_header_branch
    %31 = sbr.rel (%p29) target = $region8
  $region5: #{gin_ac_forward.6} parent=0 // loop_body
    %s33 = ssub.s32 %s28, 1
    %s34 = ssub.s32 %s28, 2
    %s35 = sadd.s32 %s28, 1
    %s36 = ssub.s32 %s28, %s35
    %p37 = scmp.eq.s32.totalorder %s36, 0
    %s39 = sadd.s32 %s38, 1
    %s40 = scalar_select %p37, %s38, %s39
    %p43 = pneg %p37
    %p44 = scmp.eq.s32.totalorder %s28, 1
    %p45 = por %p43, %p44
    %p46 = scmp.ne.s32.totalorder %s38, %s41
    %p47 = scmp.eq.s32.totalorder %s28, 0
    %p48 = por %p46, %p47
    %p49 = scmp.ne.s32.totalorder %s38, %s41
    %p50 = scmp.eq.s32.totalorder %s33, 1
    %p51 = por %p49, %p50
    %p52 = scmp.ne.s32.totalorder %s41, %s42
    %p53 = scmp.eq.s32.totalorder %s33, 0
    %p54 = por %p52, %p53
    %p55 = scmp.ne.s32.totalorder %s41, %s42
    %p56 = scmp.eq.s32.totalorder %s34, 1
    %p57 = por %p55, %p56
    %p59 = scmp.ne.s32.totalorder %s42, %s58
    %p60 = scmp.eq.s32.totalorder %s34, 0
    %p61 = por %p59, %p60
    %s62 = ssub.s32 %s28, %s35
    %p63 = scmp.eq.s32.totalorder %s62, 0
    %s65 = sadd.s32 %s64, 1
    %s66 = scalar_select %p63, %s64, %s65
    %p69 = pneg %p63
    %p70 = scmp.eq.s32.totalorder %s28, 1
    %p71 = por %p69, %p70
    %p72 = scmp.ne.s32.totalorder %s64, %s67
    %p73 = scmp.eq.s32.totalorder %s28, 0
    %p74 = por %p72, %p73
    %p75 = scmp.ne.s32.totalorder %s64, %s67
    %p76 = scmp.eq.s32.totalorder %s33, 1
    %p77 = por %p75, %p76
    %p78 = scmp.ne.s32.totalorder %s67, %s68
    %p79 = scmp.eq.s32.totalorder %s33, 0
    %p80 = por %p78, %p79
    %p81 = scmp.ne.s32.totalorder %s67, %s68
    %p82 = scmp.eq.s32.totalorder %s34, 1
    %p83 = por %p81, %p82
    %p85 = scmp.ne.s32.totalorder %s68, %s84
    %p86 = scmp.eq.s32.totalorder %s34, 0
    %p87 = por %p85, %p86
    %s89 = sadd.s32 %s88, 1
    %p92 = scmp.eq.s32.totalorder %s28, 1
    %p93 = scmp.ne.s32.totalorder %s88, %s90
    %p94 = scmp.eq.s32.totalorder %s28, 0
    %p95 = por %p93, %p94
    %p96 = scmp.ne.s32.totalorder %s88, %s90
    %p97 = scmp.eq.s32.totalorder %s33, 1
    %p98 = por %p96, %p97
    %p99 = scmp.ne.s32.totalorder %s90, %s91
    %p100 = scmp.eq.s32.totalorder %s33, 0
    %p101 = por %p99, %p100
    %p102 = scmp.ne.s32.totalorder %s90, %s91
    %p103 = scmp.eq.s32.totalorder %s34, 1
    %p104 = por %p102, %p103
    %p106 = scmp.ne.s32.totalorder %s91, %s105
    %p107 = scmp.eq.s32.totalorder %s34, 0
    %p108 = por %p106, %p107
    %s110 = sadd.s32 %s109, 1
    %p113 = scmp.eq.s32.totalorder %s28, 1
    %p114 = scmp.ne.s32.totalorder %s109, %s111
    %p115 = scmp.eq.s32.totalorder %s28, 0
    %p116 = por %p114, %p115
    %p117 = scmp.ne.s32.totalorder %s109, %s111
    %p118 = scmp.eq.s32.totalorder %s33, 1
    %p119 = por %p117, %p118
    %p120 = scmp.ne.s32.totalorder %s111, %s112
    %p121 = scmp.eq.s32.totalorder %s33, 0
    %p122 = por %p120, %p121
    %p123 = scmp.ne.s32.totalorder %s111, %s112
    %p124 = scmp.eq.s32.totalorder %s34, 1
    %p125 = por %p123, %p124
    %p127 = scmp.ne.s32.totalorder %s112, %s126
    %p128 = scmp.eq.s32.totalorder %s34, 0
    %p129 = por %p127, %p128
    %s131 = sadd.s32 %s130, 1
    %p134 = scmp.eq.s32.totalorder %s28, 1
    %p135 = scmp.ne.s32.totalorder %s130, %s132
    %p136 = scmp.eq.s32.totalorder %s28, 0
    %p137 = por %p135, %p136
    %p138 = scmp.ne.s32.totalorder %s130, %s132
    %p139 = scmp.eq.s32.totalorder %s33, 1
    %p140 = por %p138, %p139
    %p141 = scmp.ne.s32.totalorder %s132, %s133
    %p142 = scmp.eq.s32.totalorder %s33, 0
    %p143 = por %p141, %p142
    %p144 = scmp.ne.s32.totalorder %s132, %s133
    %p145 = scmp.eq.s32.totalorder %s34, 1
    %p146 = por %p144, %p145
    %p148 = scmp.ne.s32.totalorder %s133, %s147
    %p149 = scmp.eq.s32.totalorder %s34, 0
    %p150 = por %p148, %p149
    %s152 = sadd.s32 %s151, 1
    %p155 = scmp.eq.s32.totalorder %s28, 1
    %p156 = scmp.ne.s32.totalorder %s151, %s153
    %p157 = scmp.eq.s32.totalorder %s28, 0
    %p158 = por %p156, %p157
    %p159 = scmp.ne.s32.totalorder %s151, %s153
    %p160 = scmp.eq.s32.totalorder %s33, 1
    %p161 = por %p159, %p160
    %p162 = scmp.ne.s32.totalorder %s153, %s154
    %p163 = scmp.eq.s32.totalorder %s33, 0
    %p164 = por %p162, %p163
    %p165 = scmp.ne.s32.totalorder %s153, %s154
    %p166 = scmp.eq.s32.totalorder %s34, 1
    %p167 = por %p165, %p166
    %p169 = scmp.ne.s32.totalorder %s154, %s168
    %p170 = scmp.eq.s32.totalorder %s34, 0
    %p171 = por %p169, %p170
    %s173 = sadd.s32 %s172, 1
    %p176 = scmp.eq.s32.totalorder %s28, 1
    %p177 = scmp.ne.s32.totalorder %s172, %s174
    %p178 = scmp.eq.s32.totalorder %s28, 0
    %p179 = por %p177, %p178
    %p180 = scmp.ne.s32.totalorder %s172, %s174
    %p181 = scmp.eq.s32.totalorder %s33, 1
    %p182 = por %p180, %p181
    %p183 = scmp.ne.s32.totalorder %s174, %s175
    %p184 = scmp.eq.s32.totalorder %s33, 0
    %p185 = por %p183, %p184
    %p186 = scmp.ne.s32.totalorder %s174, %s175
    %p187 = scmp.eq.s32.totalorder %s34, 1
    %p188 = por %p186, %p187
    %p190 = scmp.ne.s32.totalorder %s175, %s189
    %p191 = scmp.eq.s32.totalorder %s34, 0
    %p192 = por %p190, %p191
    %s194 = sadd.s32 %s193, 1
    %p197 = scmp.eq.s32.totalorder %s28, 1
    %p198 = scmp.ne.s32.totalorder %s193, %s195
    %p199 = scmp.eq.s32.totalorder %s28, 0
    %p200 = por %p198, %p199
    %p201 = scmp.ne.s32.totalorder %s193, %s195
    %p202 = scmp.eq.s32.totalorder %s33, 1
    %p203 = por %p201, %p202
    %p204 = scmp.ne.s32.totalorder %s195, %s196
    %p205 = scmp.eq.s32.totalorder %s33, 0
    %p206 = por %p204, %p205
    %p207 = scmp.ne.s32.totalorder %s195, %s196
    %p208 = scmp.eq.s32.totalorder %s34, 1
    %p209 = por %p207, %p208
    %p211 = scmp.ne.s32.totalorder %s196, %s210
    %p212 = scmp.eq.s32.totalorder %s34, 0
    %p213 = por %p211, %p212
    %s215 = sadd.s32 %s214, 1
    %p218 = scmp.eq.s32.totalorder %s28, 1
    %p219 = scmp.ne.s32.totalorder %s214, %s216
    %p220 = scmp.eq.s32.totalorder %s28, 0
    %p221 = por %p219, %p220
    %p222 = scmp.ne.s32.totalorder %s214, %s216
    %p223 = scmp.eq.s32.totalorder %s33, 1
    %p224 = por %p222, %p223
    %p225 = scmp.ne.s32.totalorder %s216, %s217
    %p226 = scmp.eq.s32.totalorder %s33, 0
    %p227 = por %p225, %p226
    %p228 = scmp.ne.s32.totalorder %s216, %s217
    %p229 = scmp.eq.s32.totalorder %s34, 1
    %p230 = por %p228, %p229
    %p232 = scmp.ne.s32.totalorder %s217, %s231
    %p233 = scmp.eq.s32.totalorder %s34, 0
    %p234 = por %p232, %p233
    %s236 = sadd.s32 %s235, 1
    %p239 = scmp.eq.s32.totalorder %s28, 1
    %p240 = scmp.ne.s32.totalorder %s235, %s237
    %p241 = scmp.eq.s32.totalorder %s28, 0
    %p242 = por %p240, %p241
    %p243 = scmp.ne.s32.totalorder %s235, %s237
    %p244 = scmp.eq.s32.totalorder %s33, 1
    %p245 = por %p243, %p244
    %p246 = scmp.ne.s32.totalorder %s237, %s238
    %p247 = scmp.eq.s32.totalorder %s33, 0
    %p248 = por %p246, %p247
    %p249 = scmp.ne.s32.totalorder %s237, %s238
    %p250 = scmp.eq.s32.totalorder %s34, 1
    %p251 = por %p249, %p250
    %p253 = scmp.ne.s32.totalorder %s238, %s252
    %p254 = scmp.eq.s32.totalorder %s34, 0
    %p255 = por %p253, %p254
    %s257 = sadd.s32 %s256, 1
    %p260 = scmp.eq.s32.totalorder %s28, 1
    %p261 = scmp.ne.s32.totalorder %s256, %s258
    %p262 = scmp.eq.s32.totalorder %s28, 0
    %p263 = por %p261, %p262
    %p264 = scmp.ne.s32.totalorder %s256, %s258
    %p265 = scmp.eq.s32.totalorder %s33, 1
    %p266 = por %p264, %p265
    %p267 = scmp.ne.s32.totalorder %s258, %s259
    %p268 = scmp.eq.s32.totalorder %s33, 0
    %p269 = por %p267, %p268
    %p270 = scmp.ne.s32.totalorder %s258, %s259
    %p271 = scmp.eq.s32.totalorder %s34, 1
    %p272 = por %p270, %p271
    %p274 = scmp.ne.s32.totalorder %s259, %s273
    %p275 = scmp.eq.s32.totalorder %s34, 0
    %p276 = por %p274, %p275
    %s278 = sadd.s32 %s277, 1
    %p281 = scmp.eq.s32.totalorder %s28, 1
    %p282 = scmp.ne.s32.totalorder %s277, %s279
    %p283 = scmp.eq.s32.totalorder %s28, 0
    %p284 = por %p282, %p283
    %p285 = scmp.ne.s32.totalorder %s277, %s279
    %p286 = scmp.eq.s32.totalorder %s33, 1
    %p287 = por %p285, %p286
    %p288 = scmp.ne.s32.totalorder %s279, %s280
    %p289 = scmp.eq.s32.totalorder %s33, 0
    %p290 = por %p288, %p289
    %p291 = scmp.ne.s32.totalorder %s279, %s280
    %p292 = scmp.eq.s32.totalorder %s34, 1
    %p293 = por %p291, %p292
    %p295 = scmp.ne.s32.totalorder %s280, %s294
    %p296 = scmp.eq.s32.totalorder %s34, 0
    %p297 = por %p295, %p296
    %s299 = sadd.s32 %s298, 1
    %p302 = scmp.eq.s32.totalorder %s28, 1
    %p303 = scmp.ne.s32.totalorder %s298, %s300
    %p304 = scmp.eq.s32.totalorder %s28, 0
    %p305 = por %p303, %p304
    %p306 = scmp.ne.s32.totalorder %s298, %s300
    %p307 = scmp.eq.s32.totalorder %s33, 1
    %p308 = por %p306, %p307
    %p309 = scmp.ne.s32.totalorder %s300, %s301
    %p310 = scmp.eq.s32.totalorder %s33, 0
    %p311 = por %p309, %p310
    %p312 = scmp.ne.s32.totalorder %s300, %s301
    %p313 = scmp.eq.s32.totalorder %s34, 1
    %p314 = por %p312, %p313
    %p316 = scmp.ne.s32.totalorder %s301, %s315
    %p317 = scmp.eq.s32.totalorder %s34, 0
    %p318 = por %p316, %p317
    %s320 = sadd.s32 %s319, 1
    %p323 = scmp.eq.s32.totalorder %s28, 1
    %p324 = scmp.ne.s32.totalorder %s319, %s321
    %p325 = scmp.eq.s32.totalorder %s28, 0
    %p326 = por %p324, %p325
    %p327 = scmp.ne.s32.totalorder %s319, %s321
    %p328 = scmp.eq.s32.totalorder %s33, 1
    %p329 = por %p327, %p328
    %p330 = scmp.ne.s32.totalorder %s321, %s322
    %p331 = scmp.eq.s32.totalorder %s33, 0
    %p332 = por %p330, %p331
    %p333 = scmp.ne.s32.totalorder %s321, %s322
    %p334 = scmp.eq.s32.totalorder %s34, 1
    %p335 = por %p333, %p334
    %p337 = scmp.ne.s32.totalorder %s322, %s336
    %p338 = scmp.eq.s32.totalorder %s34, 0
    %p339 = por %p337, %p338
    %s341 = sadd.s32 %s340, 1
    %p344 = scmp.eq.s32.totalorder %s28, 1
    %p345 = scmp.ne.s32.totalorder %s340, %s342
    %p346 = scmp.eq.s32.totalorder %s28, 0
    %p347 = por %p345, %p346
    %p348 = scmp.ne.s32.totalorder %s340, %s342
    %p349 = scmp.eq.s32.totalorder %s33, 1
    %p350 = por %p348, %p349
    %p351 = scmp.ne.s32.totalorder %s342, %s343
    %p352 = scmp.eq.s32.totalorder %s33, 0
    %p353 = por %p351, %p352
    %p354 = scmp.ne.s32.totalorder %s342, %s343
    %p355 = scmp.eq.s32.totalorder %s34, 1
    %p356 = por %p354, %p355
    %p358 = scmp.ne.s32.totalorder %s343, %s357
    %p359 = scmp.eq.s32.totalorder %s34, 0
    %p360 = por %p358, %p359
    %s362 = sadd.s32 %s361, 1
    %p365 = scmp.eq.s32.totalorder %s28, 1
    %p366 = scmp.ne.s32.totalorder %s361, %s363
    %p367 = scmp.eq.s32.totalorder %s28, 0
    %p368 = por %p366, %p367
    %p369 = scmp.ne.s32.totalorder %s361, %s363
    %p370 = scmp.eq.s32.totalorder %s33, 1
    %p371 = por %p369, %p370
    %p372 = scmp.ne.s32.totalorder %s363, %s364
    %p373 = scmp.eq.s32.totalorder %s33, 0
    %p374 = por %p372, %p373
    %p375 = scmp.ne.s32.totalorder %s363, %s364
    %p376 = scmp.eq.s32.totalorder %s34, 1
    %p377 = por %p375, %p376
    %p379 = scmp.ne.s32.totalorder %s364, %s378
    %p380 = scmp.eq.s32.totalorder %s34, 0
    %p381 = por %p379, %p380
    %s383 = sadd.s32 %s382, 1
    %p386 = scmp.eq.s32.totalorder %s28, 1
    %p387 = scmp.ne.s32.totalorder %s382, %s384
    %p388 = scmp.eq.s32.totalorder %s28, 0
    %p389 = por %p387, %p388
    %p390 = scmp.ne.s32.totalorder %s382, %s384
    %p391 = scmp.eq.s32.totalorder %s33, 1
    %p392 = por %p390, %p391
    %p393 = scmp.ne.s32.totalorder %s384, %s385
    %p394 = scmp.eq.s32.totalorder %s33, 0
    %p395 = por %p393, %p394
    %p396 = scmp.ne.s32.totalorder %s384, %s385
    %p397 = scmp.eq.s32.totalorder %s34, 1
    %p398 = por %p396, %p397
    %p400 = scmp.ne.s32.totalorder %s385, %s399
    %p401 = scmp.eq.s32.totalorder %s34, 0
    %p402 = por %p400, %p401
    %s404 = sadd.s32 %s403, 1
    %p407 = scmp.eq.s32.totalorder %s28, 1
    %p408 = scmp.ne.s32.totalorder %s403, %s405
    %p409 = scmp.eq.s32.totalorder %s28, 0
    %p410 = por %p408, %p409
    %p411 = scmp.ne.s32.totalorder %s403, %s405
    %p412 = scmp.eq.s32.totalorder %s33, 1
    %p413 = por %p411, %p412
    %p414 = scmp.ne.s32.totalorder %s405, %s406
    %p415 = scmp.eq.s32.totalorder %s33, 0
    %p416 = por %p414, %p415
    %p417 = scmp.ne.s32.totalorder %s405, %s406
    %p418 = scmp.eq.s32.totalorder %s34, 1
    %p419 = por %p417, %p418
    %p421 = scmp.ne.s32.totalorder %s406, %s420
    %p422 = scmp.eq.s32.totalorder %s34, 0
    %p423 = por %p421, %p422
    %s425 = sadd.s32 %s424, 1
    %p428 = scmp.eq.s32.totalorder %s28, 1
    %p429 = scmp.ne.s32.totalorder %s424, %s426
    %p430 = scmp.eq.s32.totalorder %s28, 0
    %p431 = por %p429, %p430
    %p432 = scmp.ne.s32.totalorder %s424, %s426
    %p433 = scmp.eq.s32.totalorder %s33, 1
    %p434 = por %p432, %p433
    %p435 = scmp.ne.s32.totalorder %s426, %s427
    %p436 = scmp.eq.s32.totalorder %s33, 0
    %p437 = por %p435, %p436
    %p438 = scmp.ne.s32.totalorder %s426, %s427
    %p439 = scmp.eq.s32.totalorder %s34, 1
    %p440 = por %p438, %p439
    %p442 = scmp.ne.s32.totalorder %s427, %s441
    %p443 = scmp.eq.s32.totalorder %s34, 0
    %p444 = por %p442, %p443
    %s445 = ssub.s32 %s28, %s35
    %p446 = scmp.eq.s32.totalorder %s445, 0
    %s448 = sadd.s32 %s447, 1
    %s449 = scalar_select %p446, %s447, %s448
    %p452 = pneg %p446
    %p453 = scmp.eq.s32.totalorder %s28, 1
    %p454 = por %p452, %p453
    %p455 = scmp.ne.s32.totalorder %s447, %s450
    %p456 = scmp.eq.s32.totalorder %s28, 0
    %p457 = por %p455, %p456
    %p458 = scmp.ne.s32.totalorder %s447, %s450
    %p459 = scmp.eq.s32.totalorder %s33, 1
    %p460 = por %p458, %p459
    %p461 = scmp.ne.s32.totalorder %s450, %s451
    %p462 = scmp.eq.s32.totalorder %s33, 0
    %p463 = por %p461, %p462
    %p464 = scmp.ne.s32.totalorder %s450, %s451
    %p465 = scmp.eq.s32.totalorder %s34, 1
    %p466 = por %p464, %p465
    %p468 = scmp.ne.s32.totalorder %s451, %s467
    %p469 = scmp.eq.s32.totalorder %s34, 0
    %p470 = por %p468, %p469
    %s471 = ssub.s32 %s28, %s35
    %p472 = scmp.eq.s32.totalorder %s471, 0
    %s474 = sadd.s32 %s473, 1
    %s475 = scalar_select %p472, %s473, %s474
    %p478 = pneg %p472
    %p479 = scmp.eq.s32.totalorder %s28, 1
    %p480 = por %p478, %p479
    %p481 = scmp.ne.s32.totalorder %s473, %s476
    %p482 = scmp.eq.s32.totalorder %s28, 0
    %p483 = por %p481, %p482
    %p484 = scmp.ne.s32.totalorder %s473, %s476
    %p485 = scmp.eq.s32.totalorder %s33, 1
    %p486 = por %p484, %p485
    %p487 = scmp.ne.s32.totalorder %s476, %s477
    %p488 = scmp.eq.s32.totalorder %s33, 0
    %p489 = por %p487, %p488
    %p490 = scmp.ne.s32.totalorder %s476, %s477
    %p491 = scmp.eq.s32.totalorder %s34, 1
    %p492 = por %p490, %p491
    %p494 = scmp.ne.s32.totalorder %s477, %s493
    %p495 = scmp.eq.s32.totalorder %s34, 0
    %p496 = por %p494, %p495
    %s497 = ssub.s32 %s28, %s35
    %p498 = scmp.eq.s32.totalorder %s497, 0
    %s500 = sadd.s32 %s499, 1
    %s501 = scalar_select %p498, %s499, %s500
    %p504 = pneg %p498
    %p505 = scmp.eq.s32.totalorder %s28, 1
    %p506 = por %p504, %p505
    %p507 = scmp.ne.s32.totalorder %s499, %s502
    %p508 = scmp.eq.s32.totalorder %s28, 0
    %p509 = por %p507, %p508
    %p510 = scmp.ne.s32.totalorder %s499, %s502
    %p511 = scmp.eq.s32.totalorder %s33, 1
    %p512 = por %p510, %p511
    %p513 = scmp.ne.s32.totalorder %s502, %s503
    %p514 = scmp.eq.s32.totalorder %s33, 0
    %p515 = por %p513, %p514
    %p516 = scmp.ne.s32.totalorder %s502, %s503
    %p517 = scmp.eq.s32.totalorder %s34, 1
    %p518 = por %p516, %p517
    %p520 = scmp.ne.s32.totalorder %s503, %s519
    %p521 = scmp.eq.s32.totalorder %s34, 0
    %p522 = por %p520, %p521
    %p523 = scmp.le.s32.totalorder 1, %s28
    %p524 = scmp.lt.s32.totalorder %s28, 3
    %p525 = pnand %p523, %p524
    %p526 = pneg %p525
    // Predicated region
    $region9: #{gin_ac_forward.6} parent=5 // pred_check
      _
    $region10: #{gin_ac_forward.6} parent=5 // pred_check_branch
      %528 = sbr.rel (%p525) target = $region12
    $region11: #{gin_ac_forward.6} parent=5 // pred_region
      %s529 = ssub.s32 %s28, 1
      // Predicated region
      $region13: #{gin_ac_forward.6} parent=11 // pred_check
        %p530 = pneg %p101
      $region14: #{gin_ac_forward.6} parent=11 // pred_check_branch
        %532 = sbr.rel (%p530) target = $region16
      $region15: #{gin_ac_forward.6} parent=11 // pred_region
        _
      $region16: #{gin_ac_forward.6} parent=11 // pred_fallthru
        _
      // Predicated region
      $region17: #{gin_ac_forward.6} parent=11 // pred_check
        %p533 = pneg %p122
      $region18: #{gin_ac_forward.6} parent=11 // pred_check_branch
        %535 = sbr.rel (%p533) target = $region20
      $region19: #{gin_ac_forward.6} parent=11 // pred_region
        _
      $region20: #{gin_ac_forward.6} parent=11 // pred_fallthru
        _
      // Predicated region
      $region21: #{gin_ac_forward.6} parent=11 // pred_check
        %p536 = pneg %p143
      $region22: #{gin_ac_forward.6} parent=11 // pred_check_branch
        %538 = sbr.rel (%p536) target = $region24
      $region23: #{gin_ac_forward.6} parent=11 // pred_region
        _
      $region24: #{gin_ac_forward.6} parent=11 // pred_fallthru
        _
      // Predicated region
      $region25: #{gin_ac_forward.6} parent=11 // pred_check
        %p539 = pneg %p164
      $region26: #{gin_ac_forward.6} parent=11 // pred_check_branch
        %541 = sbr.rel (%p539) target = $region28
      $region27: #{gin_ac_forward.6} parent=11 // pred_region
        _
      $region28: #{gin_ac_forward.6} parent=11 // pred_fallthru
        _
      // Predicated region
      $region29: #{gin_ac_forward.6} parent=11 // pred_check
        %p542 = pneg %p185
      $region30: #{gin_ac_forward.6} parent=11 // pred_check_branch
        %544 = sbr.rel (%p542) target = $region32
      $region31: #{gin_ac_forward.6} parent=11 // pred_region
        _
      $region32: #{gin_ac_forward.6} parent=11 // pred_fallthru
        _
      // Predicated region
      $region33: #{gin_ac_forward.6} parent=11 // pred_check
        %p545 = pneg %p206
      $region34: #{gin_ac_forward.6} parent=11 // pred_check_branch
        %547 = sbr.rel (%p545) target = $region36
      $region35: #{gin_ac_forward.6} parent=11 // pred_region
        _
      $region36: #{gin_ac_forward.6} parent=11 // pred_fallthru
        _
      // Predicated region
      $region37: #{gin_ac_forward.6} parent=11 // pred_check
        %p548 = pneg %p227
      $region38: #{gin_ac_forward.6} parent=11 // pred_check_branch
        %550 = sbr.rel (%p548) target = $region40
      $region39: #{gin_ac_forward.6} parent=11 // pred_region
        _
      $region40: #{gin_ac_forward.6} parent=11 // pred_fallthru
        _
      // Predicated region
      $region41: #{gin_ac_forward.6} parent=11 // pred_check
        %p551 = pneg %p248
      $region42: #{gin_ac_forward.6} parent=11 // pred_check_branch
        %553 = sbr.rel (%p551) target = $region44
      $region43: #{gin_ac_forward.6} parent=11 // pred_region
        _
      $region44: #{gin_ac_forward.6} parent=11 // pred_fallthru
        _
      // Predicated region
      $region45: #{gin_ac_forward.6} parent=11 // pred_check
        %p554 = pneg %p269
      $region46: #{gin_ac_forward.6} parent=11 // pred_check_branch
        %556 = sbr.rel (%p554) target = $region48
      $region47: #{gin_ac_forward.6} parent=11 // pred_region
        _
      $region48: #{gin_ac_forward.6} parent=11 // pred_fallthru
        _
      // Predicated region
      $region49: #{gin_ac_forward.6} parent=11 // pred_check
        %p557 = pneg %p290
      $region50: #{gin_ac_forward.6} parent=11 // pred_check_branch
        %559 = sbr.rel (%p557) target = $region52
      $region51: #{gin_ac_forward.6} parent=11 // pred_region
        _
      $region52: #{gin_ac_forward.6} parent=11 // pred_fallthru
        _
      // Predicated region
      $region53: #{gin_ac_forward.6} parent=11 // pred_check
        %p560 = pneg %p311
      $region54: #{gin_ac_forward.6} parent=11 // pred_check_branch
        %562 = sbr.rel (%p560) target = $region56
      $region55: #{gin_ac_forward.6} parent=11 // pred_region
        _
      $region56: #{gin_ac_forward.6} parent=11 // pred_fallthru
        _
      // Predicated region
      $region57: #{gin_ac_forward.6} parent=11 // pred_check
        %p563 = pneg %p332
      $region58: #{gin_ac_forward.6} parent=11 // pred_check_branch
        %565 = sbr.rel (%p563) target = $region60
      $region59: #{gin_ac_forward.6} parent=11 // pred_region
        _
      $region60: #{gin_ac_forward.6} parent=11 // pred_fallthru
        _
      // Predicated region
      $region61: #{gin_ac_forward.6} parent=11 // pred_check
        %p566 = pneg %p353
      $region62: #{gin_ac_forward.6} parent=11 // pred_check_branch
        %568 = sbr.rel (%p566) target = $region64
      $region63: #{gin_ac_forward.6} parent=11 // pred_region
        _
      $region64: #{gin_ac_forward.6} parent=11 // pred_fallthru
        _
      // Predicated region
      $region65: #{gin_ac_forward.6} parent=11 // pred_check
        %p569 = pneg %p374
      $region66: #{gin_ac_forward.6} parent=11 // pred_check_branch
        %571 = sbr.rel (%p569) target = $region68
      $region67: #{gin_ac_forward.6} parent=11 // pred_region
        _
      $region68: #{gin_ac_forward.6} parent=11 // pred_fallthru
        _
      // Predicated region
      $region69: #{gin_ac_forward.6} parent=11 // pred_check
        %p572 = pneg %p395
      $region70: #{gin_ac_forward.6} parent=11 // pred_check_branch
        %574 = sbr.rel (%p572) target = $region72
      $region71: #{gin_ac_forward.6} parent=11 // pred_region
        _
      $region72: #{gin_ac_forward.6} parent=11 // pred_fallthru
        _
      // Predicated region
      $region73: #{gin_ac_forward.6} parent=11 // pred_check
        %p575 = pneg %p416
      $region74: #{gin_ac_forward.6} parent=11 // pred_check_branch
        %577 = sbr.rel (%p575) target = $region76
      $region75: #{gin_ac_forward.6} parent=11 // pred_region
        _
      $region76: #{gin_ac_forward.6} parent=11 // pred_fallthru
        _
      // Predicated region
      $region77: #{gin_ac_forward.6} parent=11 // pred_check
        %p578 = pneg %p437
      $region78: #{gin_ac_forward.6} parent=11 // pred_check_branch
        %580 = sbr.rel (%p578) target = $region80
      $region79: #{gin_ac_forward.6} parent=11 // pred_region
        _
      $region80: #{gin_ac_forward.6} parent=11 // pred_fallthru
        _
    $region12: #{gin_ac_forward.6} parent=5 // pred_fallthru
      _
    %p581 = scmp.lt.s32.totalorder %s28, 2
    // Predicated region
    $region81: #{gin_ac_forward.6} parent=5 // pred_check
      %p582 = pneg %p581
    $region82: #{gin_ac_forward.6} parent=5 // pred_check_branch
      %584 = sbr.rel (%p582) target = $region84
    $region83: #{gin_ac_forward.6} parent=5 // pred_region
      // Predicated region
      $region85: #{gin_ac_forward.6} parent=83 // pred_check
        %p585 = pneg %p48
      $region86: #{gin_ac_forward.6} parent=83 // pred_check_branch
        %587 = sbr.rel (%p585) target = $region88
      $region87: #{gin_ac_forward.6} parent=83 // pred_region
        %p588 = scmp.lt.s32.totalorder %s28, 1
        %s589 = scalar_select %p588, %s28, 1
        %s590 = smul.addr %s589, 8
        %s591 = scalar_lea.vmem %s0, %s590
      $region88: #{gin_ac_forward.6} parent=83 // pred_fallthru
        _
      // Predicated region
      $region89: #{gin_ac_forward.6} parent=83 // pred_check
        %p592 = pneg %p74
      $region90: #{gin_ac_forward.6} parent=83 // pred_check_branch
        %594 = sbr.rel (%p592) target = $region92
      $region91: #{gin_ac_forward.6} parent=83 // pred_region
        %p595 = scmp.lt.s32.totalorder %s28, 1
        %s596 = scalar_select %p595, %s28, 1
        %s597 = smul.addr %s596, 8
        %s598 = scalar_lea.vmem %s1, %s597
      $region92: #{gin_ac_forward.6} parent=83 // pred_fallthru
        _
    $region84: #{gin_ac_forward.6} parent=5 // pred_fallthru
      _
    %p599 = scmp.le.s32.totalorder 1, %s28
    %p600 = scmp.lt.s32.totalorder %s28, 3
    %p601 = pnand %p599, %p600
    %p602 = pneg %p601
    // Predicated region
    $region93: #{gin_ac_forward.6} parent=5 // pred_check
      _
    $region94: #{gin_ac_forward.6} parent=5 // pred_check_branch
      %604 = sbr.rel (%p601) target = $region96
    $region95: #{gin_ac_forward.6} parent=5 // pred_region
      %s605 = ssub.s32 %s28, 1
      %p606 = scmp.lt.s32.totalorder %s33, 1
      %s607 = scalar_select %p606, %s33, 1
      %s608 = smul.addr %s607, 8
      %s609 = scalar_lea.vmem %s0, %s608
      %p610 = pneg %p54
      %p611 = pneg %p51
      %p612 = scmp.lt.s32.totalorder %s33, 1
      %s613 = scalar_select %p612, %s33, 1
      %s614 = smul.addr %s613, 8
      %s615 = scalar_lea.vmem %s1, %s614
      %p616 = pneg %p80
      %p617 = pneg %p77
      %p618 = pneg %p101
      %p619 = pneg %p98
      %p620 = pneg %p122
      %p621 = pneg %p119
      %p622 = pneg %p143
      %p623 = pneg %p140
      %p624 = pneg %p164
      %p625 = pneg %p161
      %p626 = pneg %p185
      %p627 = pneg %p182
      %p628 = pneg %p206
      %p629 = pneg %p203
      %p630 = pneg %p227
      %p631 = pneg %p224
      %p632 = pneg %p248
      %p633 = pneg %p245
      %p634 = pneg %p269
      %p635 = pneg %p266
      %p636 = pneg %p290
      %p637 = pneg %p287
      %p638 = pneg %p311
      %p639 = pneg %p308
      %p640 = pneg %p332
      %p641 = pneg %p329
      %p642 = pneg %p353
      %p643 = pneg %p350
      %p644 = pneg %p374
      %p645 = pneg %p371
      %p646 = pneg %p395
      %p647 = pneg %p392
      %p648 = pneg %p416
      %p649 = pneg %p413
      %p650 = pneg %p437
      %p651 = pneg %p434
      %p652 = pneg %p463
      %p653 = pneg %p460
      %p654 = scmp.lt.s32.totalorder %s33, 1
      %s655 = scalar_select %p654, %s33, 1
      %s656 = smul.addr %s655, 8
      %s657 = scalar_lea.vmem %s19, %s656
      %p658 = pneg %p489
      %p659 = pneg %p486
      %p660 = scmp.lt.s32.totalorder %s33, 1
      %s661 = scalar_select %p660, %s33, 1
      %s662 = scalar_lea.vmem %s20, %s661
      %p663 = pneg %p515
      %p664 = pneg %p512
      %p665 = scmp.lt.s32.totalorder %s33, 1
      %s666 = scalar_select %p665, %s33, 1
      %s667 = scalar_lea.vmem %s21, %s666
      %p668 = scmp.lt.s32.totalorder %s33, 1
      %s669 = scalar_select %p668, %s33, 1
      %s670 = smul.addr %s669, 8
      %s671 = scalar_lea.vmem %s0, %s670
      %p672 = scmp.lt.s32.totalorder %s33, 1
      %s673 = scalar_select %p672, %s33, 1
      %s674 = smul.addr %s673, 8
      %s675 = scalar_lea.vmem %s1, %s674
      %p676 = scmp.lt.s32.totalorder %s33, 1
      %s677 = scalar_select %p676, %s33, 1
      %s678 = smul.addr %s677, 8
      %s679 = scalar_lea.vmem %s19, %s678
      %p680 = scmp.lt.s32.totalorder %s33, 1
      %s681 = scalar_select %p680, %s33, 1
      %s682 = scalar_lea.vmem %s20, %s681
      %p683 = scmp.lt.s32.totalorder %s33, 1
      %s684 = scalar_select %p683, %s33, 1
      %s685 = scalar_lea.vmem %s21, %s684
      %v687 = vld [vmem:[%s671] sm:$0xff]
      %vm688 = vcmp.gt.f32.partialorder %v687, 0.0
      %v689 = vmin.f32 %v687, 0.0
      %v690 = vmul.f32 %v689, 1.442695
      %v691 = vpow.pop %v690
      %v692 = vsub.f32 %v691, 1.0
      %v693 = vsel %vm688, %v687, %v692
      %v694 = vld [vmem:[%s675] sm:$0xff]
      %v695 = vld [vmem:[%s2] sm:$0xff]
      %v696 = vld [vmem:[%s2 + $0x8] sm:$0xff]
      %v697 = vld [vmem:[%s2 + $0x10] sm:$0xff]
      %v698 = vld [vmem:[%s2 + $0x18] sm:$0xff]
      %v699 = vld [vmem:[%s2 + $0x20] sm:$0xff]
      %v700 = vld [vmem:[%s2 + $0x28] sm:$0xff]
      %v701 = vld [vmem:[%s2 + $0x30] sm:$0xff]
      %v702 = vld [vmem:[%s2 + $0x38] sm:$0xff]
      %v703 = vld [vmem:[%s2 + $0x40] sm:$0xff]
      %v704 = vld [vmem:[%s2 + $0x48] sm:$0xff]
      %v705 = vld [vmem:[%s2 + $0x50] sm:$0xff]
      %v706 = vld [vmem:[%s2 + $0x58] sm:$0xff]
      %v707 = vld [vmem:[%s2 + $0x60] sm:$0xff]
      %v708 = vld [vmem:[%s2 + $0x68] sm:$0xff]
      %v709 = vld [vmem:[%s2 + $0x70] sm:$0xff]
      %v710 = vld [vmem:[%s2 + $0x78] sm:$0xff]
      %v711 = vld [vmem:[%s3] sm:$0x1]
      %v712 = vld [vmem:[%s4] sm:$0xff]
      %v713 = vld [vmem:[%s4 + $0x8] sm:$0xff]
      %v714 = vld [vmem:[%s4 + $0x10] sm:$0xff]
      %v715 = vld [vmem:[%s4 + $0x18] sm:$0xff]
      %v716 = vld [vmem:[%s4 + $0x20] sm:$0xff]
      %v717 = vld [vmem:[%s4 + $0x28] sm:$0xff]
      %v718 = vld [vmem:[%s4 + $0x30] sm:$0xff]
      %v719 = vld [vmem:[%s4 + $0x38] sm:$0xff]
      %v720 = vld [vmem:[%s4 + $0x40] sm:$0xff]
      %v721 = vld [vmem:[%s4 + $0x48] sm:$0xff]
      %v722 = vld [vmem:[%s4 + $0x50] sm:$0xff]
      %v723 = vld [vmem:[%s4 + $0x58] sm:$0xff]
      %v724 = vld [vmem:[%s4 + $0x60] sm:$0xff]
      %v725 = vld [vmem:[%s4 + $0x68] sm:$0xff]
      %v726 = vld [vmem:[%s4 + $0x70] sm:$0xff]
      %v727 = vld [vmem:[%s4 + $0x78] sm:$0xff]
      %vm728 = vcmask 261120
      %v730 = vsel %vm728, %v693, 0
      %v733 = vsel %vm728, %v695, 0
      %v736 = vsel %vm728, %v696, 0
      %v739 = vsel %vm728, %v697, 0
      %v742 = vsel %vm728, %v698, 0
      %v745 = vsel %vm728, %v699, 0
      %v748 = vsel %vm728, %v700, 0
      %v751 = vsel %vm728, %v701, 0
      %v754 = vsel %vm728, %v702, 0
      %v757 = vsel %vm728, %v703, 0
      %v760 = vsel %vm728, %v704, 0
      %v763 = vsel %vm728, %v705, 0
      %v766 = vsel %vm728, %v706, 0
      %v769 = vsel %vm728, %v707, 0
      %v772 = vsel %vm728, %v708, 0
      %v775 = vsel %vm728, %v709, 0
      %v778 = vsel %vm728, %v710, 0
      %780 = vmatprep.subr.mxu0 0.0
      %781 = vmatpush1.xpose.msra.mxu0 %v733
      %782 = vmatprep.subr.mxu0 0.0
      %783 = vmatpush1.xpose.msra.mxu0 %v736
      %784 = vmatprep.subr.mxu0 0.0
      %785 = vmatpush1.xpose.msra.mxu0 %v739
      %786 = vmatprep.subr.mxu0 0.0
      %787 = vmatpush1.xpose.msra.mxu0 %v742
      %788 = vmatprep.subr.mxu0 0.0
      %789 = vmatpush1.xpose.msra.mxu0 %v745
      %790 = vmatprep.subr.mxu0 0.0
      %791 = vmatpush1.xpose.msra.mxu0 %v748
      %792 = vmatprep.subr.mxu0 0.0
      %793 = vmatpush1.xpose.msra.mxu0 %v751
      %794 = vmatprep.subr.mxu0 0.0
      %795 = vmatpush1.xpose.msra.mxu0 %v754
      %796 = vmatprep.subr.mxu0 0.0
      %797 = vmatpush1.xpose.msra.mxu0 %v757
      %798 = vmatprep.subr.mxu0 0.0
      %799 = vmatpush1.xpose.msra.mxu0 %v760
      %800 = vmatprep.subr.mxu0 0.0
      %801 = vmatpush1.xpose.msra.mxu0 %v763
      %802 = vmatprep.subr.mxu0 0.0
      %803 = vmatpush1.xpose.msra.mxu0 %v766
      %804 = vmatprep.subr.mxu0 0.0
      %805 = vmatpush1.xpose.msra.mxu0 %v769
      %806 = vmatprep.subr.mxu0 0.0
      %807 = vmatpush1.xpose.msra.mxu0 %v772
      %808 = vmatprep.subr.mxu0 0.0
      %809 = vmatpush1.xpose.msra.mxu0 %v775
      %810 = vmatprep.subr.mxu0 0.0
      %811 = vmatpush1.xpose.msra.mxu0 %v778
      %812 = vmatprep.subr.mxu0 0.0
      %813 = vmatpush1.xpose.msra.mxu0 0.0
      %814 = vmatprep.subr.mxu0 0.0
      %815 = vmatpush1.xpose.msra.mxu0 0.0
      %816 = vmatprep.subr.mxu0 0.0
      %817 = vmatpush1.xpose.msra.mxu0 0.0
      %818 = vmatprep.subr.mxu0 0.0
      %819 = vmatpush1.xpose.msra.mxu0 0.0
      %820 = vmatprep.subr.mxu0 0.0
      %821 = vmatpush1.xpose.msra.mxu0 0.0
      %822 = vmatprep.subr.mxu0 0.0
      %823 = vmatpush1.xpose.msra.mxu0 0.0
      %824 = vmatprep.subr.mxu0 0.0
      %825 = vmatpush1.xpose.msra.mxu0 0.0
      %826 = vmatprep.subr.mxu0 0.0
      %827 = vmatpush1.xpose.msra.mxu0 0.0
      %828 = vmatprep.subr.mxu0 0.0
      %829 = vmatpush1.xpose.msra.mxu0 0.0
      %830 = vmatprep.subr.mxu0 0.0
      %831 = vmatpush1.xpose.msra.mxu0 0.0
      %832 = vmatprep.subr.mxu0 0.0
      %833 = vmatpush1.xpose.msra.mxu0 0.0
      %834 = vmatprep.subr.mxu0 0.0
      %835 = vmatpush1.xpose.msra.mxu0 0.0
      %836 = vmatprep.subr.mxu0 0.0
      %837 = vmatpush1.xpose.msra.mxu0 0.0
      %838 = vmatprep.subr.mxu0 0.0
      %839 = vmatpush1.xpose.msra.mxu0 0.0
      %840 = vmatprep.subr.mxu0 0.0
      %841 = vmatpush1.xpose.msra.mxu0 0.0
      %842 = vmatprep.subr.mxu0 0.0
      %843 = vmatpush1.xpose.msra.mxu0 0.0
      %844 = vmatprep.mubr.f32.mxu0 0.0
      %845 = vmatmul.mubr.f32.gmra.mrb[0].mxu0 %v730
      %v846 = vpop.f32.mrb[0].mxu0
      %v847 = vadd.f32 0.0, %v846
      %v848 = vpop.f32.mrb[0].mxu0
      %849 = vdwg.mxu0
      %v850 = vxor.u32 %v847, 2147483648
      %v851 = vmul.f32 %v850, 1.442695
      %v852 = vpow.pop %v851
      %v853 = vadd.f32 %v852, 1.0
      %v854 = vrcp.pop %v853
      %v855 = vmul.f32 1.0, %v854
      %857 = vset.pattern.permute.xlu0 0
      %858 = vperm.xlu0 %857, %v694
      %v859 = vpop.permute.xlu0 %858
      %v862 = vlaneseq
      %v863 = vshrl.u32 %v862, 7
      %v864 = vsub.s32 0, %v863
      %v865 = vrot.slane %v711, %v864
      %v867 = vmul.f32 %v859, %v865
      %v868 = vmul.f32 %v855, %v867
      %869 = vst [vmem:[%s679] sm:$0xff] %v868
      %v870 = vpack.c.bf16 %v868, %v868
      %v871 = vmul.f32 %v693, %v859
      %v872 = vsel %vm728, %v871, 0.0
      %v873 = vrot.slane %v872, 4
      %v874 = vadd.f32 %v872, %v873
      %v875 = vrot.slane %v874, 2
      %v876 = vadd.f32 %v874, %v875
      %v877 = vrot.slane %v876, 1
      %v878 = vadd.f32 %v876, %v877
      %vm879 = vcmask 7168
      %v880 = vsel %vm879, %v694, 0.0
      %v881 = vrot.slane %v880, 4
      %v882 = vadd.f32 %v880, %v881
      %v883 = vrot.slane %v882, 2
      %v884 = vadd.f32 %v882, %v883
      %v885 = vrot.slane %v884, 1
      %v886 = vadd.f32 %v884, %v885
      %888 = vset.pattern.permute.xlu0 0
      %889 = vperm.xlu0 %888, %v886
      %v890 = vpop.permute.xlu0 %889
      %v892 = vrcp.pop %v890
      %v893 = vmul.f32 %v878, %v892
      %895 = vset.pattern.permute.xlu0 0
      %896 = vperm.xlu0 %895, %v712
      %v897 = vpop.permute.xlu0 %896
      %900 = vset.pattern.permute.xlu0 0
      %901 = vperm.xlu0 %900, %v713
      %v902 = vpop.permute.xlu0 %901
      %905 = vset.pattern.permute.xlu0 0
      %906 = vperm.xlu0 %905, %v714
      %v907 = vpop.permute.xlu0 %906
      %910 = vset.pattern.permute.xlu0 0
      %911 = vperm.xlu0 %910, %v715
      %v912 = vpop.permute.xlu0 %911
      %915 = vset.pattern.permute.xlu0 0
      %916 = vperm.xlu0 %915, %v716
      %v917 = vpop.permute.xlu0 %916
      %920 = vset.pattern.permute.xlu0 0
      %921 = vperm.xlu0 %920, %v717
      %v922 = vpop.permute.xlu0 %921
      %925 = vset.pattern.permute.xlu0 0
      %926 = vperm.xlu0 %925, %v718
      %v927 = vpop.permute.xlu0 %926
      %930 = vset.pattern.permute.xlu0 0
      %931 = vperm.xlu0 %930, %v719
      %v932 = vpop.permute.xlu0 %931
      %935 = vset.pattern.permute.xlu0 0
      %936 = vperm.xlu0 %935, %v720
      %v937 = vpop.permute.xlu0 %936
      %940 = vset.pattern.permute.xlu0 0
      %941 = vperm.xlu0 %940, %v721
      %v942 = vpop.permute.xlu0 %941
      %945 = vset.pattern.permute.xlu0 0
      %946 = vperm.xlu0 %945, %v722
      %v947 = vpop.permute.xlu0 %946
      %950 = vset.pattern.permute.xlu0 0
      %951 = vperm.xlu0 %950, %v723
      %v952 = vpop.permute.xlu0 %951
      %955 = vset.pattern.permute.xlu0 0
      %956 = vperm.xlu0 %955, %v724
      %v957 = vpop.permute.xlu0 %956
      %960 = vset.pattern.permute.xlu0 0
      %961 = vperm.xlu0 %960, %v725
      %v962 = vpop.permute.xlu0 %961
      %965 = vset.pattern.permute.xlu0 0
      %966 = vperm.xlu0 %965, %v726
      %v967 = vpop.permute.xlu0 %966
      %970 = vset.pattern.permute.xlu0 0
      %971 = vperm.xlu0 %970, %v727
      %v972 = vpop.permute.xlu0 %971
      %v974 = vmul.f32 %v695, %v897
      %v975 = vmul.f32 %v696, %v902
      %v976 = vmul.f32 %v697, %v907
      %v977 = vmul.f32 %v698, %v912
      %v978 = vmul.f32 %v699, %v917
      %v979 = vmul.f32 %v700, %v922
      %v980 = vmul.f32 %v701, %v927
      %v981 = vmul.f32 %v702, %v932
      %v982 = vmul.f32 %v703, %v937
      %v983 = vmul.f32 %v704, %v942
      %v984 = vmul.f32 %v705, %v947
      %v985 = vmul.f32 %v706, %v952
      %v986 = vmul.f32 %v707, %v957
      %v987 = vmul.f32 %v708, %v962
      %v988 = vmul.f32 %v709, %v967
      %v989 = vmul.f32 %v710, %v972
      %v990 = vsel %vm728, %v974, 0.0
      %v991 = vsel %vm728, %v975, 0.0
      %v992 = vadd.f32 %v990, %v991
      %v993 = vsel %vm728, %v976, 0.0
      %v994 = vadd.f32 %v992, %v993
      %v995 = vsel %vm728, %v977, 0.0
      %v996 = vadd.f32 %v994, %v995
      %v997 = vsel %vm728, %v978, 0.0
      %v998 = vadd.f32 %v996, %v997
      %v999 = vsel %vm728, %v979, 0.0
      %v1000 = vadd.f32 %v998, %v999
      %v1001 = vsel %vm728, %v980, 0.0
      %v1002 = vadd.f32 %v1000, %v1001
      %v1003 = vsel %vm728, %v981, 0.0
      %v1004 = vadd.f32 %v1002, %v1003
      %v1005 = vsel %vm728, %v982, 0.0
      %v1006 = vadd.f32 %v1004, %v1005
      %v1007 = vsel %vm728, %v983, 0.0
      %v1008 = vadd.f32 %v1006, %v1007
      %v1009 = vsel %vm728, %v984, 0.0
      %v1010 = vadd.f32 %v1008, %v1009
      %v1011 = vsel %vm728, %v985, 0.0
      %v1012 = vadd.f32 %v1010, %v1011
      %v1013 = vsel %vm728, %v986, 0.0
      %v1014 = vadd.f32 %v1012, %v1013
      %v1015 = vsel %vm728, %v987, 0.0
      %v1016 = vadd.f32 %v1014, %v1015
      %v1017 = vsel %vm728, %v988, 0.0
      %v1018 = vadd.f32 %v1016, %v1017
      %v1019 = vsel %vm728, %v989, 0.0
      %v1020 = vadd.f32 %v1018, %v1019
      %v1021 = vrot.slane %v1020, 4
      %v1022 = vadd.f32 %v1020, %v1021
      %v1023 = vrot.slane %v1022, 2
      %v1024 = vadd.f32 %v1022, %v1023
      %v1025 = vrot.slane %v1024, 1
      %v1026 = vadd.f32 %v1024, %v1025
      %v1027 = vsel %vm879, %v712, 0.0
      %v1028 = vsel %vm879, %v713, 0.0
      %v1029 = vadd.f32 %v1027, %v1028
      %v1030 = vsel %vm879, %v714, 0.0
      %v1031 = vadd.f32 %v1029, %v1030
      %v1032 = vsel %vm879, %v715, 0.0
      %v1033 = vadd.f32 %v1031, %v1032
      %v1034 = vsel %vm879, %v716, 0.0
      %v1035 = vadd.f32 %v1033, %v1034
      %v1036 = vsel %vm879, %v717, 0.0
      %v1037 = vadd.f32 %v1035, %v1036
      %v1038 = vsel %vm879, %v718, 0.0
      %v1039 = vadd.f32 %v1037, %v1038
      %v1040 = vsel %vm879, %v719, 0.0
      %v1041 = vadd.f32 %v1039, %v1040
      %v1042 = vsel %vm879, %v720, 0.0
      %v1043 = vadd.f32 %v1041, %v1042
      %v1044 = vsel %vm879, %v721, 0.0
      %v1045 = vadd.f32 %v1043, %v1044
      %v1046 = vsel %vm879, %v722, 0.0
      %v1047 = vadd.f32 %v1045, %v1046
      %v1048 = vsel %vm879, %v723, 0.0
      %v1049 = vadd.f32 %v1047, %v1048
      %v1050 = vsel %vm879, %v724, 0.0
      %v1051 = vadd.f32 %v1049, %v1050
      %v1052 = vsel %vm879, %v725, 0.0
      %v1053 = vadd.f32 %v1051, %v1052
      %v1054 = vsel %vm879, %v726, 0.0
      %v1055 = vadd.f32 %v1053, %v1054
      %v1056 = vsel %vm879, %v727, 0.0
      %v1057 = vadd.f32 %v1055, %v1056
      %v1058 = vrot.slane %v1057, 4
      %v1059 = vadd.f32 %v1057, %v1058
      %v1060 = vrot.slane %v1059, 2
      %v1061 = vadd.f32 %v1059, %v1060
      %v1062 = vrot.slane %v1061, 1
      %v1063 = vadd.f32 %v1061, %v1062
      %1065 = vset.pattern.permute.xlu0 0
      %1066 = vperm.xlu0 %1065, %v1063
      %v1067 = vpop.permute.xlu0 %1066
      %v1069 = vrcp.pop %v1067
      %v1070 = vmul.f32 %v1026, %v1069
      %v1071 = vmul.f32 %v893, %v1070
      %v1072 = vld [vmem:[%s5] sm:$0xff]
      %v1073 = vld [vmem:[%s5 + $0x8] sm:$0xff]
      %v1074 = vld [vmem:[%s5 + $0x10] sm:$0xff]
      %v1075 = vld [vmem:[%s5 + $0x18] sm:$0xff]
      %v1076 = vld [vmem:[%s6] sm:$0x1]
      %v1078 = vlaneseq
      %v1079 = vshrl.u32 %v1078, 7
      %v1080 = vsub.s32 0, %v1079
      %v1081 = vrot.slane %v1076, %v1080
      %1083 = vmatprep.subr.mxu0 0.0
      %1084 = vmatpush1.msra.mxu0 %v1072
      %1085 = vmatprep.subr.mxu0 0.0
      %1086 = vmatpush1.msra.mxu0 %v1073
      %1087 = vmatprep.subr.mxu0 0.0
      %1088 = vmatpush1.msra.mxu0 %v1074
      %1089 = vmatprep.subr.mxu0 0.0
      %1090 = vmatpush1.msra.mxu0 %v1075
      %1091 = vmatprep.subr.mxu0 0.0
      %1092 = vmatpush1.msra.mxu0 0.0
      %1093 = vmatprep.subr.mxu0 0.0
      %1094 = vmatpush1.msra.mxu0 0.0
      %1095 = vmatprep.subr.mxu0 0.0
      %1096 = vmatpush1.msra.mxu0 0.0
      %1097 = vmatprep.subr.mxu0 0.0
      %1098 = vmatpush1.msra.mxu0 0.0
      %1099 = vmatprep.subr.mxu0 0.0
      %1100 = vmatpush1.msra.mxu0 0.0
      %1101 = vmatprep.subr.mxu0 0.0
      %1102 = vmatpush1.msra.mxu0 0.0
      %1103 = vmatprep.subr.mxu0 0.0
      %1104 = vmatpush1.msra.mxu0 0.0
      %1105 = vmatprep.subr.mxu0 0.0
      %1106 = vmatpush1.msra.mxu0 0.0
      %1107 = vmatprep.subr.mxu0 0.0
      %1108 = vmatpush1.msra.mxu0 0.0
      %1109 = vmatprep.subr.mxu0 0.0
      %1110 = vmatpush1.msra.mxu0 0.0
      %1111 = vmatprep.subr.mxu0 0.0
      %1112 = vmatpush1.msra.mxu0 0.0
      %1113 = vmatprep.subr.mxu0 0.0
      %1114 = vmatpush1.msra.mxu0 0.0
      %1115 = vmatprep.subr.mxu0 0.0
      %1116 = vmatpush1.msra.mxu0 0.0
      %1117 = vmatprep.subr.mxu0 0.0
      %1118 = vmatpush1.msra.mxu0 0.0
      %1119 = vmatprep.subr.mxu0 0.0
      %1120 = vmatpush1.msra.mxu0 0.0
      %1121 = vmatprep.subr.mxu0 0.0
      %1122 = vmatpush1.msra.mxu0 0.0
      %1123 = vmatprep.subr.mxu0 0.0
      %1124 = vmatpush1.msra.mxu0 0.0
      %1125 = vmatprep.subr.mxu0 0.0
      %1126 = vmatpush1.msra.mxu0 0.0
      %1127 = vmatprep.subr.mxu0 0.0
      %1128 = vmatpush1.msra.mxu0 0.0
      %1129 = vmatprep.subr.mxu0 0.0
      %1130 = vmatpush1.msra.mxu0 0.0
      %1131 = vmatprep.subr.mxu0 0.0
      %1132 = vmatpush1.msra.mxu0 0.0
      %1133 = vmatprep.subr.mxu0 0.0
      %1134 = vmatpush1.msra.mxu0 0.0
      %1135 = vmatprep.subr.mxu0 0.0
      %1136 = vmatpush1.msra.mxu0 0.0
      %1137 = vmatprep.subr.mxu0 0.0
      %1138 = vmatpush1.msra.mxu0 0.0
      %1139 = vmatprep.subr.mxu0 0.0
      %1140 = vmatpush1.msra.mxu0 0.0
      %1141 = vmatprep.subr.mxu0 0.0
      %1142 = vmatpush1.msra.mxu0 0.0
      %1143 = vmatprep.subr.mxu0 0.0
      %1144 = vmatpush1.msra.mxu0 0.0
      %1145 = vmatprep.subr.mxu0 0.0
      %1146 = vmatpush1.msra.mxu0 0.0
      %1147 = vmatprep.mubr.f32.mxu0 0.0
      %1148 = vmatmul.mubr.f32.gmra.mrb[0].mxu0 %v730
      %v1149 = vpop.f32.mrb[0].mxu0
      %v1150 = vadd.f32 %v1081, %v1149
      %v1151 = vpop.f32.mrb[0].mxu0
      %1152 = vdwg.mxu0
      %v1153 = vtanh.pop %v1150
      %v1154 = vld [vmem:[%s7] sm:$0xff]
      %v1155 = vld [vmem:[%s7 + $0x8] sm:$0xff]
      %v1156 = vld [vmem:[%s7 + $0x10] sm:$0xff]
      %v1157 = vld [vmem:[%s7 + $0x18] sm:$0xff]
      %v1158 = vld [vmem:[%s8] sm:$0x1]
      %v1160 = vlaneseq
      %v1161 = vshrl.u32 %v1160, 7
      %v1162 = vsub.s32 0, %v1161
      %v1163 = vrot.slane %v1158, %v1162
      %1165 = vmatprep.subr.mxu0 0.0
      %1166 = vmatpush1.msra.mxu0 %v1154
      %1167 = vmatprep.subr.mxu0 0.0
      %1168 = vmatpush1.msra.mxu0 %v1155
      %1169 = vmatprep.subr.mxu0 0.0
      %1170 = vmatpush1.msra.mxu0 %v1156
      %1171 = vmatprep.subr.mxu0 0.0
      %1172 = vmatpush1.msra.mxu0 %v1157
      %1173 = vmatprep.subr.mxu0 0.0
      %1174 = vmatpush1.msra.mxu0 0.0
      %1175 = vmatprep.subr.mxu0 0.0
      %1176 = vmatpush1.msra.mxu0 0.0
      %1177 = vmatprep.subr.mxu0 0.0
      %1178 = vmatpush1.msra.mxu0 0.0
      %1179 = vmatprep.subr.mxu0 0.0
      %1180 = vmatpush1.msra.mxu0 0.0
      %1181 = vmatprep.subr.mxu0 0.0
      %1182 = vmatpush1.msra.mxu0 0.0
      %1183 = vmatprep.subr.mxu0 0.0
      %1184 = vmatpush1.msra.mxu0 0.0
      %1185 = vmatprep.subr.mxu0 0.0
      %1186 = vmatpush1.msra.mxu0 0.0
      %1187 = vmatprep.subr.mxu0 0.0
      %1188 = vmatpush1.msra.mxu0 0.0
      %1189 = vmatprep.subr.mxu0 0.0
      %1190 = vmatpush1.msra.mxu0 0.0
      %1191 = vmatprep.subr.mxu0 0.0
      %1192 = vmatpush1.msra.mxu0 0.0
      %1193 = vmatprep.subr.mxu0 0.0
      %1194 = vmatpush1.msra.mxu0 0.0
      %1195 = vmatprep.subr.mxu0 0.0
      %1196 = vmatpush1.msra.mxu0 0.0
      %1197 = vmatprep.subr.mxu0 0.0
      %1198 = vmatpush1.msra.mxu0 0.0
      %1199 = vmatprep.subr.mxu0 0.0
      %1200 = vmatpush1.msra.mxu0 0.0
      %1201 = vmatprep.subr.mxu0 0.0
      %1202 = vmatpush1.msra.mxu0 0.0
      %1203 = vmatprep.subr.mxu0 0.0
      %1204 = vmatpush1.msra.mxu0 0.0
      %1205 = vmatprep.subr.mxu0 0.0
      %1206 = vmatpush1.msra.mxu0 0.0
      %1207 = vmatprep.subr.mxu0 0.0
      %1208 = vmatpush1.msra.mxu0 0.0
      %1209 = vmatprep.subr.mxu0 0.0
      %1210 = vmatpush1.msra.mxu0 0.0
      %1211 = vmatprep.subr.mxu0 0.0
      %1212 = vmatpush1.msra.mxu0 0.0
      %1213 = vmatprep.subr.mxu0 0.0
      %1214 = vmatpush1.msra.mxu0 0.0
      %1215 = vmatprep.subr.mxu0 0.0
      %1216 = vmatpush1.msra.mxu0 0.0
      %1217 = vmatprep.subr.mxu0 0.0
      %1218 = vmatpush1.msra.mxu0 0.0
      %1219 = vmatprep.subr.mxu0 0.0
      %1220 = vmatpush1.msra.mxu0 0.0
      %1221 = vmatprep.subr.mxu0 0.0
      %1222 = vmatpush1.msra.mxu0 0.0
      %1223 = vmatprep.subr.mxu0 0.0
      %1224 = vmatpush1.msra.mxu0 0.0
      %1225 = vmatprep.subr.mxu0 0.0
      %1226 = vmatpush1.msra.mxu0 0.0
      %1227 = vmatprep.subr.mxu0 0.0
      %1228 = vmatpush1.msra.mxu0 0.0
      %1229 = vmatprep.mubr.f32.mxu0 0.0
      %1230 = vmatmul.mubr.f32.gmra.mrb[0].mxu0 %v733
      %v1231 = vpop.f32.mrb[0].mxu0
      %v1232 = vadd.f32 %v1163, %v1231
      %v1233 = vpop.f32.mrb[0].mxu0
      %1234 = vmatprep.mubr.f32.mxu0 0.0
      %1235 = vmatmul.mubr.f32.gmra.mrb[0].mxu0 %v736
      %v1236 = vpop.f32.mrb[0].mxu0
      %v1237 = vadd.f32 %v1163, %v1236
      %v1238 = vpop.f32.mrb[0].mxu0
      %1239 = vmatprep.mubr.f32.mxu0 0.0
      %1240 = vmatmul.mubr.f32.gmra.mrb[0].mxu0 %v739
      %v1241 = vpop.f32.mrb[0].mxu0
      %v1242 = vadd.f32 %v1163, %v1241
      %v1243 = vpop.f32.mrb[0].mxu0
      %1244 = vmatprep.mubr.f32.mxu0 0.0
      %1245 = vmatmul.mubr.f32.gmra.mrb[0].mxu0 %v742
      %v1246 = vpop.f32.mrb[0].mxu0
      %v1247 = vadd.f32 %v1163, %v1246
      %v1248 = vpop.f32.mrb[0].mxu0
      %1249 = vmatprep.mubr.f32.mxu0 0.0
      %1250 = vmatmul.mubr.f32.gmra.mrb[0].mxu0 %v745
      %v1251 = vpop.f32.mrb[0].mxu0
      %v1252 = vadd.f32 %v1163, %v1251
      %v1253 = vpop.f32.mrb[0].mxu0
      %1254 = vmatprep.mubr.f32.mxu0 0.0
      %1255 = vmatmul.mubr.f32.gmra.mrb[0].mxu0 %v748
      %v1256 = vpop.f32.mrb[0].mxu0
      %v1257 = vadd.f32 %v1163, %v1256
      %v1258 = vpop.f32.mrb[0].mxu0
      %1259 = vmatprep.mubr.f32.mxu0 0.0
      %1260 = vmatmul.mubr.f32.gmra.mrb[0].mxu0 %v751
      %v1261 = vpop.f32.mrb[0].mxu0
      %v1262 = vadd.f32 %v1163, %v1261
      %v1263 = vpop.f32.mrb[0].mxu0
      %1264 = vmatprep.mubr.f32.mxu0 0.0
      %1265 = vmatmul.mubr.f32.gmra.mrb[0].mxu0 %v754
      %v1266 = vpop.f32.mrb[0].mxu0
      %v1267 = vadd.f32 %v1163, %v1266
      %v1268 = vpop.f32.mrb[0].mxu0
      %1269 = vmatprep.mubr.f32.mxu0 0.0
      %1270 = vmatmul.mubr.f32.gmra.mrb[0].mxu0 %v757
      %v1271 = vpop.f32.mrb[0].mxu0
      %v1272 = vadd.f32 %v1163, %v1271
      %v1273 = vpop.f32.mrb[0].mxu0
      %1274 = vmatprep.mubr.f32.mxu0 0.0
      %1275 = vmatmul.mubr.f32.gmra.mrb[0].mxu0 %v760
      %v1276 = vpop.f32.mrb[0].mxu0
      %v1277 = vadd.f32 %v1163, %v1276
      %v1278 = vpop.f32.mrb[0].mxu0
      %1279 = vmatprep.mubr.f32.mxu0 0.0
      %1280 = vmatmul.mubr.f32.gmra.mrb[0].mxu0 %v763
      %v1281 = vpop.f32.mrb[0].mxu0
      %v1282 = vadd.f32 %v1163, %v1281
      %v1283 = vpop.f32.mrb[0].mxu0
      %1284 = vmatprep.mubr.f32.mxu0 0.0
      %1285 = vmatmul.mubr.f32.gmra.mrb[0].mxu0 %v766
      %v1286 = vpop.f32.mrb[0].mxu0
      %v1287 = vadd.f32 %v1163, %v1286
      %v1288 = vpop.f32.mrb[0].mxu0
      %1289 = vmatprep.mubr.f32.mxu0 0.0
      %1290 = vmatmul.mubr.f32.gmra.mrb[0].mxu0 %v769
      %v1291 = vpop.f32.mrb[0].mxu0
      %v1292 = vadd.f32 %v1163, %v1291
      %v1293 = vpop.f32.mrb[0].mxu0
      %1294 = vmatprep.mubr.f32.mxu0 0.0
      %1295 = vmatmul.mubr.f32.gmra.mrb[0].mxu0 %v772
      %v1296 = vpop.f32.mrb[0].mxu0
      %v1297 = vadd.f32 %v1163, %v1296
      %v1298 = vpop.f32.mrb[0].mxu0
      %1299 = vmatprep.mubr.f32.mxu0 0.0
      %1300 = vmatmul.mubr.f32.gmra.mrb[0].mxu0 %v775
      %v1301 = vpop.f32.mrb[0].mxu0
      %v1302 = vadd.f32 %v1163, %v1301
      %v1303 = vpop.f32.mrb[0].mxu0
      %1304 = vmatprep.mubr.f32.mxu0 0.0
      %1305 = vmatmul.mubr.f32.gmra.mrb[0].mxu0 %v778
      %v1306 = vpop.f32.mrb[0].mxu0
      %v1307 = vadd.f32 %v1163, %v1306
      %v1308 = vpop.f32.mrb[0].mxu0
      %1309 = vdwg.mxu0
      %v1310 = vtanh.pop %v1232
      %v1311 = vtanh.pop %v1237
      %v1312 = vtanh.pop %v1242
      %v1313 = vtanh.pop %v1247
      %v1314 = vtanh.pop %v1252
      %v1315 = vtanh.pop %v1257
      %v1316 = vtanh.pop %v1262
      %v1317 = vtanh.pop %v1267
      %v1318 = vtanh.pop %v1272
      %v1319 = vtanh.pop %v1277
      %v1320 = vtanh.pop %v1282
      %v1321 = vtanh.pop %v1287
      %v1322 = vtanh.pop %v1292
      %v1323 = vtanh.pop %v1297
      %v1324 = vtanh.pop %v1302
      %v1325 = vtanh.pop %v1307
      %v1326 = vld [vmem:[%s9] sm:$0xff]
      %v1327 = vld [vmem:[%s9 + $0x8] sm:$0xff]
      %v1328 = vld [vmem:[%s9 + $0x10] sm:$0xff]
      %v1329 = vld [vmem:[%s9 + $0x18] sm:$0xff]
      %v1330 = vld [vmem:[%s10] sm:$0x1]
      %v1332 = vsel %vm728, %v1071, 0
      %1334 = vmatprep.subr.mxu0 0.0
      %1335 = vmatpush1.msra.mxu0 %v1326
      %1336 = vmatprep.subr.mxu0 0.0
      %1337 = vmatpush1.msra.mxu0 %v1327
      %1338 = vmatprep.subr.mxu0 0.0
      %1339 = vmatpush1.msra.mxu0 %v1328
      %1340 = vmatprep.subr.mxu0 0.0
      %1341 = vmatpush1.msra.mxu0 %v1329
      %1342 = vmatprep.subr.mxu0 0.0
      %1343 = vmatpush1.msra.mxu0 0.0
      %1344 = vmatprep.subr.mxu0 0.0
      %1345 = vmatpush1.msra.mxu0 0.0
      %1346 = vmatprep.subr.mxu0 0.0
      %1347 = vmatpush1.msra.mxu0 0.0
      %1348 = vmatprep.subr.mxu0 0.0
      %1349 = vmatpush1.msra.mxu0 0.0
      %1350 = vmatprep.subr.mxu0 0.0
      %1351 = vmatpush1.msra.mxu0 0.0
      %1352 = vmatprep.subr.mxu0 0.0
      %1353 = vmatpush1.msra.mxu0 0.0
      %1354 = vmatprep.subr.mxu0 0.0
      %1355 = vmatpush1.msra.mxu0 0.0
      %1356 = vmatprep.subr.mxu0 0.0
      %1357 = vmatpush1.msra.mxu0 0.0
      %1358 = vmatprep.subr.mxu0 0.0
      %1359 = vmatpush1.msra.mxu0 0.0
      %1360 = vmatprep.subr.mxu0 0.0
      %1361 = vmatpush1.msra.mxu0 0.0
      %1362 = vmatprep.subr.mxu0 0.0
      %1363 = vmatpush1.msra.mxu0 0.0
      %1364 = vmatprep.subr.mxu0 0.0
      %1365 = vmatpush1.msra.mxu0 0.0
      %1366 = vmatprep.subr.mxu0 0.0
      %1367 = vmatpush1.msra.mxu0 0.0
      %1368 = vmatprep.subr.mxu0 0.0
      %1369 = vmatpush1.msra.mxu0 0.0
      %1370 = vmatprep.subr.mxu0 0.0
      %1371 = vmatpush1.msra.mxu0 0.0
      %1372 = vmatprep.subr.mxu0 0.0
      %1373 = vmatpush1.msra.mxu0 0.0
      %1374 = vmatprep.subr.mxu0 0.0
      %1375 = vmatpush1.msra.mxu0 0.0
      %1376 = vmatprep.subr.mxu0 0.0
      %1377 = vmatpush1.msra.mxu0 0.0
      %1378 = vmatprep.subr.mxu0 0.0
      %1379 = vmatpush1.msra.mxu0 0.0
      %1380 = vmatprep.subr.mxu0 0.0
      %1381 = vmatpush1.msra.mxu0 0.0
      %1382 = vmatprep.subr.mxu0 0.0
      %1383 = vmatpush1.msra.mxu0 0.0
      %1384 = vmatprep.subr.mxu0 0.0
      %1385 = vmatpush1.msra.mxu0 0.0
      %1386 = vmatprep.subr.mxu0 0.0
      %1387 = vmatpush1.msra.mxu0 0.0
      %1388 = vmatprep.subr.mxu0 0.0
      %1389 = vmatpush1.msra.mxu0 0.0
      %1390 = vmatprep.subr.mxu0 0.0
      %1391 = vmatpush1.msra.mxu0 0.0
      %1392 = vmatprep.subr.mxu0 0.0
      %1393 = vmatpush1.msra.mxu0 0.0
      %1394 = vmatprep.subr.mxu0 0.0
      %1395 = vmatpush1.msra.mxu0 0.0
      %1396 = vmatprep.subr.mxu0 0.0
      %1397 = vmatpush1.msra.mxu0 0.0
      %1398 = vmatprep.mubr.f32.mxu0 0.0
      %1399 = vmatmul.mubr.f32.gmra.mrb[0].mxu0 %v1332
      %v1400 = vpop.f32.mrb[0].mxu0
      %v1401 = vadd.f32 %v1330, %v1400
      %v1402 = vpop.f32.mrb[0].mxu0
      %1403 = vdwg.mxu0
      %v1404 = vtanh.pop %v1401
      %v1405 = vpack.c.bf16 %v1153, %v1153
      %1406 = vxpose.xlu0.c.b16.start [1/8] %v870, 128
      %1407 = vxpose.xlu0.c.b16.cont [2/8] 0, 128
      %1408 = vxpose.xlu0.c.b16.cont [3/8] 0, 128
      %1409 = vxpose.xlu0.c.b16.cont [4/8] 0, 128
      %1410 = vxpose.xlu0.c.b16.cont [5/8] 0, 128
      %1411 = vxpose.xlu0.c.b16.cont [6/8] 0, 128
      %1412 = vxpose.xlu0.c.b16.cont [7/8] 0, 128
      %1413 = vxpose.xlu0.c.b16.end [8/8] 0, 128
      %v1414 = vpop.trf.xlu0
      %v1415 = vpop.trf.xlu0
      %v1416 = vpop.trf.xlu0
      %v1417 = vpop.trf.xlu0
      %v1418 = vpop.trf.xlu0
      %v1419 = vpop.trf.xlu0
      %v1420 = vpop.trf.xlu0
      %v1421 = vpop.trf.xlu0
      %vm1422 = vcmask 64512
      %v1424 = vsel %vm1422, %v1414, 0
      %v1427 = vsel %vm1422, %v1415, 0
      %v1430 = vsel %vm1422, %v1416, 0
      %v1433 = vsel %vm1422, %v1417, 0
      %v1436 = vsel %vm1422, %v1418, 0
      %v1439 = vsel %vm1422, %v1419, 0
      %v1442 = vsel %vm1422, %v1420, 0
      %v1445 = vsel %vm1422, %v1421, 0
      %vm1447 = vcmask 1043456
      %v1449 = vsel %vm1447, %v1405, 0
      %1451 = vmatprep.subr.bf16.mxu0 0
      %1452 = vmatpush1.bf16.msra.mxu0 %v1449
      %1453 = vmatprep.subr.bf16.mxu0 0
      %1454 = vmatpush1.bf16.msra.mxu0 0
      %1455 = vmatprep.subr.bf16.mxu0 0
      %1456 = vmatpush1.bf16.msra.mxu0 0
      %1457 = vmatprep.subr.bf16.mxu0 0
      %1458 = vmatpush1.bf16.msra.mxu0 0
      %1459 = vmatprep.subr.bf16.mxu0 0
      %1460 = vmatpush1.bf16.msra.mxu0 0
      %1461 = vmatprep.subr.bf16.mxu0 0
      %1462 = vmatpush1.bf16.msra.mxu0 0
      %1463 = vmatprep.subr.bf16.mxu0 0
      %1464 = vmatpush1.bf16.msra.mxu0 0
      %1465 = vmatprep.subr.bf16.mxu0 0
      %1466 = vmatpush1.bf16.msra.mxu0 0
      %1467 = vmatprep.subr.bf16.mxu0 0
      %1468 = vmatpush1.bf16.msra.mxu0 0
      %1469 = vmatprep.subr.bf16.mxu0 0
      %1470 = vmatpush1.bf16.msra.mxu0 0
      %1471 = vmatprep.subr.bf16.mxu0 0
      %1472 = vmatpush1.bf16.msra.mxu0 0
      %1473 = vmatprep.subr.bf16.mxu0 0
      %1474 = vmatpush1.bf16.msra.mxu0 0
      %1475 = vmatprep.subr.bf16.mxu0 0
      %1476 = vmatpush1.bf16.msra.mxu0 0
      %1477 = vmatprep.subr.bf16.mxu0 0
      %1478 = vmatpush1.bf16.msra.mxu0 0
      %1479 = vmatprep.subr.bf16.mxu0 0
      %1480 = vmatpush1.bf16.msra.mxu0 0
      %1481 = vmatprep.subr.bf16.mxu0 0
      %1482 = vmatpush1.bf16.msra.mxu0 0
      %1483 = vmatprep.mubr.bf16.mxu0 0
      %1484 = vmatmul.mubr.bf16.gmra.mrb[0].mxu0 %v1424
      %v1485 = vpop.f32.mrb[0].mxu0
      %v1486 = vadd.f32 0.0, %v1485
      %v1487 = vpop.f32.mrb[0].mxu0
      %v1488 = vpop.f32.mrb[0].mxu0
      %v1489 = vadd.f32 0.0, %v1488
      %v1490 = vpop.f32.mrb[0].mxu0
      %1491 = vmatprep.mubr.bf16.mxu0 0
      %1492 = vmatmul.mubr.bf16.gmra.mrb[0].mxu0 %v1427
      %v1493 = vpop.f32.mrb[0].mxu0
      %v1494 = vadd.f32 0.0, %v1493
      %v1495 = vpop.f32.mrb[0].mxu0
      %v1496 = vpop.f32.mrb[0].mxu0
      %v1497 = vadd.f32 0.0, %v1496
      %v1498 = vpop.f32.mrb[0].mxu0
      %1499 = vmatprep.mubr.bf16.mxu0 0
      %1500 = vmatmul.mubr.bf16.gmra.mrb[0].mxu0 %v1430
      %v1501 = vpop.f32.mrb[0].mxu0
      %v1502 = vadd.f32 0.0, %v1501
      %v1503 = vpop.f32.mrb[0].mxu0
      %v1504 = vpop.f32.mrb[0].mxu0
      %v1505 = vadd.f32 0.0, %v1504
      %v1506 = vpop.f32.mrb[0].mxu0
      %1507 = vmatprep.mubr.bf16.mxu0 0
      %1508 = vmatmul.mubr.bf16.gmra.mrb[0].mxu0 %v1433
      %v1509 = vpop.f32.mrb[0].mxu0
      %v1510 = vadd.f32 0.0, %v1509
      %v1511 = vpop.f32.mrb[0].mxu0
      %v1512 = vpop.f32.mrb[0].mxu0
      %v1513 = vadd.f32 0.0, %v1512
      %v1514 = vpop.f32.mrb[0].mxu0
      %1515 = vmatprep.mubr.bf16.mxu0 0
      %1516 = vmatmul.mubr.bf16.gmra.mrb[0].mxu0 %v1436
      %v1517 = vpop.f32.mrb[0].mxu0
      %v1518 = vadd.f32 0.0, %v1517
      %v1519 = vpop.f32.mrb[0].mxu0
      %v1520 = vpop.f32.mrb[0].mxu0
      %v1521 = vadd.f32 0.0, %v1520
      %v1522 = vpop.f32.mrb[0].mxu0
      %1523 = vmatprep.mubr.bf16.mxu0 0
      %1524 = vmatmul.mubr.bf16.gmra.mrb[0].mxu0 %v1439
      %v1525 = vpop.f32.mrb[0].mxu0
      %v1526 = vadd.f32 0.0, %v1525
      %v1527 = vpop.f32.mrb[0].mxu0
      %v1528 = vpop.f32.mrb[0].mxu0
      %v1529 = vadd.f32 0.0, %v1528
      %v1530 = vpop.f32.mrb[0].mxu0
      %1531 = vmatprep.mubr.bf16.mxu0 0
      %1532 = vmatmul.mubr.bf16.gmra.mrb[0].mxu0 %v1442
      %v1533 = vpop.f32.mrb[0].mxu0
      %v1534 = vadd.f32 0.0, %v1533
      %v1535 = vpop.f32.mrb[0].mxu0
      %v1536 = vpop.f32.mrb[0].mxu0
      %v1537 = vadd.f32 0.0, %v1536
      %v1538 = vpop.f32.mrb[0].mxu0
      %1539 = vmatprep.mubr.bf16.mxu0 0
      %1540 = vmatmul.mubr.bf16.gmra.mrb[0].mxu0 %v1445
      %v1541 = vpop.f32.mrb[0].mxu0
      %v1542 = vadd.f32 0.0, %v1541
      %v1543 = vpop.f32.mrb[0].mxu0
      %v1544 = vpop.f32.mrb[0].mxu0
      %v1545 = vadd.f32 0.0, %v1544
      %v1546 = vpop.f32.mrb[0].mxu0
      %1547 = vdwg.mxu0
      %v1548 = vpack.c.bf16 %v1311, %v1310
      %v1549 = vpack.c.bf16 %v1313, %v1312
      %v1550 = vpack.c.bf16 %v1315, %v1314
      %v1551 = vpack.c.bf16 %v1317, %v1316
      %v1552 = vpack.c.bf16 %v1319, %v1318
      %v1553 = vpack.c.bf16 %v1321, %v1320
      %v1554 = vpack.c.bf16 %v1323, %v1322
      %v1555 = vpack.c.bf16 %v1325, %v1324
      %1556 = vmatprep.subr.bf16.mxu0 0
      %1557 = vmatpush1.bf16.msra.mxu0 %v1548
      %1558 = vmatprep.subr.bf16.mxu0 0
      %1559 = vmatpush1.bf16.msra.mxu0 %v1549
      %1560 = vmatprep.subr.bf16.mxu0 0
      %1561 = vmatpush1.bf16.msra.mxu0 %v1550
      %1562 = vmatprep.subr.bf16.mxu0 0
      %1563 = vmatpush1.bf16.msra.mxu0 %v1551
      %1564 = vmatprep.subr.bf16.mxu0 0
      %1565 = vmatpush1.bf16.msra.mxu0 %v1552
      %1566 = vmatprep.subr.bf16.mxu0 0
      %1567 = vmatpush1.bf16.msra.mxu0 %v1553
      %1568 = vmatprep.subr.bf16.mxu0 0
      %1569 = vmatpush1.bf16.msra.mxu0 %v1554
      %1570 = vmatprep.subr.bf16.mxu0 0
      %1571 = vmatpush1.bf16.msra.mxu0 %v1555
      %1572 = vmatprep.subr.bf16.mxu0 0
      %1573 = vmatpush1.bf16.msra.mxu0 0
      %1574 = vmatprep.subr.bf16.mxu0 0
      %1575 = vmatpush1.bf16.msra.mxu0 0
      %1576 = vmatprep.subr.bf16.mxu0 0
      %1577 = vmatpush1.bf16.msra.mxu0 0
      %1578 = vmatprep.subr.bf16.mxu0 0
      %1579 = vmatpush1.bf16.msra.mxu0 0
      %1580 = vmatprep.subr.bf16.mxu0 0
      %1581 = vmatpush1.bf16.msra.mxu0 0
      %1582 = vmatprep.subr.bf16.mxu0 0
      %1583 = vmatpush1.bf16.msra.mxu0 0
      %1584 = vmatprep.subr.bf16.mxu0 0
      %1585 = vmatpush1.bf16.msra.mxu0 0
      %1586 = vmatprep.subr.bf16.mxu0 0
      %1587 = vmatpush1.bf16.msra.mxu0 0
      %1588 = vmatprep.mubr.bf16.mxu0 0
      %1589 = vmatmul.mubr.bf16.gmra.mrb[0].mxu0 %v870
      %v1590 = vpop.f32.mrb[0].mxu0
      %v1591 = vadd.f32 0.0, %v1590
      %v1592 = vpop.f32.mrb[0].mxu0
      %v1593 = vpop.f32.mrb[0].mxu0
      %v1594 = vpop.f32.mrb[0].mxu0
      %1595 = vdwg.mxu0
      %v1596 = vlaneseq
      %v1597 = vshrl.u32 %v1596, 7
      %v1598 = vsub.s32 0, %v1597
      %v1599 = vrot.slane %v1404, %v1598
      %1601 = vrot.lane.b32.xlu0 %v1599, 32
      %v1602 = vpop.permute.xlu0 %1601
      %v1604 = vmul.f32 %v1153, %v1602
      %1606 = vrot.lane.b32.xlu0 %v1591, 32
      %v1607 = vpop.permute.xlu0 %1606
      %v1609 = vmul.f32 %v1604, %v1607
      %v1610 = vmul.f32 %v1310, %v1599
      %v1611 = vmul.f32 %v1311, %v1599
      %v1612 = vmul.f32 %v1312, %v1599
      %v1613 = vmul.f32 %v1313, %v1599
      %v1614 = vmul.f32 %v1314, %v1599
      %v1615 = vmul.f32 %v1315, %v1599
      %v1616 = vmul.f32 %v1316, %v1599
      %v1617 = vmul.f32 %v1317, %v1599
      %v1618 = vmul.f32 %v1318, %v1599
      %v1619 = vmul.f32 %v1319, %v1599
      %v1620 = vmul.f32 %v1320, %v1599
      %v1621 = vmul.f32 %v1321, %v1599
      %v1622 = vmul.f32 %v1322, %v1599
      %v1623 = vmul.f32 %v1323, %v1599
      %v1624 = vmul.f32 %v1324, %v1599
      %v1625 = vmul.f32 %v1325, %v1599
      %1642 = vrot.lane.b32.xlu0 %v1486, 32
      %v1643 = vpop.permute.xlu0 %1642
      %1644 = vrot.lane.b32.xlu0 %v1489, 32
      %v1645 = vpop.permute.xlu0 %1644
      %1646 = vrot.lane.b32.xlu0 %v1494, 32
      %v1647 = vpop.permute.xlu0 %1646
      %1648 = vrot.lane.b32.xlu0 %v1497, 32
      %v1649 = vpop.permute.xlu0 %1648
      %1650 = vrot.lane.b32.xlu0 %v1502, 32
      %v1651 = vpop.permute.xlu0 %1650
      %1652 = vrot.lane.b32.xlu0 %v1505, 32
      %v1653 = vpop.permute.xlu0 %1652
      %1654 = vrot.lane.b32.xlu0 %v1510, 32
      %v1655 = vpop.permute.xlu0 %1654
      %1656 = vrot.lane.b32.xlu0 %v1513, 32
      %v1657 = vpop.permute.xlu0 %1656
      %1658 = vrot.lane.b32.xlu0 %v1518, 32
      %v1659 = vpop.permute.xlu0 %1658
      %1660 = vrot.lane.b32.xlu0 %v1521, 32
      %v1661 = vpop.permute.xlu0 %1660
      %1662 = vrot.lane.b32.xlu0 %v1526, 32
      %v1663 = vpop.permute.xlu0 %1662
      %1664 = vrot.lane.b32.xlu0 %v1529, 32
      %v1665 = vpop.permute.xlu0 %1664
      %1666 = vrot.lane.b32.xlu0 %v1534, 32
      %v1667 = vpop.permute.xlu0 %1666
      %1668 = vrot.lane.b32.xlu0 %v1537, 32
      %v1669 = vpop.permute.xlu0 %1668
      %1670 = vrot.lane.b32.xlu0 %v1542, 32
      %v1671 = vpop.permute.xlu0 %1670
      %1672 = vrot.lane.b32.xlu0 %v1545, 32
      %v1673 = vpop.permute.xlu0 %1672
      %v1690 = vmul.f32 %v1610, %v1643
      %v1691 = vmul.f32 %v1611, %v1645
      %v1692 = vmul.f32 %v1612, %v1647
      %v1693 = vmul.f32 %v1613, %v1649
      %v1694 = vmul.f32 %v1614, %v1651
      %v1695 = vmul.f32 %v1615, %v1653
      %v1696 = vmul.f32 %v1616, %v1655
      %v1697 = vmul.f32 %v1617, %v1657
      %v1698 = vmul.f32 %v1618, %v1659
      %v1699 = vmul.f32 %v1619, %v1661
      %v1700 = vmul.f32 %v1620, %v1663
      %v1701 = vmul.f32 %v1621, %v1665
      %v1702 = vmul.f32 %v1622, %v1667
      %v1703 = vmul.f32 %v1623, %v1669
      %v1704 = vmul.f32 %v1624, %v1671
      %v1705 = vmul.f32 %v1625, %v1673
      %v1706 = vld [vmem:[%s11] sm:$0x1]
      %v1708 = vlaneseq
      %v1709 = vshrl.u32 %v1708, 7
      %v1710 = vsub.s32 0, %v1709
      %v1711 = vrot.slane %v1706, %v1710
      %1712 = vrot.lane.b32.xlu0 %v1711, 32
      %v1713 = vpop.permute.xlu0 %1712
      %v1715 = vmul.f32 %v1609, %v1713
      %1717 = vrot.lane.b32.xlu0 %v1715, 96
      %v1718 = vpop.permute.xlu0 %1717
      %v1720 = vsel %vm728, %v1718, 0.0
      %1721 = vadd.xlane.f32.xlu0 %v1720
      %v1722 = vpop.xlane.xlu0 %1721
      %v1723 = vld [vmem:[%s12] sm:$0x1]
      %v1725 = vlaneseq
      %v1726 = vshrl.u32 %v1725, 7
      %v1727 = vsub.s32 0, %v1726
      %v1728 = vrot.slane %v1723, %v1727
      %v1730 = vadd.f32 %v1722, %v1728
      %v1731 = vld [vmem:[%s13] sm:$0x1]
      %v1733 = vlaneseq
      %v1734 = vshrl.u32 %v1733, 7
      %v1735 = vsub.s32 0, %v1734
      %v1736 = vrot.slane %v1731, %v1735
      %1737 = vrot.lane.b32.xlu0 %v1736, 32
      %v1738 = vpop.permute.xlu0 %1737
      %v1740 = vmul.f32 %v1690, %v1738
      %v1741 = vmul.f32 %v1691, %v1738
      %v1742 = vmul.f32 %v1692, %v1738
      %v1743 = vmul.f32 %v1693, %v1738
      %v1744 = vmul.f32 %v1694, %v1738
      %v1745 = vmul.f32 %v1695, %v1738
      %v1746 = vmul.f32 %v1696, %v1738
      %v1747 = vmul.f32 %v1697, %v1738
      %v1748 = vmul.f32 %v1698, %v1738
      %v1749 = vmul.f32 %v1699, %v1738
      %v1750 = vmul.f32 %v1700, %v1738
      %v1751 = vmul.f32 %v1701, %v1738
      %v1752 = vmul.f32 %v1702, %v1738
      %v1753 = vmul.f32 %v1703, %v1738
      %v1754 = vmul.f32 %v1704, %v1738
      %v1755 = vmul.f32 %v1705, %v1738
      %1772 = vrot.lane.b32.xlu0 %v1740, 96
      %v1773 = vpop.permute.xlu0 %1772
      %1774 = vrot.lane.b32.xlu0 %v1741, 96
      %v1775 = vpop.permute.xlu0 %1774
      %1776 = vrot.lane.b32.xlu0 %v1742, 96
      %v1777 = vpop.permute.xlu0 %1776
      %1778 = vrot.lane.b32.xlu0 %v1743, 96
      %v1779 = vpop.permute.xlu0 %1778
      %1780 = vrot.lane.b32.xlu0 %v1744, 96
      %v1781 = vpop.permute.xlu0 %1780
      %1782 = vrot.lane.b32.xlu0 %v1745, 96
      %v1783 = vpop.permute.xlu0 %1782
      %1784 = vrot.lane.b32.xlu0 %v1746, 96
      %v1785 = vpop.permute.xlu0 %1784
      %1786 = vrot.lane.b32.xlu0 %v1747, 96
      %v1787 = vpop.permute.xlu0 %1786
      %1788 = vrot.lane.b32.xlu0 %v1748, 96
      %v1789 = vpop.permute.xlu0 %1788
      %1790 = vrot.lane.b32.xlu0 %v1749, 96
      %v1791 = vpop.permute.xlu0 %1790
      %1792 = vrot.lane.b32.xlu0 %v1750, 96
      %v1793 = vpop.permute.xlu0 %1792
      %1794 = vrot.lane.b32.xlu0 %v1751, 96
      %v1795 = vpop.permute.xlu0 %1794
      %1796 = vrot.lane.b32.xlu0 %v1752, 96
      %v1797 = vpop.permute.xlu0 %1796
      %1798 = vrot.lane.b32.xlu0 %v1753, 96
      %v1799 = vpop.permute.xlu0 %1798
      %1800 = vrot.lane.b32.xlu0 %v1754, 96
      %v1801 = vpop.permute.xlu0 %1800
      %1802 = vrot.lane.b32.xlu0 %v1755, 96
      %v1803 = vpop.permute.xlu0 %1802
      %v1820 = vsel %vm728, %v1773, 0.0
      %1821 = vadd.xlane.f32.xlu0 %v1820
      %v1822 = vpop.xlane.xlu0 %1821
      %v1823 = vsel %vm728, %v1775, 0.0
      %1824 = vadd.xlane.f32.xlu0 %v1823
      %v1825 = vpop.xlane.xlu0 %1824
      %v1826 = vsel %vm728, %v1777, 0.0
      %1827 = vadd.xlane.f32.xlu0 %v1826
      %v1828 = vpop.xlane.xlu0 %1827
      %v1829 = vsel %vm728, %v1779, 0.0
      %1830 = vadd.xlane.f32.xlu0 %v1829
      %v1831 = vpop.xlane.xlu0 %1830
      %v1832 = vsel %vm728, %v1781, 0.0
      %1833 = vadd.xlane.f32.xlu0 %v1832
      %v1834 = vpop.xlane.xlu0 %1833
      %v1835 = vsel %vm728, %v1783, 0.0
      %1836 = vadd.xlane.f32.xlu0 %v1835
      %v1837 = vpop.xlane.xlu0 %1836
      %v1838 = vsel %vm728, %v1785, 0.0
      %1839 = vadd.xlane.f32.xlu0 %v1838
      %v1840 = vpop.xlane.xlu0 %1839
      %v1841 = vsel %vm728, %v1787, 0.0
      %1842 = vadd.xlane.f32.xlu0 %v1841
      %v1843 = vpop.xlane.xlu0 %1842
      %v1844 = vsel %vm728, %v1789, 0.0
      %1845 = vadd.xlane.f32.xlu0 %v1844
      %v1846 = vpop.xlane.xlu0 %1845
      %v1847 = vsel %vm728, %v1791, 0.0
      %1848 = vadd.xlane.f32.xlu0 %v1847
      %v1849 = vpop.xlane.xlu0 %1848
      %v1850 = vsel %vm728, %v1793, 0.0
      %1851 = vadd.xlane.f32.xlu0 %v1850
      %v1852 = vpop.xlane.xlu0 %1851
      %v1853 = vsel %vm728, %v1795, 0.0
      %1854 = vadd.xlane.f32.xlu0 %v1853
      %v1855 = vpop.xlane.xlu0 %1854
      %v1856 = vsel %vm728, %v1797, 0.0
      %1857 = vadd.xlane.f32.xlu0 %v1856
      %v1858 = vpop.xlane.xlu0 %1857
      %v1859 = vsel %vm728, %v1799, 0.0
      %1860 = vadd.xlane.f32.xlu0 %v1859
      %v1861 = vpop.xlane.xlu0 %1860
      %v1862 = vsel %vm728, %v1801, 0.0
      %1863 = vadd.xlane.f32.xlu0 %v1862
      %v1864 = vpop.xlane.xlu0 %1863
      %v1865 = vsel %vm728, %v1803, 0.0
      %1866 = vadd.xlane.f32.xlu0 %v1865
      %v1867 = vpop.xlane.xlu0 %1866
      %v1868 = vld [vmem:[%s14] sm:$0x1]
      %v1870 = vlaneseq
      %v1871 = vshrl.u32 %v1870, 7
      %v1872 = vsub.s32 0, %v1871
      %v1873 = vrot.slane %v1868, %v1872
      %v1875 = vadd.f32 %v1822, %v1873
      %v1876 = vadd.f32 %v1825, %v1873
      %v1877 = vadd.f32 %v1828, %v1873
      %v1878 = vadd.f32 %v1831, %v1873
      %v1879 = vadd.f32 %v1834, %v1873
      %v1880 = vadd.f32 %v1837, %v1873
      %v1881 = vadd.f32 %v1840, %v1873
      %v1882 = vadd.f32 %v1843, %v1873
      %v1883 = vadd.f32 %v1846, %v1873
      %v1884 = vadd.f32 %v1849, %v1873
      %v1885 = vadd.f32 %v1852, %v1873
      %v1886 = vadd.f32 %v1855, %v1873
      %v1887 = vadd.f32 %v1858, %v1873
      %v1888 = vadd.f32 %v1861, %v1873
      %v1889 = vadd.f32 %v1864, %v1873
      %v1890 = vadd.f32 %v1867, %v1873
      %v1891 = vsel %vm879, %v1730, -inf
      %v1892 = vrot.slane %v1891, 4
      %v1893 = vmax.f32 %v1891, %v1892
      %v1894 = vrot.slane %v1893, 2
      %v1895 = vmax.f32 %v1893, %v1894
      %v1896 = vrot.slane %v1895, 1
      %v1897 = vmax.f32 %v1895, %v1896
      %v1898 = vsub.f32 %v1730, %v1897
      %v1899 = vmul.f32 %v1898, 1.442695
      %v1900 = vpow.pop %v1899
      %v1901 = vmul.f32 %v1900, %v694
      %v1902 = vsel %vm879, %v1901, 0.0
      %v1903 = vrot.slane %v1902, 4
      %v1904 = vadd.f32 %v1902, %v1903
      %v1905 = vrot.slane %v1904, 2
      %v1906 = vadd.f32 %v1904, %v1905
      %v1907 = vrot.slane %v1906, 1
      %v1908 = vadd.f32 %v1906, %v1907
      %v1909 = vadd.f32 %v1908, 1e-06
      %v1910 = vrcp.pop %v1909
      %v1911 = vmul.f32 %v1901, %v1910
      %v1912 = vsel %vm879, %v1875, -inf
      %v1913 = vsel %vm879, %v1876, -inf
      %v1914 = vsel %vm879, %v1877, -inf
      %v1915 = vsel %vm879, %v1878, -inf
      %v1916 = vsel %vm879, %v1879, -inf
      %v1917 = vmax.f32 %v1912, %v1916
      %v1918 = vsel %vm879, %v1880, -inf
      %v1919 = vmax.f32 %v1913, %v1918
      %v1920 = vsel %vm879, %v1881, -inf
      %v1921 = vmax.f32 %v1914, %v1920
      %v1922 = vsel %vm879, %v1882, -inf
      %v1923 = vmax.f32 %v1915, %v1922
      %v1924 = vsel %vm879, %v1883, -inf
      %v1925 = vmax.f32 %v1917, %v1924
      %v1926 = vsel %vm879, %v1884, -inf
      %v1927 = vmax.f32 %v1919, %v1926
      %v1928 = vsel %vm879, %v1885, -inf
      %v1929 = vmax.f32 %v1921, %v1928
      %v1930 = vsel %vm879, %v1886, -inf
      %v1931 = vmax.f32 %v1923, %v1930
      %v1932 = vsel %vm879, %v1887, -inf
      %v1933 = vmax.f32 %v1925, %v1932
      %v1934 = vsel %vm879, %v1888, -inf
      %v1935 = vmax.f32 %v1927, %v1934
      %v1936 = vsel %vm879, %v1889, -inf
      %v1937 = vmax.f32 %v1929, %v1936
      %v1938 = vsel %vm879, %v1890, -inf
      %v1939 = vmax.f32 %v1931, %v1938
      %v1940 = vmax.f32 %v1933, %v1935
      %v1941 = vmax.f32 %v1937, %v1939
      %v1942 = vmax.f32 %v1940, %v1941
      %v1943 = vrot.slane %v1942, 4
      %v1944 = vmax.f32 %v1942, %v1943
      %v1945 = vrot.slane %v1944, 2
      %v1946 = vmax.f32 %v1944, %v1945
      %v1947 = vrot.slane %v1946, 1
      %v1948 = vmax.f32 %v1946, %v1947
      %v1949 = vsub.f32 %v1875, %v1948
      %v1950 = vsub.f32 %v1876, %v1948
      %v1951 = vsub.f32 %v1877, %v1948
      %v1952 = vsub.f32 %v1878, %v1948
      %v1953 = vsub.f32 %v1879, %v1948
      %v1954 = vsub.f32 %v1880, %v1948
      %v1955 = vsub.f32 %v1881, %v1948
      %v1956 = vsub.f32 %v1882, %v1948
      %v1957 = vsub.f32 %v1883, %v1948
      %v1958 = vsub.f32 %v1884, %v1948
      %v1959 = vsub.f32 %v1885, %v1948
      %v1960 = vsub.f32 %v1886, %v1948
      %v1961 = vsub.f32 %v1887, %v1948
      %v1962 = vsub.f32 %v1888, %v1948
      %v1963 = vsub.f32 %v1889, %v1948
      %v1964 = vsub.f32 %v1890, %v1948
      %v1965 = vmul.f32 %v1949, 1.442695
      %v1966 = vpow.pop %v1965
      %v1967 = vmul.f32 %v1950, 1.442695
      %v1968 = vpow.pop %v1967
      %v1969 = vmul.f32 %v1951, 1.442695
      %v1970 = vpow.pop %v1969
      %v1971 = vmul.f32 %v1952, 1.442695
      %v1972 = vpow.pop %v1971
      %v1973 = vmul.f32 %v1953, 1.442695
      %v1974 = vpow.pop %v1973
      %v1975 = vmul.f32 %v1954, 1.442695
      %v1976 = vpow.pop %v1975
      %v1977 = vmul.f32 %v1955, 1.442695
      %v1978 = vpow.pop %v1977
      %v1979 = vmul.f32 %v1956, 1.442695
      %v1980 = vpow.pop %v1979
      %v1981 = vmul.f32 %v1957, 1.442695
      %v1982 = vpow.pop %v1981
      %v1983 = vmul.f32 %v1958, 1.442695
      %v1984 = vpow.pop %v1983
      %v1985 = vmul.f32 %v1959, 1.442695
      %v1986 = vpow.pop %v1985
      %v1987 = vmul.f32 %v1960, 1.442695
      %v1988 = vpow.pop %v1987
      %v1989 = vmul.f32 %v1961, 1.442695
      %v1990 = vpow.pop %v1989
      %v1991 = vmul.f32 %v1962, 1.442695
      %v1992 = vpow.pop %v1991
      %v1993 = vmul.f32 %v1963, 1.442695
      %v1994 = vpow.pop %v1993
      %v1995 = vmul.f32 %v1964, 1.442695
      %v1996 = vpow.pop %v1995
      %v1997 = vmul.f32 %v1966, %v712
      %v1998 = vmul.f32 %v1968, %v713
      %v1999 = vmul.f32 %v1970, %v714
      %v2000 = vmul.f32 %v1972, %v715
      %v2001 = vmul.f32 %v1974, %v716
      %v2002 = vmul.f32 %v1976, %v717
      %v2003 = vmul.f32 %v1978, %v718
      %v2004 = vmul.f32 %v1980, %v719
      %v2005 = vmul.f32 %v1982, %v720
      %v2006 = vmul.f32 %v1984, %v721
      %v2007 = vmul.f32 %v1986, %v722
      %v2008 = vmul.f32 %v1988, %v723
      %v2009 = vmul.f32 %v1990, %v724
      %v2010 = vmul.f32 %v1992, %v725
      %v2011 = vmul.f32 %v1994, %v726
      %v2012 = vmul.f32 %v1996, %v727
      %v2013 = vsel %vm879, %v1997, 0.0
      %v2014 = vsel %vm879, %v1998, 0.0
      %v2015 = vadd.f32 %v2013, %v2014
      %v2016 = vsel %vm879, %v1999, 0.0
      %v2017 = vadd.f32 %v2015, %v2016
      %v2018 = vsel %vm879, %v2000, 0.0
      %v2019 = vadd.f32 %v2017, %v2018
      %v2020 = vsel %vm879, %v2001, 0.0
      %v2021 = vadd.f32 %v2019, %v2020
      %v2022 = vsel %vm879, %v2002, 0.0
      %v2023 = vadd.f32 %v2021, %v2022
      %v2024 = vsel %vm879, %v2003, 0.0
      %v2025 = vadd.f32 %v2023, %v2024
      %v2026 = vsel %vm879, %v2004, 0.0
      %v2027 = vadd.f32 %v2025, %v2026
      %v2028 = vsel %vm879, %v2005, 0.0
      %v2029 = vadd.f32 %v2027, %v2028
      %v2030 = vsel %vm879, %v2006, 0.0
      %v2031 = vadd.f32 %v2029, %v2030
      %v2032 = vsel %vm879, %v2007, 0.0
      %v2033 = vadd.f32 %v2031, %v2032
      %v2034 = vsel %vm879, %v2008, 0.0
      %v2035 = vadd.f32 %v2033, %v2034
      %v2036 = vsel %vm879, %v2009, 0.0
      %v2037 = vadd.f32 %v2035, %v2036
      %v2038 = vsel %vm879, %v2010, 0.0
      %v2039 = vadd.f32 %v2037, %v2038
      %v2040 = vsel %vm879, %v2011, 0.0
      %v2041 = vadd.f32 %v2039, %v2040
      %v2042 = vsel %vm879, %v2012, 0.0
      %v2043 = vadd.f32 %v2041, %v2042
      %v2044 = vrot.slane %v2043, 4
      %v2045 = vadd.f32 %v2043, %v2044
      %v2046 = vrot.slane %v2045, 2
      %v2047 = vadd.f32 %v2045, %v2046
      %v2048 = vrot.slane %v2047, 1
      %v2049 = vadd.f32 %v2047, %v2048
      %v2050 = vadd.f32 %v2049, 1e-06
      %v2051 = vrcp.pop %v2050
      %v2052 = vmul.f32 %v1997, %v2051
      %v2053 = vmul.f32 %v1998, %v2051
      %v2054 = vmul.f32 %v1999, %v2051
      %v2055 = vmul.f32 %v2000, %v2051
      %v2056 = vmul.f32 %v2001, %v2051
      %v2057 = vmul.f32 %v2002, %v2051
      %v2058 = vmul.f32 %v2003, %v2051
      %v2059 = vmul.f32 %v2004, %v2051
      %v2060 = vmul.f32 %v2005, %v2051
      %v2061 = vmul.f32 %v2006, %v2051
      %v2062 = vmul.f32 %v2007, %v2051
      %v2063 = vmul.f32 %v2008, %v2051
      %v2064 = vmul.f32 %v2009, %v2051
      %v2065 = vmul.f32 %v2010, %v2051
      %v2066 = vmul.f32 %v2011, %v2051
      %v2067 = vmul.f32 %v2012, %v2051
      %2069 = vset.pattern.permute.xlu0 0
      %2070 = vperm.xlu0 %2069, %v1911
      %v2071 = vpop.permute.xlu0 %2070
      %v2073 = vmul.f32 %v693, %v2071
      %v2074 = vsel %vm728, %v2073, 0.0
      %v2075 = vrot.slane %v2074, 4
      %v2076 = vadd.f32 %v2074, %v2075
      %v2077 = vrot.slane %v2076, 2
      %v2078 = vadd.f32 %v2076, %v2077
      %v2079 = vrot.slane %v2078, 1
      %v2080 = vadd.f32 %v2078, %v2079
      %2082 = vset.pattern.permute.xlu0 0
      %2083 = vperm.xlu0 %2082, %v2052
      %v2084 = vpop.permute.xlu0 %2083
      %2087 = vset.pattern.permute.xlu0 0
      %2088 = vperm.xlu0 %2087, %v2053
      %v2089 = vpop.permute.xlu0 %2088
      %2092 = vset.pattern.permute.xlu0 0
      %2093 = vperm.xlu0 %2092, %v2054
      %v2094 = vpop.permute.xlu0 %2093
      %2097 = vset.pattern.permute.xlu0 0
      %2098 = vperm.xlu0 %2097, %v2055
      %v2099 = vpop.permute.xlu0 %2098
      %2102 = vset.pattern.permute.xlu0 0
      %2103 = vperm.xlu0 %2102, %v2056
      %v2104 = vpop.permute.xlu0 %2103
      %2107 = vset.pattern.permute.xlu0 0
      %2108 = vperm.xlu0 %2107, %v2057
      %v2109 = vpop.permute.xlu0 %2108
      %2112 = vset.pattern.permute.xlu0 0
      %2113 = vperm.xlu0 %2112, %v2058
      %v2114 = vpop.permute.xlu0 %2113
      %2117 = vset.pattern.permute.xlu0 0
      %2118 = vperm.xlu0 %2117, %v2059
      %v2119 = vpop.permute.xlu0 %2118
      %2122 = vset.pattern.permute.xlu0 0
      %2123 = vperm.xlu0 %2122, %v2060
      %v2124 = vpop.permute.xlu0 %2123
      %2127 = vset.pattern.permute.xlu0 0
      %2128 = vperm.xlu0 %2127, %v2061
      %v2129 = vpop.permute.xlu0 %2128
      %2132 = vset.pattern.permute.xlu0 0
      %2133 = vperm.xlu0 %2132, %v2062
      %v2134 = vpop.permute.xlu0 %2133
      %2137 = vset.pattern.permute.xlu0 0
      %2138 = vperm.xlu0 %2137, %v2063
      %v2139 = vpop.permute.xlu0 %2138
      %2142 = vset.pattern.permute.xlu0 0
      %2143 = vperm.xlu0 %2142, %v2064
      %v2144 = vpop.permute.xlu0 %2143
      %2147 = vset.pattern.permute.xlu0 0
      %2148 = vperm.xlu0 %2147, %v2065
      %v2149 = vpop.permute.xlu0 %2148
      %2152 = vset.pattern.permute.xlu0 0
      %2153 = vperm.xlu0 %2152, %v2066
      %v2154 = vpop.permute.xlu0 %2153
      %2157 = vset.pattern.permute.xlu0 0
      %2158 = vperm.xlu0 %2157, %v2067
      %v2159 = vpop.permute.xlu0 %2158
      %v2161 = vmul.f32 %v695, %v2084
      %v2162 = vmul.f32 %v696, %v2089
      %v2163 = vmul.f32 %v697, %v2094
      %v2164 = vmul.f32 %v698, %v2099
      %v2165 = vmul.f32 %v699, %v2104
      %v2166 = vmul.f32 %v700, %v2109
      %v2167 = vmul.f32 %v701, %v2114
      %v2168 = vmul.f32 %v702, %v2119
      %v2169 = vmul.f32 %v703, %v2124
      %v2170 = vmul.f32 %v704, %v2129
      %v2171 = vmul.f32 %v705, %v2134
      %v2172 = vmul.f32 %v706, %v2139
      %v2173 = vmul.f32 %v707, %v2144
      %v2174 = vmul.f32 %v708, %v2149
      %v2175 = vmul.f32 %v709, %v2154
      %v2176 = vmul.f32 %v710, %v2159
      %v2177 = vsel %vm728, %v2161, 0.0
      %v2178 = vsel %vm728, %v2162, 0.0
      %v2179 = vadd.f32 %v2177, %v2178
      %v2180 = vsel %vm728, %v2163, 0.0
      %v2181 = vadd.f32 %v2179, %v2180
      %v2182 = vsel %vm728, %v2164, 0.0
      %v2183 = vadd.f32 %v2181, %v2182
      %v2184 = vsel %vm728, %v2165, 0.0
      %v2185 = vadd.f32 %v2183, %v2184
      %v2186 = vsel %vm728, %v2166, 0.0
      %v2187 = vadd.f32 %v2185, %v2186
      %v2188 = vsel %vm728, %v2167, 0.0
      %v2189 = vadd.f32 %v2187, %v2188
      %v2190 = vsel %vm728, %v2168, 0.0
      %v2191 = vadd.f32 %v2189, %v2190
      %v2192 = vsel %vm728, %v2169, 0.0
      %v2193 = vadd.f32 %v2191, %v2192
      %v2194 = vsel %vm728, %v2170, 0.0
      %v2195 = vadd.f32 %v2193, %v2194
      %v2196 = vsel %vm728, %v2171, 0.0
      %v2197 = vadd.f32 %v2195, %v2196
      %v2198 = vsel %vm728, %v2172, 0.0
      %v2199 = vadd.f32 %v2197, %v2198
      %v2200 = vsel %vm728, %v2173, 0.0
      %v2201 = vadd.f32 %v2199, %v2200
      %v2202 = vsel %vm728, %v2174, 0.0
      %v2203 = vadd.f32 %v2201, %v2202
      %v2204 = vsel %vm728, %v2175, 0.0
      %v2205 = vadd.f32 %v2203, %v2204
      %v2206 = vsel %vm728, %v2176, 0.0
      %v2207 = vadd.f32 %v2205, %v2206
      %v2208 = vrot.slane %v2207, 4
      %v2209 = vadd.f32 %v2207, %v2208
      %v2210 = vrot.slane %v2209, 2
      %v2211 = vadd.f32 %v2209, %v2210
      %v2212 = vrot.slane %v2211, 1
      %v2213 = vadd.f32 %v2211, %v2212
      %v2214 = vmul.f32 %v2080, %v2213
      %v2215 = vld [vmem:[%s15] sm:$0xff]
      %v2216 = vld [vmem:[%s15 + $0x8] sm:$0xff]
      %v2217 = vld [vmem:[%s15 + $0x10] sm:$0xff]
      %v2218 = vld [vmem:[%s15 + $0x18] sm:$0xff]
      %v2219 = vld [vmem:[%s16] sm:$0x1]
      %2220 = vmatprep.subr.mxu0 0.0
      %2221 = vmatpush1.msra.mxu0 %v2215
      %2222 = vmatprep.subr.mxu0 0.0
      %2223 = vmatpush1.msra.mxu0 %v2216
      %2224 = vmatprep.subr.mxu0 0.0
      %2225 = vmatpush1.msra.mxu0 %v2217
      %2226 = vmatprep.subr.mxu0 0.0
      %2227 = vmatpush1.msra.mxu0 %v2218
      %2228 = vmatprep.subr.mxu0 0.0
      %2229 = vmatpush1.msra.mxu0 0.0
      %2230 = vmatprep.subr.mxu0 0.0
      %2231 = vmatpush1.msra.mxu0 0.0
      %2232 = vmatprep.subr.mxu0 0.0
      %2233 = vmatpush1.msra.mxu0 0.0
      %2234 = vmatprep.subr.mxu0 0.0
      %2235 = vmatpush1.msra.mxu0 0.0
      %2236 = vmatprep.subr.mxu0 0.0
      %2237 = vmatpush1.msra.mxu0 0.0
      %2238 = vmatprep.subr.mxu0 0.0
      %2239 = vmatpush1.msra.mxu0 0.0
      %2240 = vmatprep.subr.mxu0 0.0
      %2241 = vmatpush1.msra.mxu0 0.0
      %2242 = vmatprep.subr.mxu0 0.0
      %2243 = vmatpush1.msra.mxu0 0.0
      %2244 = vmatprep.subr.mxu0 0.0
      %2245 = vmatpush1.msra.mxu0 0.0
      %2246 = vmatprep.subr.mxu0 0.0
      %2247 = vmatpush1.msra.mxu0 0.0
      %2248 = vmatprep.subr.mxu0 0.0
      %2249 = vmatpush1.msra.mxu0 0.0
      %2250 = vmatprep.subr.mxu0 0.0
      %2251 = vmatpush1.msra.mxu0 0.0
      %2252 = vmatprep.subr.mxu0 0.0
      %2253 = vmatpush1.msra.mxu0 0.0
      %2254 = vmatprep.subr.mxu0 0.0
      %2255 = vmatpush1.msra.mxu0 0.0
      %2256 = vmatprep.subr.mxu0 0.0
      %2257 = vmatpush1.msra.mxu0 0.0
      %2258 = vmatprep.subr.mxu0 0.0
      %2259 = vmatpush1.msra.mxu0 0.0
      %2260 = vmatprep.subr.mxu0 0.0
      %2261 = vmatpush1.msra.mxu0 0.0
      %2262 = vmatprep.subr.mxu0 0.0
      %2263 = vmatpush1.msra.mxu0 0.0
      %2264 = vmatprep.subr.mxu0 0.0
      %2265 = vmatpush1.msra.mxu0 0.0
      %2266 = vmatprep.subr.mxu0 0.0
      %2267 = vmatpush1.msra.mxu0 0.0
      %2268 = vmatprep.subr.mxu0 0.0
      %2269 = vmatpush1.msra.mxu0 0.0
      %2270 = vmatprep.subr.mxu0 0.0
      %2271 = vmatpush1.msra.mxu0 0.0
      %2272 = vmatprep.subr.mxu0 0.0
      %2273 = vmatpush1.msra.mxu0 0.0
      %2274 = vmatprep.subr.mxu0 0.0
      %2275 = vmatpush1.msra.mxu0 0.0
      %2276 = vmatprep.subr.mxu0 0.0
      %2277 = vmatpush1.msra.mxu0 0.0
      %2278 = vmatprep.subr.mxu0 0.0
      %2279 = vmatpush1.msra.mxu0 0.0
      %2280 = vmatprep.subr.mxu0 0.0
      %2281 = vmatpush1.msra.mxu0 0.0
      %2282 = vmatprep.subr.mxu0 0.0
      %2283 = vmatpush1.msra.mxu0 0.0
      %2284 = vmatprep.mubr.f32.mxu0 0.0
      %2285 = vmatmul.mubr.f32.gmra.mrb[0].mxu0 %v1332
      %v2286 = vpop.f32.mrb[0].mxu0
      %v2287 = vadd.f32 %v2219, %v2286
      %v2288 = vpop.f32.mrb[0].mxu0
      %2289 = vdwg.mxu0
      %v2290 = vld [vmem:[%s17] sm:$0xff]
      %v2291 = vld [vmem:[%s17 + $0x8] sm:$0xff]
      %v2292 = vld [vmem:[%s17 + $0x10] sm:$0xff]
      %v2293 = vld [vmem:[%s17 + $0x18] sm:$0xff]
      %v2294 = vld [vmem:[%s18] sm:$0x1]
      %v2296 = vsel %vm728, %v2214, 0
      %2298 = vmatprep.subr.mxu0 0.0
      %2299 = vmatpush1.msra.mxu0 %v2290
      %2300 = vmatprep.subr.mxu0 0.0
      %2301 = vmatpush1.msra.mxu0 %v2291
      %2302 = vmatprep.subr.mxu0 0.0
      %2303 = vmatpush1.msra.mxu0 %v2292
      %2304 = vmatprep.subr.mxu0 0.0
      %2305 = vmatpush1.msra.mxu0 %v2293
      %2306 = vmatprep.subr.mxu0 0.0
      %2307 = vmatpush1.msra.mxu0 0.0
      %2308 = vmatprep.subr.mxu0 0.0
      %2309 = vmatpush1.msra.mxu0 0.0
      %2310 = vmatprep.subr.mxu0 0.0
      %2311 = vmatpush1.msra.mxu0 0.0
      %2312 = vmatprep.subr.mxu0 0.0
      %2313 = vmatpush1.msra.mxu0 0.0
      %2314 = vmatprep.subr.mxu0 0.0
      %2315 = vmatpush1.msra.mxu0 0.0
      %2316 = vmatprep.subr.mxu0 0.0
      %2317 = vmatpush1.msra.mxu0 0.0
      %2318 = vmatprep.subr.mxu0 0.0
      %2319 = vmatpush1.msra.mxu0 0.0
      %2320 = vmatprep.subr.mxu0 0.0
      %2321 = vmatpush1.msra.mxu0 0.0
      %2322 = vmatprep.subr.mxu0 0.0
      %2323 = vmatpush1.msra.mxu0 0.0
      %2324 = vmatprep.subr.mxu0 0.0
      %2325 = vmatpush1.msra.mxu0 0.0
      %2326 = vmatprep.subr.mxu0 0.0
      %2327 = vmatpush1.msra.mxu0 0.0
      %2328 = vmatprep.subr.mxu0 0.0
      %2329 = vmatpush1.msra.mxu0 0.0
      %2330 = vmatprep.subr.mxu0 0.0
      %2331 = vmatpush1.msra.mxu0 0.0
      %2332 = vmatprep.subr.mxu0 0.0
      %2333 = vmatpush1.msra.mxu0 0.0
      %2334 = vmatprep.subr.mxu0 0.0
      %2335 = vmatpush1.msra.mxu0 0.0
      %2336 = vmatprep.subr.mxu0 0.0
      %2337 = vmatpush1.msra.mxu0 0.0
      %2338 = vmatprep.subr.mxu0 0.0
      %2339 = vmatpush1.msra.mxu0 0.0
      %2340 = vmatprep.subr.mxu0 0.0
      %2341 = vmatpush1.msra.mxu0 0.0
      %2342 = vmatprep.subr.mxu0 0.0
      %2343 = vmatpush1.msra.mxu0 0.0
      %2344 = vmatprep.subr.mxu0 0.0
      %2345 = vmatpush1.msra.mxu0 0.0
      %2346 = vmatprep.subr.mxu0 0.0
      %2347 = vmatpush1.msra.mxu0 0.0
      %2348 = vmatprep.subr.mxu0 0.0
      %2349 = vmatpush1.msra.mxu0 0.0
      %2350 = vmatprep.subr.mxu0 0.0
      %2351 = vmatpush1.msra.mxu0 0.0
      %2352 = vmatprep.subr.mxu0 0.0
      %2353 = vmatpush1.msra.mxu0 0.0
      %2354 = vmatprep.subr.mxu0 0.0
      %2355 = vmatpush1.msra.mxu0 0.0
      %2356 = vmatprep.subr.mxu0 0.0
      %2357 = vmatpush1.msra.mxu0 0.0
      %2358 = vmatprep.subr.mxu0 0.0
      %2359 = vmatpush1.msra.mxu0 0.0
      %2360 = vmatprep.subr.mxu0 0.0
      %2361 = vmatpush1.msra.mxu0 0.0
      %2362 = vmatprep.mubr.f32.mxu0 0.0
      %2363 = vmatmul.mubr.f32.gmra.mrb[0].mxu0 %v2296
      %v2364 = vpop.f32.mrb[0].mxu0
      %v2365 = vadd.f32 %v2294, %v2364
      %v2366 = vpop.f32.mrb[0].mxu0
      %2367 = vdwg.mxu0
      %v2368 = vadd.f32 %v2287, %v2365
      %v2369 = vxor.u32 %v2368, 2147483648
      %v2370 = vmul.f32 %v2369, 1.442695
      %v2371 = vpow.pop %v2370
      %v2372 = vadd.f32 %v2371, 1.0
      %v2373 = vrcp.pop %v2372
      %v2374 = vmul.f32 1.0, %v2373
      %2376 = vrot.lane.b32.xlu0 %v2365, 64
      %v2377 = vpop.permute.xlu0 %2376
      %v2379 = vmul.f32 %v2374, %v2377
      %2381 = vrot.lane.b32.xlu0 %v2379, 64
      %v2382 = vpop.permute.xlu0 %2381
      %v2384 = vadd.f32 %v2287, %v2382
      %v2385 = vtanh.pop %v2384
      %v2386 = vsub.f32 1.0, %v2374
      %2388 = vrot.lane.b32.xlu0 %v2385, 96
      %v2389 = vpop.permute.xlu0 %2388
      %v2391 = vmul.f32 %v2386, %v2389
      %2392 = vrot.lane.b32.xlu0 %v2214, 32
      %v2393 = vpop.permute.xlu0 %2392
      %v2395 = vmul.f32 %v2374, %v2393
      %v2396 = vadd.f32 %v2391, %v2395
      %s2397 = scalar_lea.vmem %s5, 32
      %v2398 = vld [vmem:[%s2397] sm:$0xff]
      %v2399 = vld [vmem:[%s2397 + $0x8] sm:$0xff]
      %v2400 = vld [vmem:[%s2397 + $0x10] sm:$0xff]
      %v2401 = vld [vmem:[%s2397 + $0x18] sm:$0xff]
      %s2402 = scalar_lea.vmem %s6, 1
      %v2403 = vld [vmem:[%s2402] sm:$0x1]
      %v2405 = vlaneseq
      %v2406 = vshrl.u32 %v2405, 7
      %v2407 = vsub.s32 0, %v2406
      %v2408 = vrot.slane %v2403, %v2407
      %2410 = vmatprep.subr.mxu0 0.0
      %2411 = vmatpush1.msra.mxu0 %v2398
      %2412 = vmatprep.subr.mxu0 0.0
      %2413 = vmatpush1.msra.mxu0 %v2399
      %2414 = vmatprep.subr.mxu0 0.0
      %2415 = vmatpush1.msra.mxu0 %v2400
      %2416 = vmatprep.subr.mxu0 0.0
      %2417 = vmatpush1.msra.mxu0 %v2401
      %2418 = vmatprep.subr.mxu0 0.0
      %2419 = vmatpush1.msra.mxu0 0.0
      %2420 = vmatprep.subr.mxu0 0.0
      %2421 = vmatpush1.msra.mxu0 0.0
      %2422 = vmatprep.subr.mxu0 0.0
      %2423 = vmatpush1.msra.mxu0 0.0
      %2424 = vmatprep.subr.mxu0 0.0
      %2425 = vmatpush1.msra.mxu0 0.0
      %2426 = vmatprep.subr.mxu0 0.0
      %2427 = vmatpush1.msra.mxu0 0.0
      %2428 = vmatprep.subr.mxu0 0.0
      %2429 = vmatpush1.msra.mxu0 0.0
      %2430 = vmatprep.subr.mxu0 0.0
      %2431 = vmatpush1.msra.mxu0 0.0
      %2432 = vmatprep.subr.mxu0 0.0
      %2433 = vmatpush1.msra.mxu0 0.0
      %2434 = vmatprep.subr.mxu0 0.0
      %2435 = vmatpush1.msra.mxu0 0.0
      %2436 = vmatprep.subr.mxu0 0.0
      %2437 = vmatpush1.msra.mxu0 0.0
      %2438 = vmatprep.subr.mxu0 0.0
      %2439 = vmatpush1.msra.mxu0 0.0
      %2440 = vmatprep.subr.mxu0 0.0
      %2441 = vmatpush1.msra.mxu0 0.0
      %2442 = vmatprep.subr.mxu0 0.0
      %2443 = vmatpush1.msra.mxu0 0.0
      %2444 = vmatprep.subr.mxu0 0.0
      %2445 = vmatpush1.msra.mxu0 0.0
      %2446 = vmatprep.subr.mxu0 0.0
      %2447 = vmatpush1.msra.mxu0 0.0
      %2448 = vmatprep.subr.mxu0 0.0
      %2449 = vmatpush1.msra.mxu0 0.0
      %2450 = vmatprep.subr.mxu0 0.0
      %2451 = vmatpush1.msra.mxu0 0.0
      %2452 = vmatprep.subr.mxu0 0.0
      %2453 = vmatpush1.msra.mxu0 0.0
      %2454 = vmatprep.subr.mxu0 0.0
      %2455 = vmatpush1.msra.mxu0 0.0
      %2456 = vmatprep.subr.mxu0 0.0
      %2457 = vmatpush1.msra.mxu0 0.0
      %2458 = vmatprep.subr.mxu0 0.0
      %2459 = vmatpush1.msra.mxu0 0.0
      %2460 = vmatprep.subr.mxu0 0.0
      %2461 = vmatpush1.msra.mxu0 0.0
      %2462 = vmatprep.subr.mxu0 0.0
      %2463 = vmatpush1.msra.mxu0 0.0
      %2464 = vmatprep.subr.mxu0 0.0
      %2465 = vmatpush1.msra.mxu0 0.0
      %2466 = vmatprep.subr.mxu0 0.0
      %2467 = vmatpush1.msra.mxu0 0.0
      %2468 = vmatprep.subr.mxu0 0.0
      %2469 = vmatpush1.msra.mxu0 0.0
      %2470 = vmatprep.subr.mxu0 0.0
      %2471 = vmatpush1.msra.mxu0 0.0
      %2472 = vmatprep.subr.mxu0 0.0
      %2473 = vmatpush1.msra.mxu0 0.0
      %2474 = vmatprep.mubr.f32.mxu0 0.0
      %2475 = vmatmul.mubr.f32.gmra.mrb[0].mxu0 %v730
      %v2476 = vpop.f32.mrb[0].mxu0
      %v2477 = vadd.f32 %v2408, %v2476
      %v2478 = vpop.f32.mrb[0].mxu0
      %2479 = vdwg.mxu0
      %v2480 = vtanh.pop %v2477
      %s2481 = scalar_lea.vmem %s7, 32
      %v2482 = vld [vmem:[%s2481] sm:$0xff]
      %v2483 = vld [vmem:[%s2481 + $0x8] sm:$0xff]
      %v2484 = vld [vmem:[%s2481 + $0x10] sm:$0xff]
      %v2485 = vld [vmem:[%s2481 + $0x18] sm:$0xff]
      %s2486 = scalar_lea.vmem %s8, 1
      %v2487 = vld [vmem:[%s2486] sm:$0x1]
      %v2489 = vlaneseq
      %v2490 = vshrl.u32 %v2489, 7
      %v2491 = vsub.s32 0, %v2490
      %v2492 = vrot.slane %v2487, %v2491
      %2494 = vmatprep.subr.mxu0 0.0
      %2495 = vmatpush1.msra.mxu0 %v2482
      %2496 = vmatprep.subr.mxu0 0.0
      %2497 = vmatpush1.msra.mxu0 %v2483
      %2498 = vmatprep.subr.mxu0 0.0
      %2499 = vmatpush1.msra.mxu0 %v2484
      %2500 = vmatprep.subr.mxu0 0.0
      %2501 = vmatpush1.msra.mxu0 %v2485
      %2502 = vmatprep.subr.mxu0 0.0
      %2503 = vmatpush1.msra.mxu0 0.0
      %2504 = vmatprep.subr.mxu0 0.0
      %2505 = vmatpush1.msra.mxu0 0.0
      %2506 = vmatprep.subr.mxu0 0.0
      %2507 = vmatpush1.msra.mxu0 0.0
      %2508 = vmatprep.subr.mxu0 0.0
      %2509 = vmatpush1.msra.mxu0 0.0
      %2510 = vmatprep.subr.mxu0 0.0
      %2511 = vmatpush1.msra.mxu0 0.0
      %2512 = vmatprep.subr.mxu0 0.0
      %2513 = vmatpush1.msra.mxu0 0.0
      %2514 = vmatprep.subr.mxu0 0.0
      %2515 = vmatpush1.msra.mxu0 0.0
      %2516 = vmatprep.subr.mxu0 0.0
      %2517 = vmatpush1.msra.mxu0 0.0
      %2518 = vmatprep.subr.mxu0 0.0
      %2519 = vmatpush1.msra.mxu0 0.0
      %2520 = vmatprep.subr.mxu0 0.0
      %2521 = vmatpush1.msra.mxu0 0.0
      %2522 = vmatprep.subr.mxu0 0.0
      %2523 = vmatpush1.msra.mxu0 0.0
      %2524 = vmatprep.subr.mxu0 0.0
      %2525 = vmatpush1.msra.mxu0 0.0
      %2526 = vmatprep.subr.mxu0 0.0
      %2527 = vmatpush1.msra.mxu0 0.0
      %2528 = vmatprep.subr.mxu0 0.0
      %2529 = vmatpush1.msra.mxu0 0.0
      %2530 = vmatprep.subr.mxu0 0.0
      %2531 = vmatpush1.msra.mxu0 0.0
      %2532 = vmatprep.subr.mxu0 0.0
      %2533 = vmatpush1.msra.mxu0 0.0
      %2534 = vmatprep.subr.mxu0 0.0
      %2535 = vmatpush1.msra.mxu0 0.0
      %2536 = vmatprep.subr.mxu0 0.0
      %2537 = vmatpush1.msra.mxu0 0.0
      %2538 = vmatprep.subr.mxu0 0.0
      %2539 = vmatpush1.msra.mxu0 0.0
      %2540 = vmatprep.subr.mxu0 0.0
      %2541 = vmatpush1.msra.mxu0 0.0
      %2542 = vmatprep.subr.mxu0 0.0
      %2543 = vmatpush1.msra.mxu0 0.0
      %2544 = vmatprep.subr.mxu0 0.0
      %2545 = vmatpush1.msra.mxu0 0.0
      %2546 = vmatprep.subr.mxu0 0.0
      %2547 = vmatpush1.msra.mxu0 0.0
      %2548 = vmatprep.subr.mxu0 0.0
      %2549 = vmatpush1.msra.mxu0 0.0
      %2550 = vmatprep.subr.mxu0 0.0
      %2551 = vmatpush1.msra.mxu0 0.0
      %2552 = vmatprep.subr.mxu0 0.0
      %2553 = vmatpush1.msra.mxu0 0.0
      %2554 = vmatprep.subr.mxu0 0.0
      %2555 = vmatpush1.msra.mxu0 0.0
      %2556 = vmatprep.subr.mxu0 0.0
      %2557 = vmatpush1.msra.mxu0 0.0
      %2558 = vmatprep.mubr.f32.mxu0 0.0
      %2559 = vmatmul.mubr.f32.gmra.mrb[0].mxu0 %v733
      %v2560 = vpop.f32.mrb[0].mxu0
      %v2561 = vadd.f32 %v2492, %v2560
      %v2562 = vpop.f32.mrb[0].mxu0
      %2563 = vmatprep.mubr.f32.mxu0 0.0
      %2564 = vmatmul.mubr.f32.gmra.mrb[0].mxu0 %v736
      %v2565 = vpop.f32.mrb[0].mxu0
      %v2566 = vadd.f32 %v2492, %v2565
      %v2567 = vpop.f32.mrb[0].mxu0
      %2568 = vmatprep.mubr.f32.mxu0 0.0
      %2569 = vmatmul.mubr.f32.gmra.mrb[0].mxu0 %v739
      %v2570 = vpop.f32.mrb[0].mxu0
      %v2571 = vadd.f32 %v2492, %v2570
      %v2572 = vpop.f32.mrb[0].mxu0
      %2573 = vmatprep.mubr.f32.mxu0 0.0
      %2574 = vmatmul.mubr.f32.gmra.mrb[0].mxu0 %v742
      %v2575 = vpop.f32.mrb[0].mxu0
      %v2576 = vadd.f32 %v2492, %v2575
      %v2577 = vpop.f32.mrb[0].mxu0
      %2578 = vmatprep.mubr.f32.mxu0 0.0
      %2579 = vmatmul.mubr.f32.gmra.mrb[0].mxu0 %v745
      %v2580 = vpop.f32.mrb[0].mxu0
      %v2581 = vadd.f32 %v2492, %v2580
      %v2582 = vpop.f32.mrb[0].mxu0
      %2583 = vmatprep.mubr.f32.mxu0 0.0
      %2584 = vmatmul.mubr.f32.gmra.mrb[0].mxu0 %v748
      %v2585 = vpop.f32.mrb[0].mxu0
      %v2586 = vadd.f32 %v2492, %v2585
      %v2587 = vpop.f32.mrb[0].mxu0
      %2588 = vmatprep.mubr.f32.mxu0 0.0
      %2589 = vmatmul.mubr.f32.gmra.mrb[0].mxu0 %v751
      %v2590 = vpop.f32.mrb[0].mxu0
      %v2591 = vadd.f32 %v2492, %v2590
      %v2592 = vpop.f32.mrb[0].mxu0
      %2593 = vmatprep.mubr.f32.mxu0 0.0
      %2594 = vmatmul.mubr.f32.gmra.mrb[0].mxu0 %v754
      %v2595 = vpop.f32.mrb[0].mxu0
      %v2596 = vadd.f32 %v2492, %v2595
      %v2597 = vpop.f32.mrb[0].mxu0
      %2598 = vmatprep.mubr.f32.mxu0 0.0
      %2599 = vmatmul.mubr.f32.gmra.mrb[0].mxu0 %v757
      %v2600 = vpop.f32.mrb[0].mxu0
      %v2601 = vadd.f32 %v2492, %v2600
      %v2602 = vpop.f32.mrb[0].mxu0
      %2603 = vmatprep.mubr.f32.mxu0 0.0
      %2604 = vmatmul.mubr.f32.gmra.mrb[0].mxu0 %v760
      %v2605 = vpop.f32.mrb[0].mxu0
      %v2606 = vadd.f32 %v2492, %v2605
      %v2607 = vpop.f32.mrb[0].mxu0
      %2608 = vmatprep.mubr.f32.mxu0 0.0
      %2609 = vmatmul.mubr.f32.gmra.mrb[0].mxu0 %v763
      %v2610 = vpop.f32.mrb[0].mxu0
      %v2611 = vadd.f32 %v2492, %v2610
      %v2612 = vpop.f32.mrb[0].mxu0
      %2613 = vmatprep.mubr.f32.mxu0 0.0
      %2614 = vmatmul.mubr.f32.gmra.mrb[0].mxu0 %v766
      %v2615 = vpop.f32.mrb[0].mxu0
      %v2616 = vadd.f32 %v2492, %v2615
      %v2617 = vpop.f32.mrb[0].mxu0
      %2618 = vmatprep.mubr.f32.mxu0 0.0
      %2619 = vmatmul.mubr.f32.gmra.mrb[0].mxu0 %v769
      %v2620 = vpop.f32.mrb[0].mxu0
      %v2621 = vadd.f32 %v2492, %v2620
      %v2622 = vpop.f32.mrb[0].mxu0
      %2623 = vmatprep.mubr.f32.mxu0 0.0
      %2624 = vmatmul.mubr.f32.gmra.mrb[0].mxu0 %v772
      %v2625 = vpop.f32.mrb[0].mxu0
      %v2626 = vadd.f32 %v2492, %v2625
      %v2627 = vpop.f32.mrb[0].mxu0
      %2628 = vmatprep.mubr.f32.mxu0 0.0
      %2629 = vmatmul.mubr.f32.gmra.mrb[0].mxu0 %v775
      %v2630 = vpop.f32.mrb[0].mxu0
      %v2631 = vadd.f32 %v2492, %v2630
      %v2632 = vpop.f32.mrb[0].mxu0
      %2633 = vmatprep.mubr.f32.mxu0 0.0
      %2634 = vmatmul.mubr.f32.gmra.mrb[0].mxu0 %v778
      %v2635 = vpop.f32.mrb[0].mxu0
      %v2636 = vadd.f32 %v2492, %v2635
      %v2637 = vpop.f32.mrb[0].mxu0
      %2638 = vdwg.mxu0
      %v2639 = vtanh.pop %v2561
      %v2640 = vtanh.pop %v2566
      %v2641 = vtanh.pop %v2571
      %v2642 = vtanh.pop %v2576
      %v2643 = vtanh.pop %v2581
      %v2644 = vtanh.pop %v2586
      %v2645 = vtanh.pop %v2591
      %v2646 = vtanh.pop %v2596
      %v2647 = vtanh.pop %v2601
      %v2648 = vtanh.pop %v2606
      %v2649 = vtanh.pop %v2611
      %v2650 = vtanh.pop %v2616
      %v2651 = vtanh.pop %v2621
      %v2652 = vtanh.pop %v2626
      %v2653 = vtanh.pop %v2631
      %v2654 = vtanh.pop %v2636
      %s2655 = scalar_lea.vmem %s9, 32
      %v2656 = vld [vmem:[%s2655] sm:$0xff]
      %v2657 = vld [vmem:[%s2655 + $0x8] sm:$0xff]
      %v2658 = vld [vmem:[%s2655 + $0x10] sm:$0xff]
      %v2659 = vld [vmem:[%s2655 + $0x18] sm:$0xff]
      %s2660 = scalar_lea.vmem %s10, 1
      %v2661 = vld [vmem:[%s2660] sm:$0x1]
      %2663 = vrot.lane.b32.xlu0 %v2396, 96
      %v2664 = vpop.permute.xlu0 %2663
      %v2665 = vsel %vm728, %v2664, 0
      %2667 = vmatprep.subr.mxu0 0.0
      %2668 = vmatpush1.msra.mxu0 %v2656
      %2669 = vmatprep.subr.mxu0 0.0
      %2670 = vmatpush1.msra.mxu0 %v2657
      %2671 = vmatprep.subr.mxu0 0.0
      %2672 = vmatpush1.msra.mxu0 %v2658
      %2673 = vmatprep.subr.mxu0 0.0
      %2674 = vmatpush1.msra.mxu0 %v2659
      %2675 = vmatprep.subr.mxu0 0.0
      %2676 = vmatpush1.msra.mxu0 0.0
      %2677 = vmatprep.subr.mxu0 0.0
      %2678 = vmatpush1.msra.mxu0 0.0
      %2679 = vmatprep.subr.mxu0 0.0
      %2680 = vmatpush1.msra.mxu0 0.0
      %2681 = vmatprep.subr.mxu0 0.0
      %2682 = vmatpush1.msra.mxu0 0.0
      %2683 = vmatprep.subr.mxu0 0.0
      %2684 = vmatpush1.msra.mxu0 0.0
      %2685 = vmatprep.subr.mxu0 0.0
      %2686 = vmatpush1.msra.mxu0 0.0
      %2687 = vmatprep.subr.mxu0 0.0
      %2688 = vmatpush1.msra.mxu0 0.0
      %2689 = vmatprep.subr.mxu0 0.0
      %2690 = vmatpush1.msra.mxu0 0.0
      %2691 = vmatprep.subr.mxu0 0.0
      %2692 = vmatpush1.msra.mxu0 0.0
      %2693 = vmatprep.subr.mxu0 0.0
      %2694 = vmatpush1.msra.mxu0 0.0
      %2695 = vmatprep.subr.mxu0 0.0
      %2696 = vmatpush1.msra.mxu0 0.0
      %2697 = vmatprep.subr.mxu0 0.0
      %2698 = vmatpush1.msra.mxu0 0.0
      %2699 = vmatprep.subr.mxu0 0.0
      %2700 = vmatpush1.msra.mxu0 0.0
      %2701 = vmatprep.subr.mxu0 0.0
      %2702 = vmatpush1.msra.mxu0 0.0
      %2703 = vmatprep.subr.mxu0 0.0
      %2704 = vmatpush1.msra.mxu0 0.0
      %2705 = vmatprep.subr.mxu0 0.0
      %2706 = vmatpush1.msra.mxu0 0.0
      %2707 = vmatprep.subr.mxu0 0.0
      %2708 = vmatpush1.msra.mxu0 0.0
      %2709 = vmatprep.subr.mxu0 0.0
      %2710 = vmatpush1.msra.mxu0 0.0
      %2711 = vmatprep.subr.mxu0 0.0
      %2712 = vmatpush1.msra.mxu0 0.0
      %2713 = vmatprep.subr.mxu0 0.0
      %2714 = vmatpush1.msra.mxu0 0.0
      %2715 = vmatprep.subr.mxu0 0.0
      %2716 = vmatpush1.msra.mxu0 0.0
      %2717 = vmatprep.subr.mxu0 0.0
      %2718 = vmatpush1.msra.mxu0 0.0
      %2719 = vmatprep.subr.mxu0 0.0
      %2720 = vmatpush1.msra.mxu0 0.0
      %2721 = vmatprep.subr.mxu0 0.0
      %2722 = vmatpush1.msra.mxu0 0.0
      %2723 = vmatprep.subr.mxu0 0.0
      %2724 = vmatpush1.msra.mxu0 0.0
      %2725 = vmatprep.subr.mxu0 0.0
      %2726 = vmatpush1.msra.mxu0 0.0
      %2727 = vmatprep.subr.mxu0 0.0
      %2728 = vmatpush1.msra.mxu0 0.0
      %2729 = vmatprep.subr.mxu0 0.0
      %2730 = vmatpush1.msra.mxu0 0.0
      %2731 = vmatprep.mubr.f32.mxu0 0.0
      %2732 = vmatmul.mubr.f32.gmra.mrb[0].mxu0 %v2665
      %v2733 = vpop.f32.mrb[0].mxu0
      %v2734 = vadd.f32 %v2661, %v2733
      %v2735 = vpop.f32.mrb[0].mxu0
      %2736 = vdwg.mxu0
      %v2737 = vtanh.pop %v2734
      %v2738 = vpack.c.bf16 %v2480, %v2480
      %v2740 = vsel %vm1447, %v2738, 0
      %2742 = vmatprep.subr.bf16.mxu0 0
      %2743 = vmatpush1.bf16.msra.mxu0 %v2740
      %2744 = vmatprep.subr.bf16.mxu0 0
      %2745 = vmatpush1.bf16.msra.mxu0 0
      %2746 = vmatprep.subr.bf16.mxu0 0
      %2747 = vmatpush1.bf16.msra.mxu0 0
      %2748 = vmatprep.subr.bf16.mxu0 0
      %2749 = vmatpush1.bf16.msra.mxu0 0
      %2750 = vmatprep.subr.bf16.mxu0 0
      %2751 = vmatpush1.bf16.msra.mxu0 0
      %2752 = vmatprep.subr.bf16.mxu0 0
      %2753 = vmatpush1.bf16.msra.mxu0 0
      %2754 = vmatprep.subr.bf16.mxu0 0
      %2755 = vmatpush1.bf16.msra.mxu0 0
      %2756 = vmatprep.subr.bf16.mxu0 0
      %2757 = vmatpush1.bf16.msra.mxu0 0
      %2758 = vmatprep.subr.bf16.mxu0 0
      %2759 = vmatpush1.bf16.msra.mxu0 0
      %2760 = vmatprep.subr.bf16.mxu0 0
      %2761 = vmatpush1.bf16.msra.mxu0 0
      %2762 = vmatprep.subr.bf16.mxu0 0
      %2763 = vmatpush1.bf16.msra.mxu0 0
      %2764 = vmatprep.subr.bf16.mxu0 0
      %2765 = vmatpush1.bf16.msra.mxu0 0
      %2766 = vmatprep.subr.bf16.mxu0 0
      %2767 = vmatpush1.bf16.msra.mxu0 0
      %2768 = vmatprep.subr.bf16.mxu0 0
      %2769 = vmatpush1.bf16.msra.mxu0 0
      %2770 = vmatprep.subr.bf16.mxu0 0
      %2771 = vmatpush1.bf16.msra.mxu0 0
      %2772 = vmatprep.subr.bf16.mxu0 0
      %2773 = vmatpush1.bf16.msra.mxu0 0
      %2774 = vmatprep.mubr.bf16.mxu0 0
      %2775 = vmatmul.mubr.bf16.gmra.mrb[0].mxu0 %v1424
      %v2776 = vpop.f32.mrb[0].mxu0
      %v2777 = vadd.f32 0.0, %v2776
      %v2778 = vpop.f32.mrb[0].mxu0
      %v2779 = vpop.f32.mrb[0].mxu0
      %v2780 = vadd.f32 0.0, %v2779
      %v2781 = vpop.f32.mrb[0].mxu0
      %2782 = vmatprep.mubr.bf16.mxu0 0
      %2783 = vmatmul.mubr.bf16.gmra.mrb[0].mxu0 %v1427
      %v2784 = vpop.f32.mrb[0].mxu0
      %v2785 = vadd.f32 0.0, %v2784
      %v2786 = vpop.f32.mrb[0].mxu0
      %v2787 = vpop.f32.mrb[0].mxu0
      %v2788 = vadd.f32 0.0, %v2787
      %v2789 = vpop.f32.mrb[0].mxu0
      %2790 = vmatprep.mubr.bf16.mxu0 0
      %2791 = vmatmul.mubr.bf16.gmra.mrb[0].mxu0 %v1430
      %v2792 = vpop.f32.mrb[0].mxu0
      %v2793 = vadd.f32 0.0, %v2792
      %v2794 = vpop.f32.mrb[0].mxu0
      %v2795 = vpop.f32.mrb[0].mxu0
      %v2796 = vadd.f32 0.0, %v2795
      %v2797 = vpop.f32.mrb[0].mxu0
      %2798 = vmatprep.mubr.bf16.mxu0 0
      %2799 = vmatmul.mubr.bf16.gmra.mrb[0].mxu0 %v1433
      %v2800 = vpop.f32.mrb[0].mxu0
      %v2801 = vadd.f32 0.0, %v2800
      %v2802 = vpop.f32.mrb[0].mxu0
      %v2803 = vpop.f32.mrb[0].mxu0
      %v2804 = vadd.f32 0.0, %v2803
      %v2805 = vpop.f32.mrb[0].mxu0
      %2806 = vmatprep.mubr.bf16.mxu0 0
      %2807 = vmatmul.mubr.bf16.gmra.mrb[0].mxu0 %v1436
      %v2808 = vpop.f32.mrb[0].mxu0
      %v2809 = vadd.f32 0.0, %v2808
      %v2810 = vpop.f32.mrb[0].mxu0
      %v2811 = vpop.f32.mrb[0].mxu0
      %v2812 = vadd.f32 0.0, %v2811
      %v2813 = vpop.f32.mrb[0].mxu0
      %2814 = vmatprep.mubr.bf16.mxu0 0
      %2815 = vmatmul.mubr.bf16.gmra.mrb[0].mxu0 %v1439
      %v2816 = vpop.f32.mrb[0].mxu0
      %v2817 = vadd.f32 0.0, %v2816
      %v2818 = vpop.f32.mrb[0].mxu0
      %v2819 = vpop.f32.mrb[0].mxu0
      %v2820 = vadd.f32 0.0, %v2819
      %v2821 = vpop.f32.mrb[0].mxu0
      %2822 = vmatprep.mubr.bf16.mxu0 0
      %2823 = vmatmul.mubr.bf16.gmra.mrb[0].mxu0 %v1442
      %v2824 = vpop.f32.mrb[0].mxu0
      %v2825 = vadd.f32 0.0, %v2824
      %v2826 = vpop.f32.mrb[0].mxu0
      %v2827 = vpop.f32.mrb[0].mxu0
      %v2828 = vadd.f32 0.0, %v2827
      %v2829 = vpop.f32.mrb[0].mxu0
      %2830 = vmatprep.mubr.bf16.mxu0 0
      %2831 = vmatmul.mubr.bf16.gmra.mrb[0].mxu0 %v1445
      %v2832 = vpop.f32.mrb[0].mxu0
      %v2833 = vadd.f32 0.0, %v2832
      %v2834 = vpop.f32.mrb[0].mxu0
      %v2835 = vpop.f32.mrb[0].mxu0
      %v2836 = vadd.f32 0.0, %v2835
      %v2837 = vpop.f32.mrb[0].mxu0
      %2838 = vdwg.mxu0
      %v2839 = vpack.c.bf16 %v2640, %v2639
      %v2840 = vpack.c.bf16 %v2642, %v2641
      %v2841 = vpack.c.bf16 %v2644, %v2643
      %v2842 = vpack.c.bf16 %v2646, %v2645
      %v2843 = vpack.c.bf16 %v2648, %v2647
      %v2844 = vpack.c.bf16 %v2650, %v2649
      %v2845 = vpack.c.bf16 %v2652, %v2651
      %v2846 = vpack.c.bf16 %v2654, %v2653
      %2847 = vmatprep.subr.bf16.mxu0 0
      %2848 = vmatpush1.bf16.msra.mxu0 %v2839
      %2849 = vmatprep.subr.bf16.mxu0 0
      %2850 = vmatpush1.bf16.msra.mxu0 %v2840
      %2851 = vmatprep.subr.bf16.mxu0 0
      %2852 = vmatpush1.bf16.msra.mxu0 %v2841
      %2853 = vmatprep.subr.bf16.mxu0 0
      %2854 = vmatpush1.bf16.msra.mxu0 %v2842
      %2855 = vmatprep.subr.bf16.mxu0 0
      %2856 = vmatpush1.bf16.msra.mxu0 %v2843
      %2857 = vmatprep.subr.bf16.mxu0 0
      %2858 = vmatpush1.bf16.msra.mxu0 %v2844
      %2859 = vmatprep.subr.bf16.mxu0 0
      %2860 = vmatpush1.bf16.msra.mxu0 %v2845
      %2861 = vmatprep.subr.bf16.mxu0 0
      %2862 = vmatpush1.bf16.msra.mxu0 %v2846
      %2863 = vmatprep.subr.bf16.mxu0 0
      %2864 = vmatpush1.bf16.msra.mxu0 0
      %2865 = vmatprep.subr.bf16.mxu0 0
      %2866 = vmatpush1.bf16.msra.mxu0 0
      %2867 = vmatprep.subr.bf16.mxu0 0
      %2868 = vmatpush1.bf16.msra.mxu0 0
      %2869 = vmatprep.subr.bf16.mxu0 0
      %2870 = vmatpush1.bf16.msra.mxu0 0
      %2871 = vmatprep.subr.bf16.mxu0 0
      %2872 = vmatpush1.bf16.msra.mxu0 0
      %2873 = vmatprep.subr.bf16.mxu0 0
      %2874 = vmatpush1.bf16.msra.mxu0 0
      %2875 = vmatprep.subr.bf16.mxu0 0
      %2876 = vmatpush1.bf16.msra.mxu0 0
      %2877 = vmatprep.subr.bf16.mxu0 0
      %2878 = vmatpush1.bf16.msra.mxu0 0
      %2879 = vmatprep.mubr.bf16.mxu0 0
      %2880 = vmatmul.mubr.bf16.gmra.mrb[0].mxu0 %v870
      %v2881 = vpop.f32.mrb[0].mxu0
      %v2882 = vadd.f32 0.0, %v2881
      %v2883 = vpop.f32.mrb[0].mxu0
      %v2884 = vpop.f32.mrb[0].mxu0
      %v2885 = vpop.f32.mrb[0].mxu0
      %2886 = vdwg.mxu0
      %v2887 = vlaneseq
      %v2888 = vshrl.u32 %v2887, 7
      %v2889 = vsub.s32 0, %v2888
      %v2890 = vrot.slane %v2737, %v2889
      %2892 = vrot.lane.b32.xlu0 %v2890, 32
      %v2893 = vpop.permute.xlu0 %2892
      %v2895 = vmul.f32 %v2480, %v2893
      %2897 = vrot.lane.b32.xlu0 %v2882, 32
      %v2898 = vpop.permute.xlu0 %2897
      %v2900 = vmul.f32 %v2895, %v2898
      %v2901 = vmul.f32 %v2639, %v2890
      %v2902 = vmul.f32 %v2640, %v2890
      %v2903 = vmul.f32 %v2641, %v2890
      %v2904 = vmul.f32 %v2642, %v2890
      %v2905 = vmul.f32 %v2643, %v2890
      %v2906 = vmul.f32 %v2644, %v2890
      %v2907 = vmul.f32 %v2645, %v2890
      %v2908 = vmul.f32 %v2646, %v2890
      %v2909 = vmul.f32 %v2647, %v2890
      %v2910 = vmul.f32 %v2648, %v2890
      %v2911 = vmul.f32 %v2649, %v2890
      %v2912 = vmul.f32 %v2650, %v2890
      %v2913 = vmul.f32 %v2651, %v2890
      %v2914 = vmul.f32 %v2652, %v2890
      %v2915 = vmul.f32 %v2653, %v2890
      %v2916 = vmul.f32 %v2654, %v2890
      %2933 = vrot.lane.b32.xlu0 %v2777, 32
      %v2934 = vpop.permute.xlu0 %2933
      %2935 = vrot.lane.b32.xlu0 %v2780, 32
      %v2936 = vpop.permute.xlu0 %2935
      %2937 = vrot.lane.b32.xlu0 %v2785, 32
      %v2938 = vpop.permute.xlu0 %2937
      %2939 = vrot.lane.b32.xlu0 %v2788, 32
      %v2940 = vpop.permute.xlu0 %2939
      %2941 = vrot.lane.b32.xlu0 %v2793, 32
      %v2942 = vpop.permute.xlu0 %2941
      %2943 = vrot.lane.b32.xlu0 %v2796, 32
      %v2944 = vpop.permute.xlu0 %2943
      %2945 = vrot.lane.b32.xlu0 %v2801, 32
      %v2946 = vpop.permute.xlu0 %2945
      %2947 = vrot.lane.b32.xlu0 %v2804, 32
      %v2948 = vpop.permute.xlu0 %2947
      %2949 = vrot.lane.b32.xlu0 %v2809, 32
      %v2950 = vpop.permute.xlu0 %2949
      %2951 = vrot.lane.b32.xlu0 %v2812, 32
      %v2952 = vpop.permute.xlu0 %2951
      %2953 = vrot.lane.b32.xlu0 %v2817, 32
      %v2954 = vpop.permute.xlu0 %2953
      %2955 = vrot.lane.b32.xlu0 %v2820, 32
      %v2956 = vpop.permute.xlu0 %2955
      %2957 = vrot.lane.b32.xlu0 %v2825, 32
      %v2958 = vpop.permute.xlu0 %2957
      %2959 = vrot.lane.b32.xlu0 %v2828, 32
      %v2960 = vpop.permute.xlu0 %2959
      %2961 = vrot.lane.b32.xlu0 %v2833, 32
      %v2962 = vpop.permute.xlu0 %2961
      %2963 = vrot.lane.b32.xlu0 %v2836, 32
      %v2964 = vpop.permute.xlu0 %2963
      %v2981 = vmul.f32 %v2901, %v2934
      %v2982 = vmul.f32 %v2902, %v2936
      %v2983 = vmul.f32 %v2903, %v2938
      %v2984 = vmul.f32 %v2904, %v2940
      %v2985 = vmul.f32 %v2905, %v2942
      %v2986 = vmul.f32 %v2906, %v2944
      %v2987 = vmul.f32 %v2907, %v2946
      %v2988 = vmul.f32 %v2908, %v2948
      %v2989 = vmul.f32 %v2909, %v2950
      %v2990 = vmul.f32 %v2910, %v2952
      %v2991 = vmul.f32 %v2911, %v2954
      %v2992 = vmul.f32 %v2912, %v2956
      %v2993 = vmul.f32 %v2913, %v2958
      %v2994 = vmul.f32 %v2914, %v2960
      %v2995 = vmul.f32 %v2915, %v2962
      %v2996 = vmul.f32 %v2916, %v2964
      %s2997 = scalar_lea.vmem %s11, 1
      %v2998 = vld [vmem:[%s2997] sm:$0x1]
      %v3000 = vlaneseq
      %v3001 = vshrl.u32 %v3000, 7
      %v3002 = vsub.s32 0, %v3001
      %v3003 = vrot.slane %v2998, %v3002
      %3004 = vrot.lane.b32.xlu0 %v3003, 32
      %v3005 = vpop.permute.xlu0 %3004
      %v3007 = vmul.f32 %v2900, %v3005
      %3009 = vrot.lane.b32.xlu0 %v3007, 96
      %v3010 = vpop.permute.xlu0 %3009
      %v3012 = vsel %vm728, %v3010, 0.0
      %3013 = vadd.xlane.f32.xlu0 %v3012
      %v3014 = vpop.xlane.xlu0 %3013
      %s3015 = scalar_lea.vmem %s12, 1
      %v3016 = vld [vmem:[%s3015] sm:$0x1]
      %v3018 = vlaneseq
      %v3019 = vshrl.u32 %v3018, 7
      %v3020 = vsub.s32 0, %v3019
      %v3021 = vrot.slane %v3016, %v3020
      %v3023 = vadd.f32 %v3014, %v3021
      %s3024 = scalar_lea.vmem %s13, 1
      %v3025 = vld [vmem:[%s3024] sm:$0x1]
      %v3027 = vlaneseq
      %v3028 = vshrl.u32 %v3027, 7
      %v3029 = vsub.s32 0, %v3028
      %v3030 = vrot.slane %v3025, %v3029
      %3031 = vrot.lane.b32.xlu0 %v3030, 32
      %v3032 = vpop.permute.xlu0 %3031
      %v3034 = vmul.f32 %v2981, %v3032
      %v3035 = vmul.f32 %v2982, %v3032
      %v3036 = vmul.f32 %v2983, %v3032
      %v3037 = vmul.f32 %v2984, %v3032
      %v3038 = vmul.f32 %v2985, %v3032
      %v3039 = vmul.f32 %v2986, %v3032
      %v3040 = vmul.f32 %v2987, %v3032
      %v3041 = vmul.f32 %v2988, %v3032
      %v3042 = vmul.f32 %v2989, %v3032
      %v3043 = vmul.f32 %v2990, %v3032
      %v3044 = vmul.f32 %v2991, %v3032
      %v3045 = vmul.f32 %v2992, %v3032
      %v3046 = vmul.f32 %v2993, %v3032
      %v3047 = vmul.f32 %v2994, %v3032
      %v3048 = vmul.f32 %v2995, %v3032
      %v3049 = vmul.f32 %v2996, %v3032
      %3066 = vrot.lane.b32.xlu0 %v3034, 96
      %v3067 = vpop.permute.xlu0 %3066
      %3068 = vrot.lane.b32.xlu0 %v3035, 96
      %v3069 = vpop.permute.xlu0 %3068
      %3070 = vrot.lane.b32.xlu0 %v3036, 96
      %v3071 = vpop.permute.xlu0 %3070
      %3072 = vrot.lane.b32.xlu0 %v3037, 96
      %v3073 = vpop.permute.xlu0 %3072
      %3074 = vrot.lane.b32.xlu0 %v3038, 96
      %v3075 = vpop.permute.xlu0 %3074
      %3076 = vrot.lane.b32.xlu0 %v3039, 96
      %v3077 = vpop.permute.xlu0 %3076
      %3078 = vrot.lane.b32.xlu0 %v3040, 96
      %v3079 = vpop.permute.xlu0 %3078
      %3080 = vrot.lane.b32.xlu0 %v3041, 96
      %v3081 = vpop.permute.xlu0 %3080
      %3082 = vrot.lane.b32.xlu0 %v3042, 96
      %v3083 = vpop.permute.xlu0 %3082
      %3084 = vrot.lane.b32.xlu0 %v3043, 96
      %v3085 = vpop.permute.xlu0 %3084
      %3086 = vrot.lane.b32.xlu0 %v3044, 96
      %v3087 = vpop.permute.xlu0 %3086
      %3088 = vrot.lane.b32.xlu0 %v3045, 96
      %v3089 = vpop.permute.xlu0 %3088
      %3090 = vrot.lane.b32.xlu0 %v3046, 96
      %v3091 = vpop.permute.xlu0 %3090
      %3092 = vrot.lane.b32.xlu0 %v3047, 96
      %v3093 = vpop.permute.xlu0 %3092
      %3094 = vrot.lane.b32.xlu0 %v3048, 96
      %v3095 = vpop.permute.xlu0 %3094
      %3096 = vrot.lane.b32.xlu0 %v3049, 96
      %v3097 = vpop.permute.xlu0 %3096
      %v3114 = vsel %vm728, %v3067, 0.0
      %3115 = vadd.xlane.f32.xlu0 %v3114
      %v3116 = vpop.xlane.xlu0 %3115
      %v3117 = vsel %vm728, %v3069, 0.0
      %3118 = vadd.xlane.f32.xlu0 %v3117
      %v3119 = vpop.xlane.xlu0 %3118
      %v3120 = vsel %vm728, %v3071, 0.0
      %3121 = vadd.xlane.f32.xlu0 %v3120
      %v3122 = vpop.xlane.xlu0 %3121
      %v3123 = vsel %vm728, %v3073, 0.0
      %3124 = vadd.xlane.f32.xlu0 %v3123
      %v3125 = vpop.xlane.xlu0 %3124
      %v3126 = vsel %vm728, %v3075, 0.0
      %3127 = vadd.xlane.f32.xlu0 %v3126
      %v3128 = vpop.xlane.xlu0 %3127
      %v3129 = vsel %vm728, %v3077, 0.0
      %3130 = vadd.xlane.f32.xlu0 %v3129
      %v3131 = vpop.xlane.xlu0 %3130
      %v3132 = vsel %vm728, %v3079, 0.0
      %3133 = vadd.xlane.f32.xlu0 %v3132
      %v3134 = vpop.xlane.xlu0 %3133
      %v3135 = vsel %vm728, %v3081, 0.0
      %3136 = vadd.xlane.f32.xlu0 %v3135
      %v3137 = vpop.xlane.xlu0 %3136
      %v3138 = vsel %vm728, %v3083, 0.0
      %3139 = vadd.xlane.f32.xlu0 %v3138
      %v3140 = vpop.xlane.xlu0 %3139
      %v3141 = vsel %vm728, %v3085, 0.0
      %3142 = vadd.xlane.f32.xlu0 %v3141
      %v3143 = vpop.xlane.xlu0 %3142
      %v3144 = vsel %vm728, %v3087, 0.0
      %3145 = vadd.xlane.f32.xlu0 %v3144
      %v3146 = vpop.xlane.xlu0 %3145
      %v3147 = vsel %vm728, %v3089, 0.0
      %3148 = vadd.xlane.f32.xlu0 %v3147
      %v3149 = vpop.xlane.xlu0 %3148
      %v3150 = vsel %vm728, %v3091, 0.0
      %3151 = vadd.xlane.f32.xlu0 %v3150
      %v3152 = vpop.xlane.xlu0 %3151
      %v3153 = vsel %vm728, %v3093, 0.0
      %3154 = vadd.xlane.f32.xlu0 %v3153
      %v3155 = vpop.xlane.xlu0 %3154
      %v3156 = vsel %vm728, %v3095, 0.0
      %3157 = vadd.xlane.f32.xlu0 %v3156
      %v3158 = vpop.xlane.xlu0 %3157
      %v3159 = vsel %vm728, %v3097, 0.0
      %3160 = vadd.xlane.f32.xlu0 %v3159
      %v3161 = vpop.xlane.xlu0 %3160
      %s3162 = scalar_lea.vmem %s14, 1
      %v3163 = vld [vmem:[%s3162] sm:$0x1]
      %v3165 = vlaneseq
      %v3166 = vshrl.u32 %v3165, 7
      %v3167 = vsub.s32 0, %v3166
      %v3168 = vrot.slane %v3163, %v3167
      %v3170 = vadd.f32 %v3116, %v3168
      %v3171 = vadd.f32 %v3119, %v3168
      %v3172 = vadd.f32 %v3122, %v3168
      %v3173 = vadd.f32 %v3125, %v3168
      %v3174 = vadd.f32 %v3128, %v3168
      %v3175 = vadd.f32 %v3131, %v3168
      %v3176 = vadd.f32 %v3134, %v3168
      %v3177 = vadd.f32 %v3137, %v3168
      %v3178 = vadd.f32 %v3140, %v3168
      %v3179 = vadd.f32 %v3143, %v3168
      %v3180 = vadd.f32 %v3146, %v3168
      %v3181 = vadd.f32 %v3149, %v3168
      %v3182 = vadd.f32 %v3152, %v3168
      %v3183 = vadd.f32 %v3155, %v3168
      %v3184 = vadd.f32 %v3158, %v3168
      %v3185 = vadd.f32 %v3161, %v3168
      %v3186 = vsel %vm879, %v3023, -inf
      %v3187 = vrot.slane %v3186, 4
      %v3188 = vmax.f32 %v3186, %v3187
      %v3189 = vrot.slane %v3188, 2
      %v3190 = vmax.f32 %v3188, %v3189
      %v3191 = vrot.slane %v3190, 1
      %v3192 = vmax.f32 %v3190, %v3191
      %v3193 = vsub.f32 %v3023, %v3192
      %v3194 = vmul.f32 %v3193, 1.442695
      %v3195 = vpow.pop %v3194
      %v3196 = vmul.f32 %v3195, %v694
      %v3197 = vsel %vm879, %v3196, 0.0
      %v3198 = vrot.slane %v3197, 4
      %v3199 = vadd.f32 %v3197, %v3198
      %v3200 = vrot.slane %v3199, 2
      %v3201 = vadd.f32 %v3199, %v3200
      %v3202 = vrot.slane %v3201, 1
      %v3203 = vadd.f32 %v3201, %v3202
      %v3204 = vadd.f32 %v3203, 1e-06
      %v3205 = vrcp.pop %v3204
      %v3206 = vmul.f32 %v3196, %v3205
      %v3207 = vsel %vm879, %v3170, -inf
      %v3208 = vsel %vm879, %v3171, -inf
      %v3209 = vsel %vm879, %v3172, -inf
      %v3210 = vsel %vm879, %v3173, -inf
      %v3211 = vsel %vm879, %v3174, -inf
      %v3212 = vmax.f32 %v3207, %v3211
      %v3213 = vsel %vm879, %v3175, -inf
      %v3214 = vmax.f32 %v3208, %v3213
      %v3215 = vsel %vm879, %v3176, -inf
      %v3216 = vmax.f32 %v3209, %v3215
      %v3217 = vsel %vm879, %v3177, -inf
      %v3218 = vmax.f32 %v3210, %v3217
      %v3219 = vsel %vm879, %v3178, -inf
      %v3220 = vmax.f32 %v3212, %v3219
      %v3221 = vsel %vm879, %v3179, -inf
      %v3222 = vmax.f32 %v3214, %v3221
      %v3223 = vsel %vm879, %v3180, -inf
      %v3224 = vmax.f32 %v3216, %v3223
      %v3225 = vsel %vm879, %v3181, -inf
      %v3226 = vmax.f32 %v3218, %v3225
      %v3227 = vsel %vm879, %v3182, -inf
      %v3228 = vmax.f32 %v3220, %v3227
      %v3229 = vsel %vm879, %v3183, -inf
      %v3230 = vmax.f32 %v3222, %v3229
      %v3231 = vsel %vm879, %v3184, -inf
      %v3232 = vmax.f32 %v3224, %v3231
      %v3233 = vsel %vm879, %v3185, -inf
      %v3234 = vmax.f32 %v3226, %v3233
      %v3235 = vmax.f32 %v3228, %v3230
      %v3236 = vmax.f32 %v3232, %v3234
      %v3237 = vmax.f32 %v3235, %v3236
      %v3238 = vrot.slane %v3237, 4
      %v3239 = vmax.f32 %v3237, %v3238
      %v3240 = vrot.slane %v3239, 2
      %v3241 = vmax.f32 %v3239, %v3240
      %v3242 = vrot.slane %v3241, 1
      %v3243 = vmax.f32 %v3241, %v3242
      %v3244 = vsub.f32 %v3170, %v3243
      %v3245 = vsub.f32 %v3171, %v3243
      %v3246 = vsub.f32 %v3172, %v3243
      %v3247 = vsub.f32 %v3173, %v3243
      %v3248 = vsub.f32 %v3174, %v3243
      %v3249 = vsub.f32 %v3175, %v3243
      %v3250 = vsub.f32 %v3176, %v3243
      %v3251 = vsub.f32 %v3177, %v3243
      %v3252 = vsub.f32 %v3178, %v3243
      %v3253 = vsub.f32 %v3179, %v3243
      %v3254 = vsub.f32 %v3180, %v3243
      %v3255 = vsub.f32 %v3181, %v3243
      %v3256 = vsub.f32 %v3182, %v3243
      %v3257 = vsub.f32 %v3183, %v3243
      %v3258 = vsub.f32 %v3184, %v3243
      %v3259 = vsub.f32 %v3185, %v3243
      %v3260 = vmul.f32 %v3244, 1.442695
      %v3261 = vpow.pop %v3260
      %v3262 = vmul.f32 %v3245, 1.442695
      %v3263 = vpow.pop %v3262
      %v3264 = vmul.f32 %v3246, 1.442695
      %v3265 = vpow.pop %v3264
      %v3266 = vmul.f32 %v3247, 1.442695
      %v3267 = vpow.pop %v3266
      %v3268 = vmul.f32 %v3248, 1.442695
      %v3269 = vpow.pop %v3268
      %v3270 = vmul.f32 %v3249, 1.442695
      %v3271 = vpow.pop %v3270
      %v3272 = vmul.f32 %v3250, 1.442695
      %v3273 = vpow.pop %v3272
      %v3274 = vmul.f32 %v3251, 1.442695
      %v3275 = vpow.pop %v3274
      %v3276 = vmul.f32 %v3252, 1.442695
      %v3277 = vpow.pop %v3276
      %v3278 = vmul.f32 %v3253, 1.442695
      %v3279 = vpow.pop %v3278
      %v3280 = vmul.f32 %v3254, 1.442695
      %v3281 = vpow.pop %v3280
      %v3282 = vmul.f32 %v3255, 1.442695
      %v3283 = vpow.pop %v3282
      %v3284 = vmul.f32 %v3256, 1.442695
      %v3285 = vpow.pop %v3284
      %v3286 = vmul.f32 %v3257, 1.442695
      %v3287 = vpow.pop %v3286
      %v3288 = vmul.f32 %v3258, 1.442695
      %v3289 = vpow.pop %v3288
      %v3290 = vmul.f32 %v3259, 1.442695
      %v3291 = vpow.pop %v3290
      %v3292 = vmul.f32 %v3261, %v712
      %v3293 = vmul.f32 %v3263, %v713
      %v3294 = vmul.f32 %v3265, %v714
      %v3295 = vmul.f32 %v3267, %v715
      %v3296 = vmul.f32 %v3269, %v716
      %v3297 = vmul.f32 %v3271, %v717
      %v3298 = vmul.f32 %v3273, %v718
      %v3299 = vmul.f32 %v3275, %v719
      %v3300 = vmul.f32 %v3277, %v720
      %v3301 = vmul.f32 %v3279, %v721
      %v3302 = vmul.f32 %v3281, %v722
      %v3303 = vmul.f32 %v3283, %v723
      %v3304 = vmul.f32 %v3285, %v724
      %v3305 = vmul.f32 %v3287, %v725
      %v3306 = vmul.f32 %v3289, %v726
      %v3307 = vmul.f32 %v3291, %v727
      %v3308 = vsel %vm879, %v3292, 0.0
      %v3309 = vsel %vm879, %v3293, 0.0
      %v3310 = vadd.f32 %v3308, %v3309
      %v3311 = vsel %vm879, %v3294, 0.0
      %v3312 = vadd.f32 %v3310, %v3311
      %v3313 = vsel %vm879, %v3295, 0.0
      %v3314 = vadd.f32 %v3312, %v3313
      %v3315 = vsel %vm879, %v3296, 0.0
      %v3316 = vadd.f32 %v3314, %v3315
      %v3317 = vsel %vm879, %v3297, 0.0
      %v3318 = vadd.f32 %v3316, %v3317
      %v3319 = vsel %vm879, %v3298, 0.0
      %v3320 = vadd.f32 %v3318, %v3319
      %v3321 = vsel %vm879, %v3299, 0.0
      %v3322 = vadd.f32 %v3320, %v3321
      %v3323 = vsel %vm879, %v3300, 0.0
      %v3324 = vadd.f32 %v3322, %v3323
      %v3325 = vsel %vm879, %v3301, 0.0
      %v3326 = vadd.f32 %v3324, %v3325
      %v3327 = vsel %vm879, %v3302, 0.0
      %v3328 = vadd.f32 %v3326, %v3327
      %v3329 = vsel %vm879, %v3303, 0.0
      %v3330 = vadd.f32 %v3328, %v3329
      %v3331 = vsel %vm879, %v3304, 0.0
      %v3332 = vadd.f32 %v3330, %v3331
      %v3333 = vsel %vm879, %v3305, 0.0
      %v3334 = vadd.f32 %v3332, %v3333
      %v3335 = vsel %vm879, %v3306, 0.0
      %v3336 = vadd.f32 %v3334, %v3335
      %v3337 = vsel %vm879, %v3307, 0.0
      %v3338 = vadd.f32 %v3336, %v3337
      %v3339 = vrot.slane %v3338, 4
      %v3340 = vadd.f32 %v3338, %v3339
      %v3341 = vrot.slane %v3340, 2
      %v3342 = vadd.f32 %v3340, %v3341
      %v3343 = vrot.slane %v3342, 1
      %v3344 = vadd.f32 %v3342, %v3343
      %v3345 = vadd.f32 %v3344, 1e-06
      %v3346 = vrcp.pop %v3345
      %v3347 = vmul.f32 %v3292, %v3346
      %v3348 = vmul.f32 %v3293, %v3346
      %v3349 = vmul.f32 %v3294, %v3346
      %v3350 = vmul.f32 %v3295, %v3346
      %v3351 = vmul.f32 %v3296, %v3346
      %v3352 = vmul.f32 %v3297, %v3346
      %v3353 = vmul.f32 %v3298, %v3346
      %v3354 = vmul.f32 %v3299, %v3346
      %v3355 = vmul.f32 %v3300, %v3346
      %v3356 = vmul.f32 %v3301, %v3346
      %v3357 = vmul.f32 %v3302, %v3346
      %v3358 = vmul.f32 %v3303, %v3346
      %v3359 = vmul.f32 %v3304, %v3346
      %v3360 = vmul.f32 %v3305, %v3346
      %v3361 = vmul.f32 %v3306, %v3346
      %v3362 = vmul.f32 %v3307, %v3346
      %3364 = vset.pattern.permute.xlu0 0
      %3365 = vperm.xlu0 %3364, %v3206
      %v3366 = vpop.permute.xlu0 %3365
      %v3368 = vmul.f32 %v693, %v3366
      %v3369 = vsel %vm728, %v3368, 0.0
      %v3370 = vrot.slane %v3369, 4
      %v3371 = vadd.f32 %v3369, %v3370
      %v3372 = vrot.slane %v3371, 2
      %v3373 = vadd.f32 %v3371, %v3372
      %v3374 = vrot.slane %v3373, 1
      %v3375 = vadd.f32 %v3373, %v3374
      %3377 = vset.pattern.permute.xlu0 0
      %3378 = vperm.xlu0 %3377, %v3347
      %v3379 = vpop.permute.xlu0 %3378
      %3382 = vset.pattern.permute.xlu0 0
      %3383 = vperm.xlu0 %3382, %v3348
      %v3384 = vpop.permute.xlu0 %3383
      %3387 = vset.pattern.permute.xlu0 0
      %3388 = vperm.xlu0 %3387, %v3349
      %v3389 = vpop.permute.xlu0 %3388
      %3392 = vset.pattern.permute.xlu0 0
      %3393 = vperm.xlu0 %3392, %v3350
      %v3394 = vpop.permute.xlu0 %3393
      %3397 = vset.pattern.permute.xlu0 0
      %3398 = vperm.xlu0 %3397, %v3351
      %v3399 = vpop.permute.xlu0 %3398
      %3402 = vset.pattern.permute.xlu0 0
      %3403 = vperm.xlu0 %3402, %v3352
      %v3404 = vpop.permute.xlu0 %3403
      %3407 = vset.pattern.permute.xlu0 0
      %3408 = vperm.xlu0 %3407, %v3353
      %v3409 = vpop.permute.xlu0 %3408
      %3412 = vset.pattern.permute.xlu0 0
      %3413 = vperm.xlu0 %3412, %v3354
      %v3414 = vpop.permute.xlu0 %3413
      %3417 = vset.pattern.permute.xlu0 0
      %3418 = vperm.xlu0 %3417, %v3355
      %v3419 = vpop.permute.xlu0 %3418
      %3422 = vset.pattern.permute.xlu0 0
      %3423 = vperm.xlu0 %3422, %v3356
      %v3424 = vpop.permute.xlu0 %3423
      %3427 = vset.pattern.permute.xlu0 0
      %3428 = vperm.xlu0 %3427, %v3357
      %v3429 = vpop.permute.xlu0 %3428
      %3432 = vset.pattern.permute.xlu0 0
      %3433 = vperm.xlu0 %3432, %v3358
      %v3434 = vpop.permute.xlu0 %3433
      %3437 = vset.pattern.permute.xlu0 0
      %3438 = vperm.xlu0 %3437, %v3359
      %v3439 = vpop.permute.xlu0 %3438
      %3442 = vset.pattern.permute.xlu0 0
      %3443 = vperm.xlu0 %3442, %v3360
      %v3444 = vpop.permute.xlu0 %3443
      %3447 = vset.pattern.permute.xlu0 0
      %3448 = vperm.xlu0 %3447, %v3361
      %v3449 = vpop.permute.xlu0 %3448
      %3452 = vset.pattern.permute.xlu0 0
      %3453 = vperm.xlu0 %3452, %v3362
      %v3454 = vpop.permute.xlu0 %3453
      %v3456 = vmul.f32 %v695, %v3379
      %v3457 = vmul.f32 %v696, %v3384
      %v3458 = vmul.f32 %v697, %v3389
      %v3459 = vmul.f32 %v698, %v3394
      %v3460 = vmul.f32 %v699, %v3399
      %v3461 = vmul.f32 %v700, %v3404
      %v3462 = vmul.f32 %v701, %v3409
      %v3463 = vmul.f32 %v702, %v3414
      %v3464 = vmul.f32 %v703, %v3419
      %v3465 = vmul.f32 %v704, %v3424
      %v3466 = vmul.f32 %v705, %v3429
      %v3467 = vmul.f32 %v706, %v3434
      %v3468 = vmul.f32 %v707, %v3439
      %v3469 = vmul.f32 %v708, %v3444
      %v3470 = vmul.f32 %v709, %v3449
      %v3471 = vmul.f32 %v710, %v3454
      %v3472 = vsel %vm728, %v3456, 0.0
      %v3473 = vsel %vm728, %v3457, 0.0
      %v3474 = vadd.f32 %v3472, %v3473
      %v3475 = vsel %vm728, %v3458, 0.0
      %v3476 = vadd.f32 %v3474, %v3475
      %v3477 = vsel %vm728, %v3459, 0.0
      %v3478 = vadd.f32 %v3476, %v3477
      %v3479 = vsel %vm728, %v3460, 0.0
      %v3480 = vadd.f32 %v3478, %v3479
      %v3481 = vsel %vm728, %v3461, 0.0
      %v3482 = vadd.f32 %v3480, %v3481
      %v3483 = vsel %vm728, %v3462, 0.0
      %v3484 = vadd.f32 %v3482, %v3483
      %v3485 = vsel %vm728, %v3463, 0.0
      %v3486 = vadd.f32 %v3484, %v3485
      %v3487 = vsel %vm728, %v3464, 0.0
      %v3488 = vadd.f32 %v3486, %v3487
      %v3489 = vsel %vm728, %v3465, 0.0
      %v3490 = vadd.f32 %v3488, %v3489
      %v3491 = vsel %vm728, %v3466, 0.0
      %v3492 = vadd.f32 %v3490, %v3491
      %v3493 = vsel %vm728, %v3467, 0.0
      %v3494 = vadd.f32 %v3492, %v3493
      %v3495 = vsel %vm728, %v3468, 0.0
      %v3496 = vadd.f32 %v3494, %v3495
      %v3497 = vsel %vm728, %v3469, 0.0
      %v3498 = vadd.f32 %v3496, %v3497
      %v3499 = vsel %vm728, %v3470, 0.0
      %v3500 = vadd.f32 %v3498, %v3499
      %v3501 = vsel %vm728, %v3471, 0.0
      %v3502 = vadd.f32 %v3500, %v3501
      %v3503 = vrot.slane %v3502, 4
      %v3504 = vadd.f32 %v3502, %v3503
      %v3505 = vrot.slane %v3504, 2
      %v3506 = vadd.f32 %v3504, %v3505
      %v3507 = vrot.slane %v3506, 1
      %v3508 = vadd.f32 %v3506, %v3507
      %vm3509 = vcmask 253952
      %3510 = vst.msk [vmem:[%s682] sm:$0x1] %vm3509, %v3375
      %3511 = vst.msk [vmem:[%s685] sm:$0x1] %vm3509, %v3508
      %p3512 = scmp.lt.s32.totalorder %s33, 1
      %s3513 = scalar_select %p3512, %s33, 1
      %s3514 = smul.addr %s3513, 8
      %s3515 = scalar_lea.vmem %s19, %s3514
      %p3516 = scmp.lt.s32.totalorder %s33, 1
      %s3517 = scalar_select %p3516, %s33, 1
      %s3518 = scalar_lea.vmem %s20, %s3517
      %p3519 = scmp.lt.s32.totalorder %s33, 1
      %s3520 = scalar_select %p3519, %s33, 1
      %s3521 = scalar_lea.vmem %s21, %s3520
      // Predicated region
      $region97: #{gin_ac_forward.6} parent=95 // pred_check
        %p3522 = pneg %p460
      $region98: #{gin_ac_forward.6} parent=95 // pred_check_branch
        %3524 = sbr.rel (%p3522) target = $region100
      $region99: #{gin_ac_forward.6} parent=95 // pred_region
        _
      $region100: #{gin_ac_forward.6} parent=95 // pred_fallthru
        _
      // Predicated region
      $region101: #{gin_ac_forward.6} parent=95 // pred_check
        %p3525 = pneg %p486
      $region102: #{gin_ac_forward.6} parent=95 // pred_check_branch
        %3527 = sbr.rel (%p3525) target = $region104
      $region103: #{gin_ac_forward.6} parent=95 // pred_region
        _
      $region104: #{gin_ac_forward.6} parent=95 // pred_fallthru
        _
      // Predicated region
      $region105: #{gin_ac_forward.6} parent=95 // pred_check
        %p3528 = pneg %p512
      $region106: #{gin_ac_forward.6} parent=95 // pred_check_branch
        %3530 = sbr.rel (%p3528) target = $region108
      $region107: #{gin_ac_forward.6} parent=95 // pred_region
        _
      $region108: #{gin_ac_forward.6} parent=95 // pred_fallthru
        _
    $region96: #{gin_ac_forward.6} parent=5 // pred_fallthru
      _
    %p3531 = scmp.le.s32.totalorder 2, %s28
    // Predicated region
    $region109: #{gin_ac_forward.6} parent=5 // pred_check
      %p3532 = pneg %p3531
    $region110: #{gin_ac_forward.6} parent=5 // pred_check_branch
      %3534 = sbr.rel (%p3532) target = $region112
    $region111: #{gin_ac_forward.6} parent=5 // pred_region
      %s3535 = ssub.s32 %s28, 2
      // Predicated region
      $region113: #{gin_ac_forward.6} parent=111 // pred_check
        %p3536 = pneg %p466
      $region114: #{gin_ac_forward.6} parent=111 // pred_check_branch
        %3538 = sbr.rel (%p3536) target = $region116
      $region115: #{gin_ac_forward.6} parent=111 // pred_region
        %p3539 = scmp.lt.s32.totalorder %s34, 1
        %s3540 = scalar_select %p3539, %s34, 1
        %s3541 = smul.addr %s3540, 8
        %s3542 = scalar_lea.vmem %s19, %s3541
      $region116: #{gin_ac_forward.6} parent=111 // pred_fallthru
        _
      // Predicated region
      $region117: #{gin_ac_forward.6} parent=111 // pred_check
        %p3543 = pneg %p492
      $region118: #{gin_ac_forward.6} parent=111 // pred_check_branch
        %3545 = sbr.rel (%p3543) target = $region120
      $region119: #{gin_ac_forward.6} parent=111 // pred_region
        %p3546 = scmp.lt.s32.totalorder %s34, 1
        %s3547 = scalar_select %p3546, %s34, 1
        %s3548 = scalar_lea.vmem %s20, %s3547
      $region120: #{gin_ac_forward.6} parent=111 // pred_fallthru
        _
      // Predicated region
      $region121: #{gin_ac_forward.6} parent=111 // pred_check
        %p3549 = pneg %p518
      $region122: #{gin_ac_forward.6} parent=111 // pred_check_branch
        %3551 = sbr.rel (%p3549) target = $region124
      $region123: #{gin_ac_forward.6} parent=111 // pred_region
        %p3552 = scmp.lt.s32.totalorder %s34, 1
        %s3553 = scalar_select %p3552, %s34, 1
        %s3554 = scalar_lea.vmem %s21, %s3553
      $region124: #{gin_ac_forward.6} parent=111 // pred_fallthru
        _
    $region112: #{gin_ac_forward.6} parent=5 // pred_fallthru
      _
  $region6: #{gin_ac_forward.6} parent=0 // loop_footer
    %s32 = sadd.s32 1, %s28
  $region7: #{gin_ac_forward.6} parent=0 // loop_footer_branch
    %27 = sbr.rel target = $region3
  $region8: #{gin_ac_forward.6} parent=0 // loop_exit
    _

// kernel: gin_ac_forward.7
$region0: #{gin_ac_forward.7}
  #allocation0 [shape = 'u32[]', space=smem, size = 0x4, offset = 0x4, fixed_abs, tag = 'smem constant byte address 0x4 - core index']
  #allocation1 [shape = 'u32[144,128]{1,0:T(1,128)}', space=vmem, size = 0x12000, scoped, tag = 'internal scratch']
  #allocation2 [shape = 'f32[1,1]{1,0:T(1,128)S(1)}', space=vmem, size = 0x200, scoped, tag = 'scoped memory for gin_ac_forward.7']
  %s0 = inlined_call_operand.vmem [shape: f32[2,2048], index: 0, kind: input, shape index: {}]
  %s1 = inlined_call_operand.vmem [shape: f32[2048,32], index: 1, kind: input, shape index: {}]
  %s2 = inlined_call_operand.vmem [shape: f32[1,32], index: 2, kind: input, shape index: {}]
  %s3 = inlined_call_operand.vmem [shape: f32[32,32], index: 3, kind: input, shape index: {}]
  %s4 = inlined_call_operand.vmem [shape: f32[1,32], index: 4, kind: input, shape index: {}]
  %s5 = inlined_call_operand.vmem [shape: f32[32,32], index: 5, kind: input, shape index: {}]
  %s6 = inlined_call_operand.vmem [shape: f32[1,32], index: 6, kind: input, shape index: {}]
  %s7 = inlined_call_operand.vmem [shape: f32[32,1], index: 7, kind: input, shape index: {}]
  %s8 = inlined_call_operand.<no memory space> [shape: f32[1,1], index: 8, kind: input, shape index: {}]
  %s9 = inlined_call_operand.vmem [shape: f32[2,1], index: 9, kind: output, shape index: {}]
  %s10 = sld [smem:[#allocation0]]
  $region46: #{gin_ac_forward.7} parent=0
    _
  %s12 = ssub.s32 1, %s10
  %s13 = scalar_select 0, %s12, %s10
  %v14 = vstv %s8
  %15 = vst [vmem:[#allocation2] sm:$0x1] %v14
  // Predicated region
  $region2: #{gin_ac_forward.7} parent=0 // pred_check
    _
  $region3: #{gin_ac_forward.7} parent=0 // pred_check_branch
    %17 = sbr.rel (0) target = $region5
  $region4: #{gin_ac_forward.7} parent=0 // pred_region
    _
  $region5: #{gin_ac_forward.7} parent=0 // pred_fallthru
    _
  // Predicated region
  $region6: #{gin_ac_forward.7} parent=0 // pred_check
    _
  $region7: #{gin_ac_forward.7} parent=0 // pred_check_branch
    %19 = sbr.rel (0) target = $region9
  $region8: #{gin_ac_forward.7} parent=0 // pred_region
    _
  $region9: #{gin_ac_forward.7} parent=0 // pred_fallthru
    _
  // Predicated region
  $region10: #{gin_ac_forward.7} parent=0 // pred_check
    _
  $region11: #{gin_ac_forward.7} parent=0 // pred_check_branch
    %21 = sbr.rel (0) target = $region13
  $region12: #{gin_ac_forward.7} parent=0 // pred_region
    _
  $region13: #{gin_ac_forward.7} parent=0 // pred_fallthru
    _
  // Predicated region
  $region14: #{gin_ac_forward.7} parent=0 // pred_check
    _
  $region15: #{gin_ac_forward.7} parent=0 // pred_check_branch
    %23 = sbr.rel (0) target = $region17
  $region16: #{gin_ac_forward.7} parent=0 // pred_region
    _
  $region17: #{gin_ac_forward.7} parent=0 // pred_fallthru
    _
  // Predicated region
  $region18: #{gin_ac_forward.7} parent=0 // pred_check
    _
  $region19: #{gin_ac_forward.7} parent=0 // pred_check_branch
    %25 = sbr.rel (0) target = $region21
  $region20: #{gin_ac_forward.7} parent=0 // pred_region
    _
  $region21: #{gin_ac_forward.7} parent=0 // pred_fallthru
    _
  // Predicated region
  $region22: #{gin_ac_forward.7} parent=0 // pred_check
    _
  $region23: #{gin_ac_forward.7} parent=0 // pred_check_branch
    %27 = sbr.rel (0) target = $region25
  $region24: #{gin_ac_forward.7} parent=0 // pred_region
    _
  $region25: #{gin_ac_forward.7} parent=0 // pred_fallthru
    _
  // Predicated region
  $region26: #{gin_ac_forward.7} parent=0 // pred_check
    _
  $region27: #{gin_ac_forward.7} parent=0 // pred_check_branch
    %29 = sbr.rel (0) target = $region29
  $region28: #{gin_ac_forward.7} parent=0 // pred_region
    _
  $region29: #{gin_ac_forward.7} parent=0 // pred_fallthru
    _
  // Predicated region
  $region30: #{gin_ac_forward.7} parent=0 // pred_check
    _
  $region31: #{gin_ac_forward.7} parent=0 // pred_check_branch
    %31 = sbr.rel (0) target = $region33
  $region32: #{gin_ac_forward.7} parent=0 // pred_region
    _
  $region33: #{gin_ac_forward.7} parent=0 // pred_fallthru
    _
  // Predicated region
  $region34: #{gin_ac_forward.7} parent=0 // pred_check
    _
  $region35: #{gin_ac_forward.7} parent=0 // pred_check_branch
    %33 = sbr.rel (0) target = $region37
  $region36: #{gin_ac_forward.7} parent=0 // pred_region
    _
  $region37: #{gin_ac_forward.7} parent=0 // pred_fallthru
    _
  %v35 = vld [vmem:[%s0] sm:$0xff]
  %v36 = vld [vmem:[%s0 + $0x8] sm:$0xff]
  %v37 = vld [vmem:[%s0 + $0x10] sm:$0xff]
  %v38 = vld [vmem:[%s0 + $0x18] sm:$0xff]
  %v39 = vld [vmem:[%s1] sm:$0xff]
  %v40 = vld [vmem:[%s1 + $0x8] sm:$0xff]
  %v41 = vld [vmem:[%s1 + $0x10] sm:$0xff]
  %v42 = vld [vmem:[%s1 + $0x18] sm:$0xff]
  %v43 = vld [vmem:[%s1 + $0x20] sm:$0xff]
  %v44 = vld [vmem:[%s1 + $0x28] sm:$0xff]
  %v45 = vld [vmem:[%s1 + $0x30] sm:$0xff]
  %v46 = vld [vmem:[%s1 + $0x38] sm:$0xff]
  %v47 = vld [vmem:[%s1 + $0x40] sm:$0xff]
  %v48 = vld [vmem:[%s1 + $0x48] sm:$0xff]
  %v49 = vld [vmem:[%s1 + $0x50] sm:$0xff]
  %v50 = vld [vmem:[%s1 + $0x58] sm:$0xff]
  %v51 = vld [vmem:[%s1 + $0x60] sm:$0xff]
  %v52 = vld [vmem:[%s1 + $0x68] sm:$0xff]
  %v53 = vld [vmem:[%s1 + $0x70] sm:$0xff]
  %v54 = vld [vmem:[%s1 + $0x78] sm:$0xff]
  %v55 = vld [vmem:[%s1 + $0x80] sm:$0xff]
  %v56 = vld [vmem:[%s1 + $0x88] sm:$0xff]
  %v57 = vld [vmem:[%s1 + $0x90] sm:$0xff]
  %v58 = vld [vmem:[%s1 + $0x98] sm:$0xff]
  %v59 = vld [vmem:[%s1 + $0xa0] sm:$0xff]
  %v60 = vld [vmem:[%s1 + $0xa8] sm:$0xff]
  %v61 = vld [vmem:[%s1 + $0xb0] sm:$0xff]
  %v62 = vld [vmem:[%s1 + $0xb8] sm:$0xff]
  %v63 = vld [vmem:[%s1 + $0xc0] sm:$0xff]
  %v64 = vld [vmem:[%s1 + $0xc8] sm:$0xff]
  %v65 = vld [vmem:[%s1 + $0xd0] sm:$0xff]
  %v66 = vld [vmem:[%s1 + $0xd8] sm:$0xff]
  %v67 = vld [vmem:[%s1 + $0xe0] sm:$0xff]
  %v68 = vld [vmem:[%s1 + $0xe8] sm:$0xff]
  %v69 = vld [vmem:[%s1 + $0xf0] sm:$0xff]
  %v70 = vld [vmem:[%s1 + $0xf8] sm:$0xff]
  %v71 = vld [vmem:[%s1 + $0x100] sm:$0xff]
  %v72 = vld [vmem:[%s1 + $0x108] sm:$0xff]
  %v73 = vld [vmem:[%s1 + $0x110] sm:$0xff]
  %v74 = vld [vmem:[%s1 + $0x118] sm:$0xff]
  %v75 = vld [vmem:[%s1 + $0x120] sm:$0xff]
  %v76 = vld [vmem:[%s1 + $0x128] sm:$0xff]
  %v77 = vld [vmem:[%s1 + $0x130] sm:$0xff]
  %v78 = vld [vmem:[%s1 + $0x138] sm:$0xff]
  %v79 = vld [vmem:[%s1 + $0x140] sm:$0xff]
  %v80 = vld [vmem:[%s1 + $0x148] sm:$0xff]
  %v81 = vld [vmem:[%s1 + $0x150] sm:$0xff]
  %v82 = vld [vmem:[%s1 + $0x158] sm:$0xff]
  %v83 = vld [vmem:[%s1 + $0x160] sm:$0xff]
  %v84 = vld [vmem:[%s1 + $0x168] sm:$0xff]
  %v85 = vld [vmem:[%s1 + $0x170] sm:$0xff]
  %v86 = vld [vmem:[%s1 + $0x178] sm:$0xff]
  %v87 = vld [vmem:[%s1 + $0x180] sm:$0xff]
  %v88 = vld [vmem:[%s1 + $0x188] sm:$0xff]
  %v89 = vld [vmem:[%s1 + $0x190] sm:$0xff]
  %v90 = vld [vmem:[%s1 + $0x198] sm:$0xff]
  %v91 = vld [vmem:[%s1 + $0x1a0] sm:$0xff]
  %v92 = vld [vmem:[%s1 + $0x1a8] sm:$0xff]
  %v93 = vld [vmem:[%s1 + $0x1b0] sm:$0xff]
  %v94 = vld [vmem:[%s1 + $0x1b8] sm:$0xff]
  %v95 = vld [vmem:[%s1 + $0x1c0] sm:$0xff]
  %v96 = vld [vmem:[%s1 + $0x1c8] sm:$0xff]
  %v97 = vld [vmem:[%s1 + $0x1d0] sm:$0xff]
  %v98 = vld [vmem:[%s1 + $0x1d8] sm:$0xff]
  %v99 = vld [vmem:[%s1 + $0x1e0] sm:$0xff]
  %v100 = vld [vmem:[%s1 + $0x1e8] sm:$0xff]
  %v101 = vld [vmem:[%s1 + $0x1f0] sm:$0xff]
  %v102 = vld [vmem:[%s1 + $0x1f8] sm:$0xff]
  %v103 = vld [vmem:[%s1 + $0x200] sm:$0xff]
  %v104 = vld [vmem:[%s1 + $0x208] sm:$0xff]
  %v105 = vld [vmem:[%s1 + $0x210] sm:$0xff]
  %v106 = vld [vmem:[%s1 + $0x218] sm:$0xff]
  %v107 = vld [vmem:[%s1 + $0x220] sm:$0xff]
  %v108 = vld [vmem:[%s1 + $0x228] sm:$0xff]
  %v109 = vld [vmem:[%s1 + $0x230] sm:$0xff]
  %v110 = vld [vmem:[%s1 + $0x238] sm:$0xff]
  %v111 = vld [vmem:[%s1 + $0x240] sm:$0xff]
  %v112 = vld [vmem:[%s1 + $0x248] sm:$0xff]
  %v113 = vld [vmem:[%s1 + $0x250] sm:$0xff]
  %v114 = vld [vmem:[%s1 + $0x258] sm:$0xff]
  %v115 = vld [vmem:[%s1 + $0x260] sm:$0xff]
  %v116 = vld [vmem:[%s1 + $0x268] sm:$0xff]
  %v117 = vld [vmem:[%s1 + $0x270] sm:$0xff]
  %v118 = vld [vmem:[%s1 + $0x278] sm:$0xff]
  %v119 = vld [vmem:[%s1 + $0x280] sm:$0xff]
  %v120 = vld [vmem:[%s1 + $0x288] sm:$0xff]
  %v121 = vld [vmem:[%s1 + $0x290] sm:$0xff]
  %v122 = vld [vmem:[%s1 + $0x298] sm:$0xff]
  %v123 = vld [vmem:[%s1 + $0x2a0] sm:$0xff]
  %v124 = vld [vmem:[%s1 + $0x2a8] sm:$0xff]
  %v125 = vld [vmem:[%s1 + $0x2b0] sm:$0xff]
  %v126 = vld [vmem:[%s1 + $0x2b8] sm:$0xff]
  %v127 = vld [vmem:[%s1 + $0x2c0] sm:$0xff]
  %v128 = vld [vmem:[%s1 + $0x2c8] sm:$0xff]
  %v129 = vld [vmem:[%s1 + $0x2d0] sm:$0xff]
  %v130 = vld [vmem:[%s1 + $0x2d8] sm:$0xff]
  %v131 = vld [vmem:[%s1 + $0x2e0] sm:$0xff]
  %v132 = vld [vmem:[%s1 + $0x2e8] sm:$0xff]
  %v133 = vld [vmem:[%s1 + $0x2f0] sm:$0xff]
  %v134 = vld [vmem:[%s1 + $0x2f8] sm:$0xff]
  %v135 = vld [vmem:[%s1 + $0x300] sm:$0xff]
  %v136 = vld [vmem:[%s1 + $0x308] sm:$0xff]
  %v137 = vld [vmem:[%s1 + $0x310] sm:$0xff]
  %v138 = vld [vmem:[%s1 + $0x318] sm:$0xff]
  %v139 = vld [vmem:[%s1 + $0x320] sm:$0xff]
  %v140 = vld [vmem:[%s1 + $0x328] sm:$0xff]
  %v141 = vld [vmem:[%s1 + $0x330] sm:$0xff]
  %v142 = vld [vmem:[%s1 + $0x338] sm:$0xff]
  %v143 = vld [vmem:[%s1 + $0x340] sm:$0xff]
  %v144 = vld [vmem:[%s1 + $0x348] sm:$0xff]
  %v145 = vld [vmem:[%s1 + $0x350] sm:$0xff]
  %v146 = vld [vmem:[%s1 + $0x358] sm:$0xff]
  %v147 = vld [vmem:[%s1 + $0x360] sm:$0xff]
  %v148 = vld [vmem:[%s1 + $0x368] sm:$0xff]
  %v149 = vld [vmem:[%s1 + $0x370] sm:$0xff]
  %v150 = vld [vmem:[%s1 + $0x378] sm:$0xff]
  %v151 = vld [vmem:[%s1 + $0x380] sm:$0xff]
  %v152 = vld [vmem:[%s1 + $0x388] sm:$0xff]
  %v153 = vld [vmem:[%s1 + $0x390] sm:$0xff]
  %v154 = vld [vmem:[%s1 + $0x398] sm:$0xff]
  %v155 = vld [vmem:[%s1 + $0x3a0] sm:$0xff]
  %v156 = vld [vmem:[%s1 + $0x3a8] sm:$0xff]
  %v157 = vld [vmem:[%s1 + $0x3b0] sm:$0xff]
  %v158 = vld [vmem:[%s1 + $0x3b8] sm:$0xff]
  %v159 = vld [vmem:[%s1 + $0x3c0] sm:$0xff]
  %v160 = vld [vmem:[%s1 + $0x3c8] sm:$0xff]
  %v161 = vld [vmem:[%s1 + $0x3d0] sm:$0xff]
  %v162 = vld [vmem:[%s1 + $0x3d8] sm:$0xff]
  %v163 = vld [vmem:[%s1 + $0x3e0] sm:$0xff]
  %v164 = vld [vmem:[%s1 + $0x3e8] sm:$0xff]
  %v165 = vld [vmem:[%s1 + $0x3f0] sm:$0xff]
  %v166 = vld [vmem:[%s1 + $0x3f8] sm:$0xff]
  %v167 = vld [vmem:[%s1 + $0x400] sm:$0xff]
  %v168 = vld [vmem:[%s1 + $0x408] sm:$0xff]
  %v169 = vld [vmem:[%s1 + $0x410] sm:$0xff]
  %v170 = vld [vmem:[%s1 + $0x418] sm:$0xff]
  %v171 = vld [vmem:[%s1 + $0x420] sm:$0xff]
  %v172 = vld [vmem:[%s1 + $0x428] sm:$0xff]
  %v173 = vld [vmem:[%s1 + $0x430] sm:$0xff]
  %v174 = vld [vmem:[%s1 + $0x438] sm:$0xff]
  %v175 = vld [vmem:[%s1 + $0x440] sm:$0xff]
  %v176 = vld [vmem:[%s1 + $0x448] sm:$0xff]
  %v177 = vld [vmem:[%s1 + $0x450] sm:$0xff]
  %v178 = vld [vmem:[%s1 + $0x458] sm:$0xff]
  %v179 = vld [vmem:[%s1 + $0x460] sm:$0xff]
  %v180 = vld [vmem:[%s1 + $0x468] sm:$0xff]
  %v181 = vld [vmem:[%s1 + $0x470] sm:$0xff]
  %v182 = vld [vmem:[%s1 + $0x478] sm:$0xff]
  %v183 = vld [vmem:[%s1 + $0x480] sm:$0xff]
  %v184 = vld [vmem:[%s1 + $0x488] sm:$0xff]
  %v185 = vld [vmem:[%s1 + $0x490] sm:$0xff]
  %v186 = vld [vmem:[%s1 + $0x498] sm:$0xff]
  %v187 = vld [vmem:[%s1 + $0x4a0] sm:$0xff]
  %v188 = vld [vmem:[%s1 + $0x4a8] sm:$0xff]
  %v189 = vld [vmem:[%s1 + $0x4b0] sm:$0xff]
  %v190 = vld [vmem:[%s1 + $0x4b8] sm:$0xff]
  %v191 = vld [vmem:[%s1 + $0x4c0] sm:$0xff]
  %v192 = vld [vmem:[%s1 + $0x4c8] sm:$0xff]
  %v193 = vld [vmem:[%s1 + $0x4d0] sm:$0xff]
  %v194 = vld [vmem:[%s1 + $0x4d8] sm:$0xff]
  %v195 = vld [vmem:[%s1 + $0x4e0] sm:$0xff]
  %v196 = vld [vmem:[%s1 + $0x4e8] sm:$0xff]
  %v197 = vld [vmem:[%s1 + $0x4f0] sm:$0xff]
  %v198 = vld [vmem:[%s1 + $0x4f8] sm:$0xff]
  %v199 = vld [vmem:[%s1 + $0x500] sm:$0xff]
  %v200 = vld [vmem:[%s1 + $0x508] sm:$0xff]
  %v201 = vld [vmem:[%s1 + $0x510] sm:$0xff]
  %v202 = vld [vmem:[%s1 + $0x518] sm:$0xff]
  %v203 = vld [vmem:[%s1 + $0x520] sm:$0xff]
  %v204 = vld [vmem:[%s1 + $0x528] sm:$0xff]
  %v205 = vld [vmem:[%s1 + $0x530] sm:$0xff]
  %v206 = vld [vmem:[%s1 + $0x538] sm:$0xff]
  %v207 = vld [vmem:[%s1 + $0x540] sm:$0xff]
  %v208 = vld [vmem:[%s1 + $0x548] sm:$0xff]
  %v209 = vld [vmem:[%s1 + $0x550] sm:$0xff]
  %v210 = vld [vmem:[%s1 + $0x558] sm:$0xff]
  %v211 = vld [vmem:[%s1 + $0x560] sm:$0xff]
  %v212 = vld [vmem:[%s1 + $0x568] sm:$0xff]
  %v213 = vld [vmem:[%s1 + $0x570] sm:$0xff]
  %v214 = vld [vmem:[%s1 + $0x578] sm:$0xff]
  %v215 = vld [vmem:[%s1 + $0x580] sm:$0xff]
  %v216 = vld [vmem:[%s1 + $0x588] sm:$0xff]
  %v217 = vld [vmem:[%s1 + $0x590] sm:$0xff]
  %v218 = vld [vmem:[%s1 + $0x598] sm:$0xff]
  %v219 = vld [vmem:[%s1 + $0x5a0] sm:$0xff]
  %v220 = vld [vmem:[%s1 + $0x5a8] sm:$0xff]
  %v221 = vld [vmem:[%s1 + $0x5b0] sm:$0xff]
  %v222 = vld [vmem:[%s1 + $0x5b8] sm:$0xff]
  %v223 = vld [vmem:[%s1 + $0x5c0] sm:$0xff]
  %v224 = vld [vmem:[%s1 + $0x5c8] sm:$0xff]
  %v225 = vld [vmem:[%s1 + $0x5d0] sm:$0xff]
  %v226 = vld [vmem:[%s1 + $0x5d8] sm:$0xff]
  %v227 = vld [vmem:[%s1 + $0x5e0] sm:$0xff]
  %v228 = vld [vmem:[%s1 + $0x5e8] sm:$0xff]
  %v229 = vld [vmem:[%s1 + $0x5f0] sm:$0xff]
  %v230 = vld [vmem:[%s1 + $0x5f8] sm:$0xff]
  %v231 = vld [vmem:[%s1 + $0x600] sm:$0xff]
  %v232 = vld [vmem:[%s1 + $0x608] sm:$0xff]
  %v233 = vld [vmem:[%s1 + $0x610] sm:$0xff]
  %v234 = vld [vmem:[%s1 + $0x618] sm:$0xff]
  %v235 = vld [vmem:[%s1 + $0x620] sm:$0xff]
  %v236 = vld [vmem:[%s1 + $0x628] sm:$0xff]
  %v237 = vld [vmem:[%s1 + $0x630] sm:$0xff]
  %v238 = vld [vmem:[%s1 + $0x638] sm:$0xff]
  %v239 = vld [vmem:[%s1 + $0x640] sm:$0xff]
  %v240 = vld [vmem:[%s1 + $0x648] sm:$0xff]
  %v241 = vld [vmem:[%s1 + $0x650] sm:$0xff]
  %v242 = vld [vmem:[%s1 + $0x658] sm:$0xff]
  %v243 = vld [vmem:[%s1 + $0x660] sm:$0xff]
  %v244 = vld [vmem:[%s1 + $0x668] sm:$0xff]
  %v245 = vld [vmem:[%s1 + $0x670] sm:$0xff]
  %v246 = vld [vmem:[%s1 + $0x678] sm:$0xff]
  %v247 = vld [vmem:[%s1 + $0x680] sm:$0xff]
  %v248 = vld [vmem:[%s1 + $0x688] sm:$0xff]
  %v249 = vld [vmem:[%s1 + $0x690] sm:$0xff]
  %v250 = vld [vmem:[%s1 + $0x698] sm:$0xff]
  %v251 = vld [vmem:[%s1 + $0x6a0] sm:$0xff]
  %v252 = vld [vmem:[%s1 + $0x6a8] sm:$0xff]
  %v253 = vld [vmem:[%s1 + $0x6b0] sm:$0xff]
  %v254 = vld [vmem:[%s1 + $0x6b8] sm:$0xff]
  %v255 = vld [vmem:[%s1 + $0x6c0] sm:$0xff]
  %v256 = vld [vmem:[%s1 + $0x6c8] sm:$0xff]
  %v257 = vld [vmem:[%s1 + $0x6d0] sm:$0xff]
  %v258 = vld [vmem:[%s1 + $0x6d8] sm:$0xff]
  %v259 = vld [vmem:[%s1 + $0x6e0] sm:$0xff]
  %v260 = vld [vmem:[%s1 + $0x6e8] sm:$0xff]
  %v261 = vld [vmem:[%s1 + $0x6f0] sm:$0xff]
  %v262 = vld [vmem:[%s1 + $0x6f8] sm:$0xff]
  %v263 = vld [vmem:[%s1 + $0x700] sm:$0xff]
  %v264 = vld [vmem:[%s1 + $0x708] sm:$0xff]
  %v265 = vld [vmem:[%s1 + $0x710] sm:$0xff]
  %v266 = vld [vmem:[%s1 + $0x718] sm:$0xff]
  %v267 = vld [vmem:[%s1 + $0x720] sm:$0xff]
  %v268 = vld [vmem:[%s1 + $0x728] sm:$0xff]
  %v269 = vld [vmem:[%s1 + $0x730] sm:$0xff]
  %v270 = vld [vmem:[%s1 + $0x738] sm:$0xff]
  %v271 = vld [vmem:[%s1 + $0x740] sm:$0xff]
  %v272 = vld [vmem:[%s1 + $0x748] sm:$0xff]
  %v273 = vld [vmem:[%s1 + $0x750] sm:$0xff]
  %v274 = vld [vmem:[%s1 + $0x758] sm:$0xff]
  %v275 = vld [vmem:[%s1 + $0x760] sm:$0xff]
  %v276 = vld [vmem:[%s1 + $0x768] sm:$0xff]
  %v277 = vld [vmem:[%s1 + $0x770] sm:$0xff]
  %v278 = vld [vmem:[%s1 + $0x778] sm:$0xff]
  %v279 = vld [vmem:[%s1 + $0x780] sm:$0xff]
  %v280 = vld [vmem:[%s1 + $0x788] sm:$0xff]
  %v281 = vld [vmem:[%s1 + $0x790] sm:$0xff]
  %v282 = vld [vmem:[%s1 + $0x798] sm:$0xff]
  %v283 = vld [vmem:[%s1 + $0x7a0] sm:$0xff]
  %v284 = vld [vmem:[%s1 + $0x7a8] sm:$0xff]
  %v285 = vld [vmem:[%s1 + $0x7b0] sm:$0xff]
  %v286 = vld [vmem:[%s1 + $0x7b8] sm:$0xff]
  %v287 = vld [vmem:[%s1 + $0x7c0] sm:$0xff]
  %v288 = vld [vmem:[%s1 + $0x7c8] sm:$0xff]
  %v289 = vld [vmem:[%s1 + $0x7d0] sm:$0xff]
  %v290 = vld [vmem:[%s1 + $0x7d8] sm:$0xff]
  %v291 = vld [vmem:[%s1 + $0x7e0] sm:$0xff]
  %v292 = vld [vmem:[%s1 + $0x7e8] sm:$0xff]
  %v293 = vld [vmem:[%s1 + $0x7f0] sm:$0xff]
  %v294 = vld [vmem:[%s1 + $0x7f8] sm:$0xff]
  %v295 = vld [vmem:[%s2] sm:$0x1]
  %v300 = vcombine.high %v35, %v35
  %v302 = vunpack.c.l.s4 1983009808
  %v303 = vunpack.c.0.s8 %v302
  %v304 = vlaneseq
  %v305 = vshrl.u32 %v304, 7
  %v306 = vsub.s32 %v303, %v305
  %v307 = vrot.slane %v35, %v306
  %v309 = vunpack.c.l.s4 1983009808
  %v310 = vunpack.c.0.s8 %v309
  %v311 = vlaneseq
  %v312 = vshrl.u32 %v311, 7
  %v313 = vsub.s32 %v310, %v312
  %v314 = vrot.slane %v300, %v313
  %v315 = vcombine.high %v307, %v307
  %v316 = vcombine.high %v314, %v314
  %v317 = vcombine.high %v36, %v36
  %v319 = vunpack.c.l.s4 1983009808
  %v320 = vunpack.c.0.s8 %v319
  %v321 = vlaneseq
  %v322 = vshrl.u32 %v321, 7
  %v323 = vsub.s32 %v320, %v322
  %v324 = vrot.slane %v36, %v323
  %v326 = vunpack.c.l.s4 1983009808
  %v327 = vunpack.c.0.s8 %v326
  %v328 = vlaneseq
  %v329 = vshrl.u32 %v328, 7
  %v330 = vsub.s32 %v327, %v329
  %v331 = vrot.slane %v317, %v330
  %v332 = vcombine.high %v324, %v324
  %v333 = vcombine.high %v331, %v331
  %v334 = vcombine.high %v37, %v37
  %v336 = vunpack.c.l.s4 1983009808
  %v337 = vunpack.c.0.s8 %v336
  %v338 = vlaneseq
  %v339 = vshrl.u32 %v338, 7
  %v340 = vsub.s32 %v337, %v339
  %v341 = vrot.slane %v37, %v340
  %v343 = vunpack.c.l.s4 1983009808
  %v344 = vunpack.c.0.s8 %v343
  %v345 = vlaneseq
  %v346 = vshrl.u32 %v345, 7
  %v347 = vsub.s32 %v344, %v346
  %v348 = vrot.slane %v334, %v347
  %v349 = vcombine.high %v341, %v341
  %v350 = vcombine.high %v348, %v348
  %v351 = vcombine.high %v38, %v38
  %v353 = vunpack.c.l.s4 1983009808
  %v354 = vunpack.c.0.s8 %v353
  %v355 = vlaneseq
  %v356 = vshrl.u32 %v355, 7
  %v357 = vsub.s32 %v354, %v356
  %v358 = vrot.slane %v38, %v357
  %v360 = vunpack.c.l.s4 1983009808
  %v361 = vunpack.c.0.s8 %v360
  %v362 = vlaneseq
  %v363 = vshrl.u32 %v362, 7
  %v364 = vsub.s32 %v361, %v363
  %v365 = vrot.slane %v351, %v364
  %v366 = vcombine.high %v358, %v358
  %v367 = vcombine.high %v365, %v365
  %v384 = vpack.c.bf16 %v307, %v307
  %v385 = vpack.c.bf16 %v315, %v315
  %v386 = vpack.c.bf16 %v314, %v314
  %v387 = vpack.c.bf16 %v316, %v316
  %v388 = vpack.c.bf16 %v324, %v324
  %v389 = vpack.c.bf16 %v332, %v332
  %v390 = vpack.c.bf16 %v331, %v331
  %v391 = vpack.c.bf16 %v333, %v333
  %v392 = vpack.c.bf16 %v341, %v341
  %v393 = vpack.c.bf16 %v349, %v349
  %v394 = vpack.c.bf16 %v348, %v348
  %v395 = vpack.c.bf16 %v350, %v350
  %v396 = vpack.c.bf16 %v358, %v358
  %v397 = vpack.c.bf16 %v366, %v366
  %v398 = vpack.c.bf16 %v365, %v365
  %v399 = vpack.c.bf16 %v367, %v367
  %v400 = vpack.c.bf16 %v40, %v39
  %v401 = vpack.c.bf16 %v42, %v41
  %v402 = vpack.c.bf16 %v44, %v43
  %v403 = vpack.c.bf16 %v46, %v45
  %v404 = vpack.c.bf16 %v48, %v47
  %v405 = vpack.c.bf16 %v50, %v49
  %v406 = vpack.c.bf16 %v52, %v51
  %v407 = vpack.c.bf16 %v54, %v53
  %v408 = vpack.c.bf16 %v56, %v55
  %v409 = vpack.c.bf16 %v58, %v57
  %v410 = vpack.c.bf16 %v60, %v59
  %v411 = vpack.c.bf16 %v62, %v61
  %v412 = vpack.c.bf16 %v64, %v63
  %v413 = vpack.c.bf16 %v66, %v65
  %v414 = vpack.c.bf16 %v68, %v67
  %v415 = vpack.c.bf16 %v70, %v69
  %v416 = vpack.c.bf16 %v72, %v71
  %v417 = vpack.c.bf16 %v74, %v73
  %v418 = vpack.c.bf16 %v76, %v75
  %v419 = vpack.c.bf16 %v78, %v77
  %v420 = vpack.c.bf16 %v80, %v79
  %v421 = vpack.c.bf16 %v82, %v81
  %v422 = vpack.c.bf16 %v84, %v83
  %v423 = vpack.c.bf16 %v86, %v85
  %v424 = vpack.c.bf16 %v88, %v87
  %v425 = vpack.c.bf16 %v90, %v89
  %v426 = vpack.c.bf16 %v92, %v91
  %v427 = vpack.c.bf16 %v94, %v93
  %v428 = vpack.c.bf16 %v96, %v95
  %v429 = vpack.c.bf16 %v98, %v97
  %v430 = vpack.c.bf16 %v100, %v99
  %v431 = vpack.c.bf16 %v102, %v101
  %v432 = vpack.c.bf16 %v104, %v103
  %v433 = vpack.c.bf16 %v106, %v105
  %v434 = vpack.c.bf16 %v108, %v107
  %v435 = vpack.c.bf16 %v110, %v109
  %v436 = vpack.c.bf16 %v112, %v111
  %v437 = vpack.c.bf16 %v114, %v113
  %v438 = vpack.c.bf16 %v116, %v115
  %v439 = vpack.c.bf16 %v118, %v117
  %v440 = vpack.c.bf16 %v120, %v119
  %v441 = vpack.c.bf16 %v122, %v121
  %v442 = vpack.c.bf16 %v124, %v123
  %v443 = vpack.c.bf16 %v126, %v125
  %v444 = vpack.c.bf16 %v128, %v127
  %v445 = vpack.c.bf16 %v130, %v129
  %v446 = vpack.c.bf16 %v132, %v131
  %v447 = vpack.c.bf16 %v134, %v133
  %v448 = vpack.c.bf16 %v136, %v135
  %v449 = vpack.c.bf16 %v138, %v137
  %v450 = vpack.c.bf16 %v140, %v139
  %v451 = vpack.c.bf16 %v142, %v141
  %v452 = vpack.c.bf16 %v144, %v143
  %v453 = vpack.c.bf16 %v146, %v145
  %v454 = vpack.c.bf16 %v148, %v147
  %v455 = vpack.c.bf16 %v150, %v149
  %v456 = vpack.c.bf16 %v152, %v151
  %v457 = vpack.c.bf16 %v154, %v153
  %v458 = vpack.c.bf16 %v156, %v155
  %v459 = vpack.c.bf16 %v158, %v157
  %v460 = vpack.c.bf16 %v160, %v159
  %v461 = vpack.c.bf16 %v162, %v161
  %v462 = vpack.c.bf16 %v164, %v163
  %v463 = vpack.c.bf16 %v166, %v165
  %v464 = vpack.c.bf16 %v168, %v167
  %v465 = vpack.c.bf16 %v170, %v169
  %v466 = vpack.c.bf16 %v172, %v171
  %v467 = vpack.c.bf16 %v174, %v173
  %v468 = vpack.c.bf16 %v176, %v175
  %v469 = vpack.c.bf16 %v178, %v177
  %v470 = vpack.c.bf16 %v180, %v179
  %v471 = vpack.c.bf16 %v182, %v181
  %v472 = vpack.c.bf16 %v184, %v183
  %v473 = vpack.c.bf16 %v186, %v185
  %v474 = vpack.c.bf16 %v188, %v187
  %v475 = vpack.c.bf16 %v190, %v189
  %v476 = vpack.c.bf16 %v192, %v191
  %v477 = vpack.c.bf16 %v194, %v193
  %v478 = vpack.c.bf16 %v196, %v195
  %v479 = vpack.c.bf16 %v198, %v197
  %v480 = vpack.c.bf16 %v200, %v199
  %v481 = vpack.c.bf16 %v202, %v201
  %v482 = vpack.c.bf16 %v204, %v203
  %v483 = vpack.c.bf16 %v206, %v205
  %v484 = vpack.c.bf16 %v208, %v207
  %v485 = vpack.c.bf16 %v210, %v209
  %v486 = vpack.c.bf16 %v212, %v211
  %v487 = vpack.c.bf16 %v214, %v213
  %v488 = vpack.c.bf16 %v216, %v215
  %v489 = vpack.c.bf16 %v218, %v217
  %v490 = vpack.c.bf16 %v220, %v219
  %v491 = vpack.c.bf16 %v222, %v221
  %v492 = vpack.c.bf16 %v224, %v223
  %v493 = vpack.c.bf16 %v226, %v225
  %v494 = vpack.c.bf16 %v228, %v227
  %v495 = vpack.c.bf16 %v230, %v229
  %v496 = vpack.c.bf16 %v232, %v231
  %v497 = vpack.c.bf16 %v234, %v233
  %v498 = vpack.c.bf16 %v236, %v235
  %v499 = vpack.c.bf16 %v238, %v237
  %v500 = vpack.c.bf16 %v240, %v239
  %v501 = vpack.c.bf16 %v242, %v241
  %v502 = vpack.c.bf16 %v244, %v243
  %v503 = vpack.c.bf16 %v246, %v245
  %v504 = vpack.c.bf16 %v248, %v247
  %v505 = vpack.c.bf16 %v250, %v249
  %v506 = vpack.c.bf16 %v252, %v251
  %v507 = vpack.c.bf16 %v254, %v253
  %v508 = vpack.c.bf16 %v256, %v255
  %v509 = vpack.c.bf16 %v258, %v257
  %v510 = vpack.c.bf16 %v260, %v259
  %v511 = vpack.c.bf16 %v262, %v261
  %v512 = vpack.c.bf16 %v264, %v263
  %v513 = vpack.c.bf16 %v266, %v265
  %v514 = vpack.c.bf16 %v268, %v267
  %v515 = vpack.c.bf16 %v270, %v269
  %v516 = vpack.c.bf16 %v272, %v271
  %v517 = vpack.c.bf16 %v274, %v273
  %v518 = vpack.c.bf16 %v276, %v275
  %v519 = vpack.c.bf16 %v278, %v277
  %v520 = vpack.c.bf16 %v280, %v279
  %v521 = vpack.c.bf16 %v282, %v281
  %v522 = vpack.c.bf16 %v284, %v283
  %v523 = vpack.c.bf16 %v286, %v285
  %v524 = vpack.c.bf16 %v288, %v287
  %v525 = vpack.c.bf16 %v290, %v289
  %v526 = vpack.c.bf16 %v292, %v291
  %v527 = vpack.c.bf16 %v294, %v293
  %v529 = vlaneseq
  %v530 = vshrl.u32 %v529, 7
  %v531 = vsub.s32 0, %v530
  %v532 = vrot.slane %v295, %v531
  %534 = vmatprep.subr.bf16.mxu0 0
  %535 = vmatpush1.bf16.msra.mxu0 %v400
  %536 = vmatprep.subr.bf16.mxu0 0
  %537 = vmatpush1.bf16.msra.mxu0 %v401
  %538 = vmatprep.subr.bf16.mxu0 0
  %539 = vmatpush1.bf16.msra.mxu0 %v402
  %540 = vmatprep.subr.bf16.mxu0 0
  %541 = vmatpush1.bf16.msra.mxu0 %v403
  %542 = vmatprep.subr.bf16.mxu0 0
  %543 = vmatpush1.bf16.msra.mxu0 %v404
  %544 = vmatprep.subr.bf16.mxu0 0
  %545 = vmatpush1.bf16.msra.mxu0 %v405
  %546 = vmatprep.subr.bf16.mxu0 0
  %547 = vmatpush1.bf16.msra.mxu0 %v406
  %548 = vmatprep.subr.bf16.mxu0 0
  %549 = vmatpush1.bf16.msra.mxu0 %v407
  %550 = vmatprep.subr.bf16.mxu0 0
  %551 = vmatpush1.bf16.msra.mxu0 %v408
  %552 = vmatprep.subr.bf16.mxu0 0
  %553 = vmatpush1.bf16.msra.mxu0 %v409
  %554 = vmatprep.subr.bf16.mxu0 0
  %555 = vmatpush1.bf16.msra.mxu0 %v410
  %556 = vmatprep.subr.bf16.mxu0 0
  %557 = vmatpush1.bf16.msra.mxu0 %v411
  %558 = vmatprep.subr.bf16.mxu0 0
  %559 = vmatpush1.bf16.msra.mxu0 %v412
  %560 = vmatprep.subr.bf16.mxu0 0
  %561 = vmatpush1.bf16.msra.mxu0 %v413
  %562 = vmatprep.subr.bf16.mxu0 0
  %563 = vmatpush1.bf16.msra.mxu0 %v414
  %564 = vmatprep.subr.bf16.mxu0 0
  %565 = vmatpush1.bf16.msra.mxu0 %v415
  %566 = vmatprep.mubr.bf16.mxu0 %v385
  %567 = vmatmul.mubr.bf16.gmra.mrb[0].mxu0 %v384
  %v568 = vpop.f32.mrb[0].mxu0
  %v569 = vadd.f32 %v532, %v568
  %v570 = vpop.f32.mrb[0].mxu0
  %v571 = vpop.f32.mrb[0].mxu0
  %v572 = vpop.f32.mrb[0].mxu0
  %573 = vdwg.mxu0
  %574 = vmatprep.subr.bf16.mxu0 0
  %575 = vmatpush1.bf16.msra.mxu0 %v416
  %576 = vmatprep.subr.bf16.mxu0 0
  %577 = vmatpush1.bf16.msra.mxu0 %v417
  %578 = vmatprep.subr.bf16.mxu0 0
  %579 = vmatpush1.bf16.msra.mxu0 %v418
  %580 = vmatprep.subr.bf16.mxu0 0
  %581 = vmatpush1.bf16.msra.mxu0 %v419
  %582 = vmatprep.subr.bf16.mxu0 0
  %583 = vmatpush1.bf16.msra.mxu0 %v420
  %584 = vmatprep.subr.bf16.mxu0 0
  %585 = vmatpush1.bf16.msra.mxu0 %v421
  %586 = vmatprep.subr.bf16.mxu0 0
  %587 = vmatpush1.bf16.msra.mxu0 %v422
  %588 = vmatprep.subr.bf16.mxu0 0
  %589 = vmatpush1.bf16.msra.mxu0 %v423
  %590 = vmatprep.subr.bf16.mxu0 0
  %591 = vmatpush1.bf16.msra.mxu0 %v424
  %592 = vmatprep.subr.bf16.mxu0 0
  %593 = vmatpush1.bf16.msra.mxu0 %v425
  %594 = vmatprep.subr.bf16.mxu0 0
  %595 = vmatpush1.bf16.msra.mxu0 %v426
  %596 = vmatprep.subr.bf16.mxu0 0
  %597 = vmatpush1.bf16.msra.mxu0 %v427
  %598 = vmatprep.subr.bf16.mxu0 0
  %599 = vmatpush1.bf16.msra.mxu0 %v428
  %600 = vmatprep.subr.bf16.mxu0 0
  %601 = vmatpush1.bf16.msra.mxu0 %v429
  %602 = vmatprep.subr.bf16.mxu0 0
  %603 = vmatpush1.bf16.msra.mxu0 %v430
  %604 = vmatprep.subr.bf16.mxu0 0
  %605 = vmatpush1.bf16.msra.mxu0 %v431
  %606 = vmatprep.mubr.bf16.mxu0 %v387
  %607 = vmatmul.mubr.bf16.gmra.mrb[0].mxu0 %v386
  %v608 = vpop.f32.mrb[0].mxu0
  %v609 = vadd.f32 %v569, %v608
  %v610 = vpop.f32.mrb[0].mxu0
  %v611 = vpop.f32.mrb[0].mxu0
  %v612 = vpop.f32.mrb[0].mxu0
  %613 = vdwg.mxu0
  %614 = vmatprep.subr.bf16.mxu0 0
  %615 = vmatpush1.bf16.msra.mxu0 %v432
  %616 = vmatprep.subr.bf16.mxu0 0
  %617 = vmatpush1.bf16.msra.mxu0 %v433
  %618 = vmatprep.subr.bf16.mxu0 0
  %619 = vmatpush1.bf16.msra.mxu0 %v434
  %620 = vmatprep.subr.bf16.mxu0 0
  %621 = vmatpush1.bf16.msra.mxu0 %v435
  %622 = vmatprep.subr.bf16.mxu0 0
  %623 = vmatpush1.bf16.msra.mxu0 %v436
  %624 = vmatprep.subr.bf16.mxu0 0
  %625 = vmatpush1.bf16.msra.mxu0 %v437
  %626 = vmatprep.subr.bf16.mxu0 0
  %627 = vmatpush1.bf16.msra.mxu0 %v438
  %628 = vmatprep.subr.bf16.mxu0 0
  %629 = vmatpush1.bf16.msra.mxu0 %v439
  %630 = vmatprep.subr.bf16.mxu0 0
  %631 = vmatpush1.bf16.msra.mxu0 %v440
  %632 = vmatprep.subr.bf16.mxu0 0
  %633 = vmatpush1.bf16.msra.mxu0 %v441
  %634 = vmatprep.subr.bf16.mxu0 0
  %635 = vmatpush1.bf16.msra.mxu0 %v442
  %636 = vmatprep.subr.bf16.mxu0 0
  %637 = vmatpush1.bf16.msra.mxu0 %v443
  %638 = vmatprep.subr.bf16.mxu0 0
  %639 = vmatpush1.bf16.msra.mxu0 %v444
  %640 = vmatprep.subr.bf16.mxu0 0
  %641 = vmatpush1.bf16.msra.mxu0 %v445
  %642 = vmatprep.subr.bf16.mxu0 0
  %643 = vmatpush1.bf16.msra.mxu0 %v446
  %644 = vmatprep.subr.bf16.mxu0 0
  %645 = vmatpush1.bf16.msra.mxu0 %v447
  %646 = vmatprep.mubr.bf16.mxu0 %v389
  %647 = vmatmul.mubr.bf16.gmra.mrb[0].mxu0 %v388
  %v648 = vpop.f32.mrb[0].mxu0
  %v649 = vadd.f32 %v609, %v648
  %v650 = vpop.f32.mrb[0].mxu0
  %v651 = vpop.f32.mrb[0].mxu0
  %v652 = vpop.f32.mrb[0].mxu0
  %653 = vdwg.mxu0
  %654 = vmatprep.subr.bf16.mxu0 0
  %655 = vmatpush1.bf16.msra.mxu0 %v448
  %656 = vmatprep.subr.bf16.mxu0 0
  %657 = vmatpush1.bf16.msra.mxu0 %v449
  %658 = vmatprep.subr.bf16.mxu0 0
  %659 = vmatpush1.bf16.msra.mxu0 %v450
  %660 = vmatprep.subr.bf16.mxu0 0
  %661 = vmatpush1.bf16.msra.mxu0 %v451
  %662 = vmatprep.subr.bf16.mxu0 0
  %663 = vmatpush1.bf16.msra.mxu0 %v452
  %664 = vmatprep.subr.bf16.mxu0 0
  %665 = vmatpush1.bf16.msra.mxu0 %v453
  %666 = vmatprep.subr.bf16.mxu0 0
  %667 = vmatpush1.bf16.msra.mxu0 %v454
  %668 = vmatprep.subr.bf16.mxu0 0
  %669 = vmatpush1.bf16.msra.mxu0 %v455
  %670 = vmatprep.subr.bf16.mxu0 0
  %671 = vmatpush1.bf16.msra.mxu0 %v456
  %672 = vmatprep.subr.bf16.mxu0 0
  %673 = vmatpush1.bf16.msra.mxu0 %v457
  %674 = vmatprep.subr.bf16.mxu0 0
  %675 = vmatpush1.bf16.msra.mxu0 %v458
  %676 = vmatprep.subr.bf16.mxu0 0
  %677 = vmatpush1.bf16.msra.mxu0 %v459
  %678 = vmatprep.subr.bf16.mxu0 0
  %679 = vmatpush1.bf16.msra.mxu0 %v460
  %680 = vmatprep.subr.bf16.mxu0 0
  %681 = vmatpush1.bf16.msra.mxu0 %v461
  %682 = vmatprep.subr.bf16.mxu0 0
  %683 = vmatpush1.bf16.msra.mxu0 %v462
  %684 = vmatprep.subr.bf16.mxu0 0
  %685 = vmatpush1.bf16.msra.mxu0 %v463
  %686 = vmatprep.mubr.bf16.mxu0 %v391
  %687 = vmatmul.mubr.bf16.gmra.mrb[0].mxu0 %v390
  %v688 = vpop.f32.mrb[0].mxu0
  %v689 = vadd.f32 %v649, %v688
  %v690 = vpop.f32.mrb[0].mxu0
  %v691 = vpop.f32.mrb[0].mxu0
  %v692 = vpop.f32.mrb[0].mxu0
  %693 = vdwg.mxu0
  %694 = vmatprep.subr.bf16.mxu0 0
  %695 = vmatpush1.bf16.msra.mxu0 %v464
  %696 = vmatprep.subr.bf16.mxu0 0
  %697 = vmatpush1.bf16.msra.mxu0 %v465
  %698 = vmatprep.subr.bf16.mxu0 0
  %699 = vmatpush1.bf16.msra.mxu0 %v466
  %700 = vmatprep.subr.bf16.mxu0 0
  %701 = vmatpush1.bf16.msra.mxu0 %v467
  %702 = vmatprep.subr.bf16.mxu0 0
  %703 = vmatpush1.bf16.msra.mxu0 %v468
  %704 = vmatprep.subr.bf16.mxu0 0
  %705 = vmatpush1.bf16.msra.mxu0 %v469
  %706 = vmatprep.subr.bf16.mxu0 0
  %707 = vmatpush1.bf16.msra.mxu0 %v470
  %708 = vmatprep.subr.bf16.mxu0 0
  %709 = vmatpush1.bf16.msra.mxu0 %v471
  %710 = vmatprep.subr.bf16.mxu0 0
  %711 = vmatpush1.bf16.msra.mxu0 %v472
  %712 = vmatprep.subr.bf16.mxu0 0
  %713 = vmatpush1.bf16.msra.mxu0 %v473
  %714 = vmatprep.subr.bf16.mxu0 0
  %715 = vmatpush1.bf16.msra.mxu0 %v474
  %716 = vmatprep.subr.bf16.mxu0 0
  %717 = vmatpush1.bf16.msra.mxu0 %v475
  %718 = vmatprep.subr.bf16.mxu0 0
  %719 = vmatpush1.bf16.msra.mxu0 %v476
  %720 = vmatprep.subr.bf16.mxu0 0
  %721 = vmatpush1.bf16.msra.mxu0 %v477
  %722 = vmatprep.subr.bf16.mxu0 0
  %723 = vmatpush1.bf16.msra.mxu0 %v478
  %724 = vmatprep.subr.bf16.mxu0 0
  %725 = vmatpush1.bf16.msra.mxu0 %v479
  %726 = vmatprep.mubr.bf16.mxu0 %v393
  %727 = vmatmul.mubr.bf16.gmra.mrb[0].mxu0 %v392
  %v728 = vpop.f32.mrb[0].mxu0
  %v729 = vadd.f32 %v689, %v728
  %v730 = vpop.f32.mrb[0].mxu0
  %v731 = vpop.f32.mrb[0].mxu0
  %v732 = vpop.f32.mrb[0].mxu0
  %733 = vdwg.mxu0
  %734 = vmatprep.subr.bf16.mxu0 0
  %735 = vmatpush1.bf16.msra.mxu0 %v480
  %736 = vmatprep.subr.bf16.mxu0 0
  %737 = vmatpush1.bf16.msra.mxu0 %v481
  %738 = vmatprep.subr.bf16.mxu0 0
  %739 = vmatpush1.bf16.msra.mxu0 %v482
  %740 = vmatprep.subr.bf16.mxu0 0
  %741 = vmatpush1.bf16.msra.mxu0 %v483
  %742 = vmatprep.subr.bf16.mxu0 0
  %743 = vmatpush1.bf16.msra.mxu0 %v484
  %744 = vmatprep.subr.bf16.mxu0 0
  %745 = vmatpush1.bf16.msra.mxu0 %v485
  %746 = vmatprep.subr.bf16.mxu0 0
  %747 = vmatpush1.bf16.msra.mxu0 %v486
  %748 = vmatprep.subr.bf16.mxu0 0
  %749 = vmatpush1.bf16.msra.mxu0 %v487
  %750 = vmatprep.subr.bf16.mxu0 0
  %751 = vmatpush1.bf16.msra.mxu0 %v488
  %752 = vmatprep.subr.bf16.mxu0 0
  %753 = vmatpush1.bf16.msra.mxu0 %v489
  %754 = vmatprep.subr.bf16.mxu0 0
  %755 = vmatpush1.bf16.msra.mxu0 %v490
  %756 = vmatprep.subr.bf16.mxu0 0
  %757 = vmatpush1.bf16.msra.mxu0 %v491
  %758 = vmatprep.subr.bf16.mxu0 0
  %759 = vmatpush1.bf16.msra.mxu0 %v492
  %760 = vmatprep.subr.bf16.mxu0 0
  %761 = vmatpush1.bf16.msra.mxu0 %v493
  %762 = vmatprep.subr.bf16.mxu0 0
  %763 = vmatpush1.bf16.msra.mxu0 %v494
  %764 = vmatprep.subr.bf16.mxu0 0
  %765 = vmatpush1.bf16.msra.mxu0 %v495
  %766 = vmatprep.mubr.bf16.mxu0 %v395
  %767 = vmatmul.mubr.bf16.gmra.mrb[0].mxu0 %v394
  %v768 = vpop.f32.mrb[0].mxu0
  %v769 = vadd.f32 %v729, %v768
  %v770 = vpop.f32.mrb[0].mxu0
  %v771 = vpop.f32.mrb[0].mxu0
  %v772 = vpop.f32.mrb[0].mxu0
  %773 = vdwg.mxu0
  %774 = vmatprep.subr.bf16.mxu0 0
  %775 = vmatpush1.bf16.msra.mxu0 %v496
  %776 = vmatprep.subr.bf16.mxu0 0
  %777 = vmatpush1.bf16.msra.mxu0 %v497
  %778 = vmatprep.subr.bf16.mxu0 0
  %779 = vmatpush1.bf16.msra.mxu0 %v498
  %780 = vmatprep.subr.bf16.mxu0 0
  %781 = vmatpush1.bf16.msra.mxu0 %v499
  %782 = vmatprep.subr.bf16.mxu0 0
  %783 = vmatpush1.bf16.msra.mxu0 %v500
  %784 = vmatprep.subr.bf16.mxu0 0
  %785 = vmatpush1.bf16.msra.mxu0 %v501
  %786 = vmatprep.subr.bf16.mxu0 0
  %787 = vmatpush1.bf16.msra.mxu0 %v502
  %788 = vmatprep.subr.bf16.mxu0 0
  %789 = vmatpush1.bf16.msra.mxu0 %v503
  %790 = vmatprep.subr.bf16.mxu0 0
  %791 = vmatpush1.bf16.msra.mxu0 %v504
  %792 = vmatprep.subr.bf16.mxu0 0
  %793 = vmatpush1.bf16.msra.mxu0 %v505
  %794 = vmatprep.subr.bf16.mxu0 0
  %795 = vmatpush1.bf16.msra.mxu0 %v506
  %796 = vmatprep.subr.bf16.mxu0 0
  %797 = vmatpush1.bf16.msra.mxu0 %v507
  %798 = vmatprep.subr.bf16.mxu0 0
  %799 = vmatpush1.bf16.msra.mxu0 %v508
  %800 = vmatprep.subr.bf16.mxu0 0
  %801 = vmatpush1.bf16.msra.mxu0 %v509
  %802 = vmatprep.subr.bf16.mxu0 0
  %803 = vmatpush1.bf16.msra.mxu0 %v510
  %804 = vmatprep.subr.bf16.mxu0 0
  %805 = vmatpush1.bf16.msra.mxu0 %v511
  %806 = vmatprep.mubr.bf16.mxu0 %v397
  %807 = vmatmul.mubr.bf16.gmra.mrb[0].mxu0 %v396
  %v808 = vpop.f32.mrb[0].mxu0
  %v809 = vadd.f32 %v769, %v808
  %v810 = vpop.f32.mrb[0].mxu0
  %v811 = vpop.f32.mrb[0].mxu0
  %v812 = vpop.f32.mrb[0].mxu0
  %813 = vdwg.mxu0
  %814 = vmatprep.subr.bf16.mxu0 0
  %815 = vmatpush1.bf16.msra.mxu0 %v512
  %816 = vmatprep.subr.bf16.mxu0 0
  %817 = vmatpush1.bf16.msra.mxu0 %v513
  %818 = vmatprep.subr.bf16.mxu0 0
  %819 = vmatpush1.bf16.msra.mxu0 %v514
  %820 = vmatprep.subr.bf16.mxu0 0
  %821 = vmatpush1.bf16.msra.mxu0 %v515
  %822 = vmatprep.subr.bf16.mxu0 0
  %823 = vmatpush1.bf16.msra.mxu0 %v516
  %824 = vmatprep.subr.bf16.mxu0 0
  %825 = vmatpush1.bf16.msra.mxu0 %v517
  %826 = vmatprep.subr.bf16.mxu0 0
  %827 = vmatpush1.bf16.msra.mxu0 %v518
  %828 = vmatprep.subr.bf16.mxu0 0
  %829 = vmatpush1.bf16.msra.mxu0 %v519
  %830 = vmatprep.subr.bf16.mxu0 0
  %831 = vmatpush1.bf16.msra.mxu0 %v520
  %832 = vmatprep.subr.bf16.mxu0 0
  %833 = vmatpush1.bf16.msra.mxu0 %v521
  %834 = vmatprep.subr.bf16.mxu0 0
  %835 = vmatpush1.bf16.msra.mxu0 %v522
  %836 = vmatprep.subr.bf16.mxu0 0
  %837 = vmatpush1.bf16.msra.mxu0 %v523
  %838 = vmatprep.subr.bf16.mxu0 0
  %839 = vmatpush1.bf16.msra.mxu0 %v524
  %840 = vmatprep.subr.bf16.mxu0 0
  %841 = vmatpush1.bf16.msra.mxu0 %v525
  %842 = vmatprep.subr.bf16.mxu0 0
  %843 = vmatpush1.bf16.msra.mxu0 %v526
  %844 = vmatprep.subr.bf16.mxu0 0
  %845 = vmatpush1.bf16.msra.mxu0 %v527
  %846 = vmatprep.mubr.bf16.mxu0 %v399
  %847 = vmatmul.mubr.bf16.gmra.mrb[0].mxu0 %v398
  %v848 = vpop.f32.mrb[0].mxu0
  %v849 = vadd.f32 %v809, %v848
  %v850 = vpop.f32.mrb[0].mxu0
  %v851 = vpop.f32.mrb[0].mxu0
  %v852 = vpop.f32.mrb[0].mxu0
  %853 = vdwg.mxu0
  %vm854 = vcmp.gt.f32.partialorder %v849, 0.0
  %v855 = vmin.f32 %v849, 0.0
  %v856 = vmul.f32 %v855, 1.442695
  %v857 = vpow.pop %v856
  %v858 = vsub.f32 %v857, 1.0
  %v859 = vsel %vm854, %v849, %v858
  %v860 = vld [vmem:[%s3] sm:$0xff]
  %v861 = vld [vmem:[%s3 + $0x8] sm:$0xff]
  %v862 = vld [vmem:[%s3 + $0x10] sm:$0xff]
  %v863 = vld [vmem:[%s3 + $0x18] sm:$0xff]
  %v864 = vld [vmem:[%s4] sm:$0x1]
  %v866 = vlaneseq
  %v867 = vshrl.u32 %v866, 7
  %v868 = vsub.s32 0, %v867
  %v869 = vrot.slane %v864, %v868
  %vm871 = vcmask 261120
  %v873 = vsel %vm871, %v859, 0
  %875 = vmatprep.subr.mxu0 0.0
  %876 = vmatpush1.msra.mxu0 %v860
  %877 = vmatprep.subr.mxu0 0.0
  %878 = vmatpush1.msra.mxu0 %v861
  %879 = vmatprep.subr.mxu0 0.0
  %880 = vmatpush1.msra.mxu0 %v862
  %881 = vmatprep.subr.mxu0 0.0
  %882 = vmatpush1.msra.mxu0 %v863
  %883 = vmatprep.subr.mxu0 0.0
  %884 = vmatpush1.msra.mxu0 0.0
  %885 = vmatprep.subr.mxu0 0.0
  %886 = vmatpush1.msra.mxu0 0.0
  %887 = vmatprep.subr.mxu0 0.0
  %888 = vmatpush1.msra.mxu0 0.0
  %889 = vmatprep.subr.mxu0 0.0
  %890 = vmatpush1.msra.mxu0 0.0
  %891 = vmatprep.subr.mxu0 0.0
  %892 = vmatpush1.msra.mxu0 0.0
  %893 = vmatprep.subr.mxu0 0.0
  %894 = vmatpush1.msra.mxu0 0.0
  %895 = vmatprep.subr.mxu0 0.0
  %896 = vmatpush1.msra.mxu0 0.0
  %897 = vmatprep.subr.mxu0 0.0
  %898 = vmatpush1.msra.mxu0 0.0
  %899 = vmatprep.subr.mxu0 0.0
  %900 = vmatpush1.msra.mxu0 0.0
  %901 = vmatprep.subr.mxu0 0.0
  %902 = vmatpush1.msra.mxu0 0.0
  %903 = vmatprep.subr.mxu0 0.0
  %904 = vmatpush1.msra.mxu0 0.0
  %905 = vmatprep.subr.mxu0 0.0
  %906 = vmatpush1.msra.mxu0 0.0
  %907 = vmatprep.subr.mxu0 0.0
  %908 = vmatpush1.msra.mxu0 0.0
  %909 = vmatprep.subr.mxu0 0.0
  %910 = vmatpush1.msra.mxu0 0.0
  %911 = vmatprep.subr.mxu0 0.0
  %912 = vmatpush1.msra.mxu0 0.0
  %913 = vmatprep.subr.mxu0 0.0
  %914 = vmatpush1.msra.mxu0 0.0
  %915 = vmatprep.subr.mxu0 0.0
  %916 = vmatpush1.msra.mxu0 0.0
  %917 = vmatprep.subr.mxu0 0.0
  %918 = vmatpush1.msra.mxu0 0.0
  %919 = vmatprep.subr.mxu0 0.0
  %920 = vmatpush1.msra.mxu0 0.0
  %921 = vmatprep.subr.mxu0 0.0
  %922 = vmatpush1.msra.mxu0 0.0
  %923 = vmatprep.subr.mxu0 0.0
  %924 = vmatpush1.msra.mxu0 0.0
  %925 = vmatprep.subr.mxu0 0.0
  %926 = vmatpush1.msra.mxu0 0.0
  %927 = vmatprep.subr.mxu0 0.0
  %928 = vmatpush1.msra.mxu0 0.0
  %929 = vmatprep.subr.mxu0 0.0
  %930 = vmatpush1.msra.mxu0 0.0
  %931 = vmatprep.subr.mxu0 0.0
  %932 = vmatpush1.msra.mxu0 0.0
  %933 = vmatprep.subr.mxu0 0.0
  %934 = vmatpush1.msra.mxu0 0.0
  %935 = vmatprep.subr.mxu0 0.0
  %936 = vmatpush1.msra.mxu0 0.0
  %937 = vmatprep.subr.mxu0 0.0
  %938 = vmatpush1.msra.mxu0 0.0
  %939 = vmatprep.mubr.f32.mxu0 0.0
  %940 = vmatmul.mubr.f32.gmra.mrb[0].mxu0 %v873
  %v941 = vpop.f32.mrb[0].mxu0
  %v942 = vadd.f32 %v869, %v941
  %v943 = vpop.f32.mrb[0].mxu0
  %944 = vdwg.mxu0
  %vm945 = vcmp.gt.f32.partialorder %v942, 0.0
  %v946 = vmin.f32 %v942, 0.0
  %v947 = vmul.f32 %v946, 1.442695
  %v948 = vpow.pop %v947
  %v949 = vsub.f32 %v948, 1.0
  %v950 = vsel %vm945, %v942, %v949
  %v951 = vld [vmem:[%s5] sm:$0xff]
  %v952 = vld [vmem:[%s5 + $0x8] sm:$0xff]
  %v953 = vld [vmem:[%s5 + $0x10] sm:$0xff]
  %v954 = vld [vmem:[%s5 + $0x18] sm:$0xff]
  %v955 = vld [vmem:[%s6] sm:$0x1]
  %v957 = vlaneseq
  %v958 = vshrl.u32 %v957, 7
  %v959 = vsub.s32 0, %v958
  %v960 = vrot.slane %v955, %v959
  %v963 = vsel %vm871, %v950, 0
  %965 = vmatprep.subr.mxu0 0.0
  %966 = vmatpush1.msra.mxu0 %v951
  %967 = vmatprep.subr.mxu0 0.0
  %968 = vmatpush1.msra.mxu0 %v952
  %969 = vmatprep.subr.mxu0 0.0
  %970 = vmatpush1.msra.mxu0 %v953
  %971 = vmatprep.subr.mxu0 0.0
  %972 = vmatpush1.msra.mxu0 %v954
  %973 = vmatprep.subr.mxu0 0.0
  %974 = vmatpush1.msra.mxu0 0.0
  %975 = vmatprep.subr.mxu0 0.0
  %976 = vmatpush1.msra.mxu0 0.0
  %977 = vmatprep.subr.mxu0 0.0
  %978 = vmatpush1.msra.mxu0 0.0
  %979 = vmatprep.subr.mxu0 0.0
  %980 = vmatpush1.msra.mxu0 0.0
  %981 = vmatprep.subr.mxu0 0.0
  %982 = vmatpush1.msra.mxu0 0.0
  %983 = vmatprep.subr.mxu0 0.0
  %984 = vmatpush1.msra.mxu0 0.0
  %985 = vmatprep.subr.mxu0 0.0
  %986 = vmatpush1.msra.mxu0 0.0
  %987 = vmatprep.subr.mxu0 0.0
  %988 = vmatpush1.msra.mxu0 0.0
  %989 = vmatprep.subr.mxu0 0.0
  %990 = vmatpush1.msra.mxu0 0.0
  %991 = vmatprep.subr.mxu0 0.0
  %992 = vmatpush1.msra.mxu0 0.0
  %993 = vmatprep.subr.mxu0 0.0
  %994 = vmatpush1.msra.mxu0 0.0
  %995 = vmatprep.subr.mxu0 0.0
  %996 = vmatpush1.msra.mxu0 0.0
  %997 = vmatprep.subr.mxu0 0.0
  %998 = vmatpush1.msra.mxu0 0.0
  %999 = vmatprep.subr.mxu0 0.0
  %1000 = vmatpush1.msra.mxu0 0.0
  %1001 = vmatprep.subr.mxu0 0.0
  %1002 = vmatpush1.msra.mxu0 0.0
  %1003 = vmatprep.subr.mxu0 0.0
  %1004 = vmatpush1.msra.mxu0 0.0
  %1005 = vmatprep.subr.mxu0 0.0
  %1006 = vmatpush1.msra.mxu0 0.0
  %1007 = vmatprep.subr.mxu0 0.0
  %1008 = vmatpush1.msra.mxu0 0.0
  %1009 = vmatprep.subr.mxu0 0.0
  %1010 = vmatpush1.msra.mxu0 0.0
  %1011 = vmatprep.subr.mxu0 0.0
  %1012 = vmatpush1.msra.mxu0 0.0
  %1013 = vmatprep.subr.mxu0 0.0
  %1014 = vmatpush1.msra.mxu0 0.0
  %1015 = vmatprep.subr.mxu0 0.0
  %1016 = vmatpush1.msra.mxu0 0.0
  %1017 = vmatprep.subr.mxu0 0.0
  %1018 = vmatpush1.msra.mxu0 0.0
  %1019 = vmatprep.subr.mxu0 0.0
  %1020 = vmatpush1.msra.mxu0 0.0
  %1021 = vmatprep.subr.mxu0 0.0
  %1022 = vmatpush1.msra.mxu0 0.0
  %1023 = vmatprep.subr.mxu0 0.0
  %1024 = vmatpush1.msra.mxu0 0.0
  %1025 = vmatprep.subr.mxu0 0.0
  %1026 = vmatpush1.msra.mxu0 0.0
  %1027 = vmatprep.subr.mxu0 0.0
  %1028 = vmatpush1.msra.mxu0 0.0
  %1029 = vmatprep.mubr.f32.mxu0 0.0
  %1030 = vmatmul.mubr.f32.gmra.mrb[0].mxu0 %v963
  %v1031 = vpop.f32.mrb[0].mxu0
  %v1032 = vadd.f32 %v960, %v1031
  %v1033 = vpop.f32.mrb[0].mxu0
  %1034 = vdwg.mxu0
  %vm1035 = vcmp.gt.f32.partialorder %v1032, 0.0
  %v1036 = vmin.f32 %v1032, 0.0
  %v1037 = vmul.f32 %v1036, 1.442695
  %v1038 = vpow.pop %v1037
  %v1039 = vsub.f32 %v1038, 1.0
  %v1040 = vsel %vm1035, %v1032, %v1039
  %v1041 = vld [vmem:[%s7] sm:$0xff]
  %v1042 = vld [vmem:[%s7 + $0x8] sm:$0xff]
  %v1043 = vld [vmem:[%s7 + $0x10] sm:$0xff]
  %v1044 = vld [vmem:[%s7 + $0x18] sm:$0xff]
  %v1045 = vld [vmem:[#allocation2] sm:$0x1]
  %v1047 = vlaneseq
  %v1048 = vshrl.u32 %v1047, 7
  %v1049 = vsub.s32 0, %v1048
  %v1050 = vrot.slane %v1045, %v1049
  %v1053 = vsel %vm871, %v1040, 0
  %1055 = vmatprep.subr.mxu0 0.0
  %1056 = vmatpush1.msra.mxu0 %v1041
  %1057 = vmatprep.subr.mxu0 0.0
  %1058 = vmatpush1.msra.mxu0 %v1042
  %1059 = vmatprep.subr.mxu0 0.0
  %1060 = vmatpush1.msra.mxu0 %v1043
  %1061 = vmatprep.subr.mxu0 0.0
  %1062 = vmatpush1.msra.mxu0 %v1044
  %1063 = vmatprep.subr.mxu0 0.0
  %1064 = vmatpush1.msra.mxu0 0.0
  %1065 = vmatprep.subr.mxu0 0.0
  %1066 = vmatpush1.msra.mxu0 0.0
  %1067 = vmatprep.subr.mxu0 0.0
  %1068 = vmatpush1.msra.mxu0 0.0
  %1069 = vmatprep.subr.mxu0 0.0
  %1070 = vmatpush1.msra.mxu0 0.0
  %1071 = vmatprep.subr.mxu0 0.0
  %1072 = vmatpush1.msra.mxu0 0.0
  %1073 = vmatprep.subr.mxu0 0.0
  %1074 = vmatpush1.msra.mxu0 0.0
  %1075 = vmatprep.subr.mxu0 0.0
  %1076 = vmatpush1.msra.mxu0 0.0
  %1077 = vmatprep.subr.mxu0 0.0
  %1078 = vmatpush1.msra.mxu0 0.0
  %1079 = vmatprep.subr.mxu0 0.0
  %1080 = vmatpush1.msra.mxu0 0.0
  %1081 = vmatprep.subr.mxu0 0.0
  %1082 = vmatpush1.msra.mxu0 0.0
  %1083 = vmatprep.subr.mxu0 0.0
  %1084 = vmatpush1.msra.mxu0 0.0
  %1085 = vmatprep.subr.mxu0 0.0
  %1086 = vmatpush1.msra.mxu0 0.0
  %1087 = vmatprep.subr.mxu0 0.0
  %1088 = vmatpush1.msra.mxu0 0.0
  %1089 = vmatprep.subr.mxu0 0.0
  %1090 = vmatpush1.msra.mxu0 0.0
  %1091 = vmatprep.subr.mxu0 0.0
  %1092 = vmatpush1.msra.mxu0 0.0
  %1093 = vmatprep.subr.mxu0 0.0
  %1094 = vmatpush1.msra.mxu0 0.0
  %1095 = vmatprep.subr.mxu0 0.0
  %1096 = vmatpush1.msra.mxu0 0.0
  %1097 = vmatprep.subr.mxu0 0.0
  %1098 = vmatpush1.msra.mxu0 0.0
  %1099 = vmatprep.subr.mxu0 0.0
  %1100 = vmatpush1.msra.mxu0 0.0
  %1101 = vmatprep.subr.mxu0 0.0
  %1102 = vmatpush1.msra.mxu0 0.0
  %1103 = vmatprep.subr.mxu0 0.0
  %1104 = vmatpush1.msra.mxu0 0.0
  %1105 = vmatprep.subr.mxu0 0.0
  %1106 = vmatpush1.msra.mxu0 0.0
  %1107 = vmatprep.subr.mxu0 0.0
  %1108 = vmatpush1.msra.mxu0 0.0
  %1109 = vmatprep.subr.mxu0 0.0
  %1110 = vmatpush1.msra.mxu0 0.0
  %1111 = vmatprep.subr.mxu0 0.0
  %1112 = vmatpush1.msra.mxu0 0.0
  %1113 = vmatprep.subr.mxu0 0.0
  %1114 = vmatpush1.msra.mxu0 0.0
  %1115 = vmatprep.subr.mxu0 0.0
  %1116 = vmatpush1.msra.mxu0 0.0
  %1117 = vmatprep.subr.mxu0 0.0
  %1118 = vmatpush1.msra.mxu0 0.0
  %1119 = vmatprep.mubr.f32.mxu0 0.0
  %1120 = vmatmul.mubr.f32.gmra.mrb[0].mxu0 %v1053
  %v1121 = vpop.f32.mrb[0].mxu0
  %v1122 = vadd.f32 %v1050, %v1121
  %v1123 = vpop.f32.mrb[0].mxu0
  %1124 = vdwg.mxu0
  %vm1125 = vcmask 1024
  %1126 = vst.msk [vmem:[%s9] sm:$0x3] %vm1125, %v1122
  // Predicated region
  $region38: #{gin_ac_forward.7} parent=0 // pred_check
    _
  $region39: #{gin_ac_forward.7} parent=0 // pred_check_branch
    %1128 = sbr.rel (0) target = $region41
  $region40: #{gin_ac_forward.7} parent=0 // pred_region
    _
  $region41: #{gin_ac_forward.7} parent=0 // pred_fallthru
    _
  // Predicated region
  $region42: #{gin_ac_forward.7} parent=0 // pred_check
    _
  $region43: #{gin_ac_forward.7} parent=0 // pred_check_branch
    %1130 = sbr.rel (0) target = $region45
  $region44: #{gin_ac_forward.7} parent=0 // pred_region
    _
  $region45: #{gin_ac_forward.7} parent=0 // pred_fallthru
    _

</llo_original>
